<compile_context>
chip_gen: v7x
topology: tpu7x:2x2x1
jax: 0.10.0
libtpu: 0.0.40
codegen_flags: <defaults>
</compile_context>

<pallas_src>
import functools

import jax
import jax.numpy as jnp
from jax.experimental import pallas as pl
from jax.experimental.pallas import tpu as pltpu


def _adaptive_filter_kernel(x_ref, w_ref, b_ref, o_ref, *,
                            K, group, cin, tile_h, out_w):
    """Fused Adaptive_filter step for one (batch, row-tile) grid point.

    x_ref : (cin, tile_h + K - 1, out_w + K - 1) f32 VMEM  reflection-padded rows
    w_ref : (K*K*cin*csig,)                      f32 SMEM  conv weight with the BN
            scale folded in, flattened as [((ki*K + kj)*cin + c)*csig + s]
    b_ref : (csig,)                              f32 SMEM  folded BN bias
    o_ref : (cin, tile_h, out_w)                 f32 VMEM  full-res adaptive output
    """
    kk = K * K
    csig = group * kk
    cpg = cin // group

    def tap(c, ki, kj):  # (tile_h, out_w) plane, width on the lane axis
        return x_ref[c, ki:ki + tile_h, kj:kj + out_w]

    # --- sigma logits: KxK conv + folded BN, unrolled scalar*plane MACs (VPU).
    logits = [None] * csig
    for ki in range(K):
        for kj in range(K):
            kidx = ki * K + kj
            for c in range(cin):
                t = tap(c, ki, kj)
                base = (kidx * cin + c) * csig
                for s in range(csig):
                    term = w_ref[base + s] * t
                    logits[s] = term if logits[s] is None else logits[s] + term
    logits = [logits[s] + b_ref[s] for s in range(csig)]

    # --- per-pixel softmax over the csig sigma channels.
    m = logits[0]
    for s in range(1, csig):
        m = jnp.maximum(m, logits[s])
    exps = [jnp.exp(logits[s] - m) for s in range(csig)]
    denom = exps[0]
    for s in range(1, csig):
        denom = denom + exps[s]
    inv = 1.0 / denom

    # --- adaptive filtering: out[ch] = sum_k softmax[g(ch)*KK + k] * patch_k[ch]
    for ch in range(cin):
        g = ch // cpg
        acc = None
        for ki in range(K):
            for kj in range(K):
                term = exps[g * kk + ki * K + kj] * tap(ch, ki, kj)
                acc = term if acc is None else acc + term
        o_ref[ch] = (acc * inv).astype(o_ref.dtype)


def _pick_tile_h(H, halo_rows, row_bytes, *, max_tile_h=None, vmem_budget=8 << 20):
    """Output-row tile height: divides H, multiple of 8 (or == H), and the
    estimated per-step VMEM footprint fits the budget; prefers the largest."""
    cands = [d for d in range(1, H + 1) if H % d == 0 and (d % 8 == 0 or d == H)]
    if max_tile_h is not None:
        capped = [d for d in cands if d <= max_tile_h]
        cands = capped or cands[:1]
    fitting = [d for d in cands if (d + halo_rows) * row_bytes <= vmem_budget]
    return max(fitting) if fitting else min(cands)


def adaptive_filter(x, conv_weight, bn_gamma, bn_beta, bn_mean, bn_var, *,
                    kernel_size, stride=1, group=2, eps=1e-5, max_tile_h=None):
    """JAX/Pallas forward of Adaptive_filter (NCHW in, NCHW out)."""
    B, Cin, H, W = x.shape
    K = int(kernel_size)
    assert K % 2 == 1, "odd kernel_size expected (reflection pad = K // 2)"
    assert Cin % group == 0
    KK = K * K
    Csig = group * KK
    assert conv_weight.shape == (Csig, Cin, K, K)
    pad = K // 2
    Wp = W + 2 * pad

    # Reflection padding (matches nn.ReflectionPad2d(K // 2)).
    xp = jnp.pad(x.astype(jnp.float32),
                 ((0, 0), (0, 0), (pad, pad), (pad, pad)), mode="reflect")

    # Fold (inference) BatchNorm into the conv weight / bias.
    inv_std = 1.0 / jnp.sqrt(bn_var.astype(jnp.float32) + eps)
    scale = bn_gamma.astype(jnp.float32) * inv_std                   # (Csig,)
    bias = bn_beta.astype(jnp.float32) - bn_mean.astype(jnp.float32) * scale
    w_scaled = conv_weight.astype(jnp.float32) * scale[:, None, None, None]
    # Flat layout consumed by the kernel: [((ki*K + kj)*Cin + c)*Csig + s]
    w_flat = jnp.transpose(w_scaled, (2, 3, 1, 0)).reshape(-1)

    # Row tiling of the full-resolution output.
    row_bytes = 4 * (2 * Cin * Wp + 2 * Cin * W + (2 * Csig + 4) * W)
    tile_h = _pick_tile_h(H, 2 * pad, row_bytes, max_tile_h=max_tile_h)
    T = H // tile_h
    tile_hin = tile_h + 2 * pad

    # Gather overlapping padded-row slabs per tile (only K-1 halo rows are
    # duplicated) so plain Blocked BlockSpecs can auto-pipeline the DMA.
    row_idx = (jnp.arange(T) * tile_h)[:, None] + jnp.arange(tile_hin)[None, :]
    x_tiles = jnp.take(xp, row_idx.reshape(-1), axis=2)          # (B,Cin,T*thin,Wp)
    x_tiles = x_tiles.reshape(B, Cin, T, tile_hin, Wp)
    x_tiles = jnp.moveaxis(x_tiles, 2, 1)                        # (B,T,Cin,thin,Wp)

    kernel = functools.partial(_adaptive_filter_kernel, K=K, group=group,
                               cin=Cin, tile_h=tile_h, out_w=W)

    out_full = pl.pallas_call(
        kernel,
        out_shape=jax.ShapeDtypeStruct((B, Cin, H, W), jnp.float32),
        grid_spec=pltpu.PrefetchScalarGridSpec(
            num_scalar_prefetch=0,
            grid=(B, T),
            in_specs=[
                pl.BlockSpec((None, None, Cin, tile_hin, Wp),
                             lambda b, t: (b, t, 0, 0, 0)),
                pl.BlockSpec(memory_space=pltpu.MemorySpace.SMEM),
                pl.BlockSpec(memory_space=pltpu.MemorySpace.SMEM),
            ],
            out_specs=pl.BlockSpec((None, Cin, tile_h, W),
                                   lambda b, t: (b, 0, t, 0)),
        ),
        compiler_params=pltpu.CompilerParams(
            dimension_semantics=("parallel", "parallel"),
            vmem_limit_bytes=32 * 1024 * 1024),
    )(x_tiles, w_flat, bias)

    # Stride subsampling exactly as the module (keep indices where i % stride == 0).
    return out_full[:, :, ::stride, ::stride]


def _reference(x, conv_weight, bn_gamma, bn_beta, bn_mean, bn_var, *,
               kernel_size, stride=1, group=2, eps=1e-5):
    """Pure-JAX f32 reference mirroring the PyTorch forward."""
    B, Cin, H, W = x.shape
    K = kernel_size
    KK = K * K
    Csig = group * KK
    pad = K // 2
    xp = jnp.pad(x.astype(jnp.float32),
                 ((0, 0), (0, 0), (pad, pad), (pad, pad)), mode="reflect")
    # F.unfold-equivalent patches: (B, Cin, KK, H, W), taps row-major.
    patches = jnp.stack([xp[:, :, ki:ki + H, kj:kj + W]
                         for ki in range(K) for kj in range(K)], axis=2)
    w = conv_weight.astype(jnp.float32).reshape(Csig, Cin, KK)
    sigma = jnp.einsum("bckhw,sck->bshw", patches, w,
                       precision=jax.lax.Precision.HIGHEST)
    inv_std = 1.0 / jnp.sqrt(bn_var.astype(jnp.float32) + eps)
    scale = (bn_gamma.astype(jnp.float32) * inv_std)[None, :, None, None]
    shift = (bn_beta.astype(jnp.float32)
             - bn_mean.astype(jnp.float32) * bn_gamma.astype(jnp.float32)
             * inv_std)[None, :, None, None]
    sigma = jax.nn.softmax(sigma * scale + shift, axis=1)        # (B, Csig, H, W)
    sig = sigma.reshape(B, group, KK, H, W)
    pat = patches.reshape(B, group, Cin // group, KK, H, W)
    out = jnp.sum(pat * sig[:, :, None], axis=3).reshape(B, Cin, H, W)
    return out[:, :, ::stride, ::stride]


if __name__ == "__main__":
    key = jax.random.PRNGKey(0)
    B, Cin, H, W = 2, 4, 16, 16
    K, group, stride = 3, 2, 2
    Csig = group * K * K

    k1, k2, k3, k4, k5, k6 = jax.random.split(key, 6)
    x = jax.random.normal(k1, (B, Cin, H, W), jnp.float32)
    # Conv2d weight (OIHW); bias=False in the module.
    w = jax.random.normal(k2, (Csig, Cin, K, K), jnp.float32) * 0.3
    # Deterministic, non-trivial BatchNorm parameters / running statistics.
    bn_gamma = 1.0 + 0.1 * jax.random.normal(k3, (Csig,), jnp.float32)
    bn_beta = 0.1 * jax.random.normal(k4, (Csig,), jnp.float32)
    bn_mean = 0.05 * jax.random.normal(k5, (Csig,), jnp.float32)
    bn_var = jnp.abs(1.0 + 0.1 * jax.random.normal(k6, (Csig,), jnp.float32))

    out = adaptive_filter(x, w, bn_gamma, bn_beta, bn_mean, bn_var,
                          kernel_size=K, stride=stride, group=group,
                          max_tile_h=8)      # force 2 row tiles to exercise tiling
    out = jax.block_until_ready(out)

    ref = _reference(x, w, bn_gamma, bn_beta, bn_mean, bn_var,
                     kernel_size=K, stride=stride, group=group)
    Ho = (H + stride - 1) // stride
    Wo = (W + stride - 1) // stride
    assert out.shape == (B, Cin, Ho, Wo), out.shape
    assert jnp.allclose(out, ref, atol=2e-4, rtol=2e-4), \
        float(jnp.max(jnp.abs(out - ref)))
    print("KERNEL_OK")
</pallas_src>

<mosaic_0001>
module attributes {stable_mosaic.version = 11 : i64} {
  func.func @_adaptive_filter_kernel(%arg0: i32, %arg1: i32, %arg2: memref<1x1x4x10x18xf32, #tpu.memory_space<vmem>>, %arg3: memref<648xf32, #tpu.memory_space<smem>>, %arg4: memref<18xf32, #tpu.memory_space<smem>>, %arg5: memref<1x4x8x16xf32, #tpu.memory_space<vmem>>) attributes {dimension_semantics = [#tpu.dimension_semantics<parallel>, #tpu.dimension_semantics<parallel>], iteration_bounds = array<i64: 2, 2>, scalar_prefetch = 0 : i64, scratch_operands = 0 : i64, tpu.core_type = #tpu.core_type<tc>, window_params = [{transform_indices = @transform_0, window_bounds = array<i64: 1, 1, 4, 10, 18>}, {transform_indices = @transform_1, window_bounds = array<i64: 648>}, {transform_indices = @transform_2, window_bounds = array<i64: 18>}, {transform_indices = @transform_3, window_bounds = array<i64: 1, 4, 8, 16>}]} {
    %c0 = arith.constant 0 : index
    %c0_0 = arith.constant 0 : index
    %c0_1 = arith.constant 0 : index
    %c0_2 = arith.constant 0 : index
    %c0_3 = arith.constant 0 : index
    %0 = vector.load %arg2[%c0, %c0_0, %c0_1, %c0_2, %c0_3] : memref<1x1x4x10x18xf32, #tpu.memory_space<vmem>>, vector<1x1x1x8x16xf32>
    %1 = vector.shape_cast %0 : vector<1x1x1x8x16xf32> to vector<8x16xf32>
    %c0_4 = arith.constant 0 : index
    %2 = memref.load %arg3[%c0_4] : memref<648xf32, #tpu.memory_space<smem>>
    %3 = vector.broadcast %2 : f32 to vector<8x16xf32>
    %4 = arith.mulf %3, %1 : vector<8x16xf32>
    %c1 = arith.constant 1 : index
    %5 = memref.load %arg3[%c1] : memref<648xf32, #tpu.memory_space<smem>>
    %6 = vector.broadcast %5 : f32 to vector<8x16xf32>
    %7 = arith.mulf %6, %1 : vector<8x16xf32>
    %c2 = arith.constant 2 : index
    %8 = memref.load %arg3[%c2] : memref<648xf32, #tpu.memory_space<smem>>
    %9 = vector.broadcast %8 : f32 to vector<8x16xf32>
    %10 = arith.mulf %9, %1 : vector<8x16xf32>
    %c3 = arith.constant 3 : index
    %11 = memref.load %arg3[%c3] : memref<648xf32, #tpu.memory_space<smem>>
    %12 = vector.broadcast %11 : f32 to vector<8x16xf32>
    %13 = arith.mulf %12, %1 : vector<8x16xf32>
    %c4 = arith.constant 4 : index
    %14 = memref.load %arg3[%c4] : memref<648xf32, #tpu.memory_space<smem>>
    %15 = vector.broadcast %14 : f32 to vector<8x16xf32>
    %16 = arith.mulf %15, %1 : vector<8x16xf32>
    %c5 = arith.constant 5 : index
    %17 = memref.load %arg3[%c5] : memref<648xf32, #tpu.memory_space<smem>>
    %18 = vector.broadcast %17 : f32 to vector<8x16xf32>
    %19 = arith.mulf %18, %1 : vector<8x16xf32>
    %c6 = arith.constant 6 : index
    %20 = memref.load %arg3[%c6] : memref<648xf32, #tpu.memory_space<smem>>
    %21 = vector.broadcast %20 : f32 to vector<8x16xf32>
    %22 = arith.mulf %21, %1 : vector<8x16xf32>
    %c7 = arith.constant 7 : index
    %23 = memref.load %arg3[%c7] : memref<648xf32, #tpu.memory_space<smem>>
    %24 = vector.broadcast %23 : f32 to vector<8x16xf32>
    %25 = arith.mulf %24, %1 : vector<8x16xf32>
    %c8 = arith.constant 8 : index
    %26 = memref.load %arg3[%c8] : memref<648xf32, #tpu.memory_space<smem>>
    %27 = vector.broadcast %26 : f32 to vector<8x16xf32>
    %28 = arith.mulf %27, %1 : vector<8x16xf32>
    %c9 = arith.constant 9 : index
    %29 = memref.load %arg3[%c9] : memref<648xf32, #tpu.memory_space<smem>>
    %30 = vector.broadcast %29 : f32 to vector<8x16xf32>
    %31 = arith.mulf %30, %1 : vector<8x16xf32>
    %c10 = arith.constant 10 : index
    %32 = memref.load %arg3[%c10] : memref<648xf32, #tpu.memory_space<smem>>
    %33 = vector.broadcast %32 : f32 to vector<8x16xf32>
    %34 = arith.mulf %33, %1 : vector<8x16xf32>
    %c11 = arith.constant 11 : index
    %35 = memref.load %arg3[%c11] : memref<648xf32, #tpu.memory_space<smem>>
    %36 = vector.broadcast %35 : f32 to vector<8x16xf32>
    %37 = arith.mulf %36, %1 : vector<8x16xf32>
    %c12 = arith.constant 12 : index
    %38 = memref.load %arg3[%c12] : memref<648xf32, #tpu.memory_space<smem>>
    %39 = vector.broadcast %38 : f32 to vector<8x16xf32>
    %40 = arith.mulf %39, %1 : vector<8x16xf32>
    %c13 = arith.constant 13 : index
    %41 = memref.load %arg3[%c13] : memref<648xf32, #tpu.memory_space<smem>>
    %42 = vector.broadcast %41 : f32 to vector<8x16xf32>
    %43 = arith.mulf %42, %1 : vector<8x16xf32>
    %c14 = arith.constant 14 : index
    %44 = memref.load %arg3[%c14] : memref<648xf32, #tpu.memory_space<smem>>
    %45 = vector.broadcast %44 : f32 to vector<8x16xf32>
    %46 = arith.mulf %45, %1 : vector<8x16xf32>
    %c15 = arith.constant 15 : index
    %47 = memref.load %arg3[%c15] : memref<648xf32, #tpu.memory_space<smem>>
    %48 = vector.broadcast %47 : f32 to vector<8x16xf32>
    %49 = arith.mulf %48, %1 : vector<8x16xf32>
    %c16 = arith.constant 16 : index
    %50 = memref.load %arg3[%c16] : memref<648xf32, #tpu.memory_space<smem>>
    %51 = vector.broadcast %50 : f32 to vector<8x16xf32>
    %52 = arith.mulf %51, %1 : vector<8x16xf32>
    %c17 = arith.constant 17 : index
    %53 = memref.load %arg3[%c17] : memref<648xf32, #tpu.memory_space<smem>>
    %54 = vector.broadcast %53 : f32 to vector<8x16xf32>
    %55 = arith.mulf %54, %1 : vector<8x16xf32>
    %c0_5 = arith.constant 0 : index
    %c0_6 = arith.constant 0 : index
    %c1_7 = arith.constant 1 : index
    %c0_8 = arith.constant 0 : index
    %c0_9 = arith.constant 0 : index
    %56 = vector.load %arg2[%c0_5, %c0_6, %c1_7, %c0_8, %c0_9] : memref<1x1x4x10x18xf32, #tpu.memory_space<vmem>>, vector<1x1x1x8x16xf32>
    %57 = vector.shape_cast %56 : vector<1x1x1x8x16xf32> to vector<8x16xf32>
    %c18 = arith.constant 18 : index
    %58 = memref.load %arg3[%c18] : memref<648xf32, #tpu.memory_space<smem>>
    %59 = vector.broadcast %58 : f32 to vector<8x16xf32>
    %60 = arith.mulf %59, %57 : vector<8x16xf32>
    %61 = arith.addf %4, %60 : vector<8x16xf32>
    %c19 = arith.constant 19 : index
    %62 = memref.load %arg3[%c19] : memref<648xf32, #tpu.memory_space<smem>>
    %63 = vector.broadcast %62 : f32 to vector<8x16xf32>
    %64 = arith.mulf %63, %57 : vector<8x16xf32>
    %65 = arith.addf %7, %64 : vector<8x16xf32>
    %c20 = arith.constant 20 : index
    %66 = memref.load %arg3[%c20] : memref<648xf32, #tpu.memory_space<smem>>
    %67 = vector.broadcast %66 : f32 to vector<8x16xf32>
    %68 = arith.mulf %67, %57 : vector<8x16xf32>
    %69 = arith.addf %10, %68 : vector<8x16xf32>
    %c21 = arith.constant 21 : index
    %70 = memref.load %arg3[%c21] : memref<648xf32, #tpu.memory_space<smem>>
    %71 = vector.broadcast %70 : f32 to vector<8x16xf32>
    %72 = arith.mulf %71, %57 : vector<8x16xf32>
    %73 = arith.addf %13, %72 : vector<8x16xf32>
    %c22 = arith.constant 22 : index
    %74 = memref.load %arg3[%c22] : memref<648xf32, #tpu.memory_space<smem>>
    %75 = vector.broadcast %74 : f32 to vector<8x16xf32>
    %76 = arith.mulf %75, %57 : vector<8x16xf32>
    %77 = arith.addf %16, %76 : vector<8x16xf32>
    %c23 = arith.constant 23 : index
    %78 = memref.load %arg3[%c23] : memref<648xf32, #tpu.memory_space<smem>>
    %79 = vector.broadcast %78 : f32 to vector<8x16xf32>
    %80 = arith.mulf %79, %57 : vector<8x16xf32>
    %81 = arith.addf %19, %80 : vector<8x16xf32>
    %c24 = arith.constant 24 : index
    %82 = memref.load %arg3[%c24] : memref<648xf32, #tpu.memory_space<smem>>
    %83 = vector.broadcast %82 : f32 to vector<8x16xf32>
    %84 = arith.mulf %83, %57 : vector<8x16xf32>
    %85 = arith.addf %22, %84 : vector<8x16xf32>
    %c25 = arith.constant 25 : index
    %86 = memref.load %arg3[%c25] : memref<648xf32, #tpu.memory_space<smem>>
    %87 = vector.broadcast %86 : f32 to vector<8x16xf32>
    %88 = arith.mulf %87, %57 : vector<8x16xf32>
    %89 = arith.addf %25, %88 : vector<8x16xf32>
    %c26 = arith.constant 26 : index
    %90 = memref.load %arg3[%c26] : memref<648xf32, #tpu.memory_space<smem>>
    %91 = vector.broadcast %90 : f32 to vector<8x16xf32>
    %92 = arith.mulf %91, %57 : vector<8x16xf32>
    %93 = arith.addf %28, %92 : vector<8x16xf32>
    %c27 = arith.constant 27 : index
    %94 = memref.load %arg3[%c27] : memref<648xf32, #tpu.memory_space<smem>>
    %95 = vector.broadcast %94 : f32 to vector<8x16xf32>
    %96 = arith.mulf %95, %57 : vector<8x16xf32>
    %97 = arith.addf %31, %96 : vector<8x16xf32>
    %c28 = arith.constant 28 : index
    %98 = memref.load %arg3[%c28] : memref<648xf32, #tpu.memory_space<smem>>
    %99 = vector.broadcast %98 : f32 to vector<8x16xf32>
    %100 = arith.mulf %99, %57 : vector<8x16xf32>
    %101 = arith.addf %34, %100 : vector<8x16xf32>
    %c29 = arith.constant 29 : index
    %102 = memref.load %arg3[%c29] : memref<648xf32, #tpu.memory_space<smem>>
    %103 = vector.broadcast %102 : f32 to vector<8x16xf32>
    %104 = arith.mulf %103, %57 : vector<8x16xf32>
    %105 = arith.addf %37, %104 : vector<8x16xf32>
    %c30 = arith.constant 30 : index
    %106 = memref.load %arg3[%c30] : memref<648xf32, #tpu.memory_space<smem>>
    %107 = vector.broadcast %106 : f32 to vector<8x16xf32>
    %108 = arith.mulf %107, %57 : vector<8x16xf32>
    %109 = arith.addf %40, %108 : vector<8x16xf32>
    %c31 = arith.constant 31 : index
    %110 = memref.load %arg3[%c31] : memref<648xf32, #tpu.memory_space<smem>>
    %111 = vector.broadcast %110 : f32 to vector<8x16xf32>
    %112 = arith.mulf %111, %57 : vector<8x16xf32>
    %113 = arith.addf %43, %112 : vector<8x16xf32>
    %c32 = arith.constant 32 : index
    %114 = memref.load %arg3[%c32] : memref<648xf32, #tpu.memory_space<smem>>
    %115 = vector.broadcast %114 : f32 to vector<8x16xf32>
    %116 = arith.mulf %115, %57 : vector<8x16xf32>
    %117 = arith.addf %46, %116 : vector<8x16xf32>
    %c33 = arith.constant 33 : index
    %118 = memref.load %arg3[%c33] : memref<648xf32, #tpu.memory_space<smem>>
    %119 = vector.broadcast %118 : f32 to vector<8x16xf32>
    %120 = arith.mulf %119, %57 : vector<8x16xf32>
    %121 = arith.addf %49, %120 : vector<8x16xf32>
    %c34 = arith.constant 34 : index
    %122 = memref.load %arg3[%c34] : memref<648xf32, #tpu.memory_space<smem>>
    %123 = vector.broadcast %122 : f32 to vector<8x16xf32>
    %124 = arith.mulf %123, %57 : vector<8x16xf32>
    %125 = arith.addf %52, %124 : vector<8x16xf32>
    %c35 = arith.constant 35 : index
    %126 = memref.load %arg3[%c35] : memref<648xf32, #tpu.memory_space<smem>>
    %127 = vector.broadcast %126 : f32 to vector<8x16xf32>
    %128 = arith.mulf %127, %57 : vector<8x16xf32>
    %129 = arith.addf %55, %128 : vector<8x16xf32>
    %c0_10 = arith.constant 0 : index
    %c0_11 = arith.constant 0 : index
    %c2_12 = arith.constant 2 : index
    %c0_13 = arith.constant 0 : index
    %c0_14 = arith.constant 0 : index
    %130 = vector.load %arg2[%c0_10, %c0_11, %c2_12, %c0_13, %c0_14] : memref<1x1x4x10x18xf32, #tpu.memory_space<vmem>>, vector<1x1x1x8x16xf32>
    %131 = vector.shape_cast %130 : vector<1x1x1x8x16xf32> to vector<8x16xf32>
    %c36 = arith.constant 36 : index
    %132 = memref.load %arg3[%c36] : memref<648xf32, #tpu.memory_space<smem>>
    %133 = vector.broadcast %132 : f32 to vector<8x16xf32>
    %134 = arith.mulf %133, %131 : vector<8x16xf32>
    %135 = arith.addf %61, %134 : vector<8x16xf32>
    %c37 = arith.constant 37 : index
    %136 = memref.load %arg3[%c37] : memref<648xf32, #tpu.memory_space<smem>>
    %137 = vector.broadcast %136 : f32 to vector<8x16xf32>
    %138 = arith.mulf %137, %131 : vector<8x16xf32>
    %139 = arith.addf %65, %138 : vector<8x16xf32>
    %c38 = arith.constant 38 : index
    %140 = memref.load %arg3[%c38] : memref<648xf32, #tpu.memory_space<smem>>
    %141 = vector.broadcast %140 : f32 to vector<8x16xf32>
    %142 = arith.mulf %141, %131 : vector<8x16xf32>
    %143 = arith.addf %69, %142 : vector<8x16xf32>
    %c39 = arith.constant 39 : index
    %144 = memref.load %arg3[%c39] : memref<648xf32, #tpu.memory_space<smem>>
    %145 = vector.broadcast %144 : f32 to vector<8x16xf32>
    %146 = arith.mulf %145, %131 : vector<8x16xf32>
    %147 = arith.addf %73, %146 : vector<8x16xf32>
    %c40 = arith.constant 40 : index
    %148 = memref.load %arg3[%c40] : memref<648xf32, #tpu.memory_space<smem>>
    %149 = vector.broadcast %148 : f32 to vector<8x16xf32>
    %150 = arith.mulf %149, %131 : vector<8x16xf32>
    %151 = arith.addf %77, %150 : vector<8x16xf32>
    %c41 = arith.constant 41 : index
    %152 = memref.load %arg3[%c41] : memref<648xf32, #tpu.memory_space<smem>>
    %153 = vector.broadcast %152 : f32 to vector<8x16xf32>
    %154 = arith.mulf %153, %131 : vector<8x16xf32>
    %155 = arith.addf %81, %154 : vector<8x16xf32>
    %c42 = arith.constant 42 : index
    %156 = memref.load %arg3[%c42] : memref<648xf32, #tpu.memory_space<smem>>
    %157 = vector.broadcast %156 : f32 to vector<8x16xf32>
    %158 = arith.mulf %157, %131 : vector<8x16xf32>
    %159 = arith.addf %85, %158 : vector<8x16xf32>
    %c43 = arith.constant 43 : index
    %160 = memref.load %arg3[%c43] : memref<648xf32, #tpu.memory_space<smem>>
    %161 = vector.broadcast %160 : f32 to vector<8x16xf32>
    %162 = arith.mulf %161, %131 : vector<8x16xf32>
    %163 = arith.addf %89, %162 : vector<8x16xf32>
    %c44 = arith.constant 44 : index
    %164 = memref.load %arg3[%c44] : memref<648xf32, #tpu.memory_space<smem>>
    %165 = vector.broadcast %164 : f32 to vector<8x16xf32>
    %166 = arith.mulf %165, %131 : vector<8x16xf32>
    %167 = arith.addf %93, %166 : vector<8x16xf32>
    %c45 = arith.constant 45 : index
    %168 = memref.load %arg3[%c45] : memref<648xf32, #tpu.memory_space<smem>>
    %169 = vector.broadcast %168 : f32 to vector<8x16xf32>
    %170 = arith.mulf %169, %131 : vector<8x16xf32>
    %171 = arith.addf %97, %170 : vector<8x16xf32>
    %c46 = arith.constant 46 : index
    %172 = memref.load %arg3[%c46] : memref<648xf32, #tpu.memory_space<smem>>
    %173 = vector.broadcast %172 : f32 to vector<8x16xf32>
    %174 = arith.mulf %173, %131 : vector<8x16xf32>
    %175 = arith.addf %101, %174 : vector<8x16xf32>
    %c47 = arith.constant 47 : index
    %176 = memref.load %arg3[%c47] : memref<648xf32, #tpu.memory_space<smem>>
    %177 = vector.broadcast %176 : f32 to vector<8x16xf32>
    %178 = arith.mulf %177, %131 : vector<8x16xf32>
    %179 = arith.addf %105, %178 : vector<8x16xf32>
    %c48 = arith.constant 48 : index
    %180 = memref.load %arg3[%c48] : memref<648xf32, #tpu.memory_space<smem>>
    %181 = vector.broadcast %180 : f32 to vector<8x16xf32>
    %182 = arith.mulf %181, %131 : vector<8x16xf32>
    %183 = arith.addf %109, %182 : vector<8x16xf32>
    %c49 = arith.constant 49 : index
    %184 = memref.load %arg3[%c49] : memref<648xf32, #tpu.memory_space<smem>>
    %185 = vector.broadcast %184 : f32 to vector<8x16xf32>
    %186 = arith.mulf %185, %131 : vector<8x16xf32>
    %187 = arith.addf %113, %186 : vector<8x16xf32>
    %c50 = arith.constant 50 : index
    %188 = memref.load %arg3[%c50] : memref<648xf32, #tpu.memory_space<smem>>
    %189 = vector.broadcast %188 : f32 to vector<8x16xf32>
    %190 = arith.mulf %189, %131 : vector<8x16xf32>
    %191 = arith.addf %117, %190 : vector<8x16xf32>
    %c51 = arith.constant 51 : index
    %192 = memref.load %arg3[%c51] : memref<648xf32, #tpu.memory_space<smem>>
    %193 = vector.broadcast %192 : f32 to vector<8x16xf32>
    %194 = arith.mulf %193, %131 : vector<8x16xf32>
    %195 = arith.addf %121, %194 : vector<8x16xf32>
    %c52 = arith.constant 52 : index
    %196 = memref.load %arg3[%c52] : memref<648xf32, #tpu.memory_space<smem>>
    %197 = vector.broadcast %196 : f32 to vector<8x16xf32>
    %198 = arith.mulf %197, %131 : vector<8x16xf32>
    %199 = arith.addf %125, %198 : vector<8x16xf32>
    %c53 = arith.constant 53 : index
    %200 = memref.load %arg3[%c53] : memref<648xf32, #tpu.memory_space<smem>>
    %201 = vector.broadcast %200 : f32 to vector<8x16xf32>
    %202 = arith.mulf %201, %131 : vector<8x16xf32>
    %203 = arith.addf %129, %202 : vector<8x16xf32>
    %c0_15 = arith.constant 0 : index
    %c0_16 = arith.constant 0 : index
    %c3_17 = arith.constant 3 : index
    %c0_18 = arith.constant 0 : index
    %c0_19 = arith.constant 0 : index
    %204 = vector.load %arg2[%c0_15, %c0_16, %c3_17, %c0_18, %c0_19] : memref<1x1x4x10x18xf32, #tpu.memory_space<vmem>>, vector<1x1x1x8x16xf32>
    %205 = vector.shape_cast %204 : vector<1x1x1x8x16xf32> to vector<8x16xf32>
    %c54 = arith.constant 54 : index
    %206 = memref.load %arg3[%c54] : memref<648xf32, #tpu.memory_space<smem>>
    %207 = vector.broadcast %206 : f32 to vector<8x16xf32>
    %208 = arith.mulf %207, %205 : vector<8x16xf32>
    %209 = arith.addf %135, %208 : vector<8x16xf32>
    %c55 = arith.constant 55 : index
    %210 = memref.load %arg3[%c55] : memref<648xf32, #tpu.memory_space<smem>>
    %211 = vector.broadcast %210 : f32 to vector<8x16xf32>
    %212 = arith.mulf %211, %205 : vector<8x16xf32>
    %213 = arith.addf %139, %212 : vector<8x16xf32>
    %c56 = arith.constant 56 : index
    %214 = memref.load %arg3[%c56] : memref<648xf32, #tpu.memory_space<smem>>
    %215 = vector.broadcast %214 : f32 to vector<8x16xf32>
    %216 = arith.mulf %215, %205 : vector<8x16xf32>
    %217 = arith.addf %143, %216 : vector<8x16xf32>
    %c57 = arith.constant 57 : index
    %218 = memref.load %arg3[%c57] : memref<648xf32, #tpu.memory_space<smem>>
    %219 = vector.broadcast %218 : f32 to vector<8x16xf32>
    %220 = arith.mulf %219, %205 : vector<8x16xf32>
    %221 = arith.addf %147, %220 : vector<8x16xf32>
    %c58 = arith.constant 58 : index
    %222 = memref.load %arg3[%c58] : memref<648xf32, #tpu.memory_space<smem>>
    %223 = vector.broadcast %222 : f32 to vector<8x16xf32>
    %224 = arith.mulf %223, %205 : vector<8x16xf32>
    %225 = arith.addf %151, %224 : vector<8x16xf32>
    %c59 = arith.constant 59 : index
    %226 = memref.load %arg3[%c59] : memref<648xf32, #tpu.memory_space<smem>>
    %227 = vector.broadcast %226 : f32 to vector<8x16xf32>
    %228 = arith.mulf %227, %205 : vector<8x16xf32>
    %229 = arith.addf %155, %228 : vector<8x16xf32>
    %c60 = arith.constant 60 : index
    %230 = memref.load %arg3[%c60] : memref<648xf32, #tpu.memory_space<smem>>
    %231 = vector.broadcast %230 : f32 to vector<8x16xf32>
    %232 = arith.mulf %231, %205 : vector<8x16xf32>
    %233 = arith.addf %159, %232 : vector<8x16xf32>
    %c61 = arith.constant 61 : index
    %234 = memref.load %arg3[%c61] : memref<648xf32, #tpu.memory_space<smem>>
    %235 = vector.broadcast %234 : f32 to vector<8x16xf32>
    %236 = arith.mulf %235, %205 : vector<8x16xf32>
    %237 = arith.addf %163, %236 : vector<8x16xf32>
    %c62 = arith.constant 62 : index
    %238 = memref.load %arg3[%c62] : memref<648xf32, #tpu.memory_space<smem>>
    %239 = vector.broadcast %238 : f32 to vector<8x16xf32>
    %240 = arith.mulf %239, %205 : vector<8x16xf32>
    %241 = arith.addf %167, %240 : vector<8x16xf32>
    %c63 = arith.constant 63 : index
    %242 = memref.load %arg3[%c63] : memref<648xf32, #tpu.memory_space<smem>>
    %243 = vector.broadcast %242 : f32 to vector<8x16xf32>
    %244 = arith.mulf %243, %205 : vector<8x16xf32>
    %245 = arith.addf %171, %244 : vector<8x16xf32>
    %c64 = arith.constant 64 : index
    %246 = memref.load %arg3[%c64] : memref<648xf32, #tpu.memory_space<smem>>
    %247 = vector.broadcast %246 : f32 to vector<8x16xf32>
    %248 = arith.mulf %247, %205 : vector<8x16xf32>
    %249 = arith.addf %175, %248 : vector<8x16xf32>
    %c65 = arith.constant 65 : index
    %250 = memref.load %arg3[%c65] : memref<648xf32, #tpu.memory_space<smem>>
    %251 = vector.broadcast %250 : f32 to vector<8x16xf32>
    %252 = arith.mulf %251, %205 : vector<8x16xf32>
    %253 = arith.addf %179, %252 : vector<8x16xf32>
    %c66 = arith.constant 66 : index
    %254 = memref.load %arg3[%c66] : memref<648xf32, #tpu.memory_space<smem>>
    %255 = vector.broadcast %254 : f32 to vector<8x16xf32>
    %256 = arith.mulf %255, %205 : vector<8x16xf32>
    %257 = arith.addf %183, %256 : vector<8x16xf32>
    %c67 = arith.constant 67 : index
    %258 = memref.load %arg3[%c67] : memref<648xf32, #tpu.memory_space<smem>>
    %259 = vector.broadcast %258 : f32 to vector<8x16xf32>
    %260 = arith.mulf %259, %205 : vector<8x16xf32>
    %261 = arith.addf %187, %260 : vector<8x16xf32>
    %c68 = arith.constant 68 : index
    %262 = memref.load %arg3[%c68] : memref<648xf32, #tpu.memory_space<smem>>
    %263 = vector.broadcast %262 : f32 to vector<8x16xf32>
    %264 = arith.mulf %263, %205 : vector<8x16xf32>
    %265 = arith.addf %191, %264 : vector<8x16xf32>
    %c69 = arith.constant 69 : index
    %266 = memref.load %arg3[%c69] : memref<648xf32, #tpu.memory_space<smem>>
    %267 = vector.broadcast %266 : f32 to vector<8x16xf32>
    %268 = arith.mulf %267, %205 : vector<8x16xf32>
    %269 = arith.addf %195, %268 : vector<8x16xf32>
    %c70 = arith.constant 70 : index
    %270 = memref.load %arg3[%c70] : memref<648xf32, #tpu.memory_space<smem>>
    %271 = vector.broadcast %270 : f32 to vector<8x16xf32>
    %272 = arith.mulf %271, %205 : vector<8x16xf32>
    %273 = arith.addf %199, %272 : vector<8x16xf32>
    %c71 = arith.constant 71 : index
    %274 = memref.load %arg3[%c71] : memref<648xf32, #tpu.memory_space<smem>>
    %275 = vector.broadcast %274 : f32 to vector<8x16xf32>
    %276 = arith.mulf %275, %205 : vector<8x16xf32>
    %277 = arith.addf %203, %276 : vector<8x16xf32>
    %c0_20 = arith.constant 0 : index
    %c0_21 = arith.constant 0 : index
    %c0_22 = arith.constant 0 : index
    %c0_23 = arith.constant 0 : index
    %c1_24 = arith.constant 1 : index
    %278 = vector.load %arg2[%c0_20, %c0_21, %c0_22, %c0_23, %c1_24] : memref<1x1x4x10x18xf32, #tpu.memory_space<vmem>>, vector<1x1x1x8x16xf32>
    %279 = vector.shape_cast %278 : vector<1x1x1x8x16xf32> to vector<8x16xf32>
    %c72 = arith.constant 72 : index
    %280 = memref.load %arg3[%c72] : memref<648xf32, #tpu.memory_space<smem>>
    %281 = vector.broadcast %280 : f32 to vector<8x16xf32>
    %282 = arith.mulf %281, %279 : vector<8x16xf32>
    %283 = arith.addf %209, %282 : vector<8x16xf32>
    %c73 = arith.constant 73 : index
    %284 = memref.load %arg3[%c73] : memref<648xf32, #tpu.memory_space<smem>>
    %285 = vector.broadcast %284 : f32 to vector<8x16xf32>
    %286 = arith.mulf %285, %279 : vector<8x16xf32>
    %287 = arith.addf %213, %286 : vector<8x16xf32>
    %c74 = arith.constant 74 : index
    %288 = memref.load %arg3[%c74] : memref<648xf32, #tpu.memory_space<smem>>
    %289 = vector.broadcast %288 : f32 to vector<8x16xf32>
    %290 = arith.mulf %289, %279 : vector<8x16xf32>
    %291 = arith.addf %217, %290 : vector<8x16xf32>
    %c75 = arith.constant 75 : index
    %292 = memref.load %arg3[%c75] : memref<648xf32, #tpu.memory_space<smem>>
    %293 = vector.broadcast %292 : f32 to vector<8x16xf32>
    %294 = arith.mulf %293, %279 : vector<8x16xf32>
    %295 = arith.addf %221, %294 : vector<8x16xf32>
    %c76 = arith.constant 76 : index
    %296 = memref.load %arg3[%c76] : memref<648xf32, #tpu.memory_space<smem>>
    %297 = vector.broadcast %296 : f32 to vector<8x16xf32>
    %298 = arith.mulf %297, %279 : vector<8x16xf32>
    %299 = arith.addf %225, %298 : vector<8x16xf32>
    %c77 = arith.constant 77 : index
    %300 = memref.load %arg3[%c77] : memref<648xf32, #tpu.memory_space<smem>>
    %301 = vector.broadcast %300 : f32 to vector<8x16xf32>
    %302 = arith.mulf %301, %279 : vector<8x16xf32>
    %303 = arith.addf %229, %302 : vector<8x16xf32>
    %c78 = arith.constant 78 : index
    %304 = memref.load %arg3[%c78] : memref<648xf32, #tpu.memory_space<smem>>
    %305 = vector.broadcast %304 : f32 to vector<8x16xf32>
    %306 = arith.mulf %305, %279 : vector<8x16xf32>
    %307 = arith.addf %233, %306 : vector<8x16xf32>
    %c79 = arith.constant 79 : index
    %308 = memref.load %arg3[%c79] : memref<648xf32, #tpu.memory_space<smem>>
    %309 = vector.broadcast %308 : f32 to vector<8x16xf32>
    %310 = arith.mulf %309, %279 : vector<8x16xf32>
    %311 = arith.addf %237, %310 : vector<8x16xf32>
    %c80 = arith.constant 80 : index
    %312 = memref.load %arg3[%c80] : memref<648xf32, #tpu.memory_space<smem>>
    %313 = vector.broadcast %312 : f32 to vector<8x16xf32>
    %314 = arith.mulf %313, %279 : vector<8x16xf32>
    %315 = arith.addf %241, %314 : vector<8x16xf32>
    %c81 = arith.constant 81 : index
    %316 = memref.load %arg3[%c81] : memref<648xf32, #tpu.memory_space<smem>>
    %317 = vector.broadcast %316 : f32 to vector<8x16xf32>
    %318 = arith.mulf %317, %279 : vector<8x16xf32>
    %319 = arith.addf %245, %318 : vector<8x16xf32>
    %c82 = arith.constant 82 : index
    %320 = memref.load %arg3[%c82] : memref<648xf32, #tpu.memory_space<smem>>
    %321 = vector.broadcast %320 : f32 to vector<8x16xf32>
    %322 = arith.mulf %321, %279 : vector<8x16xf32>
    %323 = arith.addf %249, %322 : vector<8x16xf32>
    %c83 = arith.constant 83 : index
    %324 = memref.load %arg3[%c83] : memref<648xf32, #tpu.memory_space<smem>>
    %325 = vector.broadcast %324 : f32 to vector<8x16xf32>
    %326 = arith.mulf %325, %279 : vector<8x16xf32>
    %327 = arith.addf %253, %326 : vector<8x16xf32>
    %c84 = arith.constant 84 : index
    %328 = memref.load %arg3[%c84] : memref<648xf32, #tpu.memory_space<smem>>
    %329 = vector.broadcast %328 : f32 to vector<8x16xf32>
    %330 = arith.mulf %329, %279 : vector<8x16xf32>
    %331 = arith.addf %257, %330 : vector<8x16xf32>
    %c85 = arith.constant 85 : index
    %332 = memref.load %arg3[%c85] : memref<648xf32, #tpu.memory_space<smem>>
    %333 = vector.broadcast %332 : f32 to vector<8x16xf32>
    %334 = arith.mulf %333, %279 : vector<8x16xf32>
    %335 = arith.addf %261, %334 : vector<8x16xf32>
    %c86 = arith.constant 86 : index
    %336 = memref.load %arg3[%c86] : memref<648xf32, #tpu.memory_space<smem>>
    %337 = vector.broadcast %336 : f32 to vector<8x16xf32>
    %338 = arith.mulf %337, %279 : vector<8x16xf32>
    %339 = arith.addf %265, %338 : vector<8x16xf32>
    %c87 = arith.constant 87 : index
    %340 = memref.load %arg3[%c87] : memref<648xf32, #tpu.memory_space<smem>>
    %341 = vector.broadcast %340 : f32 to vector<8x16xf32>
    %342 = arith.mulf %341, %279 : vector<8x16xf32>
    %343 = arith.addf %269, %342 : vector<8x16xf32>
    %c88 = arith.constant 88 : index
    %344 = memref.load %arg3[%c88] : memref<648xf32, #tpu.memory_space<smem>>
    %345 = vector.broadcast %344 : f32 to vector<8x16xf32>
    %346 = arith.mulf %345, %279 : vector<8x16xf32>
    %347 = arith.addf %273, %346 : vector<8x16xf32>
    %c89 = arith.constant 89 : index
    %348 = memref.load %arg3[%c89] : memref<648xf32, #tpu.memory_space<smem>>
    %349 = vector.broadcast %348 : f32 to vector<8x16xf32>
    %350 = arith.mulf %349, %279 : vector<8x16xf32>
    %351 = arith.addf %277, %350 : vector<8x16xf32>
    %c0_25 = arith.constant 0 : index
    %c0_26 = arith.constant 0 : index
    %c1_27 = arith.constant 1 : index
    %c0_28 = arith.constant 0 : index
    %c1_29 = arith.constant 1 : index
    %352 = vector.load %arg2[%c0_25, %c0_26, %c1_27, %c0_28, %c1_29] : memref<1x1x4x10x18xf32, #tpu.memory_space<vmem>>, vector<1x1x1x8x16xf32>
    %353 = vector.shape_cast %352 : vector<1x1x1x8x16xf32> to vector<8x16xf32>
    %c90 = arith.constant 90 : index
    %354 = memref.load %arg3[%c90] : memref<648xf32, #tpu.memory_space<smem>>
    %355 = vector.broadcast %354 : f32 to vector<8x16xf32>
    %356 = arith.mulf %355, %353 : vector<8x16xf32>
    %357 = arith.addf %283, %356 : vector<8x16xf32>
    %c91 = arith.constant 91 : index
    %358 = memref.load %arg3[%c91] : memref<648xf32, #tpu.memory_space<smem>>
    %359 = vector.broadcast %358 : f32 to vector<8x16xf32>
    %360 = arith.mulf %359, %353 : vector<8x16xf32>
    %361 = arith.addf %287, %360 : vector<8x16xf32>
    %c92 = arith.constant 92 : index
    %362 = memref.load %arg3[%c92] : memref<648xf32, #tpu.memory_space<smem>>
    %363 = vector.broadcast %362 : f32 to vector<8x16xf32>
    %364 = arith.mulf %363, %353 : vector<8x16xf32>
    %365 = arith.addf %291, %364 : vector<8x16xf32>
    %c93 = arith.constant 93 : index
    %366 = memref.load %arg3[%c93] : memref<648xf32, #tpu.memory_space<smem>>
    %367 = vector.broadcast %366 : f32 to vector<8x16xf32>
    %368 = arith.mulf %367, %353 : vector<8x16xf32>
    %369 = arith.addf %295, %368 : vector<8x16xf32>
    %c94 = arith.constant 94 : index
    %370 = memref.load %arg3[%c94] : memref<648xf32, #tpu.memory_space<smem>>
    %371 = vector.broadcast %370 : f32 to vector<8x16xf32>
    %372 = arith.mulf %371, %353 : vector<8x16xf32>
    %373 = arith.addf %299, %372 : vector<8x16xf32>
    %c95 = arith.constant 95 : index
    %374 = memref.load %arg3[%c95] : memref<648xf32, #tpu.memory_space<smem>>
    %375 = vector.broadcast %374 : f32 to vector<8x16xf32>
    %376 = arith.mulf %375, %353 : vector<8x16xf32>
    %377 = arith.addf %303, %376 : vector<8x16xf32>
    %c96 = arith.constant 96 : index
    %378 = memref.load %arg3[%c96] : memref<648xf32, #tpu.memory_space<smem>>
    %379 = vector.broadcast %378 : f32 to vector<8x16xf32>
    %380 = arith.mulf %379, %353 : vector<8x16xf32>
    %381 = arith.addf %307, %380 : vector<8x16xf32>
    %c97 = arith.constant 97 : index
    %382 = memref.load %arg3[%c97] : memref<648xf32, #tpu.memory_space<smem>>
    %383 = vector.broadcast %382 : f32 to vector<8x16xf32>
    %384 = arith.mulf %383, %353 : vector<8x16xf32>
    %385 = arith.addf %311, %384 : vector<8x16xf32>
    %c98 = arith.constant 98 : index
    %386 = memref.load %arg3[%c98] : memref<648xf32, #tpu.memory_space<smem>>
    %387 = vector.broadcast %386 : f32 to vector<8x16xf32>
    %388 = arith.mulf %387, %353 : vector<8x16xf32>
    %389 = arith.addf %315, %388 : vector<8x16xf32>
    %c99 = arith.constant 99 : index
    %390 = memref.load %arg3[%c99] : memref<648xf32, #tpu.memory_space<smem>>
    %391 = vector.broadcast %390 : f32 to vector<8x16xf32>
    %392 = arith.mulf %391, %353 : vector<8x16xf32>
    %393 = arith.addf %319, %392 : vector<8x16xf32>
    %c100 = arith.constant 100 : index
    %394 = memref.load %arg3[%c100] : memref<648xf32, #tpu.memory_space<smem>>
    %395 = vector.broadcast %394 : f32 to vector<8x16xf32>
    %396 = arith.mulf %395, %353 : vector<8x16xf32>
    %397 = arith.addf %323, %396 : vector<8x16xf32>
    %c101 = arith.constant 101 : index
    %398 = memref.load %arg3[%c101] : memref<648xf32, #tpu.memory_space<smem>>
    %399 = vector.broadcast %398 : f32 to vector<8x16xf32>
    %400 = arith.mulf %399, %353 : vector<8x16xf32>
    %401 = arith.addf %327, %400 : vector<8x16xf32>
    %c102 = arith.constant 102 : index
    %402 = memref.load %arg3[%c102] : memref<648xf32, #tpu.memory_space<smem>>
    %403 = vector.broadcast %402 : f32 to vector<8x16xf32>
    %404 = arith.mulf %403, %353 : vector<8x16xf32>
    %405 = arith.addf %331, %404 : vector<8x16xf32>
    %c103 = arith.constant 103 : index
    %406 = memref.load %arg3[%c103] : memref<648xf32, #tpu.memory_space<smem>>
    %407 = vector.broadcast %406 : f32 to vector<8x16xf32>
    %408 = arith.mulf %407, %353 : vector<8x16xf32>
    %409 = arith.addf %335, %408 : vector<8x16xf32>
    %c104 = arith.constant 104 : index
    %410 = memref.load %arg3[%c104] : memref<648xf32, #tpu.memory_space<smem>>
    %411 = vector.broadcast %410 : f32 to vector<8x16xf32>
    %412 = arith.mulf %411, %353 : vector<8x16xf32>
    %413 = arith.addf %339, %412 : vector<8x16xf32>
    %c105 = arith.constant 105 : index
    %414 = memref.load %arg3[%c105] : memref<648xf32, #tpu.memory_space<smem>>
    %415 = vector.broadcast %414 : f32 to vector<8x16xf32>
    %416 = arith.mulf %415, %353 : vector<8x16xf32>
    %417 = arith.addf %343, %416 : vector<8x16xf32>
    %c106 = arith.constant 106 : index
    %418 = memref.load %arg3[%c106] : memref<648xf32, #tpu.memory_space<smem>>
    %419 = vector.broadcast %418 : f32 to vector<8x16xf32>
    %420 = arith.mulf %419, %353 : vector<8x16xf32>
    %421 = arith.addf %347, %420 : vector<8x16xf32>
    %c107 = arith.constant 107 : index
    %422 = memref.load %arg3[%c107] : memref<648xf32, #tpu.memory_space<smem>>
    %423 = vector.broadcast %422 : f32 to vector<8x16xf32>
    %424 = arith.mulf %423, %353 : vector<8x16xf32>
    %425 = arith.addf %351, %424 : vector<8x16xf32>
    %c0_30 = arith.constant 0 : index
    %c0_31 = arith.constant 0 : index
    %c2_32 = arith.constant 2 : index
    %c0_33 = arith.constant 0 : index
    %c1_34 = arith.constant 1 : index
    %426 = vector.load %arg2[%c0_30, %c0_31, %c2_32, %c0_33, %c1_34] : memref<1x1x4x10x18xf32, #tpu.memory_space<vmem>>, vector<1x1x1x8x16xf32>
    %427 = vector.shape_cast %426 : vector<1x1x1x8x16xf32> to vector<8x16xf32>
    %c108 = arith.constant 108 : index
    %428 = memref.load %arg3[%c108] : memref<648xf32, #tpu.memory_space<smem>>
    %429 = vector.broadcast %428 : f32 to vector<8x16xf32>
    %430 = arith.mulf %429, %427 : vector<8x16xf32>
    %431 = arith.addf %357, %430 : vector<8x16xf32>
    %c109 = arith.constant 109 : index
    %432 = memref.load %arg3[%c109] : memref<648xf32, #tpu.memory_space<smem>>
    %433 = vector.broadcast %432 : f32 to vector<8x16xf32>
    %434 = arith.mulf %433, %427 : vector<8x16xf32>
    %435 = arith.addf %361, %434 : vector<8x16xf32>
    %c110 = arith.constant 110 : index
    %436 = memref.load %arg3[%c110] : memref<648xf32, #tpu.memory_space<smem>>
    %437 = vector.broadcast %436 : f32 to vector<8x16xf32>
    %438 = arith.mulf %437, %427 : vector<8x16xf32>
    %439 = arith.addf %365, %438 : vector<8x16xf32>
    %c111 = arith.constant 111 : index
    %440 = memref.load %arg3[%c111] : memref<648xf32, #tpu.memory_space<smem>>
    %441 = vector.broadcast %440 : f32 to vector<8x16xf32>
    %442 = arith.mulf %441, %427 : vector<8x16xf32>
    %443 = arith.addf %369, %442 : vector<8x16xf32>
    %c112 = arith.constant 112 : index
    %444 = memref.load %arg3[%c112] : memref<648xf32, #tpu.memory_space<smem>>
    %445 = vector.broadcast %444 : f32 to vector<8x16xf32>
    %446 = arith.mulf %445, %427 : vector<8x16xf32>
    %447 = arith.addf %373, %446 : vector<8x16xf32>
    %c113 = arith.constant 113 : index
    %448 = memref.load %arg3[%c113] : memref<648xf32, #tpu.memory_space<smem>>
    %449 = vector.broadcast %448 : f32 to vector<8x16xf32>
    %450 = arith.mulf %449, %427 : vector<8x16xf32>
    %451 = arith.addf %377, %450 : vector<8x16xf32>
    %c114 = arith.constant 114 : index
    %452 = memref.load %arg3[%c114] : memref<648xf32, #tpu.memory_space<smem>>
    %453 = vector.broadcast %452 : f32 to vector<8x16xf32>
    %454 = arith.mulf %453, %427 : vector<8x16xf32>
    %455 = arith.addf %381, %454 : vector<8x16xf32>
    %c115 = arith.constant 115 : index
    %456 = memref.load %arg3[%c115] : memref<648xf32, #tpu.memory_space<smem>>
    %457 = vector.broadcast %456 : f32 to vector<8x16xf32>
    %458 = arith.mulf %457, %427 : vector<8x16xf32>
    %459 = arith.addf %385, %458 : vector<8x16xf32>
    %c116 = arith.constant 116 : index
    %460 = memref.load %arg3[%c116] : memref<648xf32, #tpu.memory_space<smem>>
    %461 = vector.broadcast %460 : f32 to vector<8x16xf32>
    %462 = arith.mulf %461, %427 : vector<8x16xf32>
    %463 = arith.addf %389, %462 : vector<8x16xf32>
    %c117 = arith.constant 117 : index
    %464 = memref.load %arg3[%c117] : memref<648xf32, #tpu.memory_space<smem>>
    %465 = vector.broadcast %464 : f32 to vector<8x16xf32>
    %466 = arith.mulf %465, %427 : vector<8x16xf32>
    %467 = arith.addf %393, %466 : vector<8x16xf32>
    %c118 = arith.constant 118 : index
    %468 = memref.load %arg3[%c118] : memref<648xf32, #tpu.memory_space<smem>>
    %469 = vector.broadcast %468 : f32 to vector<8x16xf32>
    %470 = arith.mulf %469, %427 : vector<8x16xf32>
    %471 = arith.addf %397, %470 : vector<8x16xf32>
    %c119 = arith.constant 119 : index
    %472 = memref.load %arg3[%c119] : memref<648xf32, #tpu.memory_space<smem>>
    %473 = vector.broadcast %472 : f32 to vector<8x16xf32>
    %474 = arith.mulf %473, %427 : vector<8x16xf32>
    %475 = arith.addf %401, %474 : vector<8x16xf32>
    %c120 = arith.constant 120 : index
    %476 = memref.load %arg3[%c120] : memref<648xf32, #tpu.memory_space<smem>>
    %477 = vector.broadcast %476 : f32 to vector<8x16xf32>
    %478 = arith.mulf %477, %427 : vector<8x16xf32>
    %479 = arith.addf %405, %478 : vector<8x16xf32>
    %c121 = arith.constant 121 : index
    %480 = memref.load %arg3[%c121] : memref<648xf32, #tpu.memory_space<smem>>
    %481 = vector.broadcast %480 : f32 to vector<8x16xf32>
    %482 = arith.mulf %481, %427 : vector<8x16xf32>
    %483 = arith.addf %409, %482 : vector<8x16xf32>
    %c122 = arith.constant 122 : index
    %484 = memref.load %arg3[%c122] : memref<648xf32, #tpu.memory_space<smem>>
    %485 = vector.broadcast %484 : f32 to vector<8x16xf32>
    %486 = arith.mulf %485, %427 : vector<8x16xf32>
    %487 = arith.addf %413, %486 : vector<8x16xf32>
    %c123 = arith.constant 123 : index
    %488 = memref.load %arg3[%c123] : memref<648xf32, #tpu.memory_space<smem>>
    %489 = vector.broadcast %488 : f32 to vector<8x16xf32>
    %490 = arith.mulf %489, %427 : vector<8x16xf32>
    %491 = arith.addf %417, %490 : vector<8x16xf32>
    %c124 = arith.constant 124 : index
    %492 = memref.load %arg3[%c124] : memref<648xf32, #tpu.memory_space<smem>>
    %493 = vector.broadcast %492 : f32 to vector<8x16xf32>
    %494 = arith.mulf %493, %427 : vector<8x16xf32>
    %495 = arith.addf %421, %494 : vector<8x16xf32>
    %c125 = arith.constant 125 : index
    %496 = memref.load %arg3[%c125] : memref<648xf32, #tpu.memory_space<smem>>
    %497 = vector.broadcast %496 : f32 to vector<8x16xf32>
    %498 = arith.mulf %497, %427 : vector<8x16xf32>
    %499 = arith.addf %425, %498 : vector<8x16xf32>
    %c0_35 = arith.constant 0 : index
    %c0_36 = arith.constant 0 : index
    %c3_37 = arith.constant 3 : index
    %c0_38 = arith.constant 0 : index
    %c1_39 = arith.constant 1 : index
    %500 = vector.load %arg2[%c0_35, %c0_36, %c3_37, %c0_38, %c1_39] : memref<1x1x4x10x18xf32, #tpu.memory_space<vmem>>, vector<1x1x1x8x16xf32>
    %501 = vector.shape_cast %500 : vector<1x1x1x8x16xf32> to vector<8x16xf32>
    %c126 = arith.constant 126 : index
    %502 = memref.load %arg3[%c126] : memref<648xf32, #tpu.memory_space<smem>>
    %503 = vector.broadcast %502 : f32 to vector<8x16xf32>
    %504 = arith.mulf %503, %501 : vector<8x16xf32>
    %505 = arith.addf %431, %504 : vector<8x16xf32>
    %c127 = arith.constant 127 : index
    %506 = memref.load %arg3[%c127] : memref<648xf32, #tpu.memory_space<smem>>
    %507 = vector.broadcast %506 : f32 to vector<8x16xf32>
    %508 = arith.mulf %507, %501 : vector<8x16xf32>
    %509 = arith.addf %435, %508 : vector<8x16xf32>
    %c128 = arith.constant 128 : index
    %510 = memref.load %arg3[%c128] : memref<648xf32, #tpu.memory_space<smem>>
    %511 = vector.broadcast %510 : f32 to vector<8x16xf32>
    %512 = arith.mulf %511, %501 : vector<8x16xf32>
    %513 = arith.addf %439, %512 : vector<8x16xf32>
    %c129 = arith.constant 129 : index
    %514 = memref.load %arg3[%c129] : memref<648xf32, #tpu.memory_space<smem>>
    %515 = vector.broadcast %514 : f32 to vector<8x16xf32>
    %516 = arith.mulf %515, %501 : vector<8x16xf32>
    %517 = arith.addf %443, %516 : vector<8x16xf32>
    %c130 = arith.constant 130 : index
    %518 = memref.load %arg3[%c130] : memref<648xf32, #tpu.memory_space<smem>>
    %519 = vector.broadcast %518 : f32 to vector<8x16xf32>
    %520 = arith.mulf %519, %501 : vector<8x16xf32>
    %521 = arith.addf %447, %520 : vector<8x16xf32>
    %c131 = arith.constant 131 : index
    %522 = memref.load %arg3[%c131] : memref<648xf32, #tpu.memory_space<smem>>
    %523 = vector.broadcast %522 : f32 to vector<8x16xf32>
    %524 = arith.mulf %523, %501 : vector<8x16xf32>
    %525 = arith.addf %451, %524 : vector<8x16xf32>
    %c132 = arith.constant 132 : index
    %526 = memref.load %arg3[%c132] : memref<648xf32, #tpu.memory_space<smem>>
    %527 = vector.broadcast %526 : f32 to vector<8x16xf32>
    %528 = arith.mulf %527, %501 : vector<8x16xf32>
    %529 = arith.addf %455, %528 : vector<8x16xf32>
    %c133 = arith.constant 133 : index
    %530 = memref.load %arg3[%c133] : memref<648xf32, #tpu.memory_space<smem>>
    %531 = vector.broadcast %530 : f32 to vector<8x16xf32>
    %532 = arith.mulf %531, %501 : vector<8x16xf32>
    %533 = arith.addf %459, %532 : vector<8x16xf32>
    %c134 = arith.constant 134 : index
    %534 = memref.load %arg3[%c134] : memref<648xf32, #tpu.memory_space<smem>>
    %535 = vector.broadcast %534 : f32 to vector<8x16xf32>
    %536 = arith.mulf %535, %501 : vector<8x16xf32>
    %537 = arith.addf %463, %536 : vector<8x16xf32>
    %c135 = arith.constant 135 : index
    %538 = memref.load %arg3[%c135] : memref<648xf32, #tpu.memory_space<smem>>
    %539 = vector.broadcast %538 : f32 to vector<8x16xf32>
    %540 = arith.mulf %539, %501 : vector<8x16xf32>
    %541 = arith.addf %467, %540 : vector<8x16xf32>
    %c136 = arith.constant 136 : index
    %542 = memref.load %arg3[%c136] : memref<648xf32, #tpu.memory_space<smem>>
    %543 = vector.broadcast %542 : f32 to vector<8x16xf32>
    %544 = arith.mulf %543, %501 : vector<8x16xf32>
    %545 = arith.addf %471, %544 : vector<8x16xf32>
    %c137 = arith.constant 137 : index
    %546 = memref.load %arg3[%c137] : memref<648xf32, #tpu.memory_space<smem>>
    %547 = vector.broadcast %546 : f32 to vector<8x16xf32>
    %548 = arith.mulf %547, %501 : vector<8x16xf32>
    %549 = arith.addf %475, %548 : vector<8x16xf32>
    %c138 = arith.constant 138 : index
    %550 = memref.load %arg3[%c138] : memref<648xf32, #tpu.memory_space<smem>>
    %551 = vector.broadcast %550 : f32 to vector<8x16xf32>
    %552 = arith.mulf %551, %501 : vector<8x16xf32>
    %553 = arith.addf %479, %552 : vector<8x16xf32>
    %c139 = arith.constant 139 : index
    %554 = memref.load %arg3[%c139] : memref<648xf32, #tpu.memory_space<smem>>
    %555 = vector.broadcast %554 : f32 to vector<8x16xf32>
    %556 = arith.mulf %555, %501 : vector<8x16xf32>
    %557 = arith.addf %483, %556 : vector<8x16xf32>
    %c140 = arith.constant 140 : index
    %558 = memref.load %arg3[%c140] : memref<648xf32, #tpu.memory_space<smem>>
    %559 = vector.broadcast %558 : f32 to vector<8x16xf32>
    %560 = arith.mulf %559, %501 : vector<8x16xf32>
    %561 = arith.addf %487, %560 : vector<8x16xf32>
    %c141 = arith.constant 141 : index
    %562 = memref.load %arg3[%c141] : memref<648xf32, #tpu.memory_space<smem>>
    %563 = vector.broadcast %562 : f32 to vector<8x16xf32>
    %564 = arith.mulf %563, %501 : vector<8x16xf32>
    %565 = arith.addf %491, %564 : vector<8x16xf32>
    %c142 = arith.constant 142 : index
    %566 = memref.load %arg3[%c142] : memref<648xf32, #tpu.memory_space<smem>>
    %567 = vector.broadcast %566 : f32 to vector<8x16xf32>
    %568 = arith.mulf %567, %501 : vector<8x16xf32>
    %569 = arith.addf %495, %568 : vector<8x16xf32>
    %c143 = arith.constant 143 : index
    %570 = memref.load %arg3[%c143] : memref<648xf32, #tpu.memory_space<smem>>
    %571 = vector.broadcast %570 : f32 to vector<8x16xf32>
    %572 = arith.mulf %571, %501 : vector<8x16xf32>
    %573 = arith.addf %499, %572 : vector<8x16xf32>
    %c0_40 = arith.constant 0 : index
    %c0_41 = arith.constant 0 : index
    %c0_42 = arith.constant 0 : index
    %c0_43 = arith.constant 0 : index
    %c2_44 = arith.constant 2 : index
    %574 = vector.load %arg2[%c0_40, %c0_41, %c0_42, %c0_43, %c2_44] : memref<1x1x4x10x18xf32, #tpu.memory_space<vmem>>, vector<1x1x1x8x16xf32>
    %575 = vector.shape_cast %574 : vector<1x1x1x8x16xf32> to vector<8x16xf32>
    %c144 = arith.constant 144 : index
    %576 = memref.load %arg3[%c144] : memref<648xf32, #tpu.memory_space<smem>>
    %577 = vector.broadcast %576 : f32 to vector<8x16xf32>
    %578 = arith.mulf %577, %575 : vector<8x16xf32>
    %579 = arith.addf %505, %578 : vector<8x16xf32>
    %c145 = arith.constant 145 : index
    %580 = memref.load %arg3[%c145] : memref<648xf32, #tpu.memory_space<smem>>
    %581 = vector.broadcast %580 : f32 to vector<8x16xf32>
    %582 = arith.mulf %581, %575 : vector<8x16xf32>
    %583 = arith.addf %509, %582 : vector<8x16xf32>
    %c146 = arith.constant 146 : index
    %584 = memref.load %arg3[%c146] : memref<648xf32, #tpu.memory_space<smem>>
    %585 = vector.broadcast %584 : f32 to vector<8x16xf32>
    %586 = arith.mulf %585, %575 : vector<8x16xf32>
    %587 = arith.addf %513, %586 : vector<8x16xf32>
    %c147 = arith.constant 147 : index
    %588 = memref.load %arg3[%c147] : memref<648xf32, #tpu.memory_space<smem>>
    %589 = vector.broadcast %588 : f32 to vector<8x16xf32>
    %590 = arith.mulf %589, %575 : vector<8x16xf32>
    %591 = arith.addf %517, %590 : vector<8x16xf32>
    %c148 = arith.constant 148 : index
    %592 = memref.load %arg3[%c148] : memref<648xf32, #tpu.memory_space<smem>>
    %593 = vector.broadcast %592 : f32 to vector<8x16xf32>
    %594 = arith.mulf %593, %575 : vector<8x16xf32>
    %595 = arith.addf %521, %594 : vector<8x16xf32>
    %c149 = arith.constant 149 : index
    %596 = memref.load %arg3[%c149] : memref<648xf32, #tpu.memory_space<smem>>
    %597 = vector.broadcast %596 : f32 to vector<8x16xf32>
    %598 = arith.mulf %597, %575 : vector<8x16xf32>
    %599 = arith.addf %525, %598 : vector<8x16xf32>
    %c150 = arith.constant 150 : index
    %600 = memref.load %arg3[%c150] : memref<648xf32, #tpu.memory_space<smem>>
    %601 = vector.broadcast %600 : f32 to vector<8x16xf32>
    %602 = arith.mulf %601, %575 : vector<8x16xf32>
    %603 = arith.addf %529, %602 : vector<8x16xf32>
    %c151 = arith.constant 151 : index
    %604 = memref.load %arg3[%c151] : memref<648xf32, #tpu.memory_space<smem>>
    %605 = vector.broadcast %604 : f32 to vector<8x16xf32>
    %606 = arith.mulf %605, %575 : vector<8x16xf32>
    %607 = arith.addf %533, %606 : vector<8x16xf32>
    %c152 = arith.constant 152 : index
    %608 = memref.load %arg3[%c152] : memref<648xf32, #tpu.memory_space<smem>>
    %609 = vector.broadcast %608 : f32 to vector<8x16xf32>
    %610 = arith.mulf %609, %575 : vector<8x16xf32>
    %611 = arith.addf %537, %610 : vector<8x16xf32>
    %c153 = arith.constant 153 : index
    %612 = memref.load %arg3[%c153] : memref<648xf32, #tpu.memory_space<smem>>
    %613 = vector.broadcast %612 : f32 to vector<8x16xf32>
    %614 = arith.mulf %613, %575 : vector<8x16xf32>
    %615 = arith.addf %541, %614 : vector<8x16xf32>
    %c154 = arith.constant 154 : index
    %616 = memref.load %arg3[%c154] : memref<648xf32, #tpu.memory_space<smem>>
    %617 = vector.broadcast %616 : f32 to vector<8x16xf32>
    %618 = arith.mulf %617, %575 : vector<8x16xf32>
    %619 = arith.addf %545, %618 : vector<8x16xf32>
    %c155 = arith.constant 155 : index
    %620 = memref.load %arg3[%c155] : memref<648xf32, #tpu.memory_space<smem>>
    %621 = vector.broadcast %620 : f32 to vector<8x16xf32>
    %622 = arith.mulf %621, %575 : vector<8x16xf32>
    %623 = arith.addf %549, %622 : vector<8x16xf32>
    %c156 = arith.constant 156 : index
    %624 = memref.load %arg3[%c156] : memref<648xf32, #tpu.memory_space<smem>>
    %625 = vector.broadcast %624 : f32 to vector<8x16xf32>
    %626 = arith.mulf %625, %575 : vector<8x16xf32>
    %627 = arith.addf %553, %626 : vector<8x16xf32>
    %c157 = arith.constant 157 : index
    %628 = memref.load %arg3[%c157] : memref<648xf32, #tpu.memory_space<smem>>
    %629 = vector.broadcast %628 : f32 to vector<8x16xf32>
    %630 = arith.mulf %629, %575 : vector<8x16xf32>
    %631 = arith.addf %557, %630 : vector<8x16xf32>
    %c158 = arith.constant 158 : index
    %632 = memref.load %arg3[%c158] : memref<648xf32, #tpu.memory_space<smem>>
    %633 = vector.broadcast %632 : f32 to vector<8x16xf32>
    %634 = arith.mulf %633, %575 : vector<8x16xf32>
    %635 = arith.addf %561, %634 : vector<8x16xf32>
    %c159 = arith.constant 159 : index
    %636 = memref.load %arg3[%c159] : memref<648xf32, #tpu.memory_space<smem>>
    %637 = vector.broadcast %636 : f32 to vector<8x16xf32>
    %638 = arith.mulf %637, %575 : vector<8x16xf32>
    %639 = arith.addf %565, %638 : vector<8x16xf32>
    %c160 = arith.constant 160 : index
    %640 = memref.load %arg3[%c160] : memref<648xf32, #tpu.memory_space<smem>>
    %641 = vector.broadcast %640 : f32 to vector<8x16xf32>
    %642 = arith.mulf %641, %575 : vector<8x16xf32>
    %643 = arith.addf %569, %642 : vector<8x16xf32>
    %c161 = arith.constant 161 : index
    %644 = memref.load %arg3[%c161] : memref<648xf32, #tpu.memory_space<smem>>
    %645 = vector.broadcast %644 : f32 to vector<8x16xf32>
    %646 = arith.mulf %645, %575 : vector<8x16xf32>
    %647 = arith.addf %573, %646 : vector<8x16xf32>
    %c0_45 = arith.constant 0 : index
    %c0_46 = arith.constant 0 : index
    %c1_47 = arith.constant 1 : index
    %c0_48 = arith.constant 0 : index
    %c2_49 = arith.constant 2 : index
    %648 = vector.load %arg2[%c0_45, %c0_46, %c1_47, %c0_48, %c2_49] : memref<1x1x4x10x18xf32, #tpu.memory_space<vmem>>, vector<1x1x1x8x16xf32>
    %649 = vector.shape_cast %648 : vector<1x1x1x8x16xf32> to vector<8x16xf32>
    %c162 = arith.constant 162 : index
    %650 = memref.load %arg3[%c162] : memref<648xf32, #tpu.memory_space<smem>>
    %651 = vector.broadcast %650 : f32 to vector<8x16xf32>
    %652 = arith.mulf %651, %649 : vector<8x16xf32>
    %653 = arith.addf %579, %652 : vector<8x16xf32>
    %c163 = arith.constant 163 : index
    %654 = memref.load %arg3[%c163] : memref<648xf32, #tpu.memory_space<smem>>
    %655 = vector.broadcast %654 : f32 to vector<8x16xf32>
    %656 = arith.mulf %655, %649 : vector<8x16xf32>
    %657 = arith.addf %583, %656 : vector<8x16xf32>
    %c164 = arith.constant 164 : index
    %658 = memref.load %arg3[%c164] : memref<648xf32, #tpu.memory_space<smem>>
    %659 = vector.broadcast %658 : f32 to vector<8x16xf32>
    %660 = arith.mulf %659, %649 : vector<8x16xf32>
    %661 = arith.addf %587, %660 : vector<8x16xf32>
    %c165 = arith.constant 165 : index
    %662 = memref.load %arg3[%c165] : memref<648xf32, #tpu.memory_space<smem>>
    %663 = vector.broadcast %662 : f32 to vector<8x16xf32>
    %664 = arith.mulf %663, %649 : vector<8x16xf32>
    %665 = arith.addf %591, %664 : vector<8x16xf32>
    %c166 = arith.constant 166 : index
    %666 = memref.load %arg3[%c166] : memref<648xf32, #tpu.memory_space<smem>>
    %667 = vector.broadcast %666 : f32 to vector<8x16xf32>
    %668 = arith.mulf %667, %649 : vector<8x16xf32>
    %669 = arith.addf %595, %668 : vector<8x16xf32>
    %c167 = arith.constant 167 : index
    %670 = memref.load %arg3[%c167] : memref<648xf32, #tpu.memory_space<smem>>
    %671 = vector.broadcast %670 : f32 to vector<8x16xf32>
    %672 = arith.mulf %671, %649 : vector<8x16xf32>
    %673 = arith.addf %599, %672 : vector<8x16xf32>
    %c168 = arith.constant 168 : index
    %674 = memref.load %arg3[%c168] : memref<648xf32, #tpu.memory_space<smem>>
    %675 = vector.broadcast %674 : f32 to vector<8x16xf32>
    %676 = arith.mulf %675, %649 : vector<8x16xf32>
    %677 = arith.addf %603, %676 : vector<8x16xf32>
    %c169 = arith.constant 169 : index
    %678 = memref.load %arg3[%c169] : memref<648xf32, #tpu.memory_space<smem>>
    %679 = vector.broadcast %678 : f32 to vector<8x16xf32>
    %680 = arith.mulf %679, %649 : vector<8x16xf32>
    %681 = arith.addf %607, %680 : vector<8x16xf32>
    %c170 = arith.constant 170 : index
    %682 = memref.load %arg3[%c170] : memref<648xf32, #tpu.memory_space<smem>>
    %683 = vector.broadcast %682 : f32 to vector<8x16xf32>
    %684 = arith.mulf %683, %649 : vector<8x16xf32>
    %685 = arith.addf %611, %684 : vector<8x16xf32>
    %c171 = arith.constant 171 : index
    %686 = memref.load %arg3[%c171] : memref<648xf32, #tpu.memory_space<smem>>
    %687 = vector.broadcast %686 : f32 to vector<8x16xf32>
    %688 = arith.mulf %687, %649 : vector<8x16xf32>
    %689 = arith.addf %615, %688 : vector<8x16xf32>
    %c172 = arith.constant 172 : index
    %690 = memref.load %arg3[%c172] : memref<648xf32, #tpu.memory_space<smem>>
    %691 = vector.broadcast %690 : f32 to vector<8x16xf32>
    %692 = arith.mulf %691, %649 : vector<8x16xf32>
    %693 = arith.addf %619, %692 : vector<8x16xf32>
    %c173 = arith.constant 173 : index
    %694 = memref.load %arg3[%c173] : memref<648xf32, #tpu.memory_space<smem>>
    %695 = vector.broadcast %694 : f32 to vector<8x16xf32>
    %696 = arith.mulf %695, %649 : vector<8x16xf32>
    %697 = arith.addf %623, %696 : vector<8x16xf32>
    %c174 = arith.constant 174 : index
    %698 = memref.load %arg3[%c174] : memref<648xf32, #tpu.memory_space<smem>>
    %699 = vector.broadcast %698 : f32 to vector<8x16xf32>
    %700 = arith.mulf %699, %649 : vector<8x16xf32>
    %701 = arith.addf %627, %700 : vector<8x16xf32>
    %c175 = arith.constant 175 : index
    %702 = memref.load %arg3[%c175] : memref<648xf32, #tpu.memory_space<smem>>
    %703 = vector.broadcast %702 : f32 to vector<8x16xf32>
    %704 = arith.mulf %703, %649 : vector<8x16xf32>
    %705 = arith.addf %631, %704 : vector<8x16xf32>
    %c176 = arith.constant 176 : index
    %706 = memref.load %arg3[%c176] : memref<648xf32, #tpu.memory_space<smem>>
    %707 = vector.broadcast %706 : f32 to vector<8x16xf32>
    %708 = arith.mulf %707, %649 : vector<8x16xf32>
    %709 = arith.addf %635, %708 : vector<8x16xf32>
    %c177 = arith.constant 177 : index
    %710 = memref.load %arg3[%c177] : memref<648xf32, #tpu.memory_space<smem>>
    %711 = vector.broadcast %710 : f32 to vector<8x16xf32>
    %712 = arith.mulf %711, %649 : vector<8x16xf32>
    %713 = arith.addf %639, %712 : vector<8x16xf32>
    %c178 = arith.constant 178 : index
    %714 = memref.load %arg3[%c178] : memref<648xf32, #tpu.memory_space<smem>>
    %715 = vector.broadcast %714 : f32 to vector<8x16xf32>
    %716 = arith.mulf %715, %649 : vector<8x16xf32>
    %717 = arith.addf %643, %716 : vector<8x16xf32>
    %c179 = arith.constant 179 : index
    %718 = memref.load %arg3[%c179] : memref<648xf32, #tpu.memory_space<smem>>
    %719 = vector.broadcast %718 : f32 to vector<8x16xf32>
    %720 = arith.mulf %719, %649 : vector<8x16xf32>
    %721 = arith.addf %647, %720 : vector<8x16xf32>
    %c0_50 = arith.constant 0 : index
    %c0_51 = arith.constant 0 : index
    %c2_52 = arith.constant 2 : index
    %c0_53 = arith.constant 0 : index
    %c2_54 = arith.constant 2 : index
    %722 = vector.load %arg2[%c0_50, %c0_51, %c2_52, %c0_53, %c2_54] : memref<1x1x4x10x18xf32, #tpu.memory_space<vmem>>, vector<1x1x1x8x16xf32>
    %723 = vector.shape_cast %722 : vector<1x1x1x8x16xf32> to vector<8x16xf32>
    %c180 = arith.constant 180 : index
    %724 = memref.load %arg3[%c180] : memref<648xf32, #tpu.memory_space<smem>>
    %725 = vector.broadcast %724 : f32 to vector<8x16xf32>
    %726 = arith.mulf %725, %723 : vector<8x16xf32>
    %727 = arith.addf %653, %726 : vector<8x16xf32>
    %c181 = arith.constant 181 : index
    %728 = memref.load %arg3[%c181] : memref<648xf32, #tpu.memory_space<smem>>
    %729 = vector.broadcast %728 : f32 to vector<8x16xf32>
    %730 = arith.mulf %729, %723 : vector<8x16xf32>
    %731 = arith.addf %657, %730 : vector<8x16xf32>
    %c182 = arith.constant 182 : index
    %732 = memref.load %arg3[%c182] : memref<648xf32, #tpu.memory_space<smem>>
    %733 = vector.broadcast %732 : f32 to vector<8x16xf32>
    %734 = arith.mulf %733, %723 : vector<8x16xf32>
    %735 = arith.addf %661, %734 : vector<8x16xf32>
    %c183 = arith.constant 183 : index
    %736 = memref.load %arg3[%c183] : memref<648xf32, #tpu.memory_space<smem>>
    %737 = vector.broadcast %736 : f32 to vector<8x16xf32>
    %738 = arith.mulf %737, %723 : vector<8x16xf32>
    %739 = arith.addf %665, %738 : vector<8x16xf32>
    %c184 = arith.constant 184 : index
    %740 = memref.load %arg3[%c184] : memref<648xf32, #tpu.memory_space<smem>>
    %741 = vector.broadcast %740 : f32 to vector<8x16xf32>
    %742 = arith.mulf %741, %723 : vector<8x16xf32>
    %743 = arith.addf %669, %742 : vector<8x16xf32>
    %c185 = arith.constant 185 : index
    %744 = memref.load %arg3[%c185] : memref<648xf32, #tpu.memory_space<smem>>
    %745 = vector.broadcast %744 : f32 to vector<8x16xf32>
    %746 = arith.mulf %745, %723 : vector<8x16xf32>
    %747 = arith.addf %673, %746 : vector<8x16xf32>
    %c186 = arith.constant 186 : index
    %748 = memref.load %arg3[%c186] : memref<648xf32, #tpu.memory_space<smem>>
    %749 = vector.broadcast %748 : f32 to vector<8x16xf32>
    %750 = arith.mulf %749, %723 : vector<8x16xf32>
    %751 = arith.addf %677, %750 : vector<8x16xf32>
    %c187 = arith.constant 187 : index
    %752 = memref.load %arg3[%c187] : memref<648xf32, #tpu.memory_space<smem>>
    %753 = vector.broadcast %752 : f32 to vector<8x16xf32>
    %754 = arith.mulf %753, %723 : vector<8x16xf32>
    %755 = arith.addf %681, %754 : vector<8x16xf32>
    %c188 = arith.constant 188 : index
    %756 = memref.load %arg3[%c188] : memref<648xf32, #tpu.memory_space<smem>>
    %757 = vector.broadcast %756 : f32 to vector<8x16xf32>
    %758 = arith.mulf %757, %723 : vector<8x16xf32>
    %759 = arith.addf %685, %758 : vector<8x16xf32>
    %c189 = arith.constant 189 : index
    %760 = memref.load %arg3[%c189] : memref<648xf32, #tpu.memory_space<smem>>
    %761 = vector.broadcast %760 : f32 to vector<8x16xf32>
    %762 = arith.mulf %761, %723 : vector<8x16xf32>
    %763 = arith.addf %689, %762 : vector<8x16xf32>
    %c190 = arith.constant 190 : index
    %764 = memref.load %arg3[%c190] : memref<648xf32, #tpu.memory_space<smem>>
    %765 = vector.broadcast %764 : f32 to vector<8x16xf32>
    %766 = arith.mulf %765, %723 : vector<8x16xf32>
    %767 = arith.addf %693, %766 : vector<8x16xf32>
    %c191 = arith.constant 191 : index
    %768 = memref.load %arg3[%c191] : memref<648xf32, #tpu.memory_space<smem>>
    %769 = vector.broadcast %768 : f32 to vector<8x16xf32>
    %770 = arith.mulf %769, %723 : vector<8x16xf32>
    %771 = arith.addf %697, %770 : vector<8x16xf32>
    %c192 = arith.constant 192 : index
    %772 = memref.load %arg3[%c192] : memref<648xf32, #tpu.memory_space<smem>>
    %773 = vector.broadcast %772 : f32 to vector<8x16xf32>
    %774 = arith.mulf %773, %723 : vector<8x16xf32>
    %775 = arith.addf %701, %774 : vector<8x16xf32>
    %c193 = arith.constant 193 : index
    %776 = memref.load %arg3[%c193] : memref<648xf32, #tpu.memory_space<smem>>
    %777 = vector.broadcast %776 : f32 to vector<8x16xf32>
    %778 = arith.mulf %777, %723 : vector<8x16xf32>
    %779 = arith.addf %705, %778 : vector<8x16xf32>
    %c194 = arith.constant 194 : index
    %780 = memref.load %arg3[%c194] : memref<648xf32, #tpu.memory_space<smem>>
    %781 = vector.broadcast %780 : f32 to vector<8x16xf32>
    %782 = arith.mulf %781, %723 : vector<8x16xf32>
    %783 = arith.addf %709, %782 : vector<8x16xf32>
    %c195 = arith.constant 195 : index
    %784 = memref.load %arg3[%c195] : memref<648xf32, #tpu.memory_space<smem>>
    %785 = vector.broadcast %784 : f32 to vector<8x16xf32>
    %786 = arith.mulf %785, %723 : vector<8x16xf32>
    %787 = arith.addf %713, %786 : vector<8x16xf32>
    %c196 = arith.constant 196 : index
    %788 = memref.load %arg3[%c196] : memref<648xf32, #tpu.memory_space<smem>>
    %789 = vector.broadcast %788 : f32 to vector<8x16xf32>
    %790 = arith.mulf %789, %723 : vector<8x16xf32>
    %791 = arith.addf %717, %790 : vector<8x16xf32>
    %c197 = arith.constant 197 : index
    %792 = memref.load %arg3[%c197] : memref<648xf32, #tpu.memory_space<smem>>
    %793 = vector.broadcast %792 : f32 to vector<8x16xf32>
    %794 = arith.mulf %793, %723 : vector<8x16xf32>
    %795 = arith.addf %721, %794 : vector<8x16xf32>
    %c0_55 = arith.constant 0 : index
    %c0_56 = arith.constant 0 : index
    %c3_57 = arith.constant 3 : index
    %c0_58 = arith.constant 0 : index
    %c2_59 = arith.constant 2 : index
    %796 = vector.load %arg2[%c0_55, %c0_56, %c3_57, %c0_58, %c2_59] : memref<1x1x4x10x18xf32, #tpu.memory_space<vmem>>, vector<1x1x1x8x16xf32>
    %797 = vector.shape_cast %796 : vector<1x1x1x8x16xf32> to vector<8x16xf32>
    %c198 = arith.constant 198 : index
    %798 = memref.load %arg3[%c198] : memref<648xf32, #tpu.memory_space<smem>>
    %799 = vector.broadcast %798 : f32 to vector<8x16xf32>
    %800 = arith.mulf %799, %797 : vector<8x16xf32>
    %801 = arith.addf %727, %800 : vector<8x16xf32>
    %c199 = arith.constant 199 : index
    %802 = memref.load %arg3[%c199] : memref<648xf32, #tpu.memory_space<smem>>
    %803 = vector.broadcast %802 : f32 to vector<8x16xf32>
    %804 = arith.mulf %803, %797 : vector<8x16xf32>
    %805 = arith.addf %731, %804 : vector<8x16xf32>
    %c200 = arith.constant 200 : index
    %806 = memref.load %arg3[%c200] : memref<648xf32, #tpu.memory_space<smem>>
    %807 = vector.broadcast %806 : f32 to vector<8x16xf32>
    %808 = arith.mulf %807, %797 : vector<8x16xf32>
    %809 = arith.addf %735, %808 : vector<8x16xf32>
    %c201 = arith.constant 201 : index
    %810 = memref.load %arg3[%c201] : memref<648xf32, #tpu.memory_space<smem>>
    %811 = vector.broadcast %810 : f32 to vector<8x16xf32>
    %812 = arith.mulf %811, %797 : vector<8x16xf32>
    %813 = arith.addf %739, %812 : vector<8x16xf32>
    %c202 = arith.constant 202 : index
    %814 = memref.load %arg3[%c202] : memref<648xf32, #tpu.memory_space<smem>>
    %815 = vector.broadcast %814 : f32 to vector<8x16xf32>
    %816 = arith.mulf %815, %797 : vector<8x16xf32>
    %817 = arith.addf %743, %816 : vector<8x16xf32>
    %c203 = arith.constant 203 : index
    %818 = memref.load %arg3[%c203] : memref<648xf32, #tpu.memory_space<smem>>
    %819 = vector.broadcast %818 : f32 to vector<8x16xf32>
    %820 = arith.mulf %819, %797 : vector<8x16xf32>
    %821 = arith.addf %747, %820 : vector<8x16xf32>
    %c204 = arith.constant 204 : index
    %822 = memref.load %arg3[%c204] : memref<648xf32, #tpu.memory_space<smem>>
    %823 = vector.broadcast %822 : f32 to vector<8x16xf32>
    %824 = arith.mulf %823, %797 : vector<8x16xf32>
    %825 = arith.addf %751, %824 : vector<8x16xf32>
    %c205 = arith.constant 205 : index
    %826 = memref.load %arg3[%c205] : memref<648xf32, #tpu.memory_space<smem>>
    %827 = vector.broadcast %826 : f32 to vector<8x16xf32>
    %828 = arith.mulf %827, %797 : vector<8x16xf32>
    %829 = arith.addf %755, %828 : vector<8x16xf32>
    %c206 = arith.constant 206 : index
    %830 = memref.load %arg3[%c206] : memref<648xf32, #tpu.memory_space<smem>>
    %831 = vector.broadcast %830 : f32 to vector<8x16xf32>
    %832 = arith.mulf %831, %797 : vector<8x16xf32>
    %833 = arith.addf %759, %832 : vector<8x16xf32>
    %c207 = arith.constant 207 : index
    %834 = memref.load %arg3[%c207] : memref<648xf32, #tpu.memory_space<smem>>
    %835 = vector.broadcast %834 : f32 to vector<8x16xf32>
    %836 = arith.mulf %835, %797 : vector<8x16xf32>
    %837 = arith.addf %763, %836 : vector<8x16xf32>
    %c208 = arith.constant 208 : index
    %838 = memref.load %arg3[%c208] : memref<648xf32, #tpu.memory_space<smem>>
    %839 = vector.broadcast %838 : f32 to vector<8x16xf32>
    %840 = arith.mulf %839, %797 : vector<8x16xf32>
    %841 = arith.addf %767, %840 : vector<8x16xf32>
    %c209 = arith.constant 209 : index
    %842 = memref.load %arg3[%c209] : memref<648xf32, #tpu.memory_space<smem>>
    %843 = vector.broadcast %842 : f32 to vector<8x16xf32>
    %844 = arith.mulf %843, %797 : vector<8x16xf32>
    %845 = arith.addf %771, %844 : vector<8x16xf32>
    %c210 = arith.constant 210 : index
    %846 = memref.load %arg3[%c210] : memref<648xf32, #tpu.memory_space<smem>>
    %847 = vector.broadcast %846 : f32 to vector<8x16xf32>
    %848 = arith.mulf %847, %797 : vector<8x16xf32>
    %849 = arith.addf %775, %848 : vector<8x16xf32>
    %c211 = arith.constant 211 : index
    %850 = memref.load %arg3[%c211] : memref<648xf32, #tpu.memory_space<smem>>
    %851 = vector.broadcast %850 : f32 to vector<8x16xf32>
    %852 = arith.mulf %851, %797 : vector<8x16xf32>
    %853 = arith.addf %779, %852 : vector<8x16xf32>
    %c212 = arith.constant 212 : index
    %854 = memref.load %arg3[%c212] : memref<648xf32, #tpu.memory_space<smem>>
    %855 = vector.broadcast %854 : f32 to vector<8x16xf32>
    %856 = arith.mulf %855, %797 : vector<8x16xf32>
    %857 = arith.addf %783, %856 : vector<8x16xf32>
    %c213 = arith.constant 213 : index
    %858 = memref.load %arg3[%c213] : memref<648xf32, #tpu.memory_space<smem>>
    %859 = vector.broadcast %858 : f32 to vector<8x16xf32>
    %860 = arith.mulf %859, %797 : vector<8x16xf32>
    %861 = arith.addf %787, %860 : vector<8x16xf32>
    %c214 = arith.constant 214 : index
    %862 = memref.load %arg3[%c214] : memref<648xf32, #tpu.memory_space<smem>>
    %863 = vector.broadcast %862 : f32 to vector<8x16xf32>
    %864 = arith.mulf %863, %797 : vector<8x16xf32>
    %865 = arith.addf %791, %864 : vector<8x16xf32>
    %c215 = arith.constant 215 : index
    %866 = memref.load %arg3[%c215] : memref<648xf32, #tpu.memory_space<smem>>
    %867 = vector.broadcast %866 : f32 to vector<8x16xf32>
    %868 = arith.mulf %867, %797 : vector<8x16xf32>
    %869 = arith.addf %795, %868 : vector<8x16xf32>
    %c0_60 = arith.constant 0 : index
    %c0_61 = arith.constant 0 : index
    %c0_62 = arith.constant 0 : index
    %c1_63 = arith.constant 1 : index
    %c0_64 = arith.constant 0 : index
    %870 = vector.load %arg2[%c0_60, %c0_61, %c0_62, %c1_63, %c0_64] : memref<1x1x4x10x18xf32, #tpu.memory_space<vmem>>, vector<1x1x1x8x16xf32>
    %871 = vector.shape_cast %870 : vector<1x1x1x8x16xf32> to vector<8x16xf32>
    %c216 = arith.constant 216 : index
    %872 = memref.load %arg3[%c216] : memref<648xf32, #tpu.memory_space<smem>>
    %873 = vector.broadcast %872 : f32 to vector<8x16xf32>
    %874 = arith.mulf %873, %871 : vector<8x16xf32>
    %875 = arith.addf %801, %874 : vector<8x16xf32>
    %c217 = arith.constant 217 : index
    %876 = memref.load %arg3[%c217] : memref<648xf32, #tpu.memory_space<smem>>
    %877 = vector.broadcast %876 : f32 to vector<8x16xf32>
    %878 = arith.mulf %877, %871 : vector<8x16xf32>
    %879 = arith.addf %805, %878 : vector<8x16xf32>
    %c218 = arith.constant 218 : index
    %880 = memref.load %arg3[%c218] : memref<648xf32, #tpu.memory_space<smem>>
    %881 = vector.broadcast %880 : f32 to vector<8x16xf32>
    %882 = arith.mulf %881, %871 : vector<8x16xf32>
    %883 = arith.addf %809, %882 : vector<8x16xf32>
    %c219 = arith.constant 219 : index
    %884 = memref.load %arg3[%c219] : memref<648xf32, #tpu.memory_space<smem>>
    %885 = vector.broadcast %884 : f32 to vector<8x16xf32>
    %886 = arith.mulf %885, %871 : vector<8x16xf32>
    %887 = arith.addf %813, %886 : vector<8x16xf32>
    %c220 = arith.constant 220 : index
    %888 = memref.load %arg3[%c220] : memref<648xf32, #tpu.memory_space<smem>>
    %889 = vector.broadcast %888 : f32 to vector<8x16xf32>
    %890 = arith.mulf %889, %871 : vector<8x16xf32>
    %891 = arith.addf %817, %890 : vector<8x16xf32>
    %c221 = arith.constant 221 : index
    %892 = memref.load %arg3[%c221] : memref<648xf32, #tpu.memory_space<smem>>
    %893 = vector.broadcast %892 : f32 to vector<8x16xf32>
    %894 = arith.mulf %893, %871 : vector<8x16xf32>
    %895 = arith.addf %821, %894 : vector<8x16xf32>
    %c222 = arith.constant 222 : index
    %896 = memref.load %arg3[%c222] : memref<648xf32, #tpu.memory_space<smem>>
    %897 = vector.broadcast %896 : f32 to vector<8x16xf32>
    %898 = arith.mulf %897, %871 : vector<8x16xf32>
    %899 = arith.addf %825, %898 : vector<8x16xf32>
    %c223 = arith.constant 223 : index
    %900 = memref.load %arg3[%c223] : memref<648xf32, #tpu.memory_space<smem>>
    %901 = vector.broadcast %900 : f32 to vector<8x16xf32>
    %902 = arith.mulf %901, %871 : vector<8x16xf32>
    %903 = arith.addf %829, %902 : vector<8x16xf32>
    %c224 = arith.constant 224 : index
    %904 = memref.load %arg3[%c224] : memref<648xf32, #tpu.memory_space<smem>>
    %905 = vector.broadcast %904 : f32 to vector<8x16xf32>
    %906 = arith.mulf %905, %871 : vector<8x16xf32>
    %907 = arith.addf %833, %906 : vector<8x16xf32>
    %c225 = arith.constant 225 : index
    %908 = memref.load %arg3[%c225] : memref<648xf32, #tpu.memory_space<smem>>
    %909 = vector.broadcast %908 : f32 to vector<8x16xf32>
    %910 = arith.mulf %909, %871 : vector<8x16xf32>
    %911 = arith.addf %837, %910 : vector<8x16xf32>
    %c226 = arith.constant 226 : index
    %912 = memref.load %arg3[%c226] : memref<648xf32, #tpu.memory_space<smem>>
    %913 = vector.broadcast %912 : f32 to vector<8x16xf32>
    %914 = arith.mulf %913, %871 : vector<8x16xf32>
    %915 = arith.addf %841, %914 : vector<8x16xf32>
    %c227 = arith.constant 227 : index
    %916 = memref.load %arg3[%c227] : memref<648xf32, #tpu.memory_space<smem>>
    %917 = vector.broadcast %916 : f32 to vector<8x16xf32>
    %918 = arith.mulf %917, %871 : vector<8x16xf32>
    %919 = arith.addf %845, %918 : vector<8x16xf32>
    %c228 = arith.constant 228 : index
    %920 = memref.load %arg3[%c228] : memref<648xf32, #tpu.memory_space<smem>>
    %921 = vector.broadcast %920 : f32 to vector<8x16xf32>
    %922 = arith.mulf %921, %871 : vector<8x16xf32>
    %923 = arith.addf %849, %922 : vector<8x16xf32>
    %c229 = arith.constant 229 : index
    %924 = memref.load %arg3[%c229] : memref<648xf32, #tpu.memory_space<smem>>
    %925 = vector.broadcast %924 : f32 to vector<8x16xf32>
    %926 = arith.mulf %925, %871 : vector<8x16xf32>
    %927 = arith.addf %853, %926 : vector<8x16xf32>
    %c230 = arith.constant 230 : index
    %928 = memref.load %arg3[%c230] : memref<648xf32, #tpu.memory_space<smem>>
    %929 = vector.broadcast %928 : f32 to vector<8x16xf32>
    %930 = arith.mulf %929, %871 : vector<8x16xf32>
    %931 = arith.addf %857, %930 : vector<8x16xf32>
    %c231 = arith.constant 231 : index
    %932 = memref.load %arg3[%c231] : memref<648xf32, #tpu.memory_space<smem>>
    %933 = vector.broadcast %932 : f32 to vector<8x16xf32>
    %934 = arith.mulf %933, %871 : vector<8x16xf32>
    %935 = arith.addf %861, %934 : vector<8x16xf32>
    %c232 = arith.constant 232 : index
    %936 = memref.load %arg3[%c232] : memref<648xf32, #tpu.memory_space<smem>>
    %937 = vector.broadcast %936 : f32 to vector<8x16xf32>
    %938 = arith.mulf %937, %871 : vector<8x16xf32>
    %939 = arith.addf %865, %938 : vector<8x16xf32>
    %c233 = arith.constant 233 : index
    %940 = memref.load %arg3[%c233] : memref<648xf32, #tpu.memory_space<smem>>
    %941 = vector.broadcast %940 : f32 to vector<8x16xf32>
    %942 = arith.mulf %941, %871 : vector<8x16xf32>
    %943 = arith.addf %869, %942 : vector<8x16xf32>
    %c0_65 = arith.constant 0 : index
    %c0_66 = arith.constant 0 : index
    %c1_67 = arith.constant 1 : index
    %c1_68 = arith.constant 1 : index
    %c0_69 = arith.constant 0 : index
    %944 = vector.load %arg2[%c0_65, %c0_66, %c1_67, %c1_68, %c0_69] : memref<1x1x4x10x18xf32, #tpu.memory_space<vmem>>, vector<1x1x1x8x16xf32>
    %945 = vector.shape_cast %944 : vector<1x1x1x8x16xf32> to vector<8x16xf32>
    %c234 = arith.constant 234 : index
    %946 = memref.load %arg3[%c234] : memref<648xf32, #tpu.memory_space<smem>>
    %947 = vector.broadcast %946 : f32 to vector<8x16xf32>
    %948 = arith.mulf %947, %945 : vector<8x16xf32>
    %949 = arith.addf %875, %948 : vector<8x16xf32>
    %c235 = arith.constant 235 : index
    %950 = memref.load %arg3[%c235] : memref<648xf32, #tpu.memory_space<smem>>
    %951 = vector.broadcast %950 : f32 to vector<8x16xf32>
    %952 = arith.mulf %951, %945 : vector<8x16xf32>
    %953 = arith.addf %879, %952 : vector<8x16xf32>
    %c236 = arith.constant 236 : index
    %954 = memref.load %arg3[%c236] : memref<648xf32, #tpu.memory_space<smem>>
    %955 = vector.broadcast %954 : f32 to vector<8x16xf32>
    %956 = arith.mulf %955, %945 : vector<8x16xf32>
    %957 = arith.addf %883, %956 : vector<8x16xf32>
    %c237 = arith.constant 237 : index
    %958 = memref.load %arg3[%c237] : memref<648xf32, #tpu.memory_space<smem>>
    %959 = vector.broadcast %958 : f32 to vector<8x16xf32>
    %960 = arith.mulf %959, %945 : vector<8x16xf32>
    %961 = arith.addf %887, %960 : vector<8x16xf32>
    %c238 = arith.constant 238 : index
    %962 = memref.load %arg3[%c238] : memref<648xf32, #tpu.memory_space<smem>>
    %963 = vector.broadcast %962 : f32 to vector<8x16xf32>
    %964 = arith.mulf %963, %945 : vector<8x16xf32>
    %965 = arith.addf %891, %964 : vector<8x16xf32>
    %c239 = arith.constant 239 : index
    %966 = memref.load %arg3[%c239] : memref<648xf32, #tpu.memory_space<smem>>
    %967 = vector.broadcast %966 : f32 to vector<8x16xf32>
    %968 = arith.mulf %967, %945 : vector<8x16xf32>
    %969 = arith.addf %895, %968 : vector<8x16xf32>
    %c240 = arith.constant 240 : index
    %970 = memref.load %arg3[%c240] : memref<648xf32, #tpu.memory_space<smem>>
    %971 = vector.broadcast %970 : f32 to vector<8x16xf32>
    %972 = arith.mulf %971, %945 : vector<8x16xf32>
    %973 = arith.addf %899, %972 : vector<8x16xf32>
    %c241 = arith.constant 241 : index
    %974 = memref.load %arg3[%c241] : memref<648xf32, #tpu.memory_space<smem>>
    %975 = vector.broadcast %974 : f32 to vector<8x16xf32>
    %976 = arith.mulf %975, %945 : vector<8x16xf32>
    %977 = arith.addf %903, %976 : vector<8x16xf32>
    %c242 = arith.constant 242 : index
    %978 = memref.load %arg3[%c242] : memref<648xf32, #tpu.memory_space<smem>>
    %979 = vector.broadcast %978 : f32 to vector<8x16xf32>
    %980 = arith.mulf %979, %945 : vector<8x16xf32>
    %981 = arith.addf %907, %980 : vector<8x16xf32>
    %c243 = arith.constant 243 : index
    %982 = memref.load %arg3[%c243] : memref<648xf32, #tpu.memory_space<smem>>
    %983 = vector.broadcast %982 : f32 to vector<8x16xf32>
    %984 = arith.mulf %983, %945 : vector<8x16xf32>
    %985 = arith.addf %911, %984 : vector<8x16xf32>
    %c244 = arith.constant 244 : index
    %986 = memref.load %arg3[%c244] : memref<648xf32, #tpu.memory_space<smem>>
    %987 = vector.broadcast %986 : f32 to vector<8x16xf32>
    %988 = arith.mulf %987, %945 : vector<8x16xf32>
    %989 = arith.addf %915, %988 : vector<8x16xf32>
    %c245 = arith.constant 245 : index
    %990 = memref.load %arg3[%c245] : memref<648xf32, #tpu.memory_space<smem>>
    %991 = vector.broadcast %990 : f32 to vector<8x16xf32>
    %992 = arith.mulf %991, %945 : vector<8x16xf32>
    %993 = arith.addf %919, %992 : vector<8x16xf32>
    %c246 = arith.constant 246 : index
    %994 = memref.load %arg3[%c246] : memref<648xf32, #tpu.memory_space<smem>>
    %995 = vector.broadcast %994 : f32 to vector<8x16xf32>
    %996 = arith.mulf %995, %945 : vector<8x16xf32>
    %997 = arith.addf %923, %996 : vector<8x16xf32>
    %c247 = arith.constant 247 : index
    %998 = memref.load %arg3[%c247] : memref<648xf32, #tpu.memory_space<smem>>
    %999 = vector.broadcast %998 : f32 to vector<8x16xf32>
    %1000 = arith.mulf %999, %945 : vector<8x16xf32>
    %1001 = arith.addf %927, %1000 : vector<8x16xf32>
    %c248 = arith.constant 248 : index
    %1002 = memref.load %arg3[%c248] : memref<648xf32, #tpu.memory_space<smem>>
    %1003 = vector.broadcast %1002 : f32 to vector<8x16xf32>
    %1004 = arith.mulf %1003, %945 : vector<8x16xf32>
    %1005 = arith.addf %931, %1004 : vector<8x16xf32>
    %c249 = arith.constant 249 : index
    %1006 = memref.load %arg3[%c249] : memref<648xf32, #tpu.memory_space<smem>>
    %1007 = vector.broadcast %1006 : f32 to vector<8x16xf32>
    %1008 = arith.mulf %1007, %945 : vector<8x16xf32>
    %1009 = arith.addf %935, %1008 : vector<8x16xf32>
    %c250 = arith.constant 250 : index
    %1010 = memref.load %arg3[%c250] : memref<648xf32, #tpu.memory_space<smem>>
    %1011 = vector.broadcast %1010 : f32 to vector<8x16xf32>
    %1012 = arith.mulf %1011, %945 : vector<8x16xf32>
    %1013 = arith.addf %939, %1012 : vector<8x16xf32>
    %c251 = arith.constant 251 : index
    %1014 = memref.load %arg3[%c251] : memref<648xf32, #tpu.memory_space<smem>>
    %1015 = vector.broadcast %1014 : f32 to vector<8x16xf32>
    %1016 = arith.mulf %1015, %945 : vector<8x16xf32>
    %1017 = arith.addf %943, %1016 : vector<8x16xf32>
    %c0_70 = arith.constant 0 : index
    %c0_71 = arith.constant 0 : index
    %c2_72 = arith.constant 2 : index
    %c1_73 = arith.constant 1 : index
    %c0_74 = arith.constant 0 : index
    %1018 = vector.load %arg2[%c0_70, %c0_71, %c2_72, %c1_73, %c0_74] : memref<1x1x4x10x18xf32, #tpu.memory_space<vmem>>, vector<1x1x1x8x16xf32>
    %1019 = vector.shape_cast %1018 : vector<1x1x1x8x16xf32> to vector<8x16xf32>
    %c252 = arith.constant 252 : index
    %1020 = memref.load %arg3[%c252] : memref<648xf32, #tpu.memory_space<smem>>
    %1021 = vector.broadcast %1020 : f32 to vector<8x16xf32>
    %1022 = arith.mulf %1021, %1019 : vector<8x16xf32>
    %1023 = arith.addf %949, %1022 : vector<8x16xf32>
    %c253 = arith.constant 253 : index
    %1024 = memref.load %arg3[%c253] : memref<648xf32, #tpu.memory_space<smem>>
    %1025 = vector.broadcast %1024 : f32 to vector<8x16xf32>
    %1026 = arith.mulf %1025, %1019 : vector<8x16xf32>
    %1027 = arith.addf %953, %1026 : vector<8x16xf32>
    %c254 = arith.constant 254 : index
    %1028 = memref.load %arg3[%c254] : memref<648xf32, #tpu.memory_space<smem>>
    %1029 = vector.broadcast %1028 : f32 to vector<8x16xf32>
    %1030 = arith.mulf %1029, %1019 : vector<8x16xf32>
    %1031 = arith.addf %957, %1030 : vector<8x16xf32>
    %c255 = arith.constant 255 : index
    %1032 = memref.load %arg3[%c255] : memref<648xf32, #tpu.memory_space<smem>>
    %1033 = vector.broadcast %1032 : f32 to vector<8x16xf32>
    %1034 = arith.mulf %1033, %1019 : vector<8x16xf32>
    %1035 = arith.addf %961, %1034 : vector<8x16xf32>
    %c256 = arith.constant 256 : index
    %1036 = memref.load %arg3[%c256] : memref<648xf32, #tpu.memory_space<smem>>
    %1037 = vector.broadcast %1036 : f32 to vector<8x16xf32>
    %1038 = arith.mulf %1037, %1019 : vector<8x16xf32>
    %1039 = arith.addf %965, %1038 : vector<8x16xf32>
    %c257 = arith.constant 257 : index
    %1040 = memref.load %arg3[%c257] : memref<648xf32, #tpu.memory_space<smem>>
    %1041 = vector.broadcast %1040 : f32 to vector<8x16xf32>
    %1042 = arith.mulf %1041, %1019 : vector<8x16xf32>
    %1043 = arith.addf %969, %1042 : vector<8x16xf32>
    %c258 = arith.constant 258 : index
    %1044 = memref.load %arg3[%c258] : memref<648xf32, #tpu.memory_space<smem>>
    %1045 = vector.broadcast %1044 : f32 to vector<8x16xf32>
    %1046 = arith.mulf %1045, %1019 : vector<8x16xf32>
    %1047 = arith.addf %973, %1046 : vector<8x16xf32>
    %c259 = arith.constant 259 : index
    %1048 = memref.load %arg3[%c259] : memref<648xf32, #tpu.memory_space<smem>>
    %1049 = vector.broadcast %1048 : f32 to vector<8x16xf32>
    %1050 = arith.mulf %1049, %1019 : vector<8x16xf32>
    %1051 = arith.addf %977, %1050 : vector<8x16xf32>
    %c260 = arith.constant 260 : index
    %1052 = memref.load %arg3[%c260] : memref<648xf32, #tpu.memory_space<smem>>
    %1053 = vector.broadcast %1052 : f32 to vector<8x16xf32>
    %1054 = arith.mulf %1053, %1019 : vector<8x16xf32>
    %1055 = arith.addf %981, %1054 : vector<8x16xf32>
    %c261 = arith.constant 261 : index
    %1056 = memref.load %arg3[%c261] : memref<648xf32, #tpu.memory_space<smem>>
    %1057 = vector.broadcast %1056 : f32 to vector<8x16xf32>
    %1058 = arith.mulf %1057, %1019 : vector<8x16xf32>
    %1059 = arith.addf %985, %1058 : vector<8x16xf32>
    %c262 = arith.constant 262 : index
    %1060 = memref.load %arg3[%c262] : memref<648xf32, #tpu.memory_space<smem>>
    %1061 = vector.broadcast %1060 : f32 to vector<8x16xf32>
    %1062 = arith.mulf %1061, %1019 : vector<8x16xf32>
    %1063 = arith.addf %989, %1062 : vector<8x16xf32>
    %c263 = arith.constant 263 : index
    %1064 = memref.load %arg3[%c263] : memref<648xf32, #tpu.memory_space<smem>>
    %1065 = vector.broadcast %1064 : f32 to vector<8x16xf32>
    %1066 = arith.mulf %1065, %1019 : vector<8x16xf32>
    %1067 = arith.addf %993, %1066 : vector<8x16xf32>
    %c264 = arith.constant 264 : index
    %1068 = memref.load %arg3[%c264] : memref<648xf32, #tpu.memory_space<smem>>
    %1069 = vector.broadcast %1068 : f32 to vector<8x16xf32>
    %1070 = arith.mulf %1069, %1019 : vector<8x16xf32>
    %1071 = arith.addf %997, %1070 : vector<8x16xf32>
    %c265 = arith.constant 265 : index
    %1072 = memref.load %arg3[%c265] : memref<648xf32, #tpu.memory_space<smem>>
    %1073 = vector.broadcast %1072 : f32 to vector<8x16xf32>
    %1074 = arith.mulf %1073, %1019 : vector<8x16xf32>
    %1075 = arith.addf %1001, %1074 : vector<8x16xf32>
    %c266 = arith.constant 266 : index
    %1076 = memref.load %arg3[%c266] : memref<648xf32, #tpu.memory_space<smem>>
    %1077 = vector.broadcast %1076 : f32 to vector<8x16xf32>
    %1078 = arith.mulf %1077, %1019 : vector<8x16xf32>
    %1079 = arith.addf %1005, %1078 : vector<8x16xf32>
    %c267 = arith.constant 267 : index
    %1080 = memref.load %arg3[%c267] : memref<648xf32, #tpu.memory_space<smem>>
    %1081 = vector.broadcast %1080 : f32 to vector<8x16xf32>
    %1082 = arith.mulf %1081, %1019 : vector<8x16xf32>
    %1083 = arith.addf %1009, %1082 : vector<8x16xf32>
    %c268 = arith.constant 268 : index
    %1084 = memref.load %arg3[%c268] : memref<648xf32, #tpu.memory_space<smem>>
    %1085 = vector.broadcast %1084 : f32 to vector<8x16xf32>
    %1086 = arith.mulf %1085, %1019 : vector<8x16xf32>
    %1087 = arith.addf %1013, %1086 : vector<8x16xf32>
    %c269 = arith.constant 269 : index
    %1088 = memref.load %arg3[%c269] : memref<648xf32, #tpu.memory_space<smem>>
    %1089 = vector.broadcast %1088 : f32 to vector<8x16xf32>
    %1090 = arith.mulf %1089, %1019 : vector<8x16xf32>
    %1091 = arith.addf %1017, %1090 : vector<8x16xf32>
    %c0_75 = arith.constant 0 : index
    %c0_76 = arith.constant 0 : index
    %c3_77 = arith.constant 3 : index
    %c1_78 = arith.constant 1 : index
    %c0_79 = arith.constant 0 : index
    %1092 = vector.load %arg2[%c0_75, %c0_76, %c3_77, %c1_78, %c0_79] : memref<1x1x4x10x18xf32, #tpu.memory_space<vmem>>, vector<1x1x1x8x16xf32>
    %1093 = vector.shape_cast %1092 : vector<1x1x1x8x16xf32> to vector<8x16xf32>
    %c270 = arith.constant 270 : index
    %1094 = memref.load %arg3[%c270] : memref<648xf32, #tpu.memory_space<smem>>
    %1095 = vector.broadcast %1094 : f32 to vector<8x16xf32>
    %1096 = arith.mulf %1095, %1093 : vector<8x16xf32>
    %1097 = arith.addf %1023, %1096 : vector<8x16xf32>
    %c271 = arith.constant 271 : index
    %1098 = memref.load %arg3[%c271] : memref<648xf32, #tpu.memory_space<smem>>
    %1099 = vector.broadcast %1098 : f32 to vector<8x16xf32>
    %1100 = arith.mulf %1099, %1093 : vector<8x16xf32>
    %1101 = arith.addf %1027, %1100 : vector<8x16xf32>
    %c272 = arith.constant 272 : index
    %1102 = memref.load %arg3[%c272] : memref<648xf32, #tpu.memory_space<smem>>
    %1103 = vector.broadcast %1102 : f32 to vector<8x16xf32>
    %1104 = arith.mulf %1103, %1093 : vector<8x16xf32>
    %1105 = arith.addf %1031, %1104 : vector<8x16xf32>
    %c273 = arith.constant 273 : index
    %1106 = memref.load %arg3[%c273] : memref<648xf32, #tpu.memory_space<smem>>
    %1107 = vector.broadcast %1106 : f32 to vector<8x16xf32>
    %1108 = arith.mulf %1107, %1093 : vector<8x16xf32>
    %1109 = arith.addf %1035, %1108 : vector<8x16xf32>
    %c274 = arith.constant 274 : index
    %1110 = memref.load %arg3[%c274] : memref<648xf32, #tpu.memory_space<smem>>
    %1111 = vector.broadcast %1110 : f32 to vector<8x16xf32>
    %1112 = arith.mulf %1111, %1093 : vector<8x16xf32>
    %1113 = arith.addf %1039, %1112 : vector<8x16xf32>
    %c275 = arith.constant 275 : index
    %1114 = memref.load %arg3[%c275] : memref<648xf32, #tpu.memory_space<smem>>
    %1115 = vector.broadcast %1114 : f32 to vector<8x16xf32>
    %1116 = arith.mulf %1115, %1093 : vector<8x16xf32>
    %1117 = arith.addf %1043, %1116 : vector<8x16xf32>
    %c276 = arith.constant 276 : index
    %1118 = memref.load %arg3[%c276] : memref<648xf32, #tpu.memory_space<smem>>
    %1119 = vector.broadcast %1118 : f32 to vector<8x16xf32>
    %1120 = arith.mulf %1119, %1093 : vector<8x16xf32>
    %1121 = arith.addf %1047, %1120 : vector<8x16xf32>
    %c277 = arith.constant 277 : index
    %1122 = memref.load %arg3[%c277] : memref<648xf32, #tpu.memory_space<smem>>
    %1123 = vector.broadcast %1122 : f32 to vector<8x16xf32>
    %1124 = arith.mulf %1123, %1093 : vector<8x16xf32>
    %1125 = arith.addf %1051, %1124 : vector<8x16xf32>
    %c278 = arith.constant 278 : index
    %1126 = memref.load %arg3[%c278] : memref<648xf32, #tpu.memory_space<smem>>
    %1127 = vector.broadcast %1126 : f32 to vector<8x16xf32>
    %1128 = arith.mulf %1127, %1093 : vector<8x16xf32>
    %1129 = arith.addf %1055, %1128 : vector<8x16xf32>
    %c279 = arith.constant 279 : index
    %1130 = memref.load %arg3[%c279] : memref<648xf32, #tpu.memory_space<smem>>
    %1131 = vector.broadcast %1130 : f32 to vector<8x16xf32>
    %1132 = arith.mulf %1131, %1093 : vector<8x16xf32>
    %1133 = arith.addf %1059, %1132 : vector<8x16xf32>
    %c280 = arith.constant 280 : index
    %1134 = memref.load %arg3[%c280] : memref<648xf32, #tpu.memory_space<smem>>
    %1135 = vector.broadcast %1134 : f32 to vector<8x16xf32>
    %1136 = arith.mulf %1135, %1093 : vector<8x16xf32>
    %1137 = arith.addf %1063, %1136 : vector<8x16xf32>
    %c281 = arith.constant 281 : index
    %1138 = memref.load %arg3[%c281] : memref<648xf32, #tpu.memory_space<smem>>
    %1139 = vector.broadcast %1138 : f32 to vector<8x16xf32>
    %1140 = arith.mulf %1139, %1093 : vector<8x16xf32>
    %1141 = arith.addf %1067, %1140 : vector<8x16xf32>
    %c282 = arith.constant 282 : index
    %1142 = memref.load %arg3[%c282] : memref<648xf32, #tpu.memory_space<smem>>
    %1143 = vector.broadcast %1142 : f32 to vector<8x16xf32>
    %1144 = arith.mulf %1143, %1093 : vector<8x16xf32>
    %1145 = arith.addf %1071, %1144 : vector<8x16xf32>
    %c283 = arith.constant 283 : index
    %1146 = memref.load %arg3[%c283] : memref<648xf32, #tpu.memory_space<smem>>
    %1147 = vector.broadcast %1146 : f32 to vector<8x16xf32>
    %1148 = arith.mulf %1147, %1093 : vector<8x16xf32>
    %1149 = arith.addf %1075, %1148 : vector<8x16xf32>
    %c284 = arith.constant 284 : index
    %1150 = memref.load %arg3[%c284] : memref<648xf32, #tpu.memory_space<smem>>
    %1151 = vector.broadcast %1150 : f32 to vector<8x16xf32>
    %1152 = arith.mulf %1151, %1093 : vector<8x16xf32>
    %1153 = arith.addf %1079, %1152 : vector<8x16xf32>
    %c285 = arith.constant 285 : index
    %1154 = memref.load %arg3[%c285] : memref<648xf32, #tpu.memory_space<smem>>
    %1155 = vector.broadcast %1154 : f32 to vector<8x16xf32>
    %1156 = arith.mulf %1155, %1093 : vector<8x16xf32>
    %1157 = arith.addf %1083, %1156 : vector<8x16xf32>
    %c286 = arith.constant 286 : index
    %1158 = memref.load %arg3[%c286] : memref<648xf32, #tpu.memory_space<smem>>
    %1159 = vector.broadcast %1158 : f32 to vector<8x16xf32>
    %1160 = arith.mulf %1159, %1093 : vector<8x16xf32>
    %1161 = arith.addf %1087, %1160 : vector<8x16xf32>
    %c287 = arith.constant 287 : index
    %1162 = memref.load %arg3[%c287] : memref<648xf32, #tpu.memory_space<smem>>
    %1163 = vector.broadcast %1162 : f32 to vector<8x16xf32>
    %1164 = arith.mulf %1163, %1093 : vector<8x16xf32>
    %1165 = arith.addf %1091, %1164 : vector<8x16xf32>
    %c0_80 = arith.constant 0 : index
    %c0_81 = arith.constant 0 : index
    %c0_82 = arith.constant 0 : index
    %c1_83 = arith.constant 1 : index
    %c1_84 = arith.constant 1 : index
    %1166 = vector.load %arg2[%c0_80, %c0_81, %c0_82, %c1_83, %c1_84] : memref<1x1x4x10x18xf32, #tpu.memory_space<vmem>>, vector<1x1x1x8x16xf32>
    %1167 = vector.shape_cast %1166 : vector<1x1x1x8x16xf32> to vector<8x16xf32>
    %c288 = arith.constant 288 : index
    %1168 = memref.load %arg3[%c288] : memref<648xf32, #tpu.memory_space<smem>>
    %1169 = vector.broadcast %1168 : f32 to vector<8x16xf32>
    %1170 = arith.mulf %1169, %1167 : vector<8x16xf32>
    %1171 = arith.addf %1097, %1170 : vector<8x16xf32>
    %c289 = arith.constant 289 : index
    %1172 = memref.load %arg3[%c289] : memref<648xf32, #tpu.memory_space<smem>>
    %1173 = vector.broadcast %1172 : f32 to vector<8x16xf32>
    %1174 = arith.mulf %1173, %1167 : vector<8x16xf32>
    %1175 = arith.addf %1101, %1174 : vector<8x16xf32>
    %c290 = arith.constant 290 : index
    %1176 = memref.load %arg3[%c290] : memref<648xf32, #tpu.memory_space<smem>>
    %1177 = vector.broadcast %1176 : f32 to vector<8x16xf32>
    %1178 = arith.mulf %1177, %1167 : vector<8x16xf32>
    %1179 = arith.addf %1105, %1178 : vector<8x16xf32>
    %c291 = arith.constant 291 : index
    %1180 = memref.load %arg3[%c291] : memref<648xf32, #tpu.memory_space<smem>>
    %1181 = vector.broadcast %1180 : f32 to vector<8x16xf32>
    %1182 = arith.mulf %1181, %1167 : vector<8x16xf32>
    %1183 = arith.addf %1109, %1182 : vector<8x16xf32>
    %c292 = arith.constant 292 : index
    %1184 = memref.load %arg3[%c292] : memref<648xf32, #tpu.memory_space<smem>>
    %1185 = vector.broadcast %1184 : f32 to vector<8x16xf32>
    %1186 = arith.mulf %1185, %1167 : vector<8x16xf32>
    %1187 = arith.addf %1113, %1186 : vector<8x16xf32>
    %c293 = arith.constant 293 : index
    %1188 = memref.load %arg3[%c293] : memref<648xf32, #tpu.memory_space<smem>>
    %1189 = vector.broadcast %1188 : f32 to vector<8x16xf32>
    %1190 = arith.mulf %1189, %1167 : vector<8x16xf32>
    %1191 = arith.addf %1117, %1190 : vector<8x16xf32>
    %c294 = arith.constant 294 : index
    %1192 = memref.load %arg3[%c294] : memref<648xf32, #tpu.memory_space<smem>>
    %1193 = vector.broadcast %1192 : f32 to vector<8x16xf32>
    %1194 = arith.mulf %1193, %1167 : vector<8x16xf32>
    %1195 = arith.addf %1121, %1194 : vector<8x16xf32>
    %c295 = arith.constant 295 : index
    %1196 = memref.load %arg3[%c295] : memref<648xf32, #tpu.memory_space<smem>>
    %1197 = vector.broadcast %1196 : f32 to vector<8x16xf32>
    %1198 = arith.mulf %1197, %1167 : vector<8x16xf32>
    %1199 = arith.addf %1125, %1198 : vector<8x16xf32>
    %c296 = arith.constant 296 : index
    %1200 = memref.load %arg3[%c296] : memref<648xf32, #tpu.memory_space<smem>>
    %1201 = vector.broadcast %1200 : f32 to vector<8x16xf32>
    %1202 = arith.mulf %1201, %1167 : vector<8x16xf32>
    %1203 = arith.addf %1129, %1202 : vector<8x16xf32>
    %c297 = arith.constant 297 : index
    %1204 = memref.load %arg3[%c297] : memref<648xf32, #tpu.memory_space<smem>>
    %1205 = vector.broadcast %1204 : f32 to vector<8x16xf32>
    %1206 = arith.mulf %1205, %1167 : vector<8x16xf32>
    %1207 = arith.addf %1133, %1206 : vector<8x16xf32>
    %c298 = arith.constant 298 : index
    %1208 = memref.load %arg3[%c298] : memref<648xf32, #tpu.memory_space<smem>>
    %1209 = vector.broadcast %1208 : f32 to vector<8x16xf32>
    %1210 = arith.mulf %1209, %1167 : vector<8x16xf32>
    %1211 = arith.addf %1137, %1210 : vector<8x16xf32>
    %c299 = arith.constant 299 : index
    %1212 = memref.load %arg3[%c299] : memref<648xf32, #tpu.memory_space<smem>>
    %1213 = vector.broadcast %1212 : f32 to vector<8x16xf32>
    %1214 = arith.mulf %1213, %1167 : vector<8x16xf32>
    %1215 = arith.addf %1141, %1214 : vector<8x16xf32>
    %c300 = arith.constant 300 : index
    %1216 = memref.load %arg3[%c300] : memref<648xf32, #tpu.memory_space<smem>>
    %1217 = vector.broadcast %1216 : f32 to vector<8x16xf32>
    %1218 = arith.mulf %1217, %1167 : vector<8x16xf32>
    %1219 = arith.addf %1145, %1218 : vector<8x16xf32>
    %c301 = arith.constant 301 : index
    %1220 = memref.load %arg3[%c301] : memref<648xf32, #tpu.memory_space<smem>>
    %1221 = vector.broadcast %1220 : f32 to vector<8x16xf32>
    %1222 = arith.mulf %1221, %1167 : vector<8x16xf32>
    %1223 = arith.addf %1149, %1222 : vector<8x16xf32>
    %c302 = arith.constant 302 : index
    %1224 = memref.load %arg3[%c302] : memref<648xf32, #tpu.memory_space<smem>>
    %1225 = vector.broadcast %1224 : f32 to vector<8x16xf32>
    %1226 = arith.mulf %1225, %1167 : vector<8x16xf32>
    %1227 = arith.addf %1153, %1226 : vector<8x16xf32>
    %c303 = arith.constant 303 : index
    %1228 = memref.load %arg3[%c303] : memref<648xf32, #tpu.memory_space<smem>>
    %1229 = vector.broadcast %1228 : f32 to vector<8x16xf32>
    %1230 = arith.mulf %1229, %1167 : vector<8x16xf32>
    %1231 = arith.addf %1157, %1230 : vector<8x16xf32>
    %c304 = arith.constant 304 : index
    %1232 = memref.load %arg3[%c304] : memref<648xf32, #tpu.memory_space<smem>>
    %1233 = vector.broadcast %1232 : f32 to vector<8x16xf32>
    %1234 = arith.mulf %1233, %1167 : vector<8x16xf32>
    %1235 = arith.addf %1161, %1234 : vector<8x16xf32>
    %c305 = arith.constant 305 : index
    %1236 = memref.load %arg3[%c305] : memref<648xf32, #tpu.memory_space<smem>>
    %1237 = vector.broadcast %1236 : f32 to vector<8x16xf32>
    %1238 = arith.mulf %1237, %1167 : vector<8x16xf32>
    %1239 = arith.addf %1165, %1238 : vector<8x16xf32>
    %c0_85 = arith.constant 0 : index
    %c0_86 = arith.constant 0 : index
    %c1_87 = arith.constant 1 : index
    %c1_88 = arith.constant 1 : index
    %c1_89 = arith.constant 1 : index
    %1240 = vector.load %arg2[%c0_85, %c0_86, %c1_87, %c1_88, %c1_89] : memref<1x1x4x10x18xf32, #tpu.memory_space<vmem>>, vector<1x1x1x8x16xf32>
    %1241 = vector.shape_cast %1240 : vector<1x1x1x8x16xf32> to vector<8x16xf32>
    %c306 = arith.constant 306 : index
    %1242 = memref.load %arg3[%c306] : memref<648xf32, #tpu.memory_space<smem>>
    %1243 = vector.broadcast %1242 : f32 to vector<8x16xf32>
    %1244 = arith.mulf %1243, %1241 : vector<8x16xf32>
    %1245 = arith.addf %1171, %1244 : vector<8x16xf32>
    %c307 = arith.constant 307 : index
    %1246 = memref.load %arg3[%c307] : memref<648xf32, #tpu.memory_space<smem>>
    %1247 = vector.broadcast %1246 : f32 to vector<8x16xf32>
    %1248 = arith.mulf %1247, %1241 : vector<8x16xf32>
    %1249 = arith.addf %1175, %1248 : vector<8x16xf32>
    %c308 = arith.constant 308 : index
    %1250 = memref.load %arg3[%c308] : memref<648xf32, #tpu.memory_space<smem>>
    %1251 = vector.broadcast %1250 : f32 to vector<8x16xf32>
    %1252 = arith.mulf %1251, %1241 : vector<8x16xf32>
    %1253 = arith.addf %1179, %1252 : vector<8x16xf32>
    %c309 = arith.constant 309 : index
    %1254 = memref.load %arg3[%c309] : memref<648xf32, #tpu.memory_space<smem>>
    %1255 = vector.broadcast %1254 : f32 to vector<8x16xf32>
    %1256 = arith.mulf %1255, %1241 : vector<8x16xf32>
    %1257 = arith.addf %1183, %1256 : vector<8x16xf32>
    %c310 = arith.constant 310 : index
    %1258 = memref.load %arg3[%c310] : memref<648xf32, #tpu.memory_space<smem>>
    %1259 = vector.broadcast %1258 : f32 to vector<8x16xf32>
    %1260 = arith.mulf %1259, %1241 : vector<8x16xf32>
    %1261 = arith.addf %1187, %1260 : vector<8x16xf32>
    %c311 = arith.constant 311 : index
    %1262 = memref.load %arg3[%c311] : memref<648xf32, #tpu.memory_space<smem>>
    %1263 = vector.broadcast %1262 : f32 to vector<8x16xf32>
    %1264 = arith.mulf %1263, %1241 : vector<8x16xf32>
    %1265 = arith.addf %1191, %1264 : vector<8x16xf32>
    %c312 = arith.constant 312 : index
    %1266 = memref.load %arg3[%c312] : memref<648xf32, #tpu.memory_space<smem>>
    %1267 = vector.broadcast %1266 : f32 to vector<8x16xf32>
    %1268 = arith.mulf %1267, %1241 : vector<8x16xf32>
    %1269 = arith.addf %1195, %1268 : vector<8x16xf32>
    %c313 = arith.constant 313 : index
    %1270 = memref.load %arg3[%c313] : memref<648xf32, #tpu.memory_space<smem>>
    %1271 = vector.broadcast %1270 : f32 to vector<8x16xf32>
    %1272 = arith.mulf %1271, %1241 : vector<8x16xf32>
    %1273 = arith.addf %1199, %1272 : vector<8x16xf32>
    %c314 = arith.constant 314 : index
    %1274 = memref.load %arg3[%c314] : memref<648xf32, #tpu.memory_space<smem>>
    %1275 = vector.broadcast %1274 : f32 to vector<8x16xf32>
    %1276 = arith.mulf %1275, %1241 : vector<8x16xf32>
    %1277 = arith.addf %1203, %1276 : vector<8x16xf32>
    %c315 = arith.constant 315 : index
    %1278 = memref.load %arg3[%c315] : memref<648xf32, #tpu.memory_space<smem>>
    %1279 = vector.broadcast %1278 : f32 to vector<8x16xf32>
    %1280 = arith.mulf %1279, %1241 : vector<8x16xf32>
    %1281 = arith.addf %1207, %1280 : vector<8x16xf32>
    %c316 = arith.constant 316 : index
    %1282 = memref.load %arg3[%c316] : memref<648xf32, #tpu.memory_space<smem>>
    %1283 = vector.broadcast %1282 : f32 to vector<8x16xf32>
    %1284 = arith.mulf %1283, %1241 : vector<8x16xf32>
    %1285 = arith.addf %1211, %1284 : vector<8x16xf32>
    %c317 = arith.constant 317 : index
    %1286 = memref.load %arg3[%c317] : memref<648xf32, #tpu.memory_space<smem>>
    %1287 = vector.broadcast %1286 : f32 to vector<8x16xf32>
    %1288 = arith.mulf %1287, %1241 : vector<8x16xf32>
    %1289 = arith.addf %1215, %1288 : vector<8x16xf32>
    %c318 = arith.constant 318 : index
    %1290 = memref.load %arg3[%c318] : memref<648xf32, #tpu.memory_space<smem>>
    %1291 = vector.broadcast %1290 : f32 to vector<8x16xf32>
    %1292 = arith.mulf %1291, %1241 : vector<8x16xf32>
    %1293 = arith.addf %1219, %1292 : vector<8x16xf32>
    %c319 = arith.constant 319 : index
    %1294 = memref.load %arg3[%c319] : memref<648xf32, #tpu.memory_space<smem>>
    %1295 = vector.broadcast %1294 : f32 to vector<8x16xf32>
    %1296 = arith.mulf %1295, %1241 : vector<8x16xf32>
    %1297 = arith.addf %1223, %1296 : vector<8x16xf32>
    %c320 = arith.constant 320 : index
    %1298 = memref.load %arg3[%c320] : memref<648xf32, #tpu.memory_space<smem>>
    %1299 = vector.broadcast %1298 : f32 to vector<8x16xf32>
    %1300 = arith.mulf %1299, %1241 : vector<8x16xf32>
    %1301 = arith.addf %1227, %1300 : vector<8x16xf32>
    %c321 = arith.constant 321 : index
    %1302 = memref.load %arg3[%c321] : memref<648xf32, #tpu.memory_space<smem>>
    %1303 = vector.broadcast %1302 : f32 to vector<8x16xf32>
    %1304 = arith.mulf %1303, %1241 : vector<8x16xf32>
    %1305 = arith.addf %1231, %1304 : vector<8x16xf32>
    %c322 = arith.constant 322 : index
    %1306 = memref.load %arg3[%c322] : memref<648xf32, #tpu.memory_space<smem>>
    %1307 = vector.broadcast %1306 : f32 to vector<8x16xf32>
    %1308 = arith.mulf %1307, %1241 : vector<8x16xf32>
    %1309 = arith.addf %1235, %1308 : vector<8x16xf32>
    %c323 = arith.constant 323 : index
    %1310 = memref.load %arg3[%c323] : memref<648xf32, #tpu.memory_space<smem>>
    %1311 = vector.broadcast %1310 : f32 to vector<8x16xf32>
    %1312 = arith.mulf %1311, %1241 : vector<8x16xf32>
    %1313 = arith.addf %1239, %1312 : vector<8x16xf32>
    %c0_90 = arith.constant 0 : index
    %c0_91 = arith.constant 0 : index
    %c2_92 = arith.constant 2 : index
    %c1_93 = arith.constant 1 : index
    %c1_94 = arith.constant 1 : index
    %1314 = vector.load %arg2[%c0_90, %c0_91, %c2_92, %c1_93, %c1_94] : memref<1x1x4x10x18xf32, #tpu.memory_space<vmem>>, vector<1x1x1x8x16xf32>
    %1315 = vector.shape_cast %1314 : vector<1x1x1x8x16xf32> to vector<8x16xf32>
    %c324 = arith.constant 324 : index
    %1316 = memref.load %arg3[%c324] : memref<648xf32, #tpu.memory_space<smem>>
    %1317 = vector.broadcast %1316 : f32 to vector<8x16xf32>
    %1318 = arith.mulf %1317, %1315 : vector<8x16xf32>
    %1319 = arith.addf %1245, %1318 : vector<8x16xf32>
    %c325 = arith.constant 325 : index
    %1320 = memref.load %arg3[%c325] : memref<648xf32, #tpu.memory_space<smem>>
    %1321 = vector.broadcast %1320 : f32 to vector<8x16xf32>
    %1322 = arith.mulf %1321, %1315 : vector<8x16xf32>
    %1323 = arith.addf %1249, %1322 : vector<8x16xf32>
    %c326 = arith.constant 326 : index
    %1324 = memref.load %arg3[%c326] : memref<648xf32, #tpu.memory_space<smem>>
    %1325 = vector.broadcast %1324 : f32 to vector<8x16xf32>
    %1326 = arith.mulf %1325, %1315 : vector<8x16xf32>
    %1327 = arith.addf %1253, %1326 : vector<8x16xf32>
    %c327 = arith.constant 327 : index
    %1328 = memref.load %arg3[%c327] : memref<648xf32, #tpu.memory_space<smem>>
    %1329 = vector.broadcast %1328 : f32 to vector<8x16xf32>
    %1330 = arith.mulf %1329, %1315 : vector<8x16xf32>
    %1331 = arith.addf %1257, %1330 : vector<8x16xf32>
    %c328 = arith.constant 328 : index
    %1332 = memref.load %arg3[%c328] : memref<648xf32, #tpu.memory_space<smem>>
    %1333 = vector.broadcast %1332 : f32 to vector<8x16xf32>
    %1334 = arith.mulf %1333, %1315 : vector<8x16xf32>
    %1335 = arith.addf %1261, %1334 : vector<8x16xf32>
    %c329 = arith.constant 329 : index
    %1336 = memref.load %arg3[%c329] : memref<648xf32, #tpu.memory_space<smem>>
    %1337 = vector.broadcast %1336 : f32 to vector<8x16xf32>
    %1338 = arith.mulf %1337, %1315 : vector<8x16xf32>
    %1339 = arith.addf %1265, %1338 : vector<8x16xf32>
    %c330 = arith.constant 330 : index
    %1340 = memref.load %arg3[%c330] : memref<648xf32, #tpu.memory_space<smem>>
    %1341 = vector.broadcast %1340 : f32 to vector<8x16xf32>
    %1342 = arith.mulf %1341, %1315 : vector<8x16xf32>
    %1343 = arith.addf %1269, %1342 : vector<8x16xf32>
    %c331 = arith.constant 331 : index
    %1344 = memref.load %arg3[%c331] : memref<648xf32, #tpu.memory_space<smem>>
    %1345 = vector.broadcast %1344 : f32 to vector<8x16xf32>
    %1346 = arith.mulf %1345, %1315 : vector<8x16xf32>
    %1347 = arith.addf %1273, %1346 : vector<8x16xf32>
    %c332 = arith.constant 332 : index
    %1348 = memref.load %arg3[%c332] : memref<648xf32, #tpu.memory_space<smem>>
    %1349 = vector.broadcast %1348 : f32 to vector<8x16xf32>
    %1350 = arith.mulf %1349, %1315 : vector<8x16xf32>
    %1351 = arith.addf %1277, %1350 : vector<8x16xf32>
    %c333 = arith.constant 333 : index
    %1352 = memref.load %arg3[%c333] : memref<648xf32, #tpu.memory_space<smem>>
    %1353 = vector.broadcast %1352 : f32 to vector<8x16xf32>
    %1354 = arith.mulf %1353, %1315 : vector<8x16xf32>
    %1355 = arith.addf %1281, %1354 : vector<8x16xf32>
    %c334 = arith.constant 334 : index
    %1356 = memref.load %arg3[%c334] : memref<648xf32, #tpu.memory_space<smem>>
    %1357 = vector.broadcast %1356 : f32 to vector<8x16xf32>
    %1358 = arith.mulf %1357, %1315 : vector<8x16xf32>
    %1359 = arith.addf %1285, %1358 : vector<8x16xf32>
    %c335 = arith.constant 335 : index
    %1360 = memref.load %arg3[%c335] : memref<648xf32, #tpu.memory_space<smem>>
    %1361 = vector.broadcast %1360 : f32 to vector<8x16xf32>
    %1362 = arith.mulf %1361, %1315 : vector<8x16xf32>
    %1363 = arith.addf %1289, %1362 : vector<8x16xf32>
    %c336 = arith.constant 336 : index
    %1364 = memref.load %arg3[%c336] : memref<648xf32, #tpu.memory_space<smem>>
    %1365 = vector.broadcast %1364 : f32 to vector<8x16xf32>
    %1366 = arith.mulf %1365, %1315 : vector<8x16xf32>
    %1367 = arith.addf %1293, %1366 : vector<8x16xf32>
    %c337 = arith.constant 337 : index
    %1368 = memref.load %arg3[%c337] : memref<648xf32, #tpu.memory_space<smem>>
    %1369 = vector.broadcast %1368 : f32 to vector<8x16xf32>
    %1370 = arith.mulf %1369, %1315 : vector<8x16xf32>
    %1371 = arith.addf %1297, %1370 : vector<8x16xf32>
    %c338 = arith.constant 338 : index
    %1372 = memref.load %arg3[%c338] : memref<648xf32, #tpu.memory_space<smem>>
    %1373 = vector.broadcast %1372 : f32 to vector<8x16xf32>
    %1374 = arith.mulf %1373, %1315 : vector<8x16xf32>
    %1375 = arith.addf %1301, %1374 : vector<8x16xf32>
    %c339 = arith.constant 339 : index
    %1376 = memref.load %arg3[%c339] : memref<648xf32, #tpu.memory_space<smem>>
    %1377 = vector.broadcast %1376 : f32 to vector<8x16xf32>
    %1378 = arith.mulf %1377, %1315 : vector<8x16xf32>
    %1379 = arith.addf %1305, %1378 : vector<8x16xf32>
    %c340 = arith.constant 340 : index
    %1380 = memref.load %arg3[%c340] : memref<648xf32, #tpu.memory_space<smem>>
    %1381 = vector.broadcast %1380 : f32 to vector<8x16xf32>
    %1382 = arith.mulf %1381, %1315 : vector<8x16xf32>
    %1383 = arith.addf %1309, %1382 : vector<8x16xf32>
    %c341 = arith.constant 341 : index
    %1384 = memref.load %arg3[%c341] : memref<648xf32, #tpu.memory_space<smem>>
    %1385 = vector.broadcast %1384 : f32 to vector<8x16xf32>
    %1386 = arith.mulf %1385, %1315 : vector<8x16xf32>
    %1387 = arith.addf %1313, %1386 : vector<8x16xf32>
    %c0_95 = arith.constant 0 : index
    %c0_96 = arith.constant 0 : index
    %c3_97 = arith.constant 3 : index
    %c1_98 = arith.constant 1 : index
    %c1_99 = arith.constant 1 : index
    %1388 = vector.load %arg2[%c0_95, %c0_96, %c3_97, %c1_98, %c1_99] : memref<1x1x4x10x18xf32, #tpu.memory_space<vmem>>, vector<1x1x1x8x16xf32>
    %1389 = vector.shape_cast %1388 : vector<1x1x1x8x16xf32> to vector<8x16xf32>
    %c342 = arith.constant 342 : index
    %1390 = memref.load %arg3[%c342] : memref<648xf32, #tpu.memory_space<smem>>
    %1391 = vector.broadcast %1390 : f32 to vector<8x16xf32>
    %1392 = arith.mulf %1391, %1389 : vector<8x16xf32>
    %1393 = arith.addf %1319, %1392 : vector<8x16xf32>
    %c343 = arith.constant 343 : index
    %1394 = memref.load %arg3[%c343] : memref<648xf32, #tpu.memory_space<smem>>
    %1395 = vector.broadcast %1394 : f32 to vector<8x16xf32>
    %1396 = arith.mulf %1395, %1389 : vector<8x16xf32>
    %1397 = arith.addf %1323, %1396 : vector<8x16xf32>
    %c344 = arith.constant 344 : index
    %1398 = memref.load %arg3[%c344] : memref<648xf32, #tpu.memory_space<smem>>
    %1399 = vector.broadcast %1398 : f32 to vector<8x16xf32>
    %1400 = arith.mulf %1399, %1389 : vector<8x16xf32>
    %1401 = arith.addf %1327, %1400 : vector<8x16xf32>
    %c345 = arith.constant 345 : index
    %1402 = memref.load %arg3[%c345] : memref<648xf32, #tpu.memory_space<smem>>
    %1403 = vector.broadcast %1402 : f32 to vector<8x16xf32>
    %1404 = arith.mulf %1403, %1389 : vector<8x16xf32>
    %1405 = arith.addf %1331, %1404 : vector<8x16xf32>
    %c346 = arith.constant 346 : index
    %1406 = memref.load %arg3[%c346] : memref<648xf32, #tpu.memory_space<smem>>
    %1407 = vector.broadcast %1406 : f32 to vector<8x16xf32>
    %1408 = arith.mulf %1407, %1389 : vector<8x16xf32>
    %1409 = arith.addf %1335, %1408 : vector<8x16xf32>
    %c347 = arith.constant 347 : index
    %1410 = memref.load %arg3[%c347] : memref<648xf32, #tpu.memory_space<smem>>
    %1411 = vector.broadcast %1410 : f32 to vector<8x16xf32>
    %1412 = arith.mulf %1411, %1389 : vector<8x16xf32>
    %1413 = arith.addf %1339, %1412 : vector<8x16xf32>
    %c348 = arith.constant 348 : index
    %1414 = memref.load %arg3[%c348] : memref<648xf32, #tpu.memory_space<smem>>
    %1415 = vector.broadcast %1414 : f32 to vector<8x16xf32>
    %1416 = arith.mulf %1415, %1389 : vector<8x16xf32>
    %1417 = arith.addf %1343, %1416 : vector<8x16xf32>
    %c349 = arith.constant 349 : index
    %1418 = memref.load %arg3[%c349] : memref<648xf32, #tpu.memory_space<smem>>
    %1419 = vector.broadcast %1418 : f32 to vector<8x16xf32>
    %1420 = arith.mulf %1419, %1389 : vector<8x16xf32>
    %1421 = arith.addf %1347, %1420 : vector<8x16xf32>
    %c350 = arith.constant 350 : index
    %1422 = memref.load %arg3[%c350] : memref<648xf32, #tpu.memory_space<smem>>
    %1423 = vector.broadcast %1422 : f32 to vector<8x16xf32>
    %1424 = arith.mulf %1423, %1389 : vector<8x16xf32>
    %1425 = arith.addf %1351, %1424 : vector<8x16xf32>
    %c351 = arith.constant 351 : index
    %1426 = memref.load %arg3[%c351] : memref<648xf32, #tpu.memory_space<smem>>
    %1427 = vector.broadcast %1426 : f32 to vector<8x16xf32>
    %1428 = arith.mulf %1427, %1389 : vector<8x16xf32>
    %1429 = arith.addf %1355, %1428 : vector<8x16xf32>
    %c352 = arith.constant 352 : index
    %1430 = memref.load %arg3[%c352] : memref<648xf32, #tpu.memory_space<smem>>
    %1431 = vector.broadcast %1430 : f32 to vector<8x16xf32>
    %1432 = arith.mulf %1431, %1389 : vector<8x16xf32>
    %1433 = arith.addf %1359, %1432 : vector<8x16xf32>
    %c353 = arith.constant 353 : index
    %1434 = memref.load %arg3[%c353] : memref<648xf32, #tpu.memory_space<smem>>
    %1435 = vector.broadcast %1434 : f32 to vector<8x16xf32>
    %1436 = arith.mulf %1435, %1389 : vector<8x16xf32>
    %1437 = arith.addf %1363, %1436 : vector<8x16xf32>
    %c354 = arith.constant 354 : index
    %1438 = memref.load %arg3[%c354] : memref<648xf32, #tpu.memory_space<smem>>
    %1439 = vector.broadcast %1438 : f32 to vector<8x16xf32>
    %1440 = arith.mulf %1439, %1389 : vector<8x16xf32>
    %1441 = arith.addf %1367, %1440 : vector<8x16xf32>
    %c355 = arith.constant 355 : index
    %1442 = memref.load %arg3[%c355] : memref<648xf32, #tpu.memory_space<smem>>
    %1443 = vector.broadcast %1442 : f32 to vector<8x16xf32>
    %1444 = arith.mulf %1443, %1389 : vector<8x16xf32>
    %1445 = arith.addf %1371, %1444 : vector<8x16xf32>
    %c356 = arith.constant 356 : index
    %1446 = memref.load %arg3[%c356] : memref<648xf32, #tpu.memory_space<smem>>
    %1447 = vector.broadcast %1446 : f32 to vector<8x16xf32>
    %1448 = arith.mulf %1447, %1389 : vector<8x16xf32>
    %1449 = arith.addf %1375, %1448 : vector<8x16xf32>
    %c357 = arith.constant 357 : index
    %1450 = memref.load %arg3[%c357] : memref<648xf32, #tpu.memory_space<smem>>
    %1451 = vector.broadcast %1450 : f32 to vector<8x16xf32>
    %1452 = arith.mulf %1451, %1389 : vector<8x16xf32>
    %1453 = arith.addf %1379, %1452 : vector<8x16xf32>
    %c358 = arith.constant 358 : index
    %1454 = memref.load %arg3[%c358] : memref<648xf32, #tpu.memory_space<smem>>
    %1455 = vector.broadcast %1454 : f32 to vector<8x16xf32>
    %1456 = arith.mulf %1455, %1389 : vector<8x16xf32>
    %1457 = arith.addf %1383, %1456 : vector<8x16xf32>
    %c359 = arith.constant 359 : index
    %1458 = memref.load %arg3[%c359] : memref<648xf32, #tpu.memory_space<smem>>
    %1459 = vector.broadcast %1458 : f32 to vector<8x16xf32>
    %1460 = arith.mulf %1459, %1389 : vector<8x16xf32>
    %1461 = arith.addf %1387, %1460 : vector<8x16xf32>
    %c0_100 = arith.constant 0 : index
    %c0_101 = arith.constant 0 : index
    %c0_102 = arith.constant 0 : index
    %c1_103 = arith.constant 1 : index
    %c2_104 = arith.constant 2 : index
    %1462 = vector.load %arg2[%c0_100, %c0_101, %c0_102, %c1_103, %c2_104] : memref<1x1x4x10x18xf32, #tpu.memory_space<vmem>>, vector<1x1x1x8x16xf32>
    %1463 = vector.shape_cast %1462 : vector<1x1x1x8x16xf32> to vector<8x16xf32>
    %c360 = arith.constant 360 : index
    %1464 = memref.load %arg3[%c360] : memref<648xf32, #tpu.memory_space<smem>>
    %1465 = vector.broadcast %1464 : f32 to vector<8x16xf32>
    %1466 = arith.mulf %1465, %1463 : vector<8x16xf32>
    %1467 = arith.addf %1393, %1466 : vector<8x16xf32>
    %c361 = arith.constant 361 : index
    %1468 = memref.load %arg3[%c361] : memref<648xf32, #tpu.memory_space<smem>>
    %1469 = vector.broadcast %1468 : f32 to vector<8x16xf32>
    %1470 = arith.mulf %1469, %1463 : vector<8x16xf32>
    %1471 = arith.addf %1397, %1470 : vector<8x16xf32>
    %c362 = arith.constant 362 : index
    %1472 = memref.load %arg3[%c362] : memref<648xf32, #tpu.memory_space<smem>>
    %1473 = vector.broadcast %1472 : f32 to vector<8x16xf32>
    %1474 = arith.mulf %1473, %1463 : vector<8x16xf32>
    %1475 = arith.addf %1401, %1474 : vector<8x16xf32>
    %c363 = arith.constant 363 : index
    %1476 = memref.load %arg3[%c363] : memref<648xf32, #tpu.memory_space<smem>>
    %1477 = vector.broadcast %1476 : f32 to vector<8x16xf32>
    %1478 = arith.mulf %1477, %1463 : vector<8x16xf32>
    %1479 = arith.addf %1405, %1478 : vector<8x16xf32>
    %c364 = arith.constant 364 : index
    %1480 = memref.load %arg3[%c364] : memref<648xf32, #tpu.memory_space<smem>>
    %1481 = vector.broadcast %1480 : f32 to vector<8x16xf32>
    %1482 = arith.mulf %1481, %1463 : vector<8x16xf32>
    %1483 = arith.addf %1409, %1482 : vector<8x16xf32>
    %c365 = arith.constant 365 : index
    %1484 = memref.load %arg3[%c365] : memref<648xf32, #tpu.memory_space<smem>>
    %1485 = vector.broadcast %1484 : f32 to vector<8x16xf32>
    %1486 = arith.mulf %1485, %1463 : vector<8x16xf32>
    %1487 = arith.addf %1413, %1486 : vector<8x16xf32>
    %c366 = arith.constant 366 : index
    %1488 = memref.load %arg3[%c366] : memref<648xf32, #tpu.memory_space<smem>>
    %1489 = vector.broadcast %1488 : f32 to vector<8x16xf32>
    %1490 = arith.mulf %1489, %1463 : vector<8x16xf32>
    %1491 = arith.addf %1417, %1490 : vector<8x16xf32>
    %c367 = arith.constant 367 : index
    %1492 = memref.load %arg3[%c367] : memref<648xf32, #tpu.memory_space<smem>>
    %1493 = vector.broadcast %1492 : f32 to vector<8x16xf32>
    %1494 = arith.mulf %1493, %1463 : vector<8x16xf32>
    %1495 = arith.addf %1421, %1494 : vector<8x16xf32>
    %c368 = arith.constant 368 : index
    %1496 = memref.load %arg3[%c368] : memref<648xf32, #tpu.memory_space<smem>>
    %1497 = vector.broadcast %1496 : f32 to vector<8x16xf32>
    %1498 = arith.mulf %1497, %1463 : vector<8x16xf32>
    %1499 = arith.addf %1425, %1498 : vector<8x16xf32>
    %c369 = arith.constant 369 : index
    %1500 = memref.load %arg3[%c369] : memref<648xf32, #tpu.memory_space<smem>>
    %1501 = vector.broadcast %1500 : f32 to vector<8x16xf32>
    %1502 = arith.mulf %1501, %1463 : vector<8x16xf32>
    %1503 = arith.addf %1429, %1502 : vector<8x16xf32>
    %c370 = arith.constant 370 : index
    %1504 = memref.load %arg3[%c370] : memref<648xf32, #tpu.memory_space<smem>>
    %1505 = vector.broadcast %1504 : f32 to vector<8x16xf32>
    %1506 = arith.mulf %1505, %1463 : vector<8x16xf32>
    %1507 = arith.addf %1433, %1506 : vector<8x16xf32>
    %c371 = arith.constant 371 : index
    %1508 = memref.load %arg3[%c371] : memref<648xf32, #tpu.memory_space<smem>>
    %1509 = vector.broadcast %1508 : f32 to vector<8x16xf32>
    %1510 = arith.mulf %1509, %1463 : vector<8x16xf32>
    %1511 = arith.addf %1437, %1510 : vector<8x16xf32>
    %c372 = arith.constant 372 : index
    %1512 = memref.load %arg3[%c372] : memref<648xf32, #tpu.memory_space<smem>>
    %1513 = vector.broadcast %1512 : f32 to vector<8x16xf32>
    %1514 = arith.mulf %1513, %1463 : vector<8x16xf32>
    %1515 = arith.addf %1441, %1514 : vector<8x16xf32>
    %c373 = arith.constant 373 : index
    %1516 = memref.load %arg3[%c373] : memref<648xf32, #tpu.memory_space<smem>>
    %1517 = vector.broadcast %1516 : f32 to vector<8x16xf32>
    %1518 = arith.mulf %1517, %1463 : vector<8x16xf32>
    %1519 = arith.addf %1445, %1518 : vector<8x16xf32>
    %c374 = arith.constant 374 : index
    %1520 = memref.load %arg3[%c374] : memref<648xf32, #tpu.memory_space<smem>>
    %1521 = vector.broadcast %1520 : f32 to vector<8x16xf32>
    %1522 = arith.mulf %1521, %1463 : vector<8x16xf32>
    %1523 = arith.addf %1449, %1522 : vector<8x16xf32>
    %c375 = arith.constant 375 : index
    %1524 = memref.load %arg3[%c375] : memref<648xf32, #tpu.memory_space<smem>>
    %1525 = vector.broadcast %1524 : f32 to vector<8x16xf32>
    %1526 = arith.mulf %1525, %1463 : vector<8x16xf32>
    %1527 = arith.addf %1453, %1526 : vector<8x16xf32>
    %c376 = arith.constant 376 : index
    %1528 = memref.load %arg3[%c376] : memref<648xf32, #tpu.memory_space<smem>>
    %1529 = vector.broadcast %1528 : f32 to vector<8x16xf32>
    %1530 = arith.mulf %1529, %1463 : vector<8x16xf32>
    %1531 = arith.addf %1457, %1530 : vector<8x16xf32>
    %c377 = arith.constant 377 : index
    %1532 = memref.load %arg3[%c377] : memref<648xf32, #tpu.memory_space<smem>>
    %1533 = vector.broadcast %1532 : f32 to vector<8x16xf32>
    %1534 = arith.mulf %1533, %1463 : vector<8x16xf32>
    %1535 = arith.addf %1461, %1534 : vector<8x16xf32>
    %c0_105 = arith.constant 0 : index
    %c0_106 = arith.constant 0 : index
    %c1_107 = arith.constant 1 : index
    %c1_108 = arith.constant 1 : index
    %c2_109 = arith.constant 2 : index
    %1536 = vector.load %arg2[%c0_105, %c0_106, %c1_107, %c1_108, %c2_109] : memref<1x1x4x10x18xf32, #tpu.memory_space<vmem>>, vector<1x1x1x8x16xf32>
    %1537 = vector.shape_cast %1536 : vector<1x1x1x8x16xf32> to vector<8x16xf32>
    %c378 = arith.constant 378 : index
    %1538 = memref.load %arg3[%c378] : memref<648xf32, #tpu.memory_space<smem>>
    %1539 = vector.broadcast %1538 : f32 to vector<8x16xf32>
    %1540 = arith.mulf %1539, %1537 : vector<8x16xf32>
    %1541 = arith.addf %1467, %1540 : vector<8x16xf32>
    %c379 = arith.constant 379 : index
    %1542 = memref.load %arg3[%c379] : memref<648xf32, #tpu.memory_space<smem>>
    %1543 = vector.broadcast %1542 : f32 to vector<8x16xf32>
    %1544 = arith.mulf %1543, %1537 : vector<8x16xf32>
    %1545 = arith.addf %1471, %1544 : vector<8x16xf32>
    %c380 = arith.constant 380 : index
    %1546 = memref.load %arg3[%c380] : memref<648xf32, #tpu.memory_space<smem>>
    %1547 = vector.broadcast %1546 : f32 to vector<8x16xf32>
    %1548 = arith.mulf %1547, %1537 : vector<8x16xf32>
    %1549 = arith.addf %1475, %1548 : vector<8x16xf32>
    %c381 = arith.constant 381 : index
    %1550 = memref.load %arg3[%c381] : memref<648xf32, #tpu.memory_space<smem>>
    %1551 = vector.broadcast %1550 : f32 to vector<8x16xf32>
    %1552 = arith.mulf %1551, %1537 : vector<8x16xf32>
    %1553 = arith.addf %1479, %1552 : vector<8x16xf32>
    %c382 = arith.constant 382 : index
    %1554 = memref.load %arg3[%c382] : memref<648xf32, #tpu.memory_space<smem>>
    %1555 = vector.broadcast %1554 : f32 to vector<8x16xf32>
    %1556 = arith.mulf %1555, %1537 : vector<8x16xf32>
    %1557 = arith.addf %1483, %1556 : vector<8x16xf32>
    %c383 = arith.constant 383 : index
    %1558 = memref.load %arg3[%c383] : memref<648xf32, #tpu.memory_space<smem>>
    %1559 = vector.broadcast %1558 : f32 to vector<8x16xf32>
    %1560 = arith.mulf %1559, %1537 : vector<8x16xf32>
    %1561 = arith.addf %1487, %1560 : vector<8x16xf32>
    %c384 = arith.constant 384 : index
    %1562 = memref.load %arg3[%c384] : memref<648xf32, #tpu.memory_space<smem>>
    %1563 = vector.broadcast %1562 : f32 to vector<8x16xf32>
    %1564 = arith.mulf %1563, %1537 : vector<8x16xf32>
    %1565 = arith.addf %1491, %1564 : vector<8x16xf32>
    %c385 = arith.constant 385 : index
    %1566 = memref.load %arg3[%c385] : memref<648xf32, #tpu.memory_space<smem>>
    %1567 = vector.broadcast %1566 : f32 to vector<8x16xf32>
    %1568 = arith.mulf %1567, %1537 : vector<8x16xf32>
    %1569 = arith.addf %1495, %1568 : vector<8x16xf32>
    %c386 = arith.constant 386 : index
    %1570 = memref.load %arg3[%c386] : memref<648xf32, #tpu.memory_space<smem>>
    %1571 = vector.broadcast %1570 : f32 to vector<8x16xf32>
    %1572 = arith.mulf %1571, %1537 : vector<8x16xf32>
    %1573 = arith.addf %1499, %1572 : vector<8x16xf32>
    %c387 = arith.constant 387 : index
    %1574 = memref.load %arg3[%c387] : memref<648xf32, #tpu.memory_space<smem>>
    %1575 = vector.broadcast %1574 : f32 to vector<8x16xf32>
    %1576 = arith.mulf %1575, %1537 : vector<8x16xf32>
    %1577 = arith.addf %1503, %1576 : vector<8x16xf32>
    %c388 = arith.constant 388 : index
    %1578 = memref.load %arg3[%c388] : memref<648xf32, #tpu.memory_space<smem>>
    %1579 = vector.broadcast %1578 : f32 to vector<8x16xf32>
    %1580 = arith.mulf %1579, %1537 : vector<8x16xf32>
    %1581 = arith.addf %1507, %1580 : vector<8x16xf32>
    %c389 = arith.constant 389 : index
    %1582 = memref.load %arg3[%c389] : memref<648xf32, #tpu.memory_space<smem>>
    %1583 = vector.broadcast %1582 : f32 to vector<8x16xf32>
    %1584 = arith.mulf %1583, %1537 : vector<8x16xf32>
    %1585 = arith.addf %1511, %1584 : vector<8x16xf32>
    %c390 = arith.constant 390 : index
    %1586 = memref.load %arg3[%c390] : memref<648xf32, #tpu.memory_space<smem>>
    %1587 = vector.broadcast %1586 : f32 to vector<8x16xf32>
    %1588 = arith.mulf %1587, %1537 : vector<8x16xf32>
    %1589 = arith.addf %1515, %1588 : vector<8x16xf32>
    %c391 = arith.constant 391 : index
    %1590 = memref.load %arg3[%c391] : memref<648xf32, #tpu.memory_space<smem>>
    %1591 = vector.broadcast %1590 : f32 to vector<8x16xf32>
    %1592 = arith.mulf %1591, %1537 : vector<8x16xf32>
    %1593 = arith.addf %1519, %1592 : vector<8x16xf32>
    %c392 = arith.constant 392 : index
    %1594 = memref.load %arg3[%c392] : memref<648xf32, #tpu.memory_space<smem>>
    %1595 = vector.broadcast %1594 : f32 to vector<8x16xf32>
    %1596 = arith.mulf %1595, %1537 : vector<8x16xf32>
    %1597 = arith.addf %1523, %1596 : vector<8x16xf32>
    %c393 = arith.constant 393 : index
    %1598 = memref.load %arg3[%c393] : memref<648xf32, #tpu.memory_space<smem>>
    %1599 = vector.broadcast %1598 : f32 to vector<8x16xf32>
    %1600 = arith.mulf %1599, %1537 : vector<8x16xf32>
    %1601 = arith.addf %1527, %1600 : vector<8x16xf32>
    %c394 = arith.constant 394 : index
    %1602 = memref.load %arg3[%c394] : memref<648xf32, #tpu.memory_space<smem>>
    %1603 = vector.broadcast %1602 : f32 to vector<8x16xf32>
    %1604 = arith.mulf %1603, %1537 : vector<8x16xf32>
    %1605 = arith.addf %1531, %1604 : vector<8x16xf32>
    %c395 = arith.constant 395 : index
    %1606 = memref.load %arg3[%c395] : memref<648xf32, #tpu.memory_space<smem>>
    %1607 = vector.broadcast %1606 : f32 to vector<8x16xf32>
    %1608 = arith.mulf %1607, %1537 : vector<8x16xf32>
    %1609 = arith.addf %1535, %1608 : vector<8x16xf32>
    %c0_110 = arith.constant 0 : index
    %c0_111 = arith.constant 0 : index
    %c2_112 = arith.constant 2 : index
    %c1_113 = arith.constant 1 : index
    %c2_114 = arith.constant 2 : index
    %1610 = vector.load %arg2[%c0_110, %c0_111, %c2_112, %c1_113, %c2_114] : memref<1x1x4x10x18xf32, #tpu.memory_space<vmem>>, vector<1x1x1x8x16xf32>
    %1611 = vector.shape_cast %1610 : vector<1x1x1x8x16xf32> to vector<8x16xf32>
    %c396 = arith.constant 396 : index
    %1612 = memref.load %arg3[%c396] : memref<648xf32, #tpu.memory_space<smem>>
    %1613 = vector.broadcast %1612 : f32 to vector<8x16xf32>
    %1614 = arith.mulf %1613, %1611 : vector<8x16xf32>
    %1615 = arith.addf %1541, %1614 : vector<8x16xf32>
    %c397 = arith.constant 397 : index
    %1616 = memref.load %arg3[%c397] : memref<648xf32, #tpu.memory_space<smem>>
    %1617 = vector.broadcast %1616 : f32 to vector<8x16xf32>
    %1618 = arith.mulf %1617, %1611 : vector<8x16xf32>
    %1619 = arith.addf %1545, %1618 : vector<8x16xf32>
    %c398 = arith.constant 398 : index
    %1620 = memref.load %arg3[%c398] : memref<648xf32, #tpu.memory_space<smem>>
    %1621 = vector.broadcast %1620 : f32 to vector<8x16xf32>
    %1622 = arith.mulf %1621, %1611 : vector<8x16xf32>
    %1623 = arith.addf %1549, %1622 : vector<8x16xf32>
    %c399 = arith.constant 399 : index
    %1624 = memref.load %arg3[%c399] : memref<648xf32, #tpu.memory_space<smem>>
    %1625 = vector.broadcast %1624 : f32 to vector<8x16xf32>
    %1626 = arith.mulf %1625, %1611 : vector<8x16xf32>
    %1627 = arith.addf %1553, %1626 : vector<8x16xf32>
    %c400 = arith.constant 400 : index
    %1628 = memref.load %arg3[%c400] : memref<648xf32, #tpu.memory_space<smem>>
    %1629 = vector.broadcast %1628 : f32 to vector<8x16xf32>
    %1630 = arith.mulf %1629, %1611 : vector<8x16xf32>
    %1631 = arith.addf %1557, %1630 : vector<8x16xf32>
    %c401 = arith.constant 401 : index
    %1632 = memref.load %arg3[%c401] : memref<648xf32, #tpu.memory_space<smem>>
    %1633 = vector.broadcast %1632 : f32 to vector<8x16xf32>
    %1634 = arith.mulf %1633, %1611 : vector<8x16xf32>
    %1635 = arith.addf %1561, %1634 : vector<8x16xf32>
    %c402 = arith.constant 402 : index
    %1636 = memref.load %arg3[%c402] : memref<648xf32, #tpu.memory_space<smem>>
    %1637 = vector.broadcast %1636 : f32 to vector<8x16xf32>
    %1638 = arith.mulf %1637, %1611 : vector<8x16xf32>
    %1639 = arith.addf %1565, %1638 : vector<8x16xf32>
    %c403 = arith.constant 403 : index
    %1640 = memref.load %arg3[%c403] : memref<648xf32, #tpu.memory_space<smem>>
    %1641 = vector.broadcast %1640 : f32 to vector<8x16xf32>
    %1642 = arith.mulf %1641, %1611 : vector<8x16xf32>
    %1643 = arith.addf %1569, %1642 : vector<8x16xf32>
    %c404 = arith.constant 404 : index
    %1644 = memref.load %arg3[%c404] : memref<648xf32, #tpu.memory_space<smem>>
    %1645 = vector.broadcast %1644 : f32 to vector<8x16xf32>
    %1646 = arith.mulf %1645, %1611 : vector<8x16xf32>
    %1647 = arith.addf %1573, %1646 : vector<8x16xf32>
    %c405 = arith.constant 405 : index
    %1648 = memref.load %arg3[%c405] : memref<648xf32, #tpu.memory_space<smem>>
    %1649 = vector.broadcast %1648 : f32 to vector<8x16xf32>
    %1650 = arith.mulf %1649, %1611 : vector<8x16xf32>
    %1651 = arith.addf %1577, %1650 : vector<8x16xf32>
    %c406 = arith.constant 406 : index
    %1652 = memref.load %arg3[%c406] : memref<648xf32, #tpu.memory_space<smem>>
    %1653 = vector.broadcast %1652 : f32 to vector<8x16xf32>
    %1654 = arith.mulf %1653, %1611 : vector<8x16xf32>
    %1655 = arith.addf %1581, %1654 : vector<8x16xf32>
    %c407 = arith.constant 407 : index
    %1656 = memref.load %arg3[%c407] : memref<648xf32, #tpu.memory_space<smem>>
    %1657 = vector.broadcast %1656 : f32 to vector<8x16xf32>
    %1658 = arith.mulf %1657, %1611 : vector<8x16xf32>
    %1659 = arith.addf %1585, %1658 : vector<8x16xf32>
    %c408 = arith.constant 408 : index
    %1660 = memref.load %arg3[%c408] : memref<648xf32, #tpu.memory_space<smem>>
    %1661 = vector.broadcast %1660 : f32 to vector<8x16xf32>
    %1662 = arith.mulf %1661, %1611 : vector<8x16xf32>
    %1663 = arith.addf %1589, %1662 : vector<8x16xf32>
    %c409 = arith.constant 409 : index
    %1664 = memref.load %arg3[%c409] : memref<648xf32, #tpu.memory_space<smem>>
    %1665 = vector.broadcast %1664 : f32 to vector<8x16xf32>
    %1666 = arith.mulf %1665, %1611 : vector<8x16xf32>
    %1667 = arith.addf %1593, %1666 : vector<8x16xf32>
    %c410 = arith.constant 410 : index
    %1668 = memref.load %arg3[%c410] : memref<648xf32, #tpu.memory_space<smem>>
    %1669 = vector.broadcast %1668 : f32 to vector<8x16xf32>
    %1670 = arith.mulf %1669, %1611 : vector<8x16xf32>
    %1671 = arith.addf %1597, %1670 : vector<8x16xf32>
    %c411 = arith.constant 411 : index
    %1672 = memref.load %arg3[%c411] : memref<648xf32, #tpu.memory_space<smem>>
    %1673 = vector.broadcast %1672 : f32 to vector<8x16xf32>
    %1674 = arith.mulf %1673, %1611 : vector<8x16xf32>
    %1675 = arith.addf %1601, %1674 : vector<8x16xf32>
    %c412 = arith.constant 412 : index
    %1676 = memref.load %arg3[%c412] : memref<648xf32, #tpu.memory_space<smem>>
    %1677 = vector.broadcast %1676 : f32 to vector<8x16xf32>
    %1678 = arith.mulf %1677, %1611 : vector<8x16xf32>
    %1679 = arith.addf %1605, %1678 : vector<8x16xf32>
    %c413 = arith.constant 413 : index
    %1680 = memref.load %arg3[%c413] : memref<648xf32, #tpu.memory_space<smem>>
    %1681 = vector.broadcast %1680 : f32 to vector<8x16xf32>
    %1682 = arith.mulf %1681, %1611 : vector<8x16xf32>
    %1683 = arith.addf %1609, %1682 : vector<8x16xf32>
    %c0_115 = arith.constant 0 : index
    %c0_116 = arith.constant 0 : index
    %c3_117 = arith.constant 3 : index
    %c1_118 = arith.constant 1 : index
    %c2_119 = arith.constant 2 : index
    %1684 = vector.load %arg2[%c0_115, %c0_116, %c3_117, %c1_118, %c2_119] : memref<1x1x4x10x18xf32, #tpu.memory_space<vmem>>, vector<1x1x1x8x16xf32>
    %1685 = vector.shape_cast %1684 : vector<1x1x1x8x16xf32> to vector<8x16xf32>
    %c414 = arith.constant 414 : index
    %1686 = memref.load %arg3[%c414] : memref<648xf32, #tpu.memory_space<smem>>
    %1687 = vector.broadcast %1686 : f32 to vector<8x16xf32>
    %1688 = arith.mulf %1687, %1685 : vector<8x16xf32>
    %1689 = arith.addf %1615, %1688 : vector<8x16xf32>
    %c415 = arith.constant 415 : index
    %1690 = memref.load %arg3[%c415] : memref<648xf32, #tpu.memory_space<smem>>
    %1691 = vector.broadcast %1690 : f32 to vector<8x16xf32>
    %1692 = arith.mulf %1691, %1685 : vector<8x16xf32>
    %1693 = arith.addf %1619, %1692 : vector<8x16xf32>
    %c416 = arith.constant 416 : index
    %1694 = memref.load %arg3[%c416] : memref<648xf32, #tpu.memory_space<smem>>
    %1695 = vector.broadcast %1694 : f32 to vector<8x16xf32>
    %1696 = arith.mulf %1695, %1685 : vector<8x16xf32>
    %1697 = arith.addf %1623, %1696 : vector<8x16xf32>
    %c417 = arith.constant 417 : index
    %1698 = memref.load %arg3[%c417] : memref<648xf32, #tpu.memory_space<smem>>
    %1699 = vector.broadcast %1698 : f32 to vector<8x16xf32>
    %1700 = arith.mulf %1699, %1685 : vector<8x16xf32>
    %1701 = arith.addf %1627, %1700 : vector<8x16xf32>
    %c418 = arith.constant 418 : index
    %1702 = memref.load %arg3[%c418] : memref<648xf32, #tpu.memory_space<smem>>
    %1703 = vector.broadcast %1702 : f32 to vector<8x16xf32>
    %1704 = arith.mulf %1703, %1685 : vector<8x16xf32>
    %1705 = arith.addf %1631, %1704 : vector<8x16xf32>
    %c419 = arith.constant 419 : index
    %1706 = memref.load %arg3[%c419] : memref<648xf32, #tpu.memory_space<smem>>
    %1707 = vector.broadcast %1706 : f32 to vector<8x16xf32>
    %1708 = arith.mulf %1707, %1685 : vector<8x16xf32>
    %1709 = arith.addf %1635, %1708 : vector<8x16xf32>
    %c420 = arith.constant 420 : index
    %1710 = memref.load %arg3[%c420] : memref<648xf32, #tpu.memory_space<smem>>
    %1711 = vector.broadcast %1710 : f32 to vector<8x16xf32>
    %1712 = arith.mulf %1711, %1685 : vector<8x16xf32>
    %1713 = arith.addf %1639, %1712 : vector<8x16xf32>
    %c421 = arith.constant 421 : index
    %1714 = memref.load %arg3[%c421] : memref<648xf32, #tpu.memory_space<smem>>
    %1715 = vector.broadcast %1714 : f32 to vector<8x16xf32>
    %1716 = arith.mulf %1715, %1685 : vector<8x16xf32>
    %1717 = arith.addf %1643, %1716 : vector<8x16xf32>
    %c422 = arith.constant 422 : index
    %1718 = memref.load %arg3[%c422] : memref<648xf32, #tpu.memory_space<smem>>
    %1719 = vector.broadcast %1718 : f32 to vector<8x16xf32>
    %1720 = arith.mulf %1719, %1685 : vector<8x16xf32>
    %1721 = arith.addf %1647, %1720 : vector<8x16xf32>
    %c423 = arith.constant 423 : index
    %1722 = memref.load %arg3[%c423] : memref<648xf32, #tpu.memory_space<smem>>
    %1723 = vector.broadcast %1722 : f32 to vector<8x16xf32>
    %1724 = arith.mulf %1723, %1685 : vector<8x16xf32>
    %1725 = arith.addf %1651, %1724 : vector<8x16xf32>
    %c424 = arith.constant 424 : index
    %1726 = memref.load %arg3[%c424] : memref<648xf32, #tpu.memory_space<smem>>
    %1727 = vector.broadcast %1726 : f32 to vector<8x16xf32>
    %1728 = arith.mulf %1727, %1685 : vector<8x16xf32>
    %1729 = arith.addf %1655, %1728 : vector<8x16xf32>
    %c425 = arith.constant 425 : index
    %1730 = memref.load %arg3[%c425] : memref<648xf32, #tpu.memory_space<smem>>
    %1731 = vector.broadcast %1730 : f32 to vector<8x16xf32>
    %1732 = arith.mulf %1731, %1685 : vector<8x16xf32>
    %1733 = arith.addf %1659, %1732 : vector<8x16xf32>
    %c426 = arith.constant 426 : index
    %1734 = memref.load %arg3[%c426] : memref<648xf32, #tpu.memory_space<smem>>
    %1735 = vector.broadcast %1734 : f32 to vector<8x16xf32>
    %1736 = arith.mulf %1735, %1685 : vector<8x16xf32>
    %1737 = arith.addf %1663, %1736 : vector<8x16xf32>
    %c427 = arith.constant 427 : index
    %1738 = memref.load %arg3[%c427] : memref<648xf32, #tpu.memory_space<smem>>
    %1739 = vector.broadcast %1738 : f32 to vector<8x16xf32>
    %1740 = arith.mulf %1739, %1685 : vector<8x16xf32>
    %1741 = arith.addf %1667, %1740 : vector<8x16xf32>
    %c428 = arith.constant 428 : index
    %1742 = memref.load %arg3[%c428] : memref<648xf32, #tpu.memory_space<smem>>
    %1743 = vector.broadcast %1742 : f32 to vector<8x16xf32>
    %1744 = arith.mulf %1743, %1685 : vector<8x16xf32>
    %1745 = arith.addf %1671, %1744 : vector<8x16xf32>
    %c429 = arith.constant 429 : index
    %1746 = memref.load %arg3[%c429] : memref<648xf32, #tpu.memory_space<smem>>
    %1747 = vector.broadcast %1746 : f32 to vector<8x16xf32>
    %1748 = arith.mulf %1747, %1685 : vector<8x16xf32>
    %1749 = arith.addf %1675, %1748 : vector<8x16xf32>
    %c430 = arith.constant 430 : index
    %1750 = memref.load %arg3[%c430] : memref<648xf32, #tpu.memory_space<smem>>
    %1751 = vector.broadcast %1750 : f32 to vector<8x16xf32>
    %1752 = arith.mulf %1751, %1685 : vector<8x16xf32>
    %1753 = arith.addf %1679, %1752 : vector<8x16xf32>
    %c431 = arith.constant 431 : index
    %1754 = memref.load %arg3[%c431] : memref<648xf32, #tpu.memory_space<smem>>
    %1755 = vector.broadcast %1754 : f32 to vector<8x16xf32>
    %1756 = arith.mulf %1755, %1685 : vector<8x16xf32>
    %1757 = arith.addf %1683, %1756 : vector<8x16xf32>
    %c0_120 = arith.constant 0 : index
    %c0_121 = arith.constant 0 : index
    %c0_122 = arith.constant 0 : index
    %c2_123 = arith.constant 2 : index
    %c0_124 = arith.constant 0 : index
    %1758 = vector.load %arg2[%c0_120, %c0_121, %c0_122, %c2_123, %c0_124] : memref<1x1x4x10x18xf32, #tpu.memory_space<vmem>>, vector<1x1x1x8x16xf32>
    %1759 = vector.shape_cast %1758 : vector<1x1x1x8x16xf32> to vector<8x16xf32>
    %c432 = arith.constant 432 : index
    %1760 = memref.load %arg3[%c432] : memref<648xf32, #tpu.memory_space<smem>>
    %1761 = vector.broadcast %1760 : f32 to vector<8x16xf32>
    %1762 = arith.mulf %1761, %1759 : vector<8x16xf32>
    %1763 = arith.addf %1689, %1762 : vector<8x16xf32>
    %c433 = arith.constant 433 : index
    %1764 = memref.load %arg3[%c433] : memref<648xf32, #tpu.memory_space<smem>>
    %1765 = vector.broadcast %1764 : f32 to vector<8x16xf32>
    %1766 = arith.mulf %1765, %1759 : vector<8x16xf32>
    %1767 = arith.addf %1693, %1766 : vector<8x16xf32>
    %c434 = arith.constant 434 : index
    %1768 = memref.load %arg3[%c434] : memref<648xf32, #tpu.memory_space<smem>>
    %1769 = vector.broadcast %1768 : f32 to vector<8x16xf32>
    %1770 = arith.mulf %1769, %1759 : vector<8x16xf32>
    %1771 = arith.addf %1697, %1770 : vector<8x16xf32>
    %c435 = arith.constant 435 : index
    %1772 = memref.load %arg3[%c435] : memref<648xf32, #tpu.memory_space<smem>>
    %1773 = vector.broadcast %1772 : f32 to vector<8x16xf32>
    %1774 = arith.mulf %1773, %1759 : vector<8x16xf32>
    %1775 = arith.addf %1701, %1774 : vector<8x16xf32>
    %c436 = arith.constant 436 : index
    %1776 = memref.load %arg3[%c436] : memref<648xf32, #tpu.memory_space<smem>>
    %1777 = vector.broadcast %1776 : f32 to vector<8x16xf32>
    %1778 = arith.mulf %1777, %1759 : vector<8x16xf32>
    %1779 = arith.addf %1705, %1778 : vector<8x16xf32>
    %c437 = arith.constant 437 : index
    %1780 = memref.load %arg3[%c437] : memref<648xf32, #tpu.memory_space<smem>>
    %1781 = vector.broadcast %1780 : f32 to vector<8x16xf32>
    %1782 = arith.mulf %1781, %1759 : vector<8x16xf32>
    %1783 = arith.addf %1709, %1782 : vector<8x16xf32>
    %c438 = arith.constant 438 : index
    %1784 = memref.load %arg3[%c438] : memref<648xf32, #tpu.memory_space<smem>>
    %1785 = vector.broadcast %1784 : f32 to vector<8x16xf32>
    %1786 = arith.mulf %1785, %1759 : vector<8x16xf32>
    %1787 = arith.addf %1713, %1786 : vector<8x16xf32>
    %c439 = arith.constant 439 : index
    %1788 = memref.load %arg3[%c439] : memref<648xf32, #tpu.memory_space<smem>>
    %1789 = vector.broadcast %1788 : f32 to vector<8x16xf32>
    %1790 = arith.mulf %1789, %1759 : vector<8x16xf32>
    %1791 = arith.addf %1717, %1790 : vector<8x16xf32>
    %c440 = arith.constant 440 : index
    %1792 = memref.load %arg3[%c440] : memref<648xf32, #tpu.memory_space<smem>>
    %1793 = vector.broadcast %1792 : f32 to vector<8x16xf32>
    %1794 = arith.mulf %1793, %1759 : vector<8x16xf32>
    %1795 = arith.addf %1721, %1794 : vector<8x16xf32>
    %c441 = arith.constant 441 : index
    %1796 = memref.load %arg3[%c441] : memref<648xf32, #tpu.memory_space<smem>>
    %1797 = vector.broadcast %1796 : f32 to vector<8x16xf32>
    %1798 = arith.mulf %1797, %1759 : vector<8x16xf32>
    %1799 = arith.addf %1725, %1798 : vector<8x16xf32>
    %c442 = arith.constant 442 : index
    %1800 = memref.load %arg3[%c442] : memref<648xf32, #tpu.memory_space<smem>>
    %1801 = vector.broadcast %1800 : f32 to vector<8x16xf32>
    %1802 = arith.mulf %1801, %1759 : vector<8x16xf32>
    %1803 = arith.addf %1729, %1802 : vector<8x16xf32>
    %c443 = arith.constant 443 : index
    %1804 = memref.load %arg3[%c443] : memref<648xf32, #tpu.memory_space<smem>>
    %1805 = vector.broadcast %1804 : f32 to vector<8x16xf32>
    %1806 = arith.mulf %1805, %1759 : vector<8x16xf32>
    %1807 = arith.addf %1733, %1806 : vector<8x16xf32>
    %c444 = arith.constant 444 : index
    %1808 = memref.load %arg3[%c444] : memref<648xf32, #tpu.memory_space<smem>>
    %1809 = vector.broadcast %1808 : f32 to vector<8x16xf32>
    %1810 = arith.mulf %1809, %1759 : vector<8x16xf32>
    %1811 = arith.addf %1737, %1810 : vector<8x16xf32>
    %c445 = arith.constant 445 : index
    %1812 = memref.load %arg3[%c445] : memref<648xf32, #tpu.memory_space<smem>>
    %1813 = vector.broadcast %1812 : f32 to vector<8x16xf32>
    %1814 = arith.mulf %1813, %1759 : vector<8x16xf32>
    %1815 = arith.addf %1741, %1814 : vector<8x16xf32>
    %c446 = arith.constant 446 : index
    %1816 = memref.load %arg3[%c446] : memref<648xf32, #tpu.memory_space<smem>>
    %1817 = vector.broadcast %1816 : f32 to vector<8x16xf32>
    %1818 = arith.mulf %1817, %1759 : vector<8x16xf32>
    %1819 = arith.addf %1745, %1818 : vector<8x16xf32>
    %c447 = arith.constant 447 : index
    %1820 = memref.load %arg3[%c447] : memref<648xf32, #tpu.memory_space<smem>>
    %1821 = vector.broadcast %1820 : f32 to vector<8x16xf32>
    %1822 = arith.mulf %1821, %1759 : vector<8x16xf32>
    %1823 = arith.addf %1749, %1822 : vector<8x16xf32>
    %c448 = arith.constant 448 : index
    %1824 = memref.load %arg3[%c448] : memref<648xf32, #tpu.memory_space<smem>>
    %1825 = vector.broadcast %1824 : f32 to vector<8x16xf32>
    %1826 = arith.mulf %1825, %1759 : vector<8x16xf32>
    %1827 = arith.addf %1753, %1826 : vector<8x16xf32>
    %c449 = arith.constant 449 : index
    %1828 = memref.load %arg3[%c449] : memref<648xf32, #tpu.memory_space<smem>>
    %1829 = vector.broadcast %1828 : f32 to vector<8x16xf32>
    %1830 = arith.mulf %1829, %1759 : vector<8x16xf32>
    %1831 = arith.addf %1757, %1830 : vector<8x16xf32>
    %c0_125 = arith.constant 0 : index
    %c0_126 = arith.constant 0 : index
    %c1_127 = arith.constant 1 : index
    %c2_128 = arith.constant 2 : index
    %c0_129 = arith.constant 0 : index
    %1832 = vector.load %arg2[%c0_125, %c0_126, %c1_127, %c2_128, %c0_129] : memref<1x1x4x10x18xf32, #tpu.memory_space<vmem>>, vector<1x1x1x8x16xf32>
    %1833 = vector.shape_cast %1832 : vector<1x1x1x8x16xf32> to vector<8x16xf32>
    %c450 = arith.constant 450 : index
    %1834 = memref.load %arg3[%c450] : memref<648xf32, #tpu.memory_space<smem>>
    %1835 = vector.broadcast %1834 : f32 to vector<8x16xf32>
    %1836 = arith.mulf %1835, %1833 : vector<8x16xf32>
    %1837 = arith.addf %1763, %1836 : vector<8x16xf32>
    %c451 = arith.constant 451 : index
    %1838 = memref.load %arg3[%c451] : memref<648xf32, #tpu.memory_space<smem>>
    %1839 = vector.broadcast %1838 : f32 to vector<8x16xf32>
    %1840 = arith.mulf %1839, %1833 : vector<8x16xf32>
    %1841 = arith.addf %1767, %1840 : vector<8x16xf32>
    %c452 = arith.constant 452 : index
    %1842 = memref.load %arg3[%c452] : memref<648xf32, #tpu.memory_space<smem>>
    %1843 = vector.broadcast %1842 : f32 to vector<8x16xf32>
    %1844 = arith.mulf %1843, %1833 : vector<8x16xf32>
    %1845 = arith.addf %1771, %1844 : vector<8x16xf32>
    %c453 = arith.constant 453 : index
    %1846 = memref.load %arg3[%c453] : memref<648xf32, #tpu.memory_space<smem>>
    %1847 = vector.broadcast %1846 : f32 to vector<8x16xf32>
    %1848 = arith.mulf %1847, %1833 : vector<8x16xf32>
    %1849 = arith.addf %1775, %1848 : vector<8x16xf32>
    %c454 = arith.constant 454 : index
    %1850 = memref.load %arg3[%c454] : memref<648xf32, #tpu.memory_space<smem>>
    %1851 = vector.broadcast %1850 : f32 to vector<8x16xf32>
    %1852 = arith.mulf %1851, %1833 : vector<8x16xf32>
    %1853 = arith.addf %1779, %1852 : vector<8x16xf32>
    %c455 = arith.constant 455 : index
    %1854 = memref.load %arg3[%c455] : memref<648xf32, #tpu.memory_space<smem>>
    %1855 = vector.broadcast %1854 : f32 to vector<8x16xf32>
    %1856 = arith.mulf %1855, %1833 : vector<8x16xf32>
    %1857 = arith.addf %1783, %1856 : vector<8x16xf32>
    %c456 = arith.constant 456 : index
    %1858 = memref.load %arg3[%c456] : memref<648xf32, #tpu.memory_space<smem>>
    %1859 = vector.broadcast %1858 : f32 to vector<8x16xf32>
    %1860 = arith.mulf %1859, %1833 : vector<8x16xf32>
    %1861 = arith.addf %1787, %1860 : vector<8x16xf32>
    %c457 = arith.constant 457 : index
    %1862 = memref.load %arg3[%c457] : memref<648xf32, #tpu.memory_space<smem>>
    %1863 = vector.broadcast %1862 : f32 to vector<8x16xf32>
    %1864 = arith.mulf %1863, %1833 : vector<8x16xf32>
    %1865 = arith.addf %1791, %1864 : vector<8x16xf32>
    %c458 = arith.constant 458 : index
    %1866 = memref.load %arg3[%c458] : memref<648xf32, #tpu.memory_space<smem>>
    %1867 = vector.broadcast %1866 : f32 to vector<8x16xf32>
    %1868 = arith.mulf %1867, %1833 : vector<8x16xf32>
    %1869 = arith.addf %1795, %1868 : vector<8x16xf32>
    %c459 = arith.constant 459 : index
    %1870 = memref.load %arg3[%c459] : memref<648xf32, #tpu.memory_space<smem>>
    %1871 = vector.broadcast %1870 : f32 to vector<8x16xf32>
    %1872 = arith.mulf %1871, %1833 : vector<8x16xf32>
    %1873 = arith.addf %1799, %1872 : vector<8x16xf32>
    %c460 = arith.constant 460 : index
    %1874 = memref.load %arg3[%c460] : memref<648xf32, #tpu.memory_space<smem>>
    %1875 = vector.broadcast %1874 : f32 to vector<8x16xf32>
    %1876 = arith.mulf %1875, %1833 : vector<8x16xf32>
    %1877 = arith.addf %1803, %1876 : vector<8x16xf32>
    %c461 = arith.constant 461 : index
    %1878 = memref.load %arg3[%c461] : memref<648xf32, #tpu.memory_space<smem>>
    %1879 = vector.broadcast %1878 : f32 to vector<8x16xf32>
    %1880 = arith.mulf %1879, %1833 : vector<8x16xf32>
    %1881 = arith.addf %1807, %1880 : vector<8x16xf32>
    %c462 = arith.constant 462 : index
    %1882 = memref.load %arg3[%c462] : memref<648xf32, #tpu.memory_space<smem>>
    %1883 = vector.broadcast %1882 : f32 to vector<8x16xf32>
    %1884 = arith.mulf %1883, %1833 : vector<8x16xf32>
    %1885 = arith.addf %1811, %1884 : vector<8x16xf32>
    %c463 = arith.constant 463 : index
    %1886 = memref.load %arg3[%c463] : memref<648xf32, #tpu.memory_space<smem>>
    %1887 = vector.broadcast %1886 : f32 to vector<8x16xf32>
    %1888 = arith.mulf %1887, %1833 : vector<8x16xf32>
    %1889 = arith.addf %1815, %1888 : vector<8x16xf32>
    %c464 = arith.constant 464 : index
    %1890 = memref.load %arg3[%c464] : memref<648xf32, #tpu.memory_space<smem>>
    %1891 = vector.broadcast %1890 : f32 to vector<8x16xf32>
    %1892 = arith.mulf %1891, %1833 : vector<8x16xf32>
    %1893 = arith.addf %1819, %1892 : vector<8x16xf32>
    %c465 = arith.constant 465 : index
    %1894 = memref.load %arg3[%c465] : memref<648xf32, #tpu.memory_space<smem>>
    %1895 = vector.broadcast %1894 : f32 to vector<8x16xf32>
    %1896 = arith.mulf %1895, %1833 : vector<8x16xf32>
    %1897 = arith.addf %1823, %1896 : vector<8x16xf32>
    %c466 = arith.constant 466 : index
    %1898 = memref.load %arg3[%c466] : memref<648xf32, #tpu.memory_space<smem>>
    %1899 = vector.broadcast %1898 : f32 to vector<8x16xf32>
    %1900 = arith.mulf %1899, %1833 : vector<8x16xf32>
    %1901 = arith.addf %1827, %1900 : vector<8x16xf32>
    %c467 = arith.constant 467 : index
    %1902 = memref.load %arg3[%c467] : memref<648xf32, #tpu.memory_space<smem>>
    %1903 = vector.broadcast %1902 : f32 to vector<8x16xf32>
    %1904 = arith.mulf %1903, %1833 : vector<8x16xf32>
    %1905 = arith.addf %1831, %1904 : vector<8x16xf32>
    %c0_130 = arith.constant 0 : index
    %c0_131 = arith.constant 0 : index
    %c2_132 = arith.constant 2 : index
    %c2_133 = arith.constant 2 : index
    %c0_134 = arith.constant 0 : index
    %1906 = vector.load %arg2[%c0_130, %c0_131, %c2_132, %c2_133, %c0_134] : memref<1x1x4x10x18xf32, #tpu.memory_space<vmem>>, vector<1x1x1x8x16xf32>
    %1907 = vector.shape_cast %1906 : vector<1x1x1x8x16xf32> to vector<8x16xf32>
    %c468 = arith.constant 468 : index
    %1908 = memref.load %arg3[%c468] : memref<648xf32, #tpu.memory_space<smem>>
    %1909 = vector.broadcast %1908 : f32 to vector<8x16xf32>
    %1910 = arith.mulf %1909, %1907 : vector<8x16xf32>
    %1911 = arith.addf %1837, %1910 : vector<8x16xf32>
    %c469 = arith.constant 469 : index
    %1912 = memref.load %arg3[%c469] : memref<648xf32, #tpu.memory_space<smem>>
    %1913 = vector.broadcast %1912 : f32 to vector<8x16xf32>
    %1914 = arith.mulf %1913, %1907 : vector<8x16xf32>
    %1915 = arith.addf %1841, %1914 : vector<8x16xf32>
    %c470 = arith.constant 470 : index
    %1916 = memref.load %arg3[%c470] : memref<648xf32, #tpu.memory_space<smem>>
    %1917 = vector.broadcast %1916 : f32 to vector<8x16xf32>
    %1918 = arith.mulf %1917, %1907 : vector<8x16xf32>
    %1919 = arith.addf %1845, %1918 : vector<8x16xf32>
    %c471 = arith.constant 471 : index
    %1920 = memref.load %arg3[%c471] : memref<648xf32, #tpu.memory_space<smem>>
    %1921 = vector.broadcast %1920 : f32 to vector<8x16xf32>
    %1922 = arith.mulf %1921, %1907 : vector<8x16xf32>
    %1923 = arith.addf %1849, %1922 : vector<8x16xf32>
    %c472 = arith.constant 472 : index
    %1924 = memref.load %arg3[%c472] : memref<648xf32, #tpu.memory_space<smem>>
    %1925 = vector.broadcast %1924 : f32 to vector<8x16xf32>
    %1926 = arith.mulf %1925, %1907 : vector<8x16xf32>
    %1927 = arith.addf %1853, %1926 : vector<8x16xf32>
    %c473 = arith.constant 473 : index
    %1928 = memref.load %arg3[%c473] : memref<648xf32, #tpu.memory_space<smem>>
    %1929 = vector.broadcast %1928 : f32 to vector<8x16xf32>
    %1930 = arith.mulf %1929, %1907 : vector<8x16xf32>
    %1931 = arith.addf %1857, %1930 : vector<8x16xf32>
    %c474 = arith.constant 474 : index
    %1932 = memref.load %arg3[%c474] : memref<648xf32, #tpu.memory_space<smem>>
    %1933 = vector.broadcast %1932 : f32 to vector<8x16xf32>
    %1934 = arith.mulf %1933, %1907 : vector<8x16xf32>
    %1935 = arith.addf %1861, %1934 : vector<8x16xf32>
    %c475 = arith.constant 475 : index
    %1936 = memref.load %arg3[%c475] : memref<648xf32, #tpu.memory_space<smem>>
    %1937 = vector.broadcast %1936 : f32 to vector<8x16xf32>
    %1938 = arith.mulf %1937, %1907 : vector<8x16xf32>
    %1939 = arith.addf %1865, %1938 : vector<8x16xf32>
    %c476 = arith.constant 476 : index
    %1940 = memref.load %arg3[%c476] : memref<648xf32, #tpu.memory_space<smem>>
    %1941 = vector.broadcast %1940 : f32 to vector<8x16xf32>
    %1942 = arith.mulf %1941, %1907 : vector<8x16xf32>
    %1943 = arith.addf %1869, %1942 : vector<8x16xf32>
    %c477 = arith.constant 477 : index
    %1944 = memref.load %arg3[%c477] : memref<648xf32, #tpu.memory_space<smem>>
    %1945 = vector.broadcast %1944 : f32 to vector<8x16xf32>
    %1946 = arith.mulf %1945, %1907 : vector<8x16xf32>
    %1947 = arith.addf %1873, %1946 : vector<8x16xf32>
    %c478 = arith.constant 478 : index
    %1948 = memref.load %arg3[%c478] : memref<648xf32, #tpu.memory_space<smem>>
    %1949 = vector.broadcast %1948 : f32 to vector<8x16xf32>
    %1950 = arith.mulf %1949, %1907 : vector<8x16xf32>
    %1951 = arith.addf %1877, %1950 : vector<8x16xf32>
    %c479 = arith.constant 479 : index
    %1952 = memref.load %arg3[%c479] : memref<648xf32, #tpu.memory_space<smem>>
    %1953 = vector.broadcast %1952 : f32 to vector<8x16xf32>
    %1954 = arith.mulf %1953, %1907 : vector<8x16xf32>
    %1955 = arith.addf %1881, %1954 : vector<8x16xf32>
    %c480 = arith.constant 480 : index
    %1956 = memref.load %arg3[%c480] : memref<648xf32, #tpu.memory_space<smem>>
    %1957 = vector.broadcast %1956 : f32 to vector<8x16xf32>
    %1958 = arith.mulf %1957, %1907 : vector<8x16xf32>
    %1959 = arith.addf %1885, %1958 : vector<8x16xf32>
    %c481 = arith.constant 481 : index
    %1960 = memref.load %arg3[%c481] : memref<648xf32, #tpu.memory_space<smem>>
    %1961 = vector.broadcast %1960 : f32 to vector<8x16xf32>
    %1962 = arith.mulf %1961, %1907 : vector<8x16xf32>
    %1963 = arith.addf %1889, %1962 : vector<8x16xf32>
    %c482 = arith.constant 482 : index
    %1964 = memref.load %arg3[%c482] : memref<648xf32, #tpu.memory_space<smem>>
    %1965 = vector.broadcast %1964 : f32 to vector<8x16xf32>
    %1966 = arith.mulf %1965, %1907 : vector<8x16xf32>
    %1967 = arith.addf %1893, %1966 : vector<8x16xf32>
    %c483 = arith.constant 483 : index
    %1968 = memref.load %arg3[%c483] : memref<648xf32, #tpu.memory_space<smem>>
    %1969 = vector.broadcast %1968 : f32 to vector<8x16xf32>
    %1970 = arith.mulf %1969, %1907 : vector<8x16xf32>
    %1971 = arith.addf %1897, %1970 : vector<8x16xf32>
    %c484 = arith.constant 484 : index
    %1972 = memref.load %arg3[%c484] : memref<648xf32, #tpu.memory_space<smem>>
    %1973 = vector.broadcast %1972 : f32 to vector<8x16xf32>
    %1974 = arith.mulf %1973, %1907 : vector<8x16xf32>
    %1975 = arith.addf %1901, %1974 : vector<8x16xf32>
    %c485 = arith.constant 485 : index
    %1976 = memref.load %arg3[%c485] : memref<648xf32, #tpu.memory_space<smem>>
    %1977 = vector.broadcast %1976 : f32 to vector<8x16xf32>
    %1978 = arith.mulf %1977, %1907 : vector<8x16xf32>
    %1979 = arith.addf %1905, %1978 : vector<8x16xf32>
    %c0_135 = arith.constant 0 : index
    %c0_136 = arith.constant 0 : index
    %c3_137 = arith.constant 3 : index
    %c2_138 = arith.constant 2 : index
    %c0_139 = arith.constant 0 : index
    %1980 = vector.load %arg2[%c0_135, %c0_136, %c3_137, %c2_138, %c0_139] : memref<1x1x4x10x18xf32, #tpu.memory_space<vmem>>, vector<1x1x1x8x16xf32>
    %1981 = vector.shape_cast %1980 : vector<1x1x1x8x16xf32> to vector<8x16xf32>
    %c486 = arith.constant 486 : index
    %1982 = memref.load %arg3[%c486] : memref<648xf32, #tpu.memory_space<smem>>
    %1983 = vector.broadcast %1982 : f32 to vector<8x16xf32>
    %1984 = arith.mulf %1983, %1981 : vector<8x16xf32>
    %1985 = arith.addf %1911, %1984 : vector<8x16xf32>
    %c487 = arith.constant 487 : index
    %1986 = memref.load %arg3[%c487] : memref<648xf32, #tpu.memory_space<smem>>
    %1987 = vector.broadcast %1986 : f32 to vector<8x16xf32>
    %1988 = arith.mulf %1987, %1981 : vector<8x16xf32>
    %1989 = arith.addf %1915, %1988 : vector<8x16xf32>
    %c488 = arith.constant 488 : index
    %1990 = memref.load %arg3[%c488] : memref<648xf32, #tpu.memory_space<smem>>
    %1991 = vector.broadcast %1990 : f32 to vector<8x16xf32>
    %1992 = arith.mulf %1991, %1981 : vector<8x16xf32>
    %1993 = arith.addf %1919, %1992 : vector<8x16xf32>
    %c489 = arith.constant 489 : index
    %1994 = memref.load %arg3[%c489] : memref<648xf32, #tpu.memory_space<smem>>
    %1995 = vector.broadcast %1994 : f32 to vector<8x16xf32>
    %1996 = arith.mulf %1995, %1981 : vector<8x16xf32>
    %1997 = arith.addf %1923, %1996 : vector<8x16xf32>
    %c490 = arith.constant 490 : index
    %1998 = memref.load %arg3[%c490] : memref<648xf32, #tpu.memory_space<smem>>
    %1999 = vector.broadcast %1998 : f32 to vector<8x16xf32>
    %2000 = arith.mulf %1999, %1981 : vector<8x16xf32>
    %2001 = arith.addf %1927, %2000 : vector<8x16xf32>
    %c491 = arith.constant 491 : index
    %2002 = memref.load %arg3[%c491] : memref<648xf32, #tpu.memory_space<smem>>
    %2003 = vector.broadcast %2002 : f32 to vector<8x16xf32>
    %2004 = arith.mulf %2003, %1981 : vector<8x16xf32>
    %2005 = arith.addf %1931, %2004 : vector<8x16xf32>
    %c492 = arith.constant 492 : index
    %2006 = memref.load %arg3[%c492] : memref<648xf32, #tpu.memory_space<smem>>
    %2007 = vector.broadcast %2006 : f32 to vector<8x16xf32>
    %2008 = arith.mulf %2007, %1981 : vector<8x16xf32>
    %2009 = arith.addf %1935, %2008 : vector<8x16xf32>
    %c493 = arith.constant 493 : index
    %2010 = memref.load %arg3[%c493] : memref<648xf32, #tpu.memory_space<smem>>
    %2011 = vector.broadcast %2010 : f32 to vector<8x16xf32>
    %2012 = arith.mulf %2011, %1981 : vector<8x16xf32>
    %2013 = arith.addf %1939, %2012 : vector<8x16xf32>
    %c494 = arith.constant 494 : index
    %2014 = memref.load %arg3[%c494] : memref<648xf32, #tpu.memory_space<smem>>
    %2015 = vector.broadcast %2014 : f32 to vector<8x16xf32>
    %2016 = arith.mulf %2015, %1981 : vector<8x16xf32>
    %2017 = arith.addf %1943, %2016 : vector<8x16xf32>
    %c495 = arith.constant 495 : index
    %2018 = memref.load %arg3[%c495] : memref<648xf32, #tpu.memory_space<smem>>
    %2019 = vector.broadcast %2018 : f32 to vector<8x16xf32>
    %2020 = arith.mulf %2019, %1981 : vector<8x16xf32>
    %2021 = arith.addf %1947, %2020 : vector<8x16xf32>
    %c496 = arith.constant 496 : index
    %2022 = memref.load %arg3[%c496] : memref<648xf32, #tpu.memory_space<smem>>
    %2023 = vector.broadcast %2022 : f32 to vector<8x16xf32>
    %2024 = arith.mulf %2023, %1981 : vector<8x16xf32>
    %2025 = arith.addf %1951, %2024 : vector<8x16xf32>
    %c497 = arith.constant 497 : index
    %2026 = memref.load %arg3[%c497] : memref<648xf32, #tpu.memory_space<smem>>
    %2027 = vector.broadcast %2026 : f32 to vector<8x16xf32>
    %2028 = arith.mulf %2027, %1981 : vector<8x16xf32>
    %2029 = arith.addf %1955, %2028 : vector<8x16xf32>
    %c498 = arith.constant 498 : index
    %2030 = memref.load %arg3[%c498] : memref<648xf32, #tpu.memory_space<smem>>
    %2031 = vector.broadcast %2030 : f32 to vector<8x16xf32>
    %2032 = arith.mulf %2031, %1981 : vector<8x16xf32>
    %2033 = arith.addf %1959, %2032 : vector<8x16xf32>
    %c499 = arith.constant 499 : index
    %2034 = memref.load %arg3[%c499] : memref<648xf32, #tpu.memory_space<smem>>
    %2035 = vector.broadcast %2034 : f32 to vector<8x16xf32>
    %2036 = arith.mulf %2035, %1981 : vector<8x16xf32>
    %2037 = arith.addf %1963, %2036 : vector<8x16xf32>
    %c500 = arith.constant 500 : index
    %2038 = memref.load %arg3[%c500] : memref<648xf32, #tpu.memory_space<smem>>
    %2039 = vector.broadcast %2038 : f32 to vector<8x16xf32>
    %2040 = arith.mulf %2039, %1981 : vector<8x16xf32>
    %2041 = arith.addf %1967, %2040 : vector<8x16xf32>
    %c501 = arith.constant 501 : index
    %2042 = memref.load %arg3[%c501] : memref<648xf32, #tpu.memory_space<smem>>
    %2043 = vector.broadcast %2042 : f32 to vector<8x16xf32>
    %2044 = arith.mulf %2043, %1981 : vector<8x16xf32>
    %2045 = arith.addf %1971, %2044 : vector<8x16xf32>
    %c502 = arith.constant 502 : index
    %2046 = memref.load %arg3[%c502] : memref<648xf32, #tpu.memory_space<smem>>
    %2047 = vector.broadcast %2046 : f32 to vector<8x16xf32>
    %2048 = arith.mulf %2047, %1981 : vector<8x16xf32>
    %2049 = arith.addf %1975, %2048 : vector<8x16xf32>
    %c503 = arith.constant 503 : index
    %2050 = memref.load %arg3[%c503] : memref<648xf32, #tpu.memory_space<smem>>
    %2051 = vector.broadcast %2050 : f32 to vector<8x16xf32>
    %2052 = arith.mulf %2051, %1981 : vector<8x16xf32>
    %2053 = arith.addf %1979, %2052 : vector<8x16xf32>
    %c0_140 = arith.constant 0 : index
    %c0_141 = arith.constant 0 : index
    %c0_142 = arith.constant 0 : index
    %c2_143 = arith.constant 2 : index
    %c1_144 = arith.constant 1 : index
    %2054 = vector.load %arg2[%c0_140, %c0_141, %c0_142, %c2_143, %c1_144] : memref<1x1x4x10x18xf32, #tpu.memory_space<vmem>>, vector<1x1x1x8x16xf32>
    %2055 = vector.shape_cast %2054 : vector<1x1x1x8x16xf32> to vector<8x16xf32>
    %c504 = arith.constant 504 : index
    %2056 = memref.load %arg3[%c504] : memref<648xf32, #tpu.memory_space<smem>>
    %2057 = vector.broadcast %2056 : f32 to vector<8x16xf32>
    %2058 = arith.mulf %2057, %2055 : vector<8x16xf32>
    %2059 = arith.addf %1985, %2058 : vector<8x16xf32>
    %c505 = arith.constant 505 : index
    %2060 = memref.load %arg3[%c505] : memref<648xf32, #tpu.memory_space<smem>>
    %2061 = vector.broadcast %2060 : f32 to vector<8x16xf32>
    %2062 = arith.mulf %2061, %2055 : vector<8x16xf32>
    %2063 = arith.addf %1989, %2062 : vector<8x16xf32>
    %c506 = arith.constant 506 : index
    %2064 = memref.load %arg3[%c506] : memref<648xf32, #tpu.memory_space<smem>>
    %2065 = vector.broadcast %2064 : f32 to vector<8x16xf32>
    %2066 = arith.mulf %2065, %2055 : vector<8x16xf32>
    %2067 = arith.addf %1993, %2066 : vector<8x16xf32>
    %c507 = arith.constant 507 : index
    %2068 = memref.load %arg3[%c507] : memref<648xf32, #tpu.memory_space<smem>>
    %2069 = vector.broadcast %2068 : f32 to vector<8x16xf32>
    %2070 = arith.mulf %2069, %2055 : vector<8x16xf32>
    %2071 = arith.addf %1997, %2070 : vector<8x16xf32>
    %c508 = arith.constant 508 : index
    %2072 = memref.load %arg3[%c508] : memref<648xf32, #tpu.memory_space<smem>>
    %2073 = vector.broadcast %2072 : f32 to vector<8x16xf32>
    %2074 = arith.mulf %2073, %2055 : vector<8x16xf32>
    %2075 = arith.addf %2001, %2074 : vector<8x16xf32>
    %c509 = arith.constant 509 : index
    %2076 = memref.load %arg3[%c509] : memref<648xf32, #tpu.memory_space<smem>>
    %2077 = vector.broadcast %2076 : f32 to vector<8x16xf32>
    %2078 = arith.mulf %2077, %2055 : vector<8x16xf32>
    %2079 = arith.addf %2005, %2078 : vector<8x16xf32>
    %c510 = arith.constant 510 : index
    %2080 = memref.load %arg3[%c510] : memref<648xf32, #tpu.memory_space<smem>>
    %2081 = vector.broadcast %2080 : f32 to vector<8x16xf32>
    %2082 = arith.mulf %2081, %2055 : vector<8x16xf32>
    %2083 = arith.addf %2009, %2082 : vector<8x16xf32>
    %c511 = arith.constant 511 : index
    %2084 = memref.load %arg3[%c511] : memref<648xf32, #tpu.memory_space<smem>>
    %2085 = vector.broadcast %2084 : f32 to vector<8x16xf32>
    %2086 = arith.mulf %2085, %2055 : vector<8x16xf32>
    %2087 = arith.addf %2013, %2086 : vector<8x16xf32>
    %c512 = arith.constant 512 : index
    %2088 = memref.load %arg3[%c512] : memref<648xf32, #tpu.memory_space<smem>>
    %2089 = vector.broadcast %2088 : f32 to vector<8x16xf32>
    %2090 = arith.mulf %2089, %2055 : vector<8x16xf32>
    %2091 = arith.addf %2017, %2090 : vector<8x16xf32>
    %c513 = arith.constant 513 : index
    %2092 = memref.load %arg3[%c513] : memref<648xf32, #tpu.memory_space<smem>>
    %2093 = vector.broadcast %2092 : f32 to vector<8x16xf32>
    %2094 = arith.mulf %2093, %2055 : vector<8x16xf32>
    %2095 = arith.addf %2021, %2094 : vector<8x16xf32>
    %c514 = arith.constant 514 : index
    %2096 = memref.load %arg3[%c514] : memref<648xf32, #tpu.memory_space<smem>>
    %2097 = vector.broadcast %2096 : f32 to vector<8x16xf32>
    %2098 = arith.mulf %2097, %2055 : vector<8x16xf32>
    %2099 = arith.addf %2025, %2098 : vector<8x16xf32>
    %c515 = arith.constant 515 : index
    %2100 = memref.load %arg3[%c515] : memref<648xf32, #tpu.memory_space<smem>>
    %2101 = vector.broadcast %2100 : f32 to vector<8x16xf32>
    %2102 = arith.mulf %2101, %2055 : vector<8x16xf32>
    %2103 = arith.addf %2029, %2102 : vector<8x16xf32>
    %c516 = arith.constant 516 : index
    %2104 = memref.load %arg3[%c516] : memref<648xf32, #tpu.memory_space<smem>>
    %2105 = vector.broadcast %2104 : f32 to vector<8x16xf32>
    %2106 = arith.mulf %2105, %2055 : vector<8x16xf32>
    %2107 = arith.addf %2033, %2106 : vector<8x16xf32>
    %c517 = arith.constant 517 : index
    %2108 = memref.load %arg3[%c517] : memref<648xf32, #tpu.memory_space<smem>>
    %2109 = vector.broadcast %2108 : f32 to vector<8x16xf32>
    %2110 = arith.mulf %2109, %2055 : vector<8x16xf32>
    %2111 = arith.addf %2037, %2110 : vector<8x16xf32>
    %c518 = arith.constant 518 : index
    %2112 = memref.load %arg3[%c518] : memref<648xf32, #tpu.memory_space<smem>>
    %2113 = vector.broadcast %2112 : f32 to vector<8x16xf32>
    %2114 = arith.mulf %2113, %2055 : vector<8x16xf32>
    %2115 = arith.addf %2041, %2114 : vector<8x16xf32>
    %c519 = arith.constant 519 : index
    %2116 = memref.load %arg3[%c519] : memref<648xf32, #tpu.memory_space<smem>>
    %2117 = vector.broadcast %2116 : f32 to vector<8x16xf32>
    %2118 = arith.mulf %2117, %2055 : vector<8x16xf32>
    %2119 = arith.addf %2045, %2118 : vector<8x16xf32>
    %c520 = arith.constant 520 : index
    %2120 = memref.load %arg3[%c520] : memref<648xf32, #tpu.memory_space<smem>>
    %2121 = vector.broadcast %2120 : f32 to vector<8x16xf32>
    %2122 = arith.mulf %2121, %2055 : vector<8x16xf32>
    %2123 = arith.addf %2049, %2122 : vector<8x16xf32>
    %c521 = arith.constant 521 : index
    %2124 = memref.load %arg3[%c521] : memref<648xf32, #tpu.memory_space<smem>>
    %2125 = vector.broadcast %2124 : f32 to vector<8x16xf32>
    %2126 = arith.mulf %2125, %2055 : vector<8x16xf32>
    %2127 = arith.addf %2053, %2126 : vector<8x16xf32>
    %c0_145 = arith.constant 0 : index
    %c0_146 = arith.constant 0 : index
    %c1_147 = arith.constant 1 : index
    %c2_148 = arith.constant 2 : index
    %c1_149 = arith.constant 1 : index
    %2128 = vector.load %arg2[%c0_145, %c0_146, %c1_147, %c2_148, %c1_149] : memref<1x1x4x10x18xf32, #tpu.memory_space<vmem>>, vector<1x1x1x8x16xf32>
    %2129 = vector.shape_cast %2128 : vector<1x1x1x8x16xf32> to vector<8x16xf32>
    %c522 = arith.constant 522 : index
    %2130 = memref.load %arg3[%c522] : memref<648xf32, #tpu.memory_space<smem>>
    %2131 = vector.broadcast %2130 : f32 to vector<8x16xf32>
    %2132 = arith.mulf %2131, %2129 : vector<8x16xf32>
    %2133 = arith.addf %2059, %2132 : vector<8x16xf32>
    %c523 = arith.constant 523 : index
    %2134 = memref.load %arg3[%c523] : memref<648xf32, #tpu.memory_space<smem>>
    %2135 = vector.broadcast %2134 : f32 to vector<8x16xf32>
    %2136 = arith.mulf %2135, %2129 : vector<8x16xf32>
    %2137 = arith.addf %2063, %2136 : vector<8x16xf32>
    %c524 = arith.constant 524 : index
    %2138 = memref.load %arg3[%c524] : memref<648xf32, #tpu.memory_space<smem>>
    %2139 = vector.broadcast %2138 : f32 to vector<8x16xf32>
    %2140 = arith.mulf %2139, %2129 : vector<8x16xf32>
    %2141 = arith.addf %2067, %2140 : vector<8x16xf32>
    %c525 = arith.constant 525 : index
    %2142 = memref.load %arg3[%c525] : memref<648xf32, #tpu.memory_space<smem>>
    %2143 = vector.broadcast %2142 : f32 to vector<8x16xf32>
    %2144 = arith.mulf %2143, %2129 : vector<8x16xf32>
    %2145 = arith.addf %2071, %2144 : vector<8x16xf32>
    %c526 = arith.constant 526 : index
    %2146 = memref.load %arg3[%c526] : memref<648xf32, #tpu.memory_space<smem>>
    %2147 = vector.broadcast %2146 : f32 to vector<8x16xf32>
    %2148 = arith.mulf %2147, %2129 : vector<8x16xf32>
    %2149 = arith.addf %2075, %2148 : vector<8x16xf32>
    %c527 = arith.constant 527 : index
    %2150 = memref.load %arg3[%c527] : memref<648xf32, #tpu.memory_space<smem>>
    %2151 = vector.broadcast %2150 : f32 to vector<8x16xf32>
    %2152 = arith.mulf %2151, %2129 : vector<8x16xf32>
    %2153 = arith.addf %2079, %2152 : vector<8x16xf32>
    %c528 = arith.constant 528 : index
    %2154 = memref.load %arg3[%c528] : memref<648xf32, #tpu.memory_space<smem>>
    %2155 = vector.broadcast %2154 : f32 to vector<8x16xf32>
    %2156 = arith.mulf %2155, %2129 : vector<8x16xf32>
    %2157 = arith.addf %2083, %2156 : vector<8x16xf32>
    %c529 = arith.constant 529 : index
    %2158 = memref.load %arg3[%c529] : memref<648xf32, #tpu.memory_space<smem>>
    %2159 = vector.broadcast %2158 : f32 to vector<8x16xf32>
    %2160 = arith.mulf %2159, %2129 : vector<8x16xf32>
    %2161 = arith.addf %2087, %2160 : vector<8x16xf32>
    %c530 = arith.constant 530 : index
    %2162 = memref.load %arg3[%c530] : memref<648xf32, #tpu.memory_space<smem>>
    %2163 = vector.broadcast %2162 : f32 to vector<8x16xf32>
    %2164 = arith.mulf %2163, %2129 : vector<8x16xf32>
    %2165 = arith.addf %2091, %2164 : vector<8x16xf32>
    %c531 = arith.constant 531 : index
    %2166 = memref.load %arg3[%c531] : memref<648xf32, #tpu.memory_space<smem>>
    %2167 = vector.broadcast %2166 : f32 to vector<8x16xf32>
    %2168 = arith.mulf %2167, %2129 : vector<8x16xf32>
    %2169 = arith.addf %2095, %2168 : vector<8x16xf32>
    %c532 = arith.constant 532 : index
    %2170 = memref.load %arg3[%c532] : memref<648xf32, #tpu.memory_space<smem>>
    %2171 = vector.broadcast %2170 : f32 to vector<8x16xf32>
    %2172 = arith.mulf %2171, %2129 : vector<8x16xf32>
    %2173 = arith.addf %2099, %2172 : vector<8x16xf32>
    %c533 = arith.constant 533 : index
    %2174 = memref.load %arg3[%c533] : memref<648xf32, #tpu.memory_space<smem>>
    %2175 = vector.broadcast %2174 : f32 to vector<8x16xf32>
    %2176 = arith.mulf %2175, %2129 : vector<8x16xf32>
    %2177 = arith.addf %2103, %2176 : vector<8x16xf32>
    %c534 = arith.constant 534 : index
    %2178 = memref.load %arg3[%c534] : memref<648xf32, #tpu.memory_space<smem>>
    %2179 = vector.broadcast %2178 : f32 to vector<8x16xf32>
    %2180 = arith.mulf %2179, %2129 : vector<8x16xf32>
    %2181 = arith.addf %2107, %2180 : vector<8x16xf32>
    %c535 = arith.constant 535 : index
    %2182 = memref.load %arg3[%c535] : memref<648xf32, #tpu.memory_space<smem>>
    %2183 = vector.broadcast %2182 : f32 to vector<8x16xf32>
    %2184 = arith.mulf %2183, %2129 : vector<8x16xf32>
    %2185 = arith.addf %2111, %2184 : vector<8x16xf32>
    %c536 = arith.constant 536 : index
    %2186 = memref.load %arg3[%c536] : memref<648xf32, #tpu.memory_space<smem>>
    %2187 = vector.broadcast %2186 : f32 to vector<8x16xf32>
    %2188 = arith.mulf %2187, %2129 : vector<8x16xf32>
    %2189 = arith.addf %2115, %2188 : vector<8x16xf32>
    %c537 = arith.constant 537 : index
    %2190 = memref.load %arg3[%c537] : memref<648xf32, #tpu.memory_space<smem>>
    %2191 = vector.broadcast %2190 : f32 to vector<8x16xf32>
    %2192 = arith.mulf %2191, %2129 : vector<8x16xf32>
    %2193 = arith.addf %2119, %2192 : vector<8x16xf32>
    %c538 = arith.constant 538 : index
    %2194 = memref.load %arg3[%c538] : memref<648xf32, #tpu.memory_space<smem>>
    %2195 = vector.broadcast %2194 : f32 to vector<8x16xf32>
    %2196 = arith.mulf %2195, %2129 : vector<8x16xf32>
    %2197 = arith.addf %2123, %2196 : vector<8x16xf32>
    %c539 = arith.constant 539 : index
    %2198 = memref.load %arg3[%c539] : memref<648xf32, #tpu.memory_space<smem>>
    %2199 = vector.broadcast %2198 : f32 to vector<8x16xf32>
    %2200 = arith.mulf %2199, %2129 : vector<8x16xf32>
    %2201 = arith.addf %2127, %2200 : vector<8x16xf32>
    %c0_150 = arith.constant 0 : index
    %c0_151 = arith.constant 0 : index
    %c2_152 = arith.constant 2 : index
    %c2_153 = arith.constant 2 : index
    %c1_154 = arith.constant 1 : index
    %2202 = vector.load %arg2[%c0_150, %c0_151, %c2_152, %c2_153, %c1_154] : memref<1x1x4x10x18xf32, #tpu.memory_space<vmem>>, vector<1x1x1x8x16xf32>
    %2203 = vector.shape_cast %2202 : vector<1x1x1x8x16xf32> to vector<8x16xf32>
    %c540 = arith.constant 540 : index
    %2204 = memref.load %arg3[%c540] : memref<648xf32, #tpu.memory_space<smem>>
    %2205 = vector.broadcast %2204 : f32 to vector<8x16xf32>
    %2206 = arith.mulf %2205, %2203 : vector<8x16xf32>
    %2207 = arith.addf %2133, %2206 : vector<8x16xf32>
    %c541 = arith.constant 541 : index
    %2208 = memref.load %arg3[%c541] : memref<648xf32, #tpu.memory_space<smem>>
    %2209 = vector.broadcast %2208 : f32 to vector<8x16xf32>
    %2210 = arith.mulf %2209, %2203 : vector<8x16xf32>
    %2211 = arith.addf %2137, %2210 : vector<8x16xf32>
    %c542 = arith.constant 542 : index
    %2212 = memref.load %arg3[%c542] : memref<648xf32, #tpu.memory_space<smem>>
    %2213 = vector.broadcast %2212 : f32 to vector<8x16xf32>
    %2214 = arith.mulf %2213, %2203 : vector<8x16xf32>
    %2215 = arith.addf %2141, %2214 : vector<8x16xf32>
    %c543 = arith.constant 543 : index
    %2216 = memref.load %arg3[%c543] : memref<648xf32, #tpu.memory_space<smem>>
    %2217 = vector.broadcast %2216 : f32 to vector<8x16xf32>
    %2218 = arith.mulf %2217, %2203 : vector<8x16xf32>
    %2219 = arith.addf %2145, %2218 : vector<8x16xf32>
    %c544 = arith.constant 544 : index
    %2220 = memref.load %arg3[%c544] : memref<648xf32, #tpu.memory_space<smem>>
    %2221 = vector.broadcast %2220 : f32 to vector<8x16xf32>
    %2222 = arith.mulf %2221, %2203 : vector<8x16xf32>
    %2223 = arith.addf %2149, %2222 : vector<8x16xf32>
    %c545 = arith.constant 545 : index
    %2224 = memref.load %arg3[%c545] : memref<648xf32, #tpu.memory_space<smem>>
    %2225 = vector.broadcast %2224 : f32 to vector<8x16xf32>
    %2226 = arith.mulf %2225, %2203 : vector<8x16xf32>
    %2227 = arith.addf %2153, %2226 : vector<8x16xf32>
    %c546 = arith.constant 546 : index
    %2228 = memref.load %arg3[%c546] : memref<648xf32, #tpu.memory_space<smem>>
    %2229 = vector.broadcast %2228 : f32 to vector<8x16xf32>
    %2230 = arith.mulf %2229, %2203 : vector<8x16xf32>
    %2231 = arith.addf %2157, %2230 : vector<8x16xf32>
    %c547 = arith.constant 547 : index
    %2232 = memref.load %arg3[%c547] : memref<648xf32, #tpu.memory_space<smem>>
    %2233 = vector.broadcast %2232 : f32 to vector<8x16xf32>
    %2234 = arith.mulf %2233, %2203 : vector<8x16xf32>
    %2235 = arith.addf %2161, %2234 : vector<8x16xf32>
    %c548 = arith.constant 548 : index
    %2236 = memref.load %arg3[%c548] : memref<648xf32, #tpu.memory_space<smem>>
    %2237 = vector.broadcast %2236 : f32 to vector<8x16xf32>
    %2238 = arith.mulf %2237, %2203 : vector<8x16xf32>
    %2239 = arith.addf %2165, %2238 : vector<8x16xf32>
    %c549 = arith.constant 549 : index
    %2240 = memref.load %arg3[%c549] : memref<648xf32, #tpu.memory_space<smem>>
    %2241 = vector.broadcast %2240 : f32 to vector<8x16xf32>
    %2242 = arith.mulf %2241, %2203 : vector<8x16xf32>
    %2243 = arith.addf %2169, %2242 : vector<8x16xf32>
    %c550 = arith.constant 550 : index
    %2244 = memref.load %arg3[%c550] : memref<648xf32, #tpu.memory_space<smem>>
    %2245 = vector.broadcast %2244 : f32 to vector<8x16xf32>
    %2246 = arith.mulf %2245, %2203 : vector<8x16xf32>
    %2247 = arith.addf %2173, %2246 : vector<8x16xf32>
    %c551 = arith.constant 551 : index
    %2248 = memref.load %arg3[%c551] : memref<648xf32, #tpu.memory_space<smem>>
    %2249 = vector.broadcast %2248 : f32 to vector<8x16xf32>
    %2250 = arith.mulf %2249, %2203 : vector<8x16xf32>
    %2251 = arith.addf %2177, %2250 : vector<8x16xf32>
    %c552 = arith.constant 552 : index
    %2252 = memref.load %arg3[%c552] : memref<648xf32, #tpu.memory_space<smem>>
    %2253 = vector.broadcast %2252 : f32 to vector<8x16xf32>
    %2254 = arith.mulf %2253, %2203 : vector<8x16xf32>
    %2255 = arith.addf %2181, %2254 : vector<8x16xf32>
    %c553 = arith.constant 553 : index
    %2256 = memref.load %arg3[%c553] : memref<648xf32, #tpu.memory_space<smem>>
    %2257 = vector.broadcast %2256 : f32 to vector<8x16xf32>
    %2258 = arith.mulf %2257, %2203 : vector<8x16xf32>
    %2259 = arith.addf %2185, %2258 : vector<8x16xf32>
    %c554 = arith.constant 554 : index
    %2260 = memref.load %arg3[%c554] : memref<648xf32, #tpu.memory_space<smem>>
    %2261 = vector.broadcast %2260 : f32 to vector<8x16xf32>
    %2262 = arith.mulf %2261, %2203 : vector<8x16xf32>
    %2263 = arith.addf %2189, %2262 : vector<8x16xf32>
    %c555 = arith.constant 555 : index
    %2264 = memref.load %arg3[%c555] : memref<648xf32, #tpu.memory_space<smem>>
    %2265 = vector.broadcast %2264 : f32 to vector<8x16xf32>
    %2266 = arith.mulf %2265, %2203 : vector<8x16xf32>
    %2267 = arith.addf %2193, %2266 : vector<8x16xf32>
    %c556 = arith.constant 556 : index
    %2268 = memref.load %arg3[%c556] : memref<648xf32, #tpu.memory_space<smem>>
    %2269 = vector.broadcast %2268 : f32 to vector<8x16xf32>
    %2270 = arith.mulf %2269, %2203 : vector<8x16xf32>
    %2271 = arith.addf %2197, %2270 : vector<8x16xf32>
    %c557 = arith.constant 557 : index
    %2272 = memref.load %arg3[%c557] : memref<648xf32, #tpu.memory_space<smem>>
    %2273 = vector.broadcast %2272 : f32 to vector<8x16xf32>
    %2274 = arith.mulf %2273, %2203 : vector<8x16xf32>
    %2275 = arith.addf %2201, %2274 : vector<8x16xf32>
    %c0_155 = arith.constant 0 : index
    %c0_156 = arith.constant 0 : index
    %c3_157 = arith.constant 3 : index
    %c2_158 = arith.constant 2 : index
    %c1_159 = arith.constant 1 : index
    %2276 = vector.load %arg2[%c0_155, %c0_156, %c3_157, %c2_158, %c1_159] : memref<1x1x4x10x18xf32, #tpu.memory_space<vmem>>, vector<1x1x1x8x16xf32>
    %2277 = vector.shape_cast %2276 : vector<1x1x1x8x16xf32> to vector<8x16xf32>
    %c558 = arith.constant 558 : index
    %2278 = memref.load %arg3[%c558] : memref<648xf32, #tpu.memory_space<smem>>
    %2279 = vector.broadcast %2278 : f32 to vector<8x16xf32>
    %2280 = arith.mulf %2279, %2277 : vector<8x16xf32>
    %2281 = arith.addf %2207, %2280 : vector<8x16xf32>
    %c559 = arith.constant 559 : index
    %2282 = memref.load %arg3[%c559] : memref<648xf32, #tpu.memory_space<smem>>
    %2283 = vector.broadcast %2282 : f32 to vector<8x16xf32>
    %2284 = arith.mulf %2283, %2277 : vector<8x16xf32>
    %2285 = arith.addf %2211, %2284 : vector<8x16xf32>
    %c560 = arith.constant 560 : index
    %2286 = memref.load %arg3[%c560] : memref<648xf32, #tpu.memory_space<smem>>
    %2287 = vector.broadcast %2286 : f32 to vector<8x16xf32>
    %2288 = arith.mulf %2287, %2277 : vector<8x16xf32>
    %2289 = arith.addf %2215, %2288 : vector<8x16xf32>
    %c561 = arith.constant 561 : index
    %2290 = memref.load %arg3[%c561] : memref<648xf32, #tpu.memory_space<smem>>
    %2291 = vector.broadcast %2290 : f32 to vector<8x16xf32>
    %2292 = arith.mulf %2291, %2277 : vector<8x16xf32>
    %2293 = arith.addf %2219, %2292 : vector<8x16xf32>
    %c562 = arith.constant 562 : index
    %2294 = memref.load %arg3[%c562] : memref<648xf32, #tpu.memory_space<smem>>
    %2295 = vector.broadcast %2294 : f32 to vector<8x16xf32>
    %2296 = arith.mulf %2295, %2277 : vector<8x16xf32>
    %2297 = arith.addf %2223, %2296 : vector<8x16xf32>
    %c563 = arith.constant 563 : index
    %2298 = memref.load %arg3[%c563] : memref<648xf32, #tpu.memory_space<smem>>
    %2299 = vector.broadcast %2298 : f32 to vector<8x16xf32>
    %2300 = arith.mulf %2299, %2277 : vector<8x16xf32>
    %2301 = arith.addf %2227, %2300 : vector<8x16xf32>
    %c564 = arith.constant 564 : index
    %2302 = memref.load %arg3[%c564] : memref<648xf32, #tpu.memory_space<smem>>
    %2303 = vector.broadcast %2302 : f32 to vector<8x16xf32>
    %2304 = arith.mulf %2303, %2277 : vector<8x16xf32>
    %2305 = arith.addf %2231, %2304 : vector<8x16xf32>
    %c565 = arith.constant 565 : index
    %2306 = memref.load %arg3[%c565] : memref<648xf32, #tpu.memory_space<smem>>
    %2307 = vector.broadcast %2306 : f32 to vector<8x16xf32>
    %2308 = arith.mulf %2307, %2277 : vector<8x16xf32>
    %2309 = arith.addf %2235, %2308 : vector<8x16xf32>
    %c566 = arith.constant 566 : index
    %2310 = memref.load %arg3[%c566] : memref<648xf32, #tpu.memory_space<smem>>
    %2311 = vector.broadcast %2310 : f32 to vector<8x16xf32>
    %2312 = arith.mulf %2311, %2277 : vector<8x16xf32>
    %2313 = arith.addf %2239, %2312 : vector<8x16xf32>
    %c567 = arith.constant 567 : index
    %2314 = memref.load %arg3[%c567] : memref<648xf32, #tpu.memory_space<smem>>
    %2315 = vector.broadcast %2314 : f32 to vector<8x16xf32>
    %2316 = arith.mulf %2315, %2277 : vector<8x16xf32>
    %2317 = arith.addf %2243, %2316 : vector<8x16xf32>
    %c568 = arith.constant 568 : index
    %2318 = memref.load %arg3[%c568] : memref<648xf32, #tpu.memory_space<smem>>
    %2319 = vector.broadcast %2318 : f32 to vector<8x16xf32>
    %2320 = arith.mulf %2319, %2277 : vector<8x16xf32>
    %2321 = arith.addf %2247, %2320 : vector<8x16xf32>
    %c569 = arith.constant 569 : index
    %2322 = memref.load %arg3[%c569] : memref<648xf32, #tpu.memory_space<smem>>
    %2323 = vector.broadcast %2322 : f32 to vector<8x16xf32>
    %2324 = arith.mulf %2323, %2277 : vector<8x16xf32>
    %2325 = arith.addf %2251, %2324 : vector<8x16xf32>
    %c570 = arith.constant 570 : index
    %2326 = memref.load %arg3[%c570] : memref<648xf32, #tpu.memory_space<smem>>
    %2327 = vector.broadcast %2326 : f32 to vector<8x16xf32>
    %2328 = arith.mulf %2327, %2277 : vector<8x16xf32>
    %2329 = arith.addf %2255, %2328 : vector<8x16xf32>
    %c571 = arith.constant 571 : index
    %2330 = memref.load %arg3[%c571] : memref<648xf32, #tpu.memory_space<smem>>
    %2331 = vector.broadcast %2330 : f32 to vector<8x16xf32>
    %2332 = arith.mulf %2331, %2277 : vector<8x16xf32>
    %2333 = arith.addf %2259, %2332 : vector<8x16xf32>
    %c572 = arith.constant 572 : index
    %2334 = memref.load %arg3[%c572] : memref<648xf32, #tpu.memory_space<smem>>
    %2335 = vector.broadcast %2334 : f32 to vector<8x16xf32>
    %2336 = arith.mulf %2335, %2277 : vector<8x16xf32>
    %2337 = arith.addf %2263, %2336 : vector<8x16xf32>
    %c573 = arith.constant 573 : index
    %2338 = memref.load %arg3[%c573] : memref<648xf32, #tpu.memory_space<smem>>
    %2339 = vector.broadcast %2338 : f32 to vector<8x16xf32>
    %2340 = arith.mulf %2339, %2277 : vector<8x16xf32>
    %2341 = arith.addf %2267, %2340 : vector<8x16xf32>
    %c574 = arith.constant 574 : index
    %2342 = memref.load %arg3[%c574] : memref<648xf32, #tpu.memory_space<smem>>
    %2343 = vector.broadcast %2342 : f32 to vector<8x16xf32>
    %2344 = arith.mulf %2343, %2277 : vector<8x16xf32>
    %2345 = arith.addf %2271, %2344 : vector<8x16xf32>
    %c575 = arith.constant 575 : index
    %2346 = memref.load %arg3[%c575] : memref<648xf32, #tpu.memory_space<smem>>
    %2347 = vector.broadcast %2346 : f32 to vector<8x16xf32>
    %2348 = arith.mulf %2347, %2277 : vector<8x16xf32>
    %2349 = arith.addf %2275, %2348 : vector<8x16xf32>
    %c0_160 = arith.constant 0 : index
    %c0_161 = arith.constant 0 : index
    %c0_162 = arith.constant 0 : index
    %c2_163 = arith.constant 2 : index
    %c2_164 = arith.constant 2 : index
    %2350 = vector.load %arg2[%c0_160, %c0_161, %c0_162, %c2_163, %c2_164] : memref<1x1x4x10x18xf32, #tpu.memory_space<vmem>>, vector<1x1x1x8x16xf32>
    %2351 = vector.shape_cast %2350 : vector<1x1x1x8x16xf32> to vector<8x16xf32>
    %c576 = arith.constant 576 : index
    %2352 = memref.load %arg3[%c576] : memref<648xf32, #tpu.memory_space<smem>>
    %2353 = vector.broadcast %2352 : f32 to vector<8x16xf32>
    %2354 = arith.mulf %2353, %2351 : vector<8x16xf32>
    %2355 = arith.addf %2281, %2354 : vector<8x16xf32>
    %c577 = arith.constant 577 : index
    %2356 = memref.load %arg3[%c577] : memref<648xf32, #tpu.memory_space<smem>>
    %2357 = vector.broadcast %2356 : f32 to vector<8x16xf32>
    %2358 = arith.mulf %2357, %2351 : vector<8x16xf32>
    %2359 = arith.addf %2285, %2358 : vector<8x16xf32>
    %c578 = arith.constant 578 : index
    %2360 = memref.load %arg3[%c578] : memref<648xf32, #tpu.memory_space<smem>>
    %2361 = vector.broadcast %2360 : f32 to vector<8x16xf32>
    %2362 = arith.mulf %2361, %2351 : vector<8x16xf32>
    %2363 = arith.addf %2289, %2362 : vector<8x16xf32>
    %c579 = arith.constant 579 : index
    %2364 = memref.load %arg3[%c579] : memref<648xf32, #tpu.memory_space<smem>>
    %2365 = vector.broadcast %2364 : f32 to vector<8x16xf32>
    %2366 = arith.mulf %2365, %2351 : vector<8x16xf32>
    %2367 = arith.addf %2293, %2366 : vector<8x16xf32>
    %c580 = arith.constant 580 : index
    %2368 = memref.load %arg3[%c580] : memref<648xf32, #tpu.memory_space<smem>>
    %2369 = vector.broadcast %2368 : f32 to vector<8x16xf32>
    %2370 = arith.mulf %2369, %2351 : vector<8x16xf32>
    %2371 = arith.addf %2297, %2370 : vector<8x16xf32>
    %c581 = arith.constant 581 : index
    %2372 = memref.load %arg3[%c581] : memref<648xf32, #tpu.memory_space<smem>>
    %2373 = vector.broadcast %2372 : f32 to vector<8x16xf32>
    %2374 = arith.mulf %2373, %2351 : vector<8x16xf32>
    %2375 = arith.addf %2301, %2374 : vector<8x16xf32>
    %c582 = arith.constant 582 : index
    %2376 = memref.load %arg3[%c582] : memref<648xf32, #tpu.memory_space<smem>>
    %2377 = vector.broadcast %2376 : f32 to vector<8x16xf32>
    %2378 = arith.mulf %2377, %2351 : vector<8x16xf32>
    %2379 = arith.addf %2305, %2378 : vector<8x16xf32>
    %c583 = arith.constant 583 : index
    %2380 = memref.load %arg3[%c583] : memref<648xf32, #tpu.memory_space<smem>>
    %2381 = vector.broadcast %2380 : f32 to vector<8x16xf32>
    %2382 = arith.mulf %2381, %2351 : vector<8x16xf32>
    %2383 = arith.addf %2309, %2382 : vector<8x16xf32>
    %c584 = arith.constant 584 : index
    %2384 = memref.load %arg3[%c584] : memref<648xf32, #tpu.memory_space<smem>>
    %2385 = vector.broadcast %2384 : f32 to vector<8x16xf32>
    %2386 = arith.mulf %2385, %2351 : vector<8x16xf32>
    %2387 = arith.addf %2313, %2386 : vector<8x16xf32>
    %c585 = arith.constant 585 : index
    %2388 = memref.load %arg3[%c585] : memref<648xf32, #tpu.memory_space<smem>>
    %2389 = vector.broadcast %2388 : f32 to vector<8x16xf32>
    %2390 = arith.mulf %2389, %2351 : vector<8x16xf32>
    %2391 = arith.addf %2317, %2390 : vector<8x16xf32>
    %c586 = arith.constant 586 : index
    %2392 = memref.load %arg3[%c586] : memref<648xf32, #tpu.memory_space<smem>>
    %2393 = vector.broadcast %2392 : f32 to vector<8x16xf32>
    %2394 = arith.mulf %2393, %2351 : vector<8x16xf32>
    %2395 = arith.addf %2321, %2394 : vector<8x16xf32>
    %c587 = arith.constant 587 : index
    %2396 = memref.load %arg3[%c587] : memref<648xf32, #tpu.memory_space<smem>>
    %2397 = vector.broadcast %2396 : f32 to vector<8x16xf32>
    %2398 = arith.mulf %2397, %2351 : vector<8x16xf32>
    %2399 = arith.addf %2325, %2398 : vector<8x16xf32>
    %c588 = arith.constant 588 : index
    %2400 = memref.load %arg3[%c588] : memref<648xf32, #tpu.memory_space<smem>>
    %2401 = vector.broadcast %2400 : f32 to vector<8x16xf32>
    %2402 = arith.mulf %2401, %2351 : vector<8x16xf32>
    %2403 = arith.addf %2329, %2402 : vector<8x16xf32>
    %c589 = arith.constant 589 : index
    %2404 = memref.load %arg3[%c589] : memref<648xf32, #tpu.memory_space<smem>>
    %2405 = vector.broadcast %2404 : f32 to vector<8x16xf32>
    %2406 = arith.mulf %2405, %2351 : vector<8x16xf32>
    %2407 = arith.addf %2333, %2406 : vector<8x16xf32>
    %c590 = arith.constant 590 : index
    %2408 = memref.load %arg3[%c590] : memref<648xf32, #tpu.memory_space<smem>>
    %2409 = vector.broadcast %2408 : f32 to vector<8x16xf32>
    %2410 = arith.mulf %2409, %2351 : vector<8x16xf32>
    %2411 = arith.addf %2337, %2410 : vector<8x16xf32>
    %c591 = arith.constant 591 : index
    %2412 = memref.load %arg3[%c591] : memref<648xf32, #tpu.memory_space<smem>>
    %2413 = vector.broadcast %2412 : f32 to vector<8x16xf32>
    %2414 = arith.mulf %2413, %2351 : vector<8x16xf32>
    %2415 = arith.addf %2341, %2414 : vector<8x16xf32>
    %c592 = arith.constant 592 : index
    %2416 = memref.load %arg3[%c592] : memref<648xf32, #tpu.memory_space<smem>>
    %2417 = vector.broadcast %2416 : f32 to vector<8x16xf32>
    %2418 = arith.mulf %2417, %2351 : vector<8x16xf32>
    %2419 = arith.addf %2345, %2418 : vector<8x16xf32>
    %c593 = arith.constant 593 : index
    %2420 = memref.load %arg3[%c593] : memref<648xf32, #tpu.memory_space<smem>>
    %2421 = vector.broadcast %2420 : f32 to vector<8x16xf32>
    %2422 = arith.mulf %2421, %2351 : vector<8x16xf32>
    %2423 = arith.addf %2349, %2422 : vector<8x16xf32>
    %c0_165 = arith.constant 0 : index
    %c0_166 = arith.constant 0 : index
    %c1_167 = arith.constant 1 : index
    %c2_168 = arith.constant 2 : index
    %c2_169 = arith.constant 2 : index
    %2424 = vector.load %arg2[%c0_165, %c0_166, %c1_167, %c2_168, %c2_169] : memref<1x1x4x10x18xf32, #tpu.memory_space<vmem>>, vector<1x1x1x8x16xf32>
    %2425 = vector.shape_cast %2424 : vector<1x1x1x8x16xf32> to vector<8x16xf32>
    %c594 = arith.constant 594 : index
    %2426 = memref.load %arg3[%c594] : memref<648xf32, #tpu.memory_space<smem>>
    %2427 = vector.broadcast %2426 : f32 to vector<8x16xf32>
    %2428 = arith.mulf %2427, %2425 : vector<8x16xf32>
    %2429 = arith.addf %2355, %2428 : vector<8x16xf32>
    %c595 = arith.constant 595 : index
    %2430 = memref.load %arg3[%c595] : memref<648xf32, #tpu.memory_space<smem>>
    %2431 = vector.broadcast %2430 : f32 to vector<8x16xf32>
    %2432 = arith.mulf %2431, %2425 : vector<8x16xf32>
    %2433 = arith.addf %2359, %2432 : vector<8x16xf32>
    %c596 = arith.constant 596 : index
    %2434 = memref.load %arg3[%c596] : memref<648xf32, #tpu.memory_space<smem>>
    %2435 = vector.broadcast %2434 : f32 to vector<8x16xf32>
    %2436 = arith.mulf %2435, %2425 : vector<8x16xf32>
    %2437 = arith.addf %2363, %2436 : vector<8x16xf32>
    %c597 = arith.constant 597 : index
    %2438 = memref.load %arg3[%c597] : memref<648xf32, #tpu.memory_space<smem>>
    %2439 = vector.broadcast %2438 : f32 to vector<8x16xf32>
    %2440 = arith.mulf %2439, %2425 : vector<8x16xf32>
    %2441 = arith.addf %2367, %2440 : vector<8x16xf32>
    %c598 = arith.constant 598 : index
    %2442 = memref.load %arg3[%c598] : memref<648xf32, #tpu.memory_space<smem>>
    %2443 = vector.broadcast %2442 : f32 to vector<8x16xf32>
    %2444 = arith.mulf %2443, %2425 : vector<8x16xf32>
    %2445 = arith.addf %2371, %2444 : vector<8x16xf32>
    %c599 = arith.constant 599 : index
    %2446 = memref.load %arg3[%c599] : memref<648xf32, #tpu.memory_space<smem>>
    %2447 = vector.broadcast %2446 : f32 to vector<8x16xf32>
    %2448 = arith.mulf %2447, %2425 : vector<8x16xf32>
    %2449 = arith.addf %2375, %2448 : vector<8x16xf32>
    %c600 = arith.constant 600 : index
    %2450 = memref.load %arg3[%c600] : memref<648xf32, #tpu.memory_space<smem>>
    %2451 = vector.broadcast %2450 : f32 to vector<8x16xf32>
    %2452 = arith.mulf %2451, %2425 : vector<8x16xf32>
    %2453 = arith.addf %2379, %2452 : vector<8x16xf32>
    %c601 = arith.constant 601 : index
    %2454 = memref.load %arg3[%c601] : memref<648xf32, #tpu.memory_space<smem>>
    %2455 = vector.broadcast %2454 : f32 to vector<8x16xf32>
    %2456 = arith.mulf %2455, %2425 : vector<8x16xf32>
    %2457 = arith.addf %2383, %2456 : vector<8x16xf32>
    %c602 = arith.constant 602 : index
    %2458 = memref.load %arg3[%c602] : memref<648xf32, #tpu.memory_space<smem>>
    %2459 = vector.broadcast %2458 : f32 to vector<8x16xf32>
    %2460 = arith.mulf %2459, %2425 : vector<8x16xf32>
    %2461 = arith.addf %2387, %2460 : vector<8x16xf32>
    %c603 = arith.constant 603 : index
    %2462 = memref.load %arg3[%c603] : memref<648xf32, #tpu.memory_space<smem>>
    %2463 = vector.broadcast %2462 : f32 to vector<8x16xf32>
    %2464 = arith.mulf %2463, %2425 : vector<8x16xf32>
    %2465 = arith.addf %2391, %2464 : vector<8x16xf32>
    %c604 = arith.constant 604 : index
    %2466 = memref.load %arg3[%c604] : memref<648xf32, #tpu.memory_space<smem>>
    %2467 = vector.broadcast %2466 : f32 to vector<8x16xf32>
    %2468 = arith.mulf %2467, %2425 : vector<8x16xf32>
    %2469 = arith.addf %2395, %2468 : vector<8x16xf32>
    %c605 = arith.constant 605 : index
    %2470 = memref.load %arg3[%c605] : memref<648xf32, #tpu.memory_space<smem>>
    %2471 = vector.broadcast %2470 : f32 to vector<8x16xf32>
    %2472 = arith.mulf %2471, %2425 : vector<8x16xf32>
    %2473 = arith.addf %2399, %2472 : vector<8x16xf32>
    %c606 = arith.constant 606 : index
    %2474 = memref.load %arg3[%c606] : memref<648xf32, #tpu.memory_space<smem>>
    %2475 = vector.broadcast %2474 : f32 to vector<8x16xf32>
    %2476 = arith.mulf %2475, %2425 : vector<8x16xf32>
    %2477 = arith.addf %2403, %2476 : vector<8x16xf32>
    %c607 = arith.constant 607 : index
    %2478 = memref.load %arg3[%c607] : memref<648xf32, #tpu.memory_space<smem>>
    %2479 = vector.broadcast %2478 : f32 to vector<8x16xf32>
    %2480 = arith.mulf %2479, %2425 : vector<8x16xf32>
    %2481 = arith.addf %2407, %2480 : vector<8x16xf32>
    %c608 = arith.constant 608 : index
    %2482 = memref.load %arg3[%c608] : memref<648xf32, #tpu.memory_space<smem>>
    %2483 = vector.broadcast %2482 : f32 to vector<8x16xf32>
    %2484 = arith.mulf %2483, %2425 : vector<8x16xf32>
    %2485 = arith.addf %2411, %2484 : vector<8x16xf32>
    %c609 = arith.constant 609 : index
    %2486 = memref.load %arg3[%c609] : memref<648xf32, #tpu.memory_space<smem>>
    %2487 = vector.broadcast %2486 : f32 to vector<8x16xf32>
    %2488 = arith.mulf %2487, %2425 : vector<8x16xf32>
    %2489 = arith.addf %2415, %2488 : vector<8x16xf32>
    %c610 = arith.constant 610 : index
    %2490 = memref.load %arg3[%c610] : memref<648xf32, #tpu.memory_space<smem>>
    %2491 = vector.broadcast %2490 : f32 to vector<8x16xf32>
    %2492 = arith.mulf %2491, %2425 : vector<8x16xf32>
    %2493 = arith.addf %2419, %2492 : vector<8x16xf32>
    %c611 = arith.constant 611 : index
    %2494 = memref.load %arg3[%c611] : memref<648xf32, #tpu.memory_space<smem>>
    %2495 = vector.broadcast %2494 : f32 to vector<8x16xf32>
    %2496 = arith.mulf %2495, %2425 : vector<8x16xf32>
    %2497 = arith.addf %2423, %2496 : vector<8x16xf32>
    %c0_170 = arith.constant 0 : index
    %c0_171 = arith.constant 0 : index
    %c2_172 = arith.constant 2 : index
    %c2_173 = arith.constant 2 : index
    %c2_174 = arith.constant 2 : index
    %2498 = vector.load %arg2[%c0_170, %c0_171, %c2_172, %c2_173, %c2_174] : memref<1x1x4x10x18xf32, #tpu.memory_space<vmem>>, vector<1x1x1x8x16xf32>
    %2499 = vector.shape_cast %2498 : vector<1x1x1x8x16xf32> to vector<8x16xf32>
    %c612 = arith.constant 612 : index
    %2500 = memref.load %arg3[%c612] : memref<648xf32, #tpu.memory_space<smem>>
    %2501 = vector.broadcast %2500 : f32 to vector<8x16xf32>
    %2502 = arith.mulf %2501, %2499 : vector<8x16xf32>
    %2503 = arith.addf %2429, %2502 : vector<8x16xf32>
    %c613 = arith.constant 613 : index
    %2504 = memref.load %arg3[%c613] : memref<648xf32, #tpu.memory_space<smem>>
    %2505 = vector.broadcast %2504 : f32 to vector<8x16xf32>
    %2506 = arith.mulf %2505, %2499 : vector<8x16xf32>
    %2507 = arith.addf %2433, %2506 : vector<8x16xf32>
    %c614 = arith.constant 614 : index
    %2508 = memref.load %arg3[%c614] : memref<648xf32, #tpu.memory_space<smem>>
    %2509 = vector.broadcast %2508 : f32 to vector<8x16xf32>
    %2510 = arith.mulf %2509, %2499 : vector<8x16xf32>
    %2511 = arith.addf %2437, %2510 : vector<8x16xf32>
    %c615 = arith.constant 615 : index
    %2512 = memref.load %arg3[%c615] : memref<648xf32, #tpu.memory_space<smem>>
    %2513 = vector.broadcast %2512 : f32 to vector<8x16xf32>
    %2514 = arith.mulf %2513, %2499 : vector<8x16xf32>
    %2515 = arith.addf %2441, %2514 : vector<8x16xf32>
    %c616 = arith.constant 616 : index
    %2516 = memref.load %arg3[%c616] : memref<648xf32, #tpu.memory_space<smem>>
    %2517 = vector.broadcast %2516 : f32 to vector<8x16xf32>
    %2518 = arith.mulf %2517, %2499 : vector<8x16xf32>
    %2519 = arith.addf %2445, %2518 : vector<8x16xf32>
    %c617 = arith.constant 617 : index
    %2520 = memref.load %arg3[%c617] : memref<648xf32, #tpu.memory_space<smem>>
    %2521 = vector.broadcast %2520 : f32 to vector<8x16xf32>
    %2522 = arith.mulf %2521, %2499 : vector<8x16xf32>
    %2523 = arith.addf %2449, %2522 : vector<8x16xf32>
    %c618 = arith.constant 618 : index
    %2524 = memref.load %arg3[%c618] : memref<648xf32, #tpu.memory_space<smem>>
    %2525 = vector.broadcast %2524 : f32 to vector<8x16xf32>
    %2526 = arith.mulf %2525, %2499 : vector<8x16xf32>
    %2527 = arith.addf %2453, %2526 : vector<8x16xf32>
    %c619 = arith.constant 619 : index
    %2528 = memref.load %arg3[%c619] : memref<648xf32, #tpu.memory_space<smem>>
    %2529 = vector.broadcast %2528 : f32 to vector<8x16xf32>
    %2530 = arith.mulf %2529, %2499 : vector<8x16xf32>
    %2531 = arith.addf %2457, %2530 : vector<8x16xf32>
    %c620 = arith.constant 620 : index
    %2532 = memref.load %arg3[%c620] : memref<648xf32, #tpu.memory_space<smem>>
    %2533 = vector.broadcast %2532 : f32 to vector<8x16xf32>
    %2534 = arith.mulf %2533, %2499 : vector<8x16xf32>
    %2535 = arith.addf %2461, %2534 : vector<8x16xf32>
    %c621 = arith.constant 621 : index
    %2536 = memref.load %arg3[%c621] : memref<648xf32, #tpu.memory_space<smem>>
    %2537 = vector.broadcast %2536 : f32 to vector<8x16xf32>
    %2538 = arith.mulf %2537, %2499 : vector<8x16xf32>
    %2539 = arith.addf %2465, %2538 : vector<8x16xf32>
    %c622 = arith.constant 622 : index
    %2540 = memref.load %arg3[%c622] : memref<648xf32, #tpu.memory_space<smem>>
    %2541 = vector.broadcast %2540 : f32 to vector<8x16xf32>
    %2542 = arith.mulf %2541, %2499 : vector<8x16xf32>
    %2543 = arith.addf %2469, %2542 : vector<8x16xf32>
    %c623 = arith.constant 623 : index
    %2544 = memref.load %arg3[%c623] : memref<648xf32, #tpu.memory_space<smem>>
    %2545 = vector.broadcast %2544 : f32 to vector<8x16xf32>
    %2546 = arith.mulf %2545, %2499 : vector<8x16xf32>
    %2547 = arith.addf %2473, %2546 : vector<8x16xf32>
    %c624 = arith.constant 624 : index
    %2548 = memref.load %arg3[%c624] : memref<648xf32, #tpu.memory_space<smem>>
    %2549 = vector.broadcast %2548 : f32 to vector<8x16xf32>
    %2550 = arith.mulf %2549, %2499 : vector<8x16xf32>
    %2551 = arith.addf %2477, %2550 : vector<8x16xf32>
    %c625 = arith.constant 625 : index
    %2552 = memref.load %arg3[%c625] : memref<648xf32, #tpu.memory_space<smem>>
    %2553 = vector.broadcast %2552 : f32 to vector<8x16xf32>
    %2554 = arith.mulf %2553, %2499 : vector<8x16xf32>
    %2555 = arith.addf %2481, %2554 : vector<8x16xf32>
    %c626 = arith.constant 626 : index
    %2556 = memref.load %arg3[%c626] : memref<648xf32, #tpu.memory_space<smem>>
    %2557 = vector.broadcast %2556 : f32 to vector<8x16xf32>
    %2558 = arith.mulf %2557, %2499 : vector<8x16xf32>
    %2559 = arith.addf %2485, %2558 : vector<8x16xf32>
    %c627 = arith.constant 627 : index
    %2560 = memref.load %arg3[%c627] : memref<648xf32, #tpu.memory_space<smem>>
    %2561 = vector.broadcast %2560 : f32 to vector<8x16xf32>
    %2562 = arith.mulf %2561, %2499 : vector<8x16xf32>
    %2563 = arith.addf %2489, %2562 : vector<8x16xf32>
    %c628 = arith.constant 628 : index
    %2564 = memref.load %arg3[%c628] : memref<648xf32, #tpu.memory_space<smem>>
    %2565 = vector.broadcast %2564 : f32 to vector<8x16xf32>
    %2566 = arith.mulf %2565, %2499 : vector<8x16xf32>
    %2567 = arith.addf %2493, %2566 : vector<8x16xf32>
    %c629 = arith.constant 629 : index
    %2568 = memref.load %arg3[%c629] : memref<648xf32, #tpu.memory_space<smem>>
    %2569 = vector.broadcast %2568 : f32 to vector<8x16xf32>
    %2570 = arith.mulf %2569, %2499 : vector<8x16xf32>
    %2571 = arith.addf %2497, %2570 : vector<8x16xf32>
    %c0_175 = arith.constant 0 : index
    %c0_176 = arith.constant 0 : index
    %c3_177 = arith.constant 3 : index
    %c2_178 = arith.constant 2 : index
    %c2_179 = arith.constant 2 : index
    %2572 = vector.load %arg2[%c0_175, %c0_176, %c3_177, %c2_178, %c2_179] : memref<1x1x4x10x18xf32, #tpu.memory_space<vmem>>, vector<1x1x1x8x16xf32>
    %2573 = vector.shape_cast %2572 : vector<1x1x1x8x16xf32> to vector<8x16xf32>
    %c630 = arith.constant 630 : index
    %2574 = memref.load %arg3[%c630] : memref<648xf32, #tpu.memory_space<smem>>
    %2575 = vector.broadcast %2574 : f32 to vector<8x16xf32>
    %2576 = arith.mulf %2575, %2573 : vector<8x16xf32>
    %2577 = arith.addf %2503, %2576 : vector<8x16xf32>
    %c631 = arith.constant 631 : index
    %2578 = memref.load %arg3[%c631] : memref<648xf32, #tpu.memory_space<smem>>
    %2579 = vector.broadcast %2578 : f32 to vector<8x16xf32>
    %2580 = arith.mulf %2579, %2573 : vector<8x16xf32>
    %2581 = arith.addf %2507, %2580 : vector<8x16xf32>
    %c632 = arith.constant 632 : index
    %2582 = memref.load %arg3[%c632] : memref<648xf32, #tpu.memory_space<smem>>
    %2583 = vector.broadcast %2582 : f32 to vector<8x16xf32>
    %2584 = arith.mulf %2583, %2573 : vector<8x16xf32>
    %2585 = arith.addf %2511, %2584 : vector<8x16xf32>
    %c633 = arith.constant 633 : index
    %2586 = memref.load %arg3[%c633] : memref<648xf32, #tpu.memory_space<smem>>
    %2587 = vector.broadcast %2586 : f32 to vector<8x16xf32>
    %2588 = arith.mulf %2587, %2573 : vector<8x16xf32>
    %2589 = arith.addf %2515, %2588 : vector<8x16xf32>
    %c634 = arith.constant 634 : index
    %2590 = memref.load %arg3[%c634] : memref<648xf32, #tpu.memory_space<smem>>
    %2591 = vector.broadcast %2590 : f32 to vector<8x16xf32>
    %2592 = arith.mulf %2591, %2573 : vector<8x16xf32>
    %2593 = arith.addf %2519, %2592 : vector<8x16xf32>
    %c635 = arith.constant 635 : index
    %2594 = memref.load %arg3[%c635] : memref<648xf32, #tpu.memory_space<smem>>
    %2595 = vector.broadcast %2594 : f32 to vector<8x16xf32>
    %2596 = arith.mulf %2595, %2573 : vector<8x16xf32>
    %2597 = arith.addf %2523, %2596 : vector<8x16xf32>
    %c636 = arith.constant 636 : index
    %2598 = memref.load %arg3[%c636] : memref<648xf32, #tpu.memory_space<smem>>
    %2599 = vector.broadcast %2598 : f32 to vector<8x16xf32>
    %2600 = arith.mulf %2599, %2573 : vector<8x16xf32>
    %2601 = arith.addf %2527, %2600 : vector<8x16xf32>
    %c637 = arith.constant 637 : index
    %2602 = memref.load %arg3[%c637] : memref<648xf32, #tpu.memory_space<smem>>
    %2603 = vector.broadcast %2602 : f32 to vector<8x16xf32>
    %2604 = arith.mulf %2603, %2573 : vector<8x16xf32>
    %2605 = arith.addf %2531, %2604 : vector<8x16xf32>
    %c638 = arith.constant 638 : index
    %2606 = memref.load %arg3[%c638] : memref<648xf32, #tpu.memory_space<smem>>
    %2607 = vector.broadcast %2606 : f32 to vector<8x16xf32>
    %2608 = arith.mulf %2607, %2573 : vector<8x16xf32>
    %2609 = arith.addf %2535, %2608 : vector<8x16xf32>
    %c639 = arith.constant 639 : index
    %2610 = memref.load %arg3[%c639] : memref<648xf32, #tpu.memory_space<smem>>
    %2611 = vector.broadcast %2610 : f32 to vector<8x16xf32>
    %2612 = arith.mulf %2611, %2573 : vector<8x16xf32>
    %2613 = arith.addf %2539, %2612 : vector<8x16xf32>
    %c640 = arith.constant 640 : index
    %2614 = memref.load %arg3[%c640] : memref<648xf32, #tpu.memory_space<smem>>
    %2615 = vector.broadcast %2614 : f32 to vector<8x16xf32>
    %2616 = arith.mulf %2615, %2573 : vector<8x16xf32>
    %2617 = arith.addf %2543, %2616 : vector<8x16xf32>
    %c641 = arith.constant 641 : index
    %2618 = memref.load %arg3[%c641] : memref<648xf32, #tpu.memory_space<smem>>
    %2619 = vector.broadcast %2618 : f32 to vector<8x16xf32>
    %2620 = arith.mulf %2619, %2573 : vector<8x16xf32>
    %2621 = arith.addf %2547, %2620 : vector<8x16xf32>
    %c642 = arith.constant 642 : index
    %2622 = memref.load %arg3[%c642] : memref<648xf32, #tpu.memory_space<smem>>
    %2623 = vector.broadcast %2622 : f32 to vector<8x16xf32>
    %2624 = arith.mulf %2623, %2573 : vector<8x16xf32>
    %2625 = arith.addf %2551, %2624 : vector<8x16xf32>
    %c643 = arith.constant 643 : index
    %2626 = memref.load %arg3[%c643] : memref<648xf32, #tpu.memory_space<smem>>
    %2627 = vector.broadcast %2626 : f32 to vector<8x16xf32>
    %2628 = arith.mulf %2627, %2573 : vector<8x16xf32>
    %2629 = arith.addf %2555, %2628 : vector<8x16xf32>
    %c644 = arith.constant 644 : index
    %2630 = memref.load %arg3[%c644] : memref<648xf32, #tpu.memory_space<smem>>
    %2631 = vector.broadcast %2630 : f32 to vector<8x16xf32>
    %2632 = arith.mulf %2631, %2573 : vector<8x16xf32>
    %2633 = arith.addf %2559, %2632 : vector<8x16xf32>
    %c645 = arith.constant 645 : index
    %2634 = memref.load %arg3[%c645] : memref<648xf32, #tpu.memory_space<smem>>
    %2635 = vector.broadcast %2634 : f32 to vector<8x16xf32>
    %2636 = arith.mulf %2635, %2573 : vector<8x16xf32>
    %2637 = arith.addf %2563, %2636 : vector<8x16xf32>
    %c646 = arith.constant 646 : index
    %2638 = memref.load %arg3[%c646] : memref<648xf32, #tpu.memory_space<smem>>
    %2639 = vector.broadcast %2638 : f32 to vector<8x16xf32>
    %2640 = arith.mulf %2639, %2573 : vector<8x16xf32>
    %2641 = arith.addf %2567, %2640 : vector<8x16xf32>
    %c647 = arith.constant 647 : index
    %2642 = memref.load %arg3[%c647] : memref<648xf32, #tpu.memory_space<smem>>
    %2643 = vector.broadcast %2642 : f32 to vector<8x16xf32>
    %2644 = arith.mulf %2643, %2573 : vector<8x16xf32>
    %2645 = arith.addf %2571, %2644 : vector<8x16xf32>
    %c0_180 = arith.constant 0 : index
    %2646 = memref.load %arg4[%c0_180] : memref<18xf32, #tpu.memory_space<smem>>
    %2647 = vector.broadcast %2646 : f32 to vector<8x16xf32>
    %2648 = arith.addf %2577, %2647 : vector<8x16xf32>
    %c1_181 = arith.constant 1 : index
    %2649 = memref.load %arg4[%c1_181] : memref<18xf32, #tpu.memory_space<smem>>
    %2650 = vector.broadcast %2649 : f32 to vector<8x16xf32>
    %2651 = arith.addf %2581, %2650 : vector<8x16xf32>
    %c2_182 = arith.constant 2 : index
    %2652 = memref.load %arg4[%c2_182] : memref<18xf32, #tpu.memory_space<smem>>
    %2653 = vector.broadcast %2652 : f32 to vector<8x16xf32>
    %2654 = arith.addf %2585, %2653 : vector<8x16xf32>
    %c3_183 = arith.constant 3 : index
    %2655 = memref.load %arg4[%c3_183] : memref<18xf32, #tpu.memory_space<smem>>
    %2656 = vector.broadcast %2655 : f32 to vector<8x16xf32>
    %2657 = arith.addf %2589, %2656 : vector<8x16xf32>
    %c4_184 = arith.constant 4 : index
    %2658 = memref.load %arg4[%c4_184] : memref<18xf32, #tpu.memory_space<smem>>
    %2659 = vector.broadcast %2658 : f32 to vector<8x16xf32>
    %2660 = arith.addf %2593, %2659 : vector<8x16xf32>
    %c5_185 = arith.constant 5 : index
    %2661 = memref.load %arg4[%c5_185] : memref<18xf32, #tpu.memory_space<smem>>
    %2662 = vector.broadcast %2661 : f32 to vector<8x16xf32>
    %2663 = arith.addf %2597, %2662 : vector<8x16xf32>
    %c6_186 = arith.constant 6 : index
    %2664 = memref.load %arg4[%c6_186] : memref<18xf32, #tpu.memory_space<smem>>
    %2665 = vector.broadcast %2664 : f32 to vector<8x16xf32>
    %2666 = arith.addf %2601, %2665 : vector<8x16xf32>
    %c7_187 = arith.constant 7 : index
    %2667 = memref.load %arg4[%c7_187] : memref<18xf32, #tpu.memory_space<smem>>
    %2668 = vector.broadcast %2667 : f32 to vector<8x16xf32>
    %2669 = arith.addf %2605, %2668 : vector<8x16xf32>
    %c8_188 = arith.constant 8 : index
    %2670 = memref.load %arg4[%c8_188] : memref<18xf32, #tpu.memory_space<smem>>
    %2671 = vector.broadcast %2670 : f32 to vector<8x16xf32>
    %2672 = arith.addf %2609, %2671 : vector<8x16xf32>
    %c9_189 = arith.constant 9 : index
    %2673 = memref.load %arg4[%c9_189] : memref<18xf32, #tpu.memory_space<smem>>
    %2674 = vector.broadcast %2673 : f32 to vector<8x16xf32>
    %2675 = arith.addf %2613, %2674 : vector<8x16xf32>
    %c10_190 = arith.constant 10 : index
    %2676 = memref.load %arg4[%c10_190] : memref<18xf32, #tpu.memory_space<smem>>
    %2677 = vector.broadcast %2676 : f32 to vector<8x16xf32>
    %2678 = arith.addf %2617, %2677 : vector<8x16xf32>
    %c11_191 = arith.constant 11 : index
    %2679 = memref.load %arg4[%c11_191] : memref<18xf32, #tpu.memory_space<smem>>
    %2680 = vector.broadcast %2679 : f32 to vector<8x16xf32>
    %2681 = arith.addf %2621, %2680 : vector<8x16xf32>
    %c12_192 = arith.constant 12 : index
    %2682 = memref.load %arg4[%c12_192] : memref<18xf32, #tpu.memory_space<smem>>
    %2683 = vector.broadcast %2682 : f32 to vector<8x16xf32>
    %2684 = arith.addf %2625, %2683 : vector<8x16xf32>
    %c13_193 = arith.constant 13 : index
    %2685 = memref.load %arg4[%c13_193] : memref<18xf32, #tpu.memory_space<smem>>
    %2686 = vector.broadcast %2685 : f32 to vector<8x16xf32>
    %2687 = arith.addf %2629, %2686 : vector<8x16xf32>
    %c14_194 = arith.constant 14 : index
    %2688 = memref.load %arg4[%c14_194] : memref<18xf32, #tpu.memory_space<smem>>
    %2689 = vector.broadcast %2688 : f32 to vector<8x16xf32>
    %2690 = arith.addf %2633, %2689 : vector<8x16xf32>
    %c15_195 = arith.constant 15 : index
    %2691 = memref.load %arg4[%c15_195] : memref<18xf32, #tpu.memory_space<smem>>
    %2692 = vector.broadcast %2691 : f32 to vector<8x16xf32>
    %2693 = arith.addf %2637, %2692 : vector<8x16xf32>
    %c16_196 = arith.constant 16 : index
    %2694 = memref.load %arg4[%c16_196] : memref<18xf32, #tpu.memory_space<smem>>
    %2695 = vector.broadcast %2694 : f32 to vector<8x16xf32>
    %2696 = arith.addf %2641, %2695 : vector<8x16xf32>
    %c17_197 = arith.constant 17 : index
    %2697 = memref.load %arg4[%c17_197] : memref<18xf32, #tpu.memory_space<smem>>
    %2698 = vector.broadcast %2697 : f32 to vector<8x16xf32>
    %2699 = arith.addf %2645, %2698 : vector<8x16xf32>
    %2700 = arith.maximumf %2648, %2651 : vector<8x16xf32>
    %2701 = arith.maximumf %2700, %2654 : vector<8x16xf32>
    %2702 = arith.maximumf %2701, %2657 : vector<8x16xf32>
    %2703 = arith.maximumf %2702, %2660 : vector<8x16xf32>
    %2704 = arith.maximumf %2703, %2663 : vector<8x16xf32>
    %2705 = arith.maximumf %2704, %2666 : vector<8x16xf32>
    %2706 = arith.maximumf %2705, %2669 : vector<8x16xf32>
    %2707 = arith.maximumf %2706, %2672 : vector<8x16xf32>
    %2708 = arith.maximumf %2707, %2675 : vector<8x16xf32>
    %2709 = arith.maximumf %2708, %2678 : vector<8x16xf32>
    %2710 = arith.maximumf %2709, %2681 : vector<8x16xf32>
    %2711 = arith.maximumf %2710, %2684 : vector<8x16xf32>
    %2712 = arith.maximumf %2711, %2687 : vector<8x16xf32>
    %2713 = arith.maximumf %2712, %2690 : vector<8x16xf32>
    %2714 = arith.maximumf %2713, %2693 : vector<8x16xf32>
    %2715 = arith.maximumf %2714, %2696 : vector<8x16xf32>
    %2716 = arith.maximumf %2715, %2699 : vector<8x16xf32>
    %2717 = arith.subf %2648, %2716 : vector<8x16xf32>
    %2718 = math.exp %2717 : vector<8x16xf32>
    %2719 = arith.subf %2651, %2716 : vector<8x16xf32>
    %2720 = math.exp %2719 : vector<8x16xf32>
    %2721 = arith.subf %2654, %2716 : vector<8x16xf32>
    %2722 = math.exp %2721 : vector<8x16xf32>
    %2723 = arith.subf %2657, %2716 : vector<8x16xf32>
    %2724 = math.exp %2723 : vector<8x16xf32>
    %2725 = arith.subf %2660, %2716 : vector<8x16xf32>
    %2726 = math.exp %2725 : vector<8x16xf32>
    %2727 = arith.subf %2663, %2716 : vector<8x16xf32>
    %2728 = math.exp %2727 : vector<8x16xf32>
    %2729 = arith.subf %2666, %2716 : vector<8x16xf32>
    %2730 = math.exp %2729 : vector<8x16xf32>
    %2731 = arith.subf %2669, %2716 : vector<8x16xf32>
    %2732 = math.exp %2731 : vector<8x16xf32>
    %2733 = arith.subf %2672, %2716 : vector<8x16xf32>
    %2734 = math.exp %2733 : vector<8x16xf32>
    %2735 = arith.subf %2675, %2716 : vector<8x16xf32>
    %2736 = math.exp %2735 : vector<8x16xf32>
    %2737 = arith.subf %2678, %2716 : vector<8x16xf32>
    %2738 = math.exp %2737 : vector<8x16xf32>
    %2739 = arith.subf %2681, %2716 : vector<8x16xf32>
    %2740 = math.exp %2739 : vector<8x16xf32>
    %2741 = arith.subf %2684, %2716 : vector<8x16xf32>
    %2742 = math.exp %2741 : vector<8x16xf32>
    %2743 = arith.subf %2687, %2716 : vector<8x16xf32>
    %2744 = math.exp %2743 : vector<8x16xf32>
    %2745 = arith.subf %2690, %2716 : vector<8x16xf32>
    %2746 = math.exp %2745 : vector<8x16xf32>
    %2747 = arith.subf %2693, %2716 : vector<8x16xf32>
    %2748 = math.exp %2747 : vector<8x16xf32>
    %2749 = arith.subf %2696, %2716 : vector<8x16xf32>
    %2750 = math.exp %2749 : vector<8x16xf32>
    %2751 = arith.subf %2699, %2716 : vector<8x16xf32>
    %2752 = math.exp %2751 : vector<8x16xf32>
    %2753 = arith.addf %2718, %2720 : vector<8x16xf32>
    %2754 = arith.addf %2753, %2722 : vector<8x16xf32>
    %2755 = arith.addf %2754, %2724 : vector<8x16xf32>
    %2756 = arith.addf %2755, %2726 : vector<8x16xf32>
    %2757 = arith.addf %2756, %2728 : vector<8x16xf32>
    %2758 = arith.addf %2757, %2730 : vector<8x16xf32>
    %2759 = arith.addf %2758, %2732 : vector<8x16xf32>
    %2760 = arith.addf %2759, %2734 : vector<8x16xf32>
    %2761 = arith.addf %2760, %2736 : vector<8x16xf32>
    %2762 = arith.addf %2761, %2738 : vector<8x16xf32>
    %2763 = arith.addf %2762, %2740 : vector<8x16xf32>
    %2764 = arith.addf %2763, %2742 : vector<8x16xf32>
    %2765 = arith.addf %2764, %2744 : vector<8x16xf32>
    %2766 = arith.addf %2765, %2746 : vector<8x16xf32>
    %2767 = arith.addf %2766, %2748 : vector<8x16xf32>
    %2768 = arith.addf %2767, %2750 : vector<8x16xf32>
    %2769 = arith.addf %2768, %2752 : vector<8x16xf32>
    %cst = arith.constant 1.000000e+00 : f32
    %2770 = vector.broadcast %cst : f32 to vector<8x16xf32>
    %2771 = arith.divf %2770, %2769 : vector<8x16xf32>
    %c0_198 = arith.constant 0 : index
    %c0_199 = arith.constant 0 : index
    %c0_200 = arith.constant 0 : index
    %c0_201 = arith.constant 0 : index
    %c0_202 = arith.constant 0 : index
    %2772 = vector.load %arg2[%c0_198, %c0_199, %c0_200, %c0_201, %c0_202] : memref<1x1x4x10x18xf32, #tpu.memory_space<vmem>>, vector<1x1x1x8x16xf32>
    %2773 = vector.shape_cast %2772 : vector<1x1x1x8x16xf32> to vector<8x16xf32>
    %2774 = arith.mulf %2718, %2773 : vector<8x16xf32>
    %c0_203 = arith.constant 0 : index
    %c0_204 = arith.constant 0 : index
    %c0_205 = arith.constant 0 : index
    %c0_206 = arith.constant 0 : index
    %c1_207 = arith.constant 1 : index
    %2775 = vector.load %arg2[%c0_203, %c0_204, %c0_205, %c0_206, %c1_207] : memref<1x1x4x10x18xf32, #tpu.memory_space<vmem>>, vector<1x1x1x8x16xf32>
    %2776 = vector.shape_cast %2775 : vector<1x1x1x8x16xf32> to vector<8x16xf32>
    %2777 = arith.mulf %2720, %2776 : vector<8x16xf32>
    %2778 = arith.addf %2774, %2777 : vector<8x16xf32>
    %c0_208 = arith.constant 0 : index
    %c0_209 = arith.constant 0 : index
    %c0_210 = arith.constant 0 : index
    %c0_211 = arith.constant 0 : index
    %c2_212 = arith.constant 2 : index
    %2779 = vector.load %arg2[%c0_208, %c0_209, %c0_210, %c0_211, %c2_212] : memref<1x1x4x10x18xf32, #tpu.memory_space<vmem>>, vector<1x1x1x8x16xf32>
    %2780 = vector.shape_cast %2779 : vector<1x1x1x8x16xf32> to vector<8x16xf32>
    %2781 = arith.mulf %2722, %2780 : vector<8x16xf32>
    %2782 = arith.addf %2778, %2781 : vector<8x16xf32>
    %c0_213 = arith.constant 0 : index
    %c0_214 = arith.constant 0 : index
    %c0_215 = arith.constant 0 : index
    %c1_216 = arith.constant 1 : index
    %c0_217 = arith.constant 0 : index
    %2783 = vector.load %arg2[%c0_213, %c0_214, %c0_215, %c1_216, %c0_217] : memref<1x1x4x10x18xf32, #tpu.memory_space<vmem>>, vector<1x1x1x8x16xf32>
    %2784 = vector.shape_cast %2783 : vector<1x1x1x8x16xf32> to vector<8x16xf32>
    %2785 = arith.mulf %2724, %2784 : vector<8x16xf32>
    %2786 = arith.addf %2782, %2785 : vector<8x16xf32>
    %c0_218 = arith.constant 0 : index
    %c0_219 = arith.constant 0 : index
    %c0_220 = arith.constant 0 : index
    %c1_221 = arith.constant 1 : index
    %c1_222 = arith.constant 1 : index
    %2787 = vector.load %arg2[%c0_218, %c0_219, %c0_220, %c1_221, %c1_222] : memref<1x1x4x10x18xf32, #tpu.memory_space<vmem>>, vector<1x1x1x8x16xf32>
    %2788 = vector.shape_cast %2787 : vector<1x1x1x8x16xf32> to vector<8x16xf32>
    %2789 = arith.mulf %2726, %2788 : vector<8x16xf32>
    %2790 = arith.addf %2786, %2789 : vector<8x16xf32>
    %c0_223 = arith.constant 0 : index
    %c0_224 = arith.constant 0 : index
    %c0_225 = arith.constant 0 : index
    %c1_226 = arith.constant 1 : index
    %c2_227 = arith.constant 2 : index
    %2791 = vector.load %arg2[%c0_223, %c0_224, %c0_225, %c1_226, %c2_227] : memref<1x1x4x10x18xf32, #tpu.memory_space<vmem>>, vector<1x1x1x8x16xf32>
    %2792 = vector.shape_cast %2791 : vector<1x1x1x8x16xf32> to vector<8x16xf32>
    %2793 = arith.mulf %2728, %2792 : vector<8x16xf32>
    %2794 = arith.addf %2790, %2793 : vector<8x16xf32>
    %c0_228 = arith.constant 0 : index
    %c0_229 = arith.constant 0 : index
    %c0_230 = arith.constant 0 : index
    %c2_231 = arith.constant 2 : index
    %c0_232 = arith.constant 0 : index
    %2795 = vector.load %arg2[%c0_228, %c0_229, %c0_230, %c2_231, %c0_232] : memref<1x1x4x10x18xf32, #tpu.memory_space<vmem>>, vector<1x1x1x8x16xf32>
    %2796 = vector.shape_cast %2795 : vector<1x1x1x8x16xf32> to vector<8x16xf32>
    %2797 = arith.mulf %2730, %2796 : vector<8x16xf32>
    %2798 = arith.addf %2794, %2797 : vector<8x16xf32>
    %c0_233 = arith.constant 0 : index
    %c0_234 = arith.constant 0 : index
    %c0_235 = arith.constant 0 : index
    %c2_236 = arith.constant 2 : index
    %c1_237 = arith.constant 1 : index
    %2799 = vector.load %arg2[%c0_233, %c0_234, %c0_235, %c2_236, %c1_237] : memref<1x1x4x10x18xf32, #tpu.memory_space<vmem>>, vector<1x1x1x8x16xf32>
    %2800 = vector.shape_cast %2799 : vector<1x1x1x8x16xf32> to vector<8x16xf32>
    %2801 = arith.mulf %2732, %2800 : vector<8x16xf32>
    %2802 = arith.addf %2798, %2801 : vector<8x16xf32>
    %c0_238 = arith.constant 0 : index
    %c0_239 = arith.constant 0 : index
    %c0_240 = arith.constant 0 : index
    %c2_241 = arith.constant 2 : index
    %c2_242 = arith.constant 2 : index
    %2803 = vector.load %arg2[%c0_238, %c0_239, %c0_240, %c2_241, %c2_242] : memref<1x1x4x10x18xf32, #tpu.memory_space<vmem>>, vector<1x1x1x8x16xf32>
    %2804 = vector.shape_cast %2803 : vector<1x1x1x8x16xf32> to vector<8x16xf32>
    %2805 = arith.mulf %2734, %2804 : vector<8x16xf32>
    %2806 = arith.addf %2802, %2805 : vector<8x16xf32>
    %2807 = arith.mulf %2806, %2771 : vector<8x16xf32>
    %c0_243 = arith.constant 0 : index
    %c0_244 = arith.constant 0 : index
    %c0_245 = arith.constant 0 : index
    %c0_246 = arith.constant 0 : index
    %2808 = vector.load %arg5[%c0_243, %c0_244, %c0_245, %c0_246] : memref<1x4x8x16xf32, #tpu.memory_space<vmem>>, vector<1x1x8x16xf32>
    %2809 = vector.shape_cast %2808 : vector<1x1x8x16xf32> to vector<8x16xf32>
    %2810 = vector.shape_cast %2807 : vector<8x16xf32> to vector<1x1x8x16xf32>
    tpu.vector_store %arg5[%c0_243, %c0_244, %c0_245, %c0_246], %2810 {strides = array<i32>} : memref<1x4x8x16xf32, #tpu.memory_space<vmem>>, vector<1x1x8x16xf32>,
    %c0_247 = arith.constant 0 : index
    %c0_248 = arith.constant 0 : index
    %c1_249 = arith.constant 1 : index
    %c0_250 = arith.constant 0 : index
    %c0_251 = arith.constant 0 : index
    %2811 = vector.load %arg2[%c0_247, %c0_248, %c1_249, %c0_250, %c0_251] : memref<1x1x4x10x18xf32, #tpu.memory_space<vmem>>, vector<1x1x1x8x16xf32>
    %2812 = vector.shape_cast %2811 : vector<1x1x1x8x16xf32> to vector<8x16xf32>
    %2813 = arith.mulf %2718, %2812 : vector<8x16xf32>
    %c0_252 = arith.constant 0 : index
    %c0_253 = arith.constant 0 : index
    %c1_254 = arith.constant 1 : index
    %c0_255 = arith.constant 0 : index
    %c1_256 = arith.constant 1 : index
    %2814 = vector.load %arg2[%c0_252, %c0_253, %c1_254, %c0_255, %c1_256] : memref<1x1x4x10x18xf32, #tpu.memory_space<vmem>>, vector<1x1x1x8x16xf32>
    %2815 = vector.shape_cast %2814 : vector<1x1x1x8x16xf32> to vector<8x16xf32>
    %2816 = arith.mulf %2720, %2815 : vector<8x16xf32>
    %2817 = arith.addf %2813, %2816 : vector<8x16xf32>
    %c0_257 = arith.constant 0 : index
    %c0_258 = arith.constant 0 : index
    %c1_259 = arith.constant 1 : index
    %c0_260 = arith.constant 0 : index
    %c2_261 = arith.constant 2 : index
    %2818 = vector.load %arg2[%c0_257, %c0_258, %c1_259, %c0_260, %c2_261] : memref<1x1x4x10x18xf32, #tpu.memory_space<vmem>>, vector<1x1x1x8x16xf32>
    %2819 = vector.shape_cast %2818 : vector<1x1x1x8x16xf32> to vector<8x16xf32>
    %2820 = arith.mulf %2722, %2819 : vector<8x16xf32>
    %2821 = arith.addf %2817, %2820 : vector<8x16xf32>
    %c0_262 = arith.constant 0 : index
    %c0_263 = arith.constant 0 : index
    %c1_264 = arith.constant 1 : index
    %c1_265 = arith.constant 1 : index
    %c0_266 = arith.constant 0 : index
    %2822 = vector.load %arg2[%c0_262, %c0_263, %c1_264, %c1_265, %c0_266] : memref<1x1x4x10x18xf32, #tpu.memory_space<vmem>>, vector<1x1x1x8x16xf32>
    %2823 = vector.shape_cast %2822 : vector<1x1x1x8x16xf32> to vector<8x16xf32>
    %2824 = arith.mulf %2724, %2823 : vector<8x16xf32>
    %2825 = arith.addf %2821, %2824 : vector<8x16xf32>
    %c0_267 = arith.constant 0 : index
    %c0_268 = arith.constant 0 : index
    %c1_269 = arith.constant 1 : index
    %c1_270 = arith.constant 1 : index
    %c1_271 = arith.constant 1 : index
    %2826 = vector.load %arg2[%c0_267, %c0_268, %c1_269, %c1_270, %c1_271] : memref<1x1x4x10x18xf32, #tpu.memory_space<vmem>>, vector<1x1x1x8x16xf32>
    %2827 = vector.shape_cast %2826 : vector<1x1x1x8x16xf32> to vector<8x16xf32>
    %2828 = arith.mulf %2726, %2827 : vector<8x16xf32>
    %2829 = arith.addf %2825, %2828 : vector<8x16xf32>
    %c0_272 = arith.constant 0 : index
    %c0_273 = arith.constant 0 : index
    %c1_274 = arith.constant 1 : index
    %c1_275 = arith.constant 1 : index
    %c2_276 = arith.constant 2 : index
    %2830 = vector.load %arg2[%c0_272, %c0_273, %c1_274, %c1_275, %c2_276] : memref<1x1x4x10x18xf32, #tpu.memory_space<vmem>>, vector<1x1x1x8x16xf32>
    %2831 = vector.shape_cast %2830 : vector<1x1x1x8x16xf32> to vector<8x16xf32>
    %2832 = arith.mulf %2728, %2831 : vector<8x16xf32>
    %2833 = arith.addf %2829, %2832 : vector<8x16xf32>
    %c0_277 = arith.constant 0 : index
    %c0_278 = arith.constant 0 : index
    %c1_279 = arith.constant 1 : index
    %c2_280 = arith.constant 2 : index
    %c0_281 = arith.constant 0 : index
    %2834 = vector.load %arg2[%c0_277, %c0_278, %c1_279, %c2_280, %c0_281] : memref<1x1x4x10x18xf32, #tpu.memory_space<vmem>>, vector<1x1x1x8x16xf32>
    %2835 = vector.shape_cast %2834 : vector<1x1x1x8x16xf32> to vector<8x16xf32>
    %2836 = arith.mulf %2730, %2835 : vector<8x16xf32>
    %2837 = arith.addf %2833, %2836 : vector<8x16xf32>
    %c0_282 = arith.constant 0 : index
    %c0_283 = arith.constant 0 : index
    %c1_284 = arith.constant 1 : index
    %c2_285 = arith.constant 2 : index
    %c1_286 = arith.constant 1 : index
    %2838 = vector.load %arg2[%c0_282, %c0_283, %c1_284, %c2_285, %c1_286] : memref<1x1x4x10x18xf32, #tpu.memory_space<vmem>>, vector<1x1x1x8x16xf32>
    %2839 = vector.shape_cast %2838 : vector<1x1x1x8x16xf32> to vector<8x16xf32>
    %2840 = arith.mulf %2732, %2839 : vector<8x16xf32>
    %2841 = arith.addf %2837, %2840 : vector<8x16xf32>
    %c0_287 = arith.constant 0 : index
    %c0_288 = arith.constant 0 : index
    %c1_289 = arith.constant 1 : index
    %c2_290 = arith.constant 2 : index
    %c2_291 = arith.constant 2 : index
    %2842 = vector.load %arg2[%c0_287, %c0_288, %c1_289, %c2_290, %c2_291] : memref<1x1x4x10x18xf32, #tpu.memory_space<vmem>>, vector<1x1x1x8x16xf32>
    %2843 = vector.shape_cast %2842 : vector<1x1x1x8x16xf32> to vector<8x16xf32>
    %2844 = arith.mulf %2734, %2843 : vector<8x16xf32>
    %2845 = arith.addf %2841, %2844 : vector<8x16xf32>
    %2846 = arith.mulf %2845, %2771 : vector<8x16xf32>
    %c0_292 = arith.constant 0 : index
    %c1_293 = arith.constant 1 : index
    %c0_294 = arith.constant 0 : index
    %c0_295 = arith.constant 0 : index
    %2847 = vector.load %arg5[%c0_292, %c1_293, %c0_294, %c0_295] : memref<1x4x8x16xf32, #tpu.memory_space<vmem>>, vector<1x1x8x16xf32>
    %2848 = vector.shape_cast %2847 : vector<1x1x8x16xf32> to vector<8x16xf32>
    %2849 = vector.shape_cast %2846 : vector<8x16xf32> to vector<1x1x8x16xf32>
    tpu.vector_store %arg5[%c0_292, %c1_293, %c0_294, %c0_295], %2849 {strides = array<i32>} : memref<1x4x8x16xf32, #tpu.memory_space<vmem>>, vector<1x1x8x16xf32>,
    %c0_296 = arith.constant 0 : index
    %c0_297 = arith.constant 0 : index
    %c2_298 = arith.constant 2 : index
    %c0_299 = arith.constant 0 : index
    %c0_300 = arith.constant 0 : index
    %2850 = vector.load %arg2[%c0_296, %c0_297, %c2_298, %c0_299, %c0_300] : memref<1x1x4x10x18xf32, #tpu.memory_space<vmem>>, vector<1x1x1x8x16xf32>
    %2851 = vector.shape_cast %2850 : vector<1x1x1x8x16xf32> to vector<8x16xf32>
    %2852 = arith.mulf %2736, %2851 : vector<8x16xf32>
    %c0_301 = arith.constant 0 : index
    %c0_302 = arith.constant 0 : index
    %c2_303 = arith.constant 2 : index
    %c0_304 = arith.constant 0 : index
    %c1_305 = arith.constant 1 : index
    %2853 = vector.load %arg2[%c0_301, %c0_302, %c2_303, %c0_304, %c1_305] : memref<1x1x4x10x18xf32, #tpu.memory_space<vmem>>, vector<1x1x1x8x16xf32>
    %2854 = vector.shape_cast %2853 : vector<1x1x1x8x16xf32> to vector<8x16xf32>
    %2855 = arith.mulf %2738, %2854 : vector<8x16xf32>
    %2856 = arith.addf %2852, %2855 : vector<8x16xf32>
    %c0_306 = arith.constant 0 : index
    %c0_307 = arith.constant 0 : index
    %c2_308 = arith.constant 2 : index
    %c0_309 = arith.constant 0 : index
    %c2_310 = arith.constant 2 : index
    %2857 = vector.load %arg2[%c0_306, %c0_307, %c2_308, %c0_309, %c2_310] : memref<1x1x4x10x18xf32, #tpu.memory_space<vmem>>, vector<1x1x1x8x16xf32>
    %2858 = vector.shape_cast %2857 : vector<1x1x1x8x16xf32> to vector<8x16xf32>
    %2859 = arith.mulf %2740, %2858 : vector<8x16xf32>
    %2860 = arith.addf %2856, %2859 : vector<8x16xf32>
    %c0_311 = arith.constant 0 : index
    %c0_312 = arith.constant 0 : index
    %c2_313 = arith.constant 2 : index
    %c1_314 = arith.constant 1 : index
    %c0_315 = arith.constant 0 : index
    %2861 = vector.load %arg2[%c0_311, %c0_312, %c2_313, %c1_314, %c0_315] : memref<1x1x4x10x18xf32, #tpu.memory_space<vmem>>, vector<1x1x1x8x16xf32>
    %2862 = vector.shape_cast %2861 : vector<1x1x1x8x16xf32> to vector<8x16xf32>
    %2863 = arith.mulf %2742, %2862 : vector<8x16xf32>
    %2864 = arith.addf %2860, %2863 : vector<8x16xf32>
    %c0_316 = arith.constant 0 : index
    %c0_317 = arith.constant 0 : index
    %c2_318 = arith.constant 2 : index
    %c1_319 = arith.constant 1 : index
    %c1_320 = arith.constant 1 : index
    %2865 = vector.load %arg2[%c0_316, %c0_317, %c2_318, %c1_319, %c1_320] : memref<1x1x4x10x18xf32, #tpu.memory_space<vmem>>, vector<1x1x1x8x16xf32>
    %2866 = vector.shape_cast %2865 : vector<1x1x1x8x16xf32> to vector<8x16xf32>
    %2867 = arith.mulf %2744, %2866 : vector<8x16xf32>
    %2868 = arith.addf %2864, %2867 : vector<8x16xf32>
    %c0_321 = arith.constant 0 : index
    %c0_322 = arith.constant 0 : index
    %c2_323 = arith.constant 2 : index
    %c1_324 = arith.constant 1 : index
    %c2_325 = arith.constant 2 : index
    %2869 = vector.load %arg2[%c0_321, %c0_322, %c2_323, %c1_324, %c2_325] : memref<1x1x4x10x18xf32, #tpu.memory_space<vmem>>, vector<1x1x1x8x16xf32>
    %2870 = vector.shape_cast %2869 : vector<1x1x1x8x16xf32> to vector<8x16xf32>
    %2871 = arith.mulf %2746, %2870 : vector<8x16xf32>
    %2872 = arith.addf %2868, %2871 : vector<8x16xf32>
    %c0_326 = arith.constant 0 : index
    %c0_327 = arith.constant 0 : index
    %c2_328 = arith.constant 2 : index
    %c2_329 = arith.constant 2 : index
    %c0_330 = arith.constant 0 : index
    %2873 = vector.load %arg2[%c0_326, %c0_327, %c2_328, %c2_329, %c0_330] : memref<1x1x4x10x18xf32, #tpu.memory_space<vmem>>, vector<1x1x1x8x16xf32>
    %2874 = vector.shape_cast %2873 : vector<1x1x1x8x16xf32> to vector<8x16xf32>
    %2875 = arith.mulf %2748, %2874 : vector<8x16xf32>
    %2876 = arith.addf %2872, %2875 : vector<8x16xf32>
    %c0_331 = arith.constant 0 : index
    %c0_332 = arith.constant 0 : index
    %c2_333 = arith.constant 2 : index
    %c2_334 = arith.constant 2 : index
    %c1_335 = arith.constant 1 : index
    %2877 = vector.load %arg2[%c0_331, %c0_332, %c2_333, %c2_334, %c1_335] : memref<1x1x4x10x18xf32, #tpu.memory_space<vmem>>, vector<1x1x1x8x16xf32>
    %2878 = vector.shape_cast %2877 : vector<1x1x1x8x16xf32> to vector<8x16xf32>
    %2879 = arith.mulf %2750, %2878 : vector<8x16xf32>
    %2880 = arith.addf %2876, %2879 : vector<8x16xf32>
    %c0_336 = arith.constant 0 : index
    %c0_337 = arith.constant 0 : index
    %c2_338 = arith.constant 2 : index
    %c2_339 = arith.constant 2 : index
    %c2_340 = arith.constant 2 : index
    %2881 = vector.load %arg2[%c0_336, %c0_337, %c2_338, %c2_339, %c2_340] : memref<1x1x4x10x18xf32, #tpu.memory_space<vmem>>, vector<1x1x1x8x16xf32>
    %2882 = vector.shape_cast %2881 : vector<1x1x1x8x16xf32> to vector<8x16xf32>
    %2883 = arith.mulf %2752, %2882 : vector<8x16xf32>
    %2884 = arith.addf %2880, %2883 : vector<8x16xf32>
    %2885 = arith.mulf %2884, %2771 : vector<8x16xf32>
    %c0_341 = arith.constant 0 : index
    %c2_342 = arith.constant 2 : index
    %c0_343 = arith.constant 0 : index
    %c0_344 = arith.constant 0 : index
    %2886 = vector.load %arg5[%c0_341, %c2_342, %c0_343, %c0_344] : memref<1x4x8x16xf32, #tpu.memory_space<vmem>>, vector<1x1x8x16xf32>
    %2887 = vector.shape_cast %2886 : vector<1x1x8x16xf32> to vector<8x16xf32>
    %2888 = vector.shape_cast %2885 : vector<8x16xf32> to vector<1x1x8x16xf32>
    tpu.vector_store %arg5[%c0_341, %c2_342, %c0_343, %c0_344], %2888 {strides = array<i32>} : memref<1x4x8x16xf32, #tpu.memory_space<vmem>>, vector<1x1x8x16xf32>,
    %c0_345 = arith.constant 0 : index
    %c0_346 = arith.constant 0 : index
    %c3_347 = arith.constant 3 : index
    %c0_348 = arith.constant 0 : index
    %c0_349 = arith.constant 0 : index
    %2889 = vector.load %arg2[%c0_345, %c0_346, %c3_347, %c0_348, %c0_349] : memref<1x1x4x10x18xf32, #tpu.memory_space<vmem>>, vector<1x1x1x8x16xf32>
    %2890 = vector.shape_cast %2889 : vector<1x1x1x8x16xf32> to vector<8x16xf32>
    %2891 = arith.mulf %2736, %2890 : vector<8x16xf32>
    %c0_350 = arith.constant 0 : index
    %c0_351 = arith.constant 0 : index
    %c3_352 = arith.constant 3 : index
    %c0_353 = arith.constant 0 : index
    %c1_354 = arith.constant 1 : index
    %2892 = vector.load %arg2[%c0_350, %c0_351, %c3_352, %c0_353, %c1_354] : memref<1x1x4x10x18xf32, #tpu.memory_space<vmem>>, vector<1x1x1x8x16xf32>
    %2893 = vector.shape_cast %2892 : vector<1x1x1x8x16xf32> to vector<8x16xf32>
    %2894 = arith.mulf %2738, %2893 : vector<8x16xf32>
    %2895 = arith.addf %2891, %2894 : vector<8x16xf32>
    %c0_355 = arith.constant 0 : index
    %c0_356 = arith.constant 0 : index
    %c3_357 = arith.constant 3 : index
    %c0_358 = arith.constant 0 : index
    %c2_359 = arith.constant 2 : index
    %2896 = vector.load %arg2[%c0_355, %c0_356, %c3_357, %c0_358, %c2_359] : memref<1x1x4x10x18xf32, #tpu.memory_space<vmem>>, vector<1x1x1x8x16xf32>
    %2897 = vector.shape_cast %2896 : vector<1x1x1x8x16xf32> to vector<8x16xf32>
    %2898 = arith.mulf %2740, %2897 : vector<8x16xf32>
    %2899 = arith.addf %2895, %2898 : vector<8x16xf32>
    %c0_360 = arith.constant 0 : index
    %c0_361 = arith.constant 0 : index
    %c3_362 = arith.constant 3 : index
    %c1_363 = arith.constant 1 : index
    %c0_364 = arith.constant 0 : index
    %2900 = vector.load %arg2[%c0_360, %c0_361, %c3_362, %c1_363, %c0_364] : memref<1x1x4x10x18xf32, #tpu.memory_space<vmem>>, vector<1x1x1x8x16xf32>
    %2901 = vector.shape_cast %2900 : vector<1x1x1x8x16xf32> to vector<8x16xf32>
    %2902 = arith.mulf %2742, %2901 : vector<8x16xf32>
    %2903 = arith.addf %2899, %2902 : vector<8x16xf32>
    %c0_365 = arith.constant 0 : index
    %c0_366 = arith.constant 0 : index
    %c3_367 = arith.constant 3 : index
    %c1_368 = arith.constant 1 : index
    %c1_369 = arith.constant 1 : index
    %2904 = vector.load %arg2[%c0_365, %c0_366, %c3_367, %c1_368, %c1_369] : memref<1x1x4x10x18xf32, #tpu.memory_space<vmem>>, vector<1x1x1x8x16xf32>
    %2905 = vector.shape_cast %2904 : vector<1x1x1x8x16xf32> to vector<8x16xf32>
    %2906 = arith.mulf %2744, %2905 : vector<8x16xf32>
    %2907 = arith.addf %2903, %2906 : vector<8x16xf32>
    %c0_370 = arith.constant 0 : index
    %c0_371 = arith.constant 0 : index
    %c3_372 = arith.constant 3 : index
    %c1_373 = arith.constant 1 : index
    %c2_374 = arith.constant 2 : index
    %2908 = vector.load %arg2[%c0_370, %c0_371, %c3_372, %c1_373, %c2_374] : memref<1x1x4x10x18xf32, #tpu.memory_space<vmem>>, vector<1x1x1x8x16xf32>
    %2909 = vector.shape_cast %2908 : vector<1x1x1x8x16xf32> to vector<8x16xf32>
    %2910 = arith.mulf %2746, %2909 : vector<8x16xf32>
    %2911 = arith.addf %2907, %2910 : vector<8x16xf32>
    %c0_375 = arith.constant 0 : index
    %c0_376 = arith.constant 0 : index
    %c3_377 = arith.constant 3 : index
    %c2_378 = arith.constant 2 : index
    %c0_379 = arith.constant 0 : index
    %2912 = vector.load %arg2[%c0_375, %c0_376, %c3_377, %c2_378, %c0_379] : memref<1x1x4x10x18xf32, #tpu.memory_space<vmem>>, vector<1x1x1x8x16xf32>
    %2913 = vector.shape_cast %2912 : vector<1x1x1x8x16xf32> to vector<8x16xf32>
    %2914 = arith.mulf %2748, %2913 : vector<8x16xf32>
    %2915 = arith.addf %2911, %2914 : vector<8x16xf32>
    %c0_380 = arith.constant 0 : index
    %c0_381 = arith.constant 0 : index
    %c3_382 = arith.constant 3 : index
    %c2_383 = arith.constant 2 : index
    %c1_384 = arith.constant 1 : index
    %2916 = vector.load %arg2[%c0_380, %c0_381, %c3_382, %c2_383, %c1_384] : memref<1x1x4x10x18xf32, #tpu.memory_space<vmem>>, vector<1x1x1x8x16xf32>
    %2917 = vector.shape_cast %2916 : vector<1x1x1x8x16xf32> to vector<8x16xf32>
    %2918 = arith.mulf %2750, %2917 : vector<8x16xf32>
    %2919 = arith.addf %2915, %2918 : vector<8x16xf32>
    %c0_385 = arith.constant 0 : index
    %c0_386 = arith.constant 0 : index
    %c3_387 = arith.constant 3 : index
    %c2_388 = arith.constant 2 : index
    %c2_389 = arith.constant 2 : index
    %2920 = vector.load %arg2[%c0_385, %c0_386, %c3_387, %c2_388, %c2_389] : memref<1x1x4x10x18xf32, #tpu.memory_space<vmem>>, vector<1x1x1x8x16xf32>
    %2921 = vector.shape_cast %2920 : vector<1x1x1x8x16xf32> to vector<8x16xf32>
    %2922 = arith.mulf %2752, %2921 : vector<8x16xf32>
    %2923 = arith.addf %2919, %2922 : vector<8x16xf32>
    %2924 = arith.mulf %2923, %2771 : vector<8x16xf32>
    %c0_390 = arith.constant 0 : index
    %c3_391 = arith.constant 3 : index
    %c0_392 = arith.constant 0 : index
    %c0_393 = arith.constant 0 : index
    %2925 = vector.load %arg5[%c0_390, %c3_391, %c0_392, %c0_393] : memref<1x4x8x16xf32, #tpu.memory_space<vmem>>, vector<1x1x8x16xf32>
    %2926 = vector.shape_cast %2925 : vector<1x1x8x16xf32> to vector<8x16xf32>
    %2927 = vector.shape_cast %2924 : vector<8x16xf32> to vector<1x1x8x16xf32>
    tpu.vector_store %arg5[%c0_390, %c3_391, %c0_392, %c0_393], %2927 {strides = array<i32>} : memref<1x4x8x16xf32, #tpu.memory_space<vmem>>, vector<1x1x8x16xf32>,
    return
  }
  func.func @transform_0(%arg0: i32, %arg1: i32) -> (i32, i32, i32, i32, i32) {
    %c0_i32 = arith.constant 0 : i32
    %c0_i32_0 = arith.constant 0 : i32
    %c0_i32_1 = arith.constant 0 : i32
    %c0_i32_2 = arith.constant 0 : i32
    return %arg0, %arg1, %c0_i32, %c0_i32_0, %c0_i32_1 : i32, i32, i32, i32, i32
  }
  func.func @transform_1(%arg0: i32, %arg1: i32) -> i32 {
    %c0_i32 = arith.constant 0 : i32
    %c0_i32_0 = arith.constant 0 : i32
    return %c0_i32 : i32
  }
  func.func @transform_2(%arg0: i32, %arg1: i32) -> i32 {
    %c0_i32 = arith.constant 0 : i32
    %c0_i32_0 = arith.constant 0 : i32
    return %c0_i32 : i32
  }
  func.func @transform_3(%arg0: i32, %arg1: i32) -> (i32, i32, i32, i32) {
    %c0_i32 = arith.constant 0 : i32
    %c0_i32_0 = arith.constant 0 : i32
    %c0_i32_1 = arith.constant 0 : i32
    return %arg0, %c0_i32, %arg1, %c0_i32_0 : i32, i32, i32, i32
  }
}

</mosaic_0001>

<llo_original>
// kernel: tpu_custom_call.1
$region0: #{tpu_custom_call.1}
  #allocation0 [shape = 'u32[]', space=smem, size = 0x4, offset = 0x4, fixed_abs, tag = 'smem constant byte address 0x4 - core index']
  #allocation1 [shape = 'u32[144,128]{1,0:T(1,128)}', space=vmem, size = 0x12000, scoped, tag = 'internal scratch']
  %s0 = inlined_call_operand.vmem [shape: f32[2,2,4,10,18], index: 0, kind: input, shape index: {}]
  %s1 = inlined_call_operand.vmem [shape: f32[648], index: 1, kind: input, shape index: {}]
  %s2 = inlined_call_operand.vmem [shape: f32[18], index: 2, kind: input, shape index: {}]
  %s3 = inlined_call_operand.hbm [shape: f32[2,4,16,16], index: 3, kind: output, shape index: {}]
  %s4 = sld [smem:[#allocation0]]
  $region53: #{tpu_custom_call.1} parent=0
    _
  %s6 = ssub.s32 1, %s4
  %s7 = scalar_select 0, %s6, %s4
  $region1: #{tpu_custom_call.1} parent=0
    #allocation2 [shape = 'u8[3072]{0}', space=smem, size = 0xc00, scoped, tag = 'input window, operand 1, single buffered']
    #allocation3 [shape = 's32[2]{0}', space=sflag, size = 0x8, scoped, tag = 'scoped memory for tpu_custom_call.1']
    #allocation4 [shape = 's32[2]{0}', space=sflag, size = 0x8, scoped, tag = 'scoped memory for tpu_custom_call.1']
    #allocation5 [shape = 'u8[512]{0}', space=smem, size = 0x200, scoped, tag = 'input window, operand 2, single buffered']
    #allocation6 [shape = 's32[1]{0}', space=sflag, size = 0x4, scoped, tag = 'scoped memory for tpu_custom_call.1']
    #allocation7 [shape = 'u8[32768]{0}', space=vmem, size = 0x8000, scoped, tag = 'output window, operand 0']
    %8 = vsyncpa [#allocation4], 0
    %9 = vsyncpa [#allocation6], 0
    %10 = vsyncpa [#allocation3], 0
    %s11 = scalar_lea.sflag [#allocation3], 1
    %12 = vsyncpa %s11, 0
    loop: start=0, step=1, limit=6
    $region2: #{tpu_custom_call.1} parent=1 // loop_pre_header
      _
    $region3: #{tpu_custom_call.1} parent=1 // loop_header
      %s14 = sphi 0, %s18
      %p15 = scmp.ge.s32.totalorder %s14, 6
      %s21 = sphi 0, %s33
      %s22 = sphi 0, %s29
      %s23 = sphi 0, %s21
      %s24 = sphi 0, %s22
      %s25 = sphi 0, %s23
      %s26 = sphi 0, %s24
      %s38 = sphi 0, %s40
      %s41 = sphi 0, %s38
      %s42 = sphi 0, %s41
      %s58 = sphi 0, %s42
      %s62 = sphi 0, %s62
      %s64 = sphi 0, %s62
      %s65 = sphi 0, %s64
      %s79 = sphi 0, %s65
      %s83 = sphi 0, %s83
      %s85 = sphi 0, %s83
      %s86 = sphi 0, %s85
      %s100 = sphi 0, %s86
      %s108 = sphi 0, %s110
      %s111 = sphi 0, %s108
      %s112 = sphi 0, %s111
      %s128 = sphi 0, %s112
    $region4: #{tpu_custom_call.1} parent=1 // loop_header_branch
      %17 = sbr.rel (%p15) target = $region8
    $region5: #{tpu_custom_call.1} parent=1 // loop_body
      %s19 = ssub.s32 %s14, 1
      %s20 = ssub.s32 %s14, 2
      %s27 = sadd.s32 1, %s22
      %p28 = scmp.ge.s32.totalorder %s27, 2
      %s29 = scalar_select %p28, 0, %s27
      %s30 = sadd.s32 1, %s21
      %s31 = scalar_select %p28, %s30, %s21
      %p32 = scmp.ge.s32.totalorder %s31, 2
      %s33 = scalar_select %p32, 0, %s31
      %s34 = ssub.s32 %s21, %s33
      %s35 = ssub.s32 %s22, %s29
      %s36 = sor.u32 %s34, %s35
      %p37 = scmp.eq.s32.totalorder %s36, 0
      %s39 = sadd.s32 %s38, 1
      %s40 = scalar_select %p37, %s38, %s39
      %p43 = pneg %p37
      %p44 = scmp.eq.s32.totalorder %s14, 3
      %p45 = por %p43, %p44
      %p46 = scmp.ne.s32.totalorder %s38, %s41
      %p47 = scmp.eq.s32.totalorder %s14, 0
      %p48 = por %p46, %p47
      %p49 = scmp.ne.s32.totalorder %s38, %s41
      %p50 = scmp.eq.s32.totalorder %s19, 3
      %p51 = por %p49, %p50
      %p52 = scmp.ne.s32.totalorder %s41, %s42
      %p53 = scmp.eq.s32.totalorder %s19, 0
      %p54 = por %p52, %p53
      %p55 = scmp.ne.s32.totalorder %s41, %s42
      %p56 = scmp.eq.s32.totalorder %s20, 3
      %p57 = por %p55, %p56
      %p59 = scmp.ne.s32.totalorder %s42, %s58
      %p60 = scmp.eq.s32.totalorder %s20, 0
      %p61 = por %p59, %p60
      %s63 = sadd.s32 %s62, 1
      %p66 = scmp.eq.s32.totalorder %s14, 3
      %p67 = scmp.ne.s32.totalorder %s62, %s64
      %p68 = scmp.eq.s32.totalorder %s14, 0
      %p69 = por %p67, %p68
      %p70 = scmp.ne.s32.totalorder %s62, %s64
      %p71 = scmp.eq.s32.totalorder %s19, 3
      %p72 = por %p70, %p71
      %p73 = scmp.ne.s32.totalorder %s64, %s65
      %p74 = scmp.eq.s32.totalorder %s19, 0
      %p75 = por %p73, %p74
      %p76 = scmp.ne.s32.totalorder %s64, %s65
      %p77 = scmp.eq.s32.totalorder %s20, 3
      %p78 = por %p76, %p77
      %p80 = scmp.ne.s32.totalorder %s65, %s79
      %p81 = scmp.eq.s32.totalorder %s20, 0
      %p82 = por %p80, %p81
      %s84 = sadd.s32 %s83, 1
      %p87 = scmp.eq.s32.totalorder %s14, 3
      %p88 = scmp.ne.s32.totalorder %s83, %s85
      %p89 = scmp.eq.s32.totalorder %s14, 0
      %p90 = por %p88, %p89
      %p91 = scmp.ne.s32.totalorder %s83, %s85
      %p92 = scmp.eq.s32.totalorder %s19, 3
      %p93 = por %p91, %p92
      %p94 = scmp.ne.s32.totalorder %s85, %s86
      %p95 = scmp.eq.s32.totalorder %s19, 0
      %p96 = por %p94, %p95
      %p97 = scmp.ne.s32.totalorder %s85, %s86
      %p98 = scmp.eq.s32.totalorder %s20, 3
      %p99 = por %p97, %p98
      %p101 = scmp.ne.s32.totalorder %s86, %s100
      %p102 = scmp.eq.s32.totalorder %s20, 0
      %p103 = por %p101, %p102
      %s104 = ssub.s32 %s21, %s33
      %s105 = ssub.s32 %s22, %s29
      %s106 = sor.u32 %s104, %s105
      %p107 = scmp.eq.s32.totalorder %s106, 0
      %s109 = sadd.s32 %s108, 1
      %s110 = scalar_select %p107, %s108, %s109
      %p113 = pneg %p107
      %p114 = scmp.eq.s32.totalorder %s14, 3
      %p115 = por %p113, %p114
      %p116 = scmp.ne.s32.totalorder %s108, %s111
      %p117 = scmp.eq.s32.totalorder %s14, 0
      %p118 = por %p116, %p117
      %p119 = scmp.ne.s32.totalorder %s108, %s111
      %p120 = scmp.eq.s32.totalorder %s19, 3
      %p121 = por %p119, %p120
      %p122 = scmp.ne.s32.totalorder %s111, %s112
      %p123 = scmp.eq.s32.totalorder %s19, 0
      %p124 = por %p122, %p123
      %p125 = scmp.ne.s32.totalorder %s111, %s112
      %p126 = scmp.eq.s32.totalorder %s20, 3
      %p127 = por %p125, %p126
      %p129 = scmp.ne.s32.totalorder %s112, %s128
      %p130 = scmp.eq.s32.totalorder %s20, 0
      %p131 = por %p129, %p130
      %p132 = scmp.le.s32.totalorder 1, %s14
      %p133 = scmp.lt.s32.totalorder %s14, 5
      %p134 = pnand %p132, %p133
      %p135 = pneg %p134
      // Predicated region
      $region9: #{tpu_custom_call.1} parent=5 // pred_check
        _
      $region10: #{tpu_custom_call.1} parent=5 // pred_check_branch
        %137 = sbr.rel (%p134) target = $region12
      $region11: #{tpu_custom_call.1} parent=5 // pred_region
        %s138 = ssub.s32 %s14, 1
        // Predicated region
        $region13: #{tpu_custom_call.1} parent=11 // pred_check
          %p139 = pneg %p75
        $region14: #{tpu_custom_call.1} parent=11 // pred_check_branch
          %141 = sbr.rel (%p139) target = $region16
        $region15: #{tpu_custom_call.1} parent=11 // pred_region
          %s143 = ssub.s32 96, 96
          %144 = vsyncadd [#allocation4], %s143
          %s146 = sshll.u32 %s1, 4
          %s147 = int_to_ptr.vmem [resolvable:$true] %s146
          %149 = dma.vmem_to_smem %s147, 96, [#allocation2], [#allocation4]
        $region16: #{tpu_custom_call.1} parent=11 // pred_fallthru
          _
        // Predicated region
        $region17: #{tpu_custom_call.1} parent=11 // pred_check
          %p150 = pneg %p96
        $region18: #{tpu_custom_call.1} parent=11 // pred_check_branch
          %152 = sbr.rel (%p150) target = $region20
        $region19: #{tpu_custom_call.1} parent=11 // pred_region
          %s154 = ssub.s32 16, 16
          %155 = vsyncadd [#allocation6], %s154
          %s157 = sshll.u32 %s2, 4
          %s158 = int_to_ptr.vmem [resolvable:$true] %s157
          %160 = dma.vmem_to_smem %s158, 16, [#allocation5], [#allocation6]
        $region20: #{tpu_custom_call.1} parent=11 // pred_fallthru
          _
      $region12: #{tpu_custom_call.1} parent=5 // pred_fallthru
        _
      %p161 = scmp.lt.s32.totalorder %s14, 4
      // Predicated region
      $region21: #{tpu_custom_call.1} parent=5 // pred_check
        %p162 = pneg %p161
      $region22: #{tpu_custom_call.1} parent=5 // pred_check_branch
        %164 = sbr.rel (%p162) target = $region24
      $region23: #{tpu_custom_call.1} parent=5 // pred_region
        // Predicated region
        $region25: #{tpu_custom_call.1} parent=23 // pred_check
          %p165 = pneg %p48
        $region26: #{tpu_custom_call.1} parent=23 // pred_check_branch
          %167 = sbr.rel (%p165) target = $region28
        $region27: #{tpu_custom_call.1} parent=23 // pred_region
          %p168 = scmp.lt.s32.totalorder %s21, 1
          %s169 = scalar_select %p168, %s21, 1
          %p170 = scmp.lt.s32.totalorder %s22, 1
          %s171 = scalar_select %p170, %s22, 1
          %s172 = smul.addr %s171, 8
          %s173 = smul.addr %s169, 16
          %s174 = sadd.s32 %s172, %s173
          %s175 = smul.addr %s174, 8
          %s176 = scalar_lea.vmem %s0, %s175
        $region28: #{tpu_custom_call.1} parent=23 // pred_fallthru
          _
      $region24: #{tpu_custom_call.1} parent=5 // pred_fallthru
        _
      %p177 = scmp.le.s32.totalorder 1, %s14
      %p178 = scmp.lt.s32.totalorder %s14, 5
      %p179 = pnand %p177, %p178
      %p180 = pneg %p179
      // Predicated region
      $region29: #{tpu_custom_call.1} parent=5 // pred_check
        _
      $region30: #{tpu_custom_call.1} parent=5 // pred_check_branch
        %182 = sbr.rel (%p179) target = $region32
      $region31: #{tpu_custom_call.1} parent=5 // pred_region
        %s183 = ssub.s32 %s14, 1
        // Predicated region
        $region33: #{tpu_custom_call.1} parent=31 // pred_check
          %p184 = pneg %p75
        $region34: #{tpu_custom_call.1} parent=31 // pred_check_branch
          %186 = sbr.rel (%p184) target = $region36
        $region35: #{tpu_custom_call.1} parent=31 // pred_region
          %187 = dma.done [#allocation4], 96
        $region36: #{tpu_custom_call.1} parent=31 // pred_fallthru
          _
        // Predicated region
        $region37: #{tpu_custom_call.1} parent=31 // pred_check
          %p188 = pneg %p96
        $region38: #{tpu_custom_call.1} parent=31 // pred_check_branch
          %190 = sbr.rel (%p188) target = $region40
        $region39: #{tpu_custom_call.1} parent=31 // pred_region
          %191 = dma.done [#allocation6], 16
        $region40: #{tpu_custom_call.1} parent=31 // pred_fallthru
          _
        %192 = sfence
        %p193 = scmp.lt.s32.totalorder %s23, 1
        %s194 = scalar_select %p193, %s23, 1
        %p195 = scmp.lt.s32.totalorder %s24, 1
        %s196 = scalar_select %p195, %s24, 1
        %s197 = smul.addr %s196, 8
        %s198 = smul.addr %s194, 16
        %s199 = sadd.s32 %s197, %s198
        %s200 = smul.addr %s199, 8
        %s201 = scalar_lea.vmem %s0, %s200
        %p202 = pneg %p54
        %p203 = pneg %p51
        %p204 = pneg %p75
        %p205 = pneg %p72
        %p206 = pneg %p96
        %p207 = pneg %p93
        %p208 = pneg %p124
        %p209 = pneg %p121
        %s210 = sand.u32 %s111, 1
        %s211 = scalar_lea.sflag [#allocation3], %s210
        %s212 = sand.u32 %s111, 1
        %s213 = smul.addr %s212, 32
        %s214 = scalar_lea.vmem [#allocation7], %s213
        %p215 = scmp.lt.s32.totalorder %s23, 1
        %s216 = scalar_select %p215, %s23, 1
        %p217 = scmp.lt.s32.totalorder %s24, 1
        %s218 = scalar_select %p217, %s24, 1
        %s219 = smul.addr %s218, 8
        %s220 = smul.addr %s216, 16
        %s221 = sadd.s32 %s219, %s220
        %s222 = smul.addr %s221, 8
        %s223 = scalar_lea.vmem %s0, %s222
        %v224 = vld [vmem:[%s223] sm:$0xff]
        %s225 = sld [smem:[#allocation2]]
        %v226 = vstv %s225
        %v227 = vmul.f32 %v226, %v224
        %s228 = sld [smem:[#allocation2 + $0x1]]
        %v229 = vstv %s228
        %v230 = vmul.f32 %v229, %v224
        %s231 = sld [smem:[#allocation2 + $0x2]]
        %v232 = vstv %s231
        %v233 = vmul.f32 %v232, %v224
        %s234 = sld [smem:[#allocation2 + $0x3]]
        %v235 = vstv %s234
        %v236 = vmul.f32 %v235, %v224
        %s237 = sld [smem:[#allocation2 + $0x4]]
        %v238 = vstv %s237
        %v239 = vmul.f32 %v238, %v224
        %s240 = sld [smem:[#allocation2 + $0x5]]
        %v241 = vstv %s240
        %v242 = vmul.f32 %v241, %v224
        %s243 = sld [smem:[#allocation2 + $0x6]]
        %v244 = vstv %s243
        %v245 = vmul.f32 %v244, %v224
        %s246 = sld [smem:[#allocation2 + $0x7]]
        %v247 = vstv %s246
        %v248 = vmul.f32 %v247, %v224
        %s249 = sld [smem:[#allocation2 + $0x8]]
        %v250 = vstv %s249
        %v251 = vmul.f32 %v250, %v224
        %s252 = sld [smem:[#allocation2 + $0x9]]
        %v253 = vstv %s252
        %v254 = vmul.f32 %v253, %v224
        %s255 = sld [smem:[#allocation2 + $0xa]]
        %v256 = vstv %s255
        %v257 = vmul.f32 %v256, %v224
        %s258 = sld [smem:[#allocation2 + $0xb]]
        %v259 = vstv %s258
        %v260 = vmul.f32 %v259, %v224
        %s261 = sld [smem:[#allocation2 + $0xc]]
        %v262 = vstv %s261
        %v263 = vmul.f32 %v262, %v224
        %s264 = sld [smem:[#allocation2 + $0xd]]
        %v265 = vstv %s264
        %v266 = vmul.f32 %v265, %v224
        %s267 = sld [smem:[#allocation2 + $0xe]]
        %v268 = vstv %s267
        %v269 = vmul.f32 %v268, %v224
        %s270 = sld [smem:[#allocation2 + $0xf]]
        %v271 = vstv %s270
        %v272 = vmul.f32 %v271, %v224
        %s273 = sld [smem:[#allocation2 + $0x10]]
        %v274 = vstv %s273
        %v275 = vmul.f32 %v274, %v224
        %s276 = sld [smem:[#allocation2 + $0x11]]
        %v277 = vstv %s276
        %v278 = vmul.f32 %v277, %v224
        %s279 = scalar_lea.vmem %s223, 16
        %v280 = vld [vmem:[%s279] sm:$0xff]
        %s281 = sld [smem:[#allocation2 + $0x12]]
        %v282 = vstv %s281
        %v283 = vmul.f32 %v282, %v280
        %v284 = vadd.f32 %v227, %v283
        %s285 = sld [smem:[#allocation2 + $0x13]]
        %v286 = vstv %s285
        %v287 = vmul.f32 %v286, %v280
        %v288 = vadd.f32 %v230, %v287
        %s289 = sld [smem:[#allocation2 + $0x14]]
        %v290 = vstv %s289
        %v291 = vmul.f32 %v290, %v280
        %v292 = vadd.f32 %v233, %v291
        %s293 = sld [smem:[#allocation2 + $0x15]]
        %v294 = vstv %s293
        %v295 = vmul.f32 %v294, %v280
        %v296 = vadd.f32 %v236, %v295
        %s297 = sld [smem:[#allocation2 + $0x16]]
        %v298 = vstv %s297
        %v299 = vmul.f32 %v298, %v280
        %v300 = vadd.f32 %v239, %v299
        %s301 = sld [smem:[#allocation2 + $0x17]]
        %v302 = vstv %s301
        %v303 = vmul.f32 %v302, %v280
        %v304 = vadd.f32 %v242, %v303
        %s305 = sld [smem:[#allocation2 + $0x18]]
        %v306 = vstv %s305
        %v307 = vmul.f32 %v306, %v280
        %v308 = vadd.f32 %v245, %v307
        %s309 = sld [smem:[#allocation2 + $0x19]]
        %v310 = vstv %s309
        %v311 = vmul.f32 %v310, %v280
        %v312 = vadd.f32 %v248, %v311
        %s313 = sld [smem:[#allocation2 + $0x1a]]
        %v314 = vstv %s313
        %v315 = vmul.f32 %v314, %v280
        %v316 = vadd.f32 %v251, %v315
        %s317 = sld [smem:[#allocation2 + $0x1b]]
        %v318 = vstv %s317
        %v319 = vmul.f32 %v318, %v280
        %v320 = vadd.f32 %v254, %v319
        %s321 = sld [smem:[#allocation2 + $0x1c]]
        %v322 = vstv %s321
        %v323 = vmul.f32 %v322, %v280
        %v324 = vadd.f32 %v257, %v323
        %s325 = sld [smem:[#allocation2 + $0x1d]]
        %v326 = vstv %s325
        %v327 = vmul.f32 %v326, %v280
        %v328 = vadd.f32 %v260, %v327
        %s329 = sld [smem:[#allocation2 + $0x1e]]
        %v330 = vstv %s329
        %v331 = vmul.f32 %v330, %v280
        %v332 = vadd.f32 %v263, %v331
        %s333 = sld [smem:[#allocation2 + $0x1f]]
        %v334 = vstv %s333
        %v335 = vmul.f32 %v334, %v280
        %v336 = vadd.f32 %v266, %v335
        %s337 = sld [smem:[#allocation2 + $0x20]]
        %v338 = vstv %s337
        %v339 = vmul.f32 %v338, %v280
        %v340 = vadd.f32 %v269, %v339
        %s341 = sld [smem:[#allocation2 + $0x21]]
        %v342 = vstv %s341
        %v343 = vmul.f32 %v342, %v280
        %v344 = vadd.f32 %v272, %v343
        %s345 = sld [smem:[#allocation2 + $0x22]]
        %v346 = vstv %s345
        %v347 = vmul.f32 %v346, %v280
        %v348 = vadd.f32 %v275, %v347
        %s349 = sld [smem:[#allocation2 + $0x23]]
        %v350 = vstv %s349
        %v351 = vmul.f32 %v350, %v280
        %v352 = vadd.f32 %v278, %v351
        %s353 = scalar_lea.vmem %s223, 32
        %v354 = vld [vmem:[%s353] sm:$0xff]
        %s355 = sld [smem:[#allocation2 + $0x24]]
        %v356 = vstv %s355
        %v357 = vmul.f32 %v356, %v354
        %v358 = vadd.f32 %v284, %v357
        %s359 = sld [smem:[#allocation2 + $0x25]]
        %v360 = vstv %s359
        %v361 = vmul.f32 %v360, %v354
        %v362 = vadd.f32 %v288, %v361
        %s363 = sld [smem:[#allocation2 + $0x26]]
        %v364 = vstv %s363
        %v365 = vmul.f32 %v364, %v354
        %v366 = vadd.f32 %v292, %v365
        %s367 = sld [smem:[#allocation2 + $0x27]]
        %v368 = vstv %s367
        %v369 = vmul.f32 %v368, %v354
        %v370 = vadd.f32 %v296, %v369
        %s371 = sld [smem:[#allocation2 + $0x28]]
        %v372 = vstv %s371
        %v373 = vmul.f32 %v372, %v354
        %v374 = vadd.f32 %v300, %v373
        %s375 = sld [smem:[#allocation2 + $0x29]]
        %v376 = vstv %s375
        %v377 = vmul.f32 %v376, %v354
        %v378 = vadd.f32 %v304, %v377
        %s379 = sld [smem:[#allocation2 + $0x2a]]
        %v380 = vstv %s379
        %v381 = vmul.f32 %v380, %v354
        %v382 = vadd.f32 %v308, %v381
        %s383 = sld [smem:[#allocation2 + $0x2b]]
        %v384 = vstv %s383
        %v385 = vmul.f32 %v384, %v354
        %v386 = vadd.f32 %v312, %v385
        %s387 = sld [smem:[#allocation2 + $0x2c]]
        %v388 = vstv %s387
        %v389 = vmul.f32 %v388, %v354
        %v390 = vadd.f32 %v316, %v389
        %s391 = sld [smem:[#allocation2 + $0x2d]]
        %v392 = vstv %s391
        %v393 = vmul.f32 %v392, %v354
        %v394 = vadd.f32 %v320, %v393
        %s395 = sld [smem:[#allocation2 + $0x2e]]
        %v396 = vstv %s395
        %v397 = vmul.f32 %v396, %v354
        %v398 = vadd.f32 %v324, %v397
        %s399 = sld [smem:[#allocation2 + $0x2f]]
        %v400 = vstv %s399
        %v401 = vmul.f32 %v400, %v354
        %v402 = vadd.f32 %v328, %v401
        %s403 = sld [smem:[#allocation2 + $0x30]]
        %v404 = vstv %s403
        %v405 = vmul.f32 %v404, %v354
        %v406 = vadd.f32 %v332, %v405
        %s407 = sld [smem:[#allocation2 + $0x31]]
        %v408 = vstv %s407
        %v409 = vmul.f32 %v408, %v354
        %v410 = vadd.f32 %v336, %v409
        %s411 = sld [smem:[#allocation2 + $0x32]]
        %v412 = vstv %s411
        %v413 = vmul.f32 %v412, %v354
        %v414 = vadd.f32 %v340, %v413
        %s415 = sld [smem:[#allocation2 + $0x33]]
        %v416 = vstv %s415
        %v417 = vmul.f32 %v416, %v354
        %v418 = vadd.f32 %v344, %v417
        %s419 = sld [smem:[#allocation2 + $0x34]]
        %v420 = vstv %s419
        %v421 = vmul.f32 %v420, %v354
        %v422 = vadd.f32 %v348, %v421
        %s423 = sld [smem:[#allocation2 + $0x35]]
        %v424 = vstv %s423
        %v425 = vmul.f32 %v424, %v354
        %v426 = vadd.f32 %v352, %v425
        %s427 = scalar_lea.vmem %s223, 48
        %v428 = vld [vmem:[%s427] sm:$0xff]
        %s429 = sld [smem:[#allocation2 + $0x36]]
        %v430 = vstv %s429
        %v431 = vmul.f32 %v430, %v428
        %v432 = vadd.f32 %v358, %v431
        %s433 = sld [smem:[#allocation2 + $0x37]]
        %v434 = vstv %s433
        %v435 = vmul.f32 %v434, %v428
        %v436 = vadd.f32 %v362, %v435
        %s437 = sld [smem:[#allocation2 + $0x38]]
        %v438 = vstv %s437
        %v439 = vmul.f32 %v438, %v428
        %v440 = vadd.f32 %v366, %v439
        %s441 = sld [smem:[#allocation2 + $0x39]]
        %v442 = vstv %s441
        %v443 = vmul.f32 %v442, %v428
        %v444 = vadd.f32 %v370, %v443
        %s445 = sld [smem:[#allocation2 + $0x3a]]
        %v446 = vstv %s445
        %v447 = vmul.f32 %v446, %v428
        %v448 = vadd.f32 %v374, %v447
        %s449 = sld [smem:[#allocation2 + $0x3b]]
        %v450 = vstv %s449
        %v451 = vmul.f32 %v450, %v428
        %v452 = vadd.f32 %v378, %v451
        %s453 = sld [smem:[#allocation2 + $0x3c]]
        %v454 = vstv %s453
        %v455 = vmul.f32 %v454, %v428
        %v456 = vadd.f32 %v382, %v455
        %s457 = sld [smem:[#allocation2 + $0x3d]]
        %v458 = vstv %s457
        %v459 = vmul.f32 %v458, %v428
        %v460 = vadd.f32 %v386, %v459
        %s461 = sld [smem:[#allocation2 + $0x3e]]
        %v462 = vstv %s461
        %v463 = vmul.f32 %v462, %v428
        %v464 = vadd.f32 %v390, %v463
        %s465 = sld [smem:[#allocation2 + $0x3f]]
        %v466 = vstv %s465
        %v467 = vmul.f32 %v466, %v428
        %v468 = vadd.f32 %v394, %v467
        %s469 = sld [smem:[#allocation2 + $0x40]]
        %v470 = vstv %s469
        %v471 = vmul.f32 %v470, %v428
        %v472 = vadd.f32 %v398, %v471
        %s473 = sld [smem:[#allocation2 + $0x41]]
        %v474 = vstv %s473
        %v475 = vmul.f32 %v474, %v428
        %v476 = vadd.f32 %v402, %v475
        %s477 = sld [smem:[#allocation2 + $0x42]]
        %v478 = vstv %s477
        %v479 = vmul.f32 %v478, %v428
        %v480 = vadd.f32 %v406, %v479
        %s481 = sld [smem:[#allocation2 + $0x43]]
        %v482 = vstv %s481
        %v483 = vmul.f32 %v482, %v428
        %v484 = vadd.f32 %v410, %v483
        %s485 = sld [smem:[#allocation2 + $0x44]]
        %v486 = vstv %s485
        %v487 = vmul.f32 %v486, %v428
        %v488 = vadd.f32 %v414, %v487
        %s489 = sld [smem:[#allocation2 + $0x45]]
        %v490 = vstv %s489
        %v491 = vmul.f32 %v490, %v428
        %v492 = vadd.f32 %v418, %v491
        %s493 = sld [smem:[#allocation2 + $0x46]]
        %v494 = vstv %s493
        %v495 = vmul.f32 %v494, %v428
        %v496 = vadd.f32 %v422, %v495
        %s497 = sld [smem:[#allocation2 + $0x47]]
        %v498 = vstv %s497
        %v499 = vmul.f32 %v498, %v428
        %v500 = vadd.f32 %v426, %v499
        %s501 = sld [smem:[#allocation2 + $0x48]]
        %v502 = vstv %s501
        %v503 = vmul.f32 %v502, %v224
        %505 = vrot.lane.b32.xlu0 %v503, 127
        %v506 = vpop.permute.xlu0 %505
        %v508 = vadd.f32 %v432, %v506
        %s509 = sld [smem:[#allocation2 + $0x49]]
        %v510 = vstv %s509
        %v511 = vmul.f32 %v510, %v224
        %513 = vrot.lane.b32.xlu0 %v511, 127
        %v514 = vpop.permute.xlu0 %513
        %v516 = vadd.f32 %v436, %v514
        %s517 = sld [smem:[#allocation2 + $0x4a]]
        %v518 = vstv %s517
        %v519 = vmul.f32 %v518, %v224
        %521 = vrot.lane.b32.xlu0 %v519, 127
        %v522 = vpop.permute.xlu0 %521
        %v524 = vadd.f32 %v440, %v522
        %s525 = sld [smem:[#allocation2 + $0x4b]]
        %v526 = vstv %s525
        %v527 = vmul.f32 %v526, %v224
        %529 = vrot.lane.b32.xlu0 %v527, 127
        %v530 = vpop.permute.xlu0 %529
        %v532 = vadd.f32 %v444, %v530
        %s533 = sld [smem:[#allocation2 + $0x4c]]
        %v534 = vstv %s533
        %v535 = vmul.f32 %v534, %v224
        %537 = vrot.lane.b32.xlu0 %v535, 127
        %v538 = vpop.permute.xlu0 %537
        %v540 = vadd.f32 %v448, %v538
        %s541 = sld [smem:[#allocation2 + $0x4d]]
        %v542 = vstv %s541
        %v543 = vmul.f32 %v542, %v224
        %545 = vrot.lane.b32.xlu0 %v543, 127
        %v546 = vpop.permute.xlu0 %545
        %v548 = vadd.f32 %v452, %v546
        %s549 = sld [smem:[#allocation2 + $0x4e]]
        %v550 = vstv %s549
        %v551 = vmul.f32 %v550, %v224
        %553 = vrot.lane.b32.xlu0 %v551, 127
        %v554 = vpop.permute.xlu0 %553
        %v556 = vadd.f32 %v456, %v554
        %s557 = sld [smem:[#allocation2 + $0x4f]]
        %v558 = vstv %s557
        %v559 = vmul.f32 %v558, %v224
        %561 = vrot.lane.b32.xlu0 %v559, 127
        %v562 = vpop.permute.xlu0 %561
        %v564 = vadd.f32 %v460, %v562
        %s565 = sld [smem:[#allocation2 + $0x50]]
        %v566 = vstv %s565
        %v567 = vmul.f32 %v566, %v224
        %569 = vrot.lane.b32.xlu0 %v567, 127
        %v570 = vpop.permute.xlu0 %569
        %v572 = vadd.f32 %v464, %v570
        %s573 = sld [smem:[#allocation2 + $0x51]]
        %v574 = vstv %s573
        %v575 = vmul.f32 %v574, %v224
        %577 = vrot.lane.b32.xlu0 %v575, 127
        %v578 = vpop.permute.xlu0 %577
        %v580 = vadd.f32 %v468, %v578
        %s581 = sld [smem:[#allocation2 + $0x52]]
        %v582 = vstv %s581
        %v583 = vmul.f32 %v582, %v224
        %585 = vrot.lane.b32.xlu0 %v583, 127
        %v586 = vpop.permute.xlu0 %585
        %v588 = vadd.f32 %v472, %v586
        %s589 = sld [smem:[#allocation2 + $0x53]]
        %v590 = vstv %s589
        %v591 = vmul.f32 %v590, %v224
        %593 = vrot.lane.b32.xlu0 %v591, 127
        %v594 = vpop.permute.xlu0 %593
        %v596 = vadd.f32 %v476, %v594
        %s597 = sld [smem:[#allocation2 + $0x54]]
        %v598 = vstv %s597
        %v599 = vmul.f32 %v598, %v224
        %601 = vrot.lane.b32.xlu0 %v599, 127
        %v602 = vpop.permute.xlu0 %601
        %v604 = vadd.f32 %v480, %v602
        %s605 = sld [smem:[#allocation2 + $0x55]]
        %v606 = vstv %s605
        %v607 = vmul.f32 %v606, %v224
        %609 = vrot.lane.b32.xlu0 %v607, 127
        %v610 = vpop.permute.xlu0 %609
        %v612 = vadd.f32 %v484, %v610
        %s613 = sld [smem:[#allocation2 + $0x56]]
        %v614 = vstv %s613
        %v615 = vmul.f32 %v614, %v224
        %617 = vrot.lane.b32.xlu0 %v615, 127
        %v618 = vpop.permute.xlu0 %617
        %v620 = vadd.f32 %v488, %v618
        %s621 = sld [smem:[#allocation2 + $0x57]]
        %v622 = vstv %s621
        %v623 = vmul.f32 %v622, %v224
        %625 = vrot.lane.b32.xlu0 %v623, 127
        %v626 = vpop.permute.xlu0 %625
        %v628 = vadd.f32 %v492, %v626
        %s629 = sld [smem:[#allocation2 + $0x58]]
        %v630 = vstv %s629
        %v631 = vmul.f32 %v630, %v224
        %633 = vrot.lane.b32.xlu0 %v631, 127
        %v634 = vpop.permute.xlu0 %633
        %v636 = vadd.f32 %v496, %v634
        %s637 = sld [smem:[#allocation2 + $0x59]]
        %v638 = vstv %s637
        %v639 = vmul.f32 %v638, %v224
        %641 = vrot.lane.b32.xlu0 %v639, 127
        %v642 = vpop.permute.xlu0 %641
        %v644 = vadd.f32 %v500, %v642
        %s645 = sld [smem:[#allocation2 + $0x5a]]
        %v646 = vstv %s645
        %v647 = vmul.f32 %v646, %v280
        %649 = vrot.lane.b32.xlu0 %v647, 127
        %v650 = vpop.permute.xlu0 %649
        %v652 = vadd.f32 %v508, %v650
        %s653 = sld [smem:[#allocation2 + $0x5b]]
        %v654 = vstv %s653
        %v655 = vmul.f32 %v654, %v280
        %657 = vrot.lane.b32.xlu0 %v655, 127
        %v658 = vpop.permute.xlu0 %657
        %v660 = vadd.f32 %v516, %v658
        %s661 = sld [smem:[#allocation2 + $0x5c]]
        %v662 = vstv %s661
        %v663 = vmul.f32 %v662, %v280
        %665 = vrot.lane.b32.xlu0 %v663, 127
        %v666 = vpop.permute.xlu0 %665
        %v668 = vadd.f32 %v524, %v666
        %s669 = sld [smem:[#allocation2 + $0x5d]]
        %v670 = vstv %s669
        %v671 = vmul.f32 %v670, %v280
        %673 = vrot.lane.b32.xlu0 %v671, 127
        %v674 = vpop.permute.xlu0 %673
        %v676 = vadd.f32 %v532, %v674
        %s677 = sld [smem:[#allocation2 + $0x5e]]
        %v678 = vstv %s677
        %v679 = vmul.f32 %v678, %v280
        %681 = vrot.lane.b32.xlu0 %v679, 127
        %v682 = vpop.permute.xlu0 %681
        %v684 = vadd.f32 %v540, %v682
        %s685 = sld [smem:[#allocation2 + $0x5f]]
        %v686 = vstv %s685
        %v687 = vmul.f32 %v686, %v280
        %689 = vrot.lane.b32.xlu0 %v687, 127
        %v690 = vpop.permute.xlu0 %689
        %v692 = vadd.f32 %v548, %v690
        %s693 = sld [smem:[#allocation2 + $0x60]]
        %v694 = vstv %s693
        %v695 = vmul.f32 %v694, %v280
        %697 = vrot.lane.b32.xlu0 %v695, 127
        %v698 = vpop.permute.xlu0 %697
        %v700 = vadd.f32 %v556, %v698
        %s701 = sld [smem:[#allocation2 + $0x61]]
        %v702 = vstv %s701
        %v703 = vmul.f32 %v702, %v280
        %705 = vrot.lane.b32.xlu0 %v703, 127
        %v706 = vpop.permute.xlu0 %705
        %v708 = vadd.f32 %v564, %v706
        %s709 = sld [smem:[#allocation2 + $0x62]]
        %v710 = vstv %s709
        %v711 = vmul.f32 %v710, %v280
        %713 = vrot.lane.b32.xlu0 %v711, 127
        %v714 = vpop.permute.xlu0 %713
        %v716 = vadd.f32 %v572, %v714
        %s717 = sld [smem:[#allocation2 + $0x63]]
        %v718 = vstv %s717
        %v719 = vmul.f32 %v718, %v280
        %721 = vrot.lane.b32.xlu0 %v719, 127
        %v722 = vpop.permute.xlu0 %721
        %v724 = vadd.f32 %v580, %v722
        %s725 = sld [smem:[#allocation2 + $0x64]]
        %v726 = vstv %s725
        %v727 = vmul.f32 %v726, %v280
        %729 = vrot.lane.b32.xlu0 %v727, 127
        %v730 = vpop.permute.xlu0 %729
        %v732 = vadd.f32 %v588, %v730
        %s733 = sld [smem:[#allocation2 + $0x65]]
        %v734 = vstv %s733
        %v735 = vmul.f32 %v734, %v280
        %737 = vrot.lane.b32.xlu0 %v735, 127
        %v738 = vpop.permute.xlu0 %737
        %v740 = vadd.f32 %v596, %v738
        %s741 = sld [smem:[#allocation2 + $0x66]]
        %v742 = vstv %s741
        %v743 = vmul.f32 %v742, %v280
        %745 = vrot.lane.b32.xlu0 %v743, 127
        %v746 = vpop.permute.xlu0 %745
        %v748 = vadd.f32 %v604, %v746
        %s749 = sld [smem:[#allocation2 + $0x67]]
        %v750 = vstv %s749
        %v751 = vmul.f32 %v750, %v280
        %753 = vrot.lane.b32.xlu0 %v751, 127
        %v754 = vpop.permute.xlu0 %753
        %v756 = vadd.f32 %v612, %v754
        %s757 = sld [smem:[#allocation2 + $0x68]]
        %v758 = vstv %s757
        %v759 = vmul.f32 %v758, %v280
        %761 = vrot.lane.b32.xlu0 %v759, 127
        %v762 = vpop.permute.xlu0 %761
        %v764 = vadd.f32 %v620, %v762
        %s765 = sld [smem:[#allocation2 + $0x69]]
        %v766 = vstv %s765
        %v767 = vmul.f32 %v766, %v280
        %769 = vrot.lane.b32.xlu0 %v767, 127
        %v770 = vpop.permute.xlu0 %769
        %v772 = vadd.f32 %v628, %v770
        %s773 = sld [smem:[#allocation2 + $0x6a]]
        %v774 = vstv %s773
        %v775 = vmul.f32 %v774, %v280
        %777 = vrot.lane.b32.xlu0 %v775, 127
        %v778 = vpop.permute.xlu0 %777
        %v780 = vadd.f32 %v636, %v778
        %s781 = sld [smem:[#allocation2 + $0x6b]]
        %v782 = vstv %s781
        %v783 = vmul.f32 %v782, %v280
        %785 = vrot.lane.b32.xlu0 %v783, 127
        %v786 = vpop.permute.xlu0 %785
        %v788 = vadd.f32 %v644, %v786
        %s789 = sld [smem:[#allocation2 + $0x6c]]
        %v790 = vstv %s789
        %v791 = vmul.f32 %v790, %v354
        %793 = vrot.lane.b32.xlu0 %v791, 127
        %v794 = vpop.permute.xlu0 %793
        %v796 = vadd.f32 %v652, %v794
        %s797 = sld [smem:[#allocation2 + $0x6d]]
        %v798 = vstv %s797
        %v799 = vmul.f32 %v798, %v354
        %801 = vrot.lane.b32.xlu0 %v799, 127
        %v802 = vpop.permute.xlu0 %801
        %v804 = vadd.f32 %v660, %v802
        %s805 = sld [smem:[#allocation2 + $0x6e]]
        %v806 = vstv %s805
        %v807 = vmul.f32 %v806, %v354
        %809 = vrot.lane.b32.xlu0 %v807, 127
        %v810 = vpop.permute.xlu0 %809
        %v812 = vadd.f32 %v668, %v810
        %s813 = sld [smem:[#allocation2 + $0x6f]]
        %v814 = vstv %s813
        %v815 = vmul.f32 %v814, %v354
        %817 = vrot.lane.b32.xlu0 %v815, 127
        %v818 = vpop.permute.xlu0 %817
        %v820 = vadd.f32 %v676, %v818
        %s821 = sld [smem:[#allocation2 + $0x70]]
        %v822 = vstv %s821
        %v823 = vmul.f32 %v822, %v354
        %825 = vrot.lane.b32.xlu0 %v823, 127
        %v826 = vpop.permute.xlu0 %825
        %v828 = vadd.f32 %v684, %v826
        %s829 = sld [smem:[#allocation2 + $0x71]]
        %v830 = vstv %s829
        %v831 = vmul.f32 %v830, %v354
        %833 = vrot.lane.b32.xlu0 %v831, 127
        %v834 = vpop.permute.xlu0 %833
        %v836 = vadd.f32 %v692, %v834
        %s837 = sld [smem:[#allocation2 + $0x72]]
        %v838 = vstv %s837
        %v839 = vmul.f32 %v838, %v354
        %841 = vrot.lane.b32.xlu0 %v839, 127
        %v842 = vpop.permute.xlu0 %841
        %v844 = vadd.f32 %v700, %v842
        %s845 = sld [smem:[#allocation2 + $0x73]]
        %v846 = vstv %s845
        %v847 = vmul.f32 %v846, %v354
        %849 = vrot.lane.b32.xlu0 %v847, 127
        %v850 = vpop.permute.xlu0 %849
        %v852 = vadd.f32 %v708, %v850
        %s853 = sld [smem:[#allocation2 + $0x74]]
        %v854 = vstv %s853
        %v855 = vmul.f32 %v854, %v354
        %857 = vrot.lane.b32.xlu0 %v855, 127
        %v858 = vpop.permute.xlu0 %857
        %v860 = vadd.f32 %v716, %v858
        %s861 = sld [smem:[#allocation2 + $0x75]]
        %v862 = vstv %s861
        %v863 = vmul.f32 %v862, %v354
        %865 = vrot.lane.b32.xlu0 %v863, 127
        %v866 = vpop.permute.xlu0 %865
        %v868 = vadd.f32 %v724, %v866
        %s869 = sld [smem:[#allocation2 + $0x76]]
        %v870 = vstv %s869
        %v871 = vmul.f32 %v870, %v354
        %873 = vrot.lane.b32.xlu0 %v871, 127
        %v874 = vpop.permute.xlu0 %873
        %v876 = vadd.f32 %v732, %v874
        %s877 = sld [smem:[#allocation2 + $0x77]]
        %v878 = vstv %s877
        %v879 = vmul.f32 %v878, %v354
        %881 = vrot.lane.b32.xlu0 %v879, 127
        %v882 = vpop.permute.xlu0 %881
        %v884 = vadd.f32 %v740, %v882
        %s885 = sld [smem:[#allocation2 + $0x78]]
        %v886 = vstv %s885
        %v887 = vmul.f32 %v886, %v354
        %889 = vrot.lane.b32.xlu0 %v887, 127
        %v890 = vpop.permute.xlu0 %889
        %v892 = vadd.f32 %v748, %v890
        %s893 = sld [smem:[#allocation2 + $0x79]]
        %v894 = vstv %s893
        %v895 = vmul.f32 %v894, %v354
        %897 = vrot.lane.b32.xlu0 %v895, 127
        %v898 = vpop.permute.xlu0 %897
        %v900 = vadd.f32 %v756, %v898
        %s901 = sld [smem:[#allocation2 + $0x7a]]
        %v902 = vstv %s901
        %v903 = vmul.f32 %v902, %v354
        %905 = vrot.lane.b32.xlu0 %v903, 127
        %v906 = vpop.permute.xlu0 %905
        %v908 = vadd.f32 %v764, %v906
        %s909 = sld [smem:[#allocation2 + $0x7b]]
        %v910 = vstv %s909
        %v911 = vmul.f32 %v910, %v354
        %913 = vrot.lane.b32.xlu0 %v911, 127
        %v914 = vpop.permute.xlu0 %913
        %v916 = vadd.f32 %v772, %v914
        %s917 = sld [smem:[#allocation2 + $0x7c]]
        %v918 = vstv %s917
        %v919 = vmul.f32 %v918, %v354
        %921 = vrot.lane.b32.xlu0 %v919, 127
        %v922 = vpop.permute.xlu0 %921
        %v924 = vadd.f32 %v780, %v922
        %s925 = sld [smem:[#allocation2 + $0x7d]]
        %v926 = vstv %s925
        %v927 = vmul.f32 %v926, %v354
        %929 = vrot.lane.b32.xlu0 %v927, 127
        %v930 = vpop.permute.xlu0 %929
        %v932 = vadd.f32 %v788, %v930
        %s933 = sld [smem:[#allocation2 + $0x7e]]
        %v934 = vstv %s933
        %v935 = vmul.f32 %v934, %v428
        %937 = vrot.lane.b32.xlu0 %v935, 127
        %v938 = vpop.permute.xlu0 %937
        %v940 = vadd.f32 %v796, %v938
        %s941 = sld [smem:[#allocation2 + $0x7f]]
        %v942 = vstv %s941
        %v943 = vmul.f32 %v942, %v428
        %945 = vrot.lane.b32.xlu0 %v943, 127
        %v946 = vpop.permute.xlu0 %945
        %v948 = vadd.f32 %v804, %v946
        %s949 = sld [smem:[#allocation2 + $0x80]]
        %v950 = vstv %s949
        %v951 = vmul.f32 %v950, %v428
        %953 = vrot.lane.b32.xlu0 %v951, 127
        %v954 = vpop.permute.xlu0 %953
        %v956 = vadd.f32 %v812, %v954
        %s957 = sld [smem:[#allocation2 + $0x81]]
        %v958 = vstv %s957
        %v959 = vmul.f32 %v958, %v428
        %961 = vrot.lane.b32.xlu0 %v959, 127
        %v962 = vpop.permute.xlu0 %961
        %v964 = vadd.f32 %v820, %v962
        %s965 = sld [smem:[#allocation2 + $0x82]]
        %v966 = vstv %s965
        %v967 = vmul.f32 %v966, %v428
        %969 = vrot.lane.b32.xlu0 %v967, 127
        %v970 = vpop.permute.xlu0 %969
        %v972 = vadd.f32 %v828, %v970
        %s973 = sld [smem:[#allocation2 + $0x83]]
        %v974 = vstv %s973
        %v975 = vmul.f32 %v974, %v428
        %977 = vrot.lane.b32.xlu0 %v975, 127
        %v978 = vpop.permute.xlu0 %977
        %v980 = vadd.f32 %v836, %v978
        %s981 = sld [smem:[#allocation2 + $0x84]]
        %v982 = vstv %s981
        %v983 = vmul.f32 %v982, %v428
        %985 = vrot.lane.b32.xlu0 %v983, 127
        %v986 = vpop.permute.xlu0 %985
        %v988 = vadd.f32 %v844, %v986
        %s989 = sld [smem:[#allocation2 + $0x85]]
        %v990 = vstv %s989
        %v991 = vmul.f32 %v990, %v428
        %993 = vrot.lane.b32.xlu0 %v991, 127
        %v994 = vpop.permute.xlu0 %993
        %v996 = vadd.f32 %v852, %v994
        %s997 = sld [smem:[#allocation2 + $0x86]]
        %v998 = vstv %s997
        %v999 = vmul.f32 %v998, %v428
        %1001 = vrot.lane.b32.xlu0 %v999, 127
        %v1002 = vpop.permute.xlu0 %1001
        %v1004 = vadd.f32 %v860, %v1002
        %s1005 = sld [smem:[#allocation2 + $0x87]]
        %v1006 = vstv %s1005
        %v1007 = vmul.f32 %v1006, %v428
        %1009 = vrot.lane.b32.xlu0 %v1007, 127
        %v1010 = vpop.permute.xlu0 %1009
        %v1012 = vadd.f32 %v868, %v1010
        %s1013 = sld [smem:[#allocation2 + $0x88]]
        %v1014 = vstv %s1013
        %v1015 = vmul.f32 %v1014, %v428
        %1017 = vrot.lane.b32.xlu0 %v1015, 127
        %v1018 = vpop.permute.xlu0 %1017
        %v1020 = vadd.f32 %v876, %v1018
        %s1021 = sld [smem:[#allocation2 + $0x89]]
        %v1022 = vstv %s1021
        %v1023 = vmul.f32 %v1022, %v428
        %1025 = vrot.lane.b32.xlu0 %v1023, 127
        %v1026 = vpop.permute.xlu0 %1025
        %v1028 = vadd.f32 %v884, %v1026
        %s1029 = sld [smem:[#allocation2 + $0x8a]]
        %v1030 = vstv %s1029
        %v1031 = vmul.f32 %v1030, %v428
        %1033 = vrot.lane.b32.xlu0 %v1031, 127
        %v1034 = vpop.permute.xlu0 %1033
        %v1036 = vadd.f32 %v892, %v1034
        %s1037 = sld [smem:[#allocation2 + $0x8b]]
        %v1038 = vstv %s1037
        %v1039 = vmul.f32 %v1038, %v428
        %1041 = vrot.lane.b32.xlu0 %v1039, 127
        %v1042 = vpop.permute.xlu0 %1041
        %v1044 = vadd.f32 %v900, %v1042
        %s1045 = sld [smem:[#allocation2 + $0x8c]]
        %v1046 = vstv %s1045
        %v1047 = vmul.f32 %v1046, %v428
        %1049 = vrot.lane.b32.xlu0 %v1047, 127
        %v1050 = vpop.permute.xlu0 %1049
        %v1052 = vadd.f32 %v908, %v1050
        %s1053 = sld [smem:[#allocation2 + $0x8d]]
        %v1054 = vstv %s1053
        %v1055 = vmul.f32 %v1054, %v428
        %1057 = vrot.lane.b32.xlu0 %v1055, 127
        %v1058 = vpop.permute.xlu0 %1057
        %v1060 = vadd.f32 %v916, %v1058
        %s1061 = sld [smem:[#allocation2 + $0x8e]]
        %v1062 = vstv %s1061
        %v1063 = vmul.f32 %v1062, %v428
        %1065 = vrot.lane.b32.xlu0 %v1063, 127
        %v1066 = vpop.permute.xlu0 %1065
        %v1068 = vadd.f32 %v924, %v1066
        %s1069 = sld [smem:[#allocation2 + $0x8f]]
        %v1070 = vstv %s1069
        %v1071 = vmul.f32 %v1070, %v428
        %1073 = vrot.lane.b32.xlu0 %v1071, 127
        %v1074 = vpop.permute.xlu0 %1073
        %v1076 = vadd.f32 %v932, %v1074
        %s1077 = sld [smem:[#allocation2 + $0x90]]
        %v1078 = vstv %s1077
        %v1079 = vmul.f32 %v1078, %v224
        %1081 = vrot.lane.b32.xlu0 %v1079, 126
        %v1082 = vpop.permute.xlu0 %1081
        %v1084 = vadd.f32 %v940, %v1082
        %s1085 = sld [smem:[#allocation2 + $0x91]]
        %v1086 = vstv %s1085
        %v1087 = vmul.f32 %v1086, %v224
        %1089 = vrot.lane.b32.xlu0 %v1087, 126
        %v1090 = vpop.permute.xlu0 %1089
        %v1092 = vadd.f32 %v948, %v1090
        %s1093 = sld [smem:[#allocation2 + $0x92]]
        %v1094 = vstv %s1093
        %v1095 = vmul.f32 %v1094, %v224
        %1097 = vrot.lane.b32.xlu0 %v1095, 126
        %v1098 = vpop.permute.xlu0 %1097
        %v1100 = vadd.f32 %v956, %v1098
        %s1101 = sld [smem:[#allocation2 + $0x93]]
        %v1102 = vstv %s1101
        %v1103 = vmul.f32 %v1102, %v224
        %1105 = vrot.lane.b32.xlu0 %v1103, 126
        %v1106 = vpop.permute.xlu0 %1105
        %v1108 = vadd.f32 %v964, %v1106
        %s1109 = sld [smem:[#allocation2 + $0x94]]
        %v1110 = vstv %s1109
        %v1111 = vmul.f32 %v1110, %v224
        %1113 = vrot.lane.b32.xlu0 %v1111, 126
        %v1114 = vpop.permute.xlu0 %1113
        %v1116 = vadd.f32 %v972, %v1114
        %s1117 = sld [smem:[#allocation2 + $0x95]]
        %v1118 = vstv %s1117
        %v1119 = vmul.f32 %v1118, %v224
        %1121 = vrot.lane.b32.xlu0 %v1119, 126
        %v1122 = vpop.permute.xlu0 %1121
        %v1124 = vadd.f32 %v980, %v1122
        %s1125 = sld [smem:[#allocation2 + $0x96]]
        %v1126 = vstv %s1125
        %v1127 = vmul.f32 %v1126, %v224
        %1129 = vrot.lane.b32.xlu0 %v1127, 126
        %v1130 = vpop.permute.xlu0 %1129
        %v1132 = vadd.f32 %v988, %v1130
        %s1133 = sld [smem:[#allocation2 + $0x97]]
        %v1134 = vstv %s1133
        %v1135 = vmul.f32 %v1134, %v224
        %1137 = vrot.lane.b32.xlu0 %v1135, 126
        %v1138 = vpop.permute.xlu0 %1137
        %v1140 = vadd.f32 %v996, %v1138
        %s1141 = sld [smem:[#allocation2 + $0x98]]
        %v1142 = vstv %s1141
        %v1143 = vmul.f32 %v1142, %v224
        %1145 = vrot.lane.b32.xlu0 %v1143, 126
        %v1146 = vpop.permute.xlu0 %1145
        %v1148 = vadd.f32 %v1004, %v1146
        %s1149 = sld [smem:[#allocation2 + $0x99]]
        %v1150 = vstv %s1149
        %v1151 = vmul.f32 %v1150, %v224
        %1153 = vrot.lane.b32.xlu0 %v1151, 126
        %v1154 = vpop.permute.xlu0 %1153
        %v1156 = vadd.f32 %v1012, %v1154
        %s1157 = sld [smem:[#allocation2 + $0x9a]]
        %v1158 = vstv %s1157
        %v1159 = vmul.f32 %v1158, %v224
        %1161 = vrot.lane.b32.xlu0 %v1159, 126
        %v1162 = vpop.permute.xlu0 %1161
        %v1164 = vadd.f32 %v1020, %v1162
        %s1165 = sld [smem:[#allocation2 + $0x9b]]
        %v1166 = vstv %s1165
        %v1167 = vmul.f32 %v1166, %v224
        %1169 = vrot.lane.b32.xlu0 %v1167, 126
        %v1170 = vpop.permute.xlu0 %1169
        %v1172 = vadd.f32 %v1028, %v1170
        %s1173 = sld [smem:[#allocation2 + $0x9c]]
        %v1174 = vstv %s1173
        %v1175 = vmul.f32 %v1174, %v224
        %1177 = vrot.lane.b32.xlu0 %v1175, 126
        %v1178 = vpop.permute.xlu0 %1177
        %v1180 = vadd.f32 %v1036, %v1178
        %s1181 = sld [smem:[#allocation2 + $0x9d]]
        %v1182 = vstv %s1181
        %v1183 = vmul.f32 %v1182, %v224
        %1185 = vrot.lane.b32.xlu0 %v1183, 126
        %v1186 = vpop.permute.xlu0 %1185
        %v1188 = vadd.f32 %v1044, %v1186
        %s1189 = sld [smem:[#allocation2 + $0x9e]]
        %v1190 = vstv %s1189
        %v1191 = vmul.f32 %v1190, %v224
        %1193 = vrot.lane.b32.xlu0 %v1191, 126
        %v1194 = vpop.permute.xlu0 %1193
        %v1196 = vadd.f32 %v1052, %v1194
        %s1197 = sld [smem:[#allocation2 + $0x9f]]
        %v1198 = vstv %s1197
        %v1199 = vmul.f32 %v1198, %v224
        %1201 = vrot.lane.b32.xlu0 %v1199, 126
        %v1202 = vpop.permute.xlu0 %1201
        %v1204 = vadd.f32 %v1060, %v1202
        %s1205 = sld [smem:[#allocation2 + $0xa0]]
        %v1206 = vstv %s1205
        %v1207 = vmul.f32 %v1206, %v224
        %1209 = vrot.lane.b32.xlu0 %v1207, 126
        %v1210 = vpop.permute.xlu0 %1209
        %v1212 = vadd.f32 %v1068, %v1210
        %s1213 = sld [smem:[#allocation2 + $0xa1]]
        %v1214 = vstv %s1213
        %v1215 = vmul.f32 %v1214, %v224
        %1217 = vrot.lane.b32.xlu0 %v1215, 126
        %v1218 = vpop.permute.xlu0 %1217
        %v1220 = vadd.f32 %v1076, %v1218
        %s1221 = sld [smem:[#allocation2 + $0xa2]]
        %v1222 = vstv %s1221
        %v1223 = vmul.f32 %v1222, %v280
        %1225 = vrot.lane.b32.xlu0 %v1223, 126
        %v1226 = vpop.permute.xlu0 %1225
        %v1228 = vadd.f32 %v1084, %v1226
        %s1229 = sld [smem:[#allocation2 + $0xa3]]
        %v1230 = vstv %s1229
        %v1231 = vmul.f32 %v1230, %v280
        %1233 = vrot.lane.b32.xlu0 %v1231, 126
        %v1234 = vpop.permute.xlu0 %1233
        %v1236 = vadd.f32 %v1092, %v1234
        %s1237 = sld [smem:[#allocation2 + $0xa4]]
        %v1238 = vstv %s1237
        %v1239 = vmul.f32 %v1238, %v280
        %1241 = vrot.lane.b32.xlu0 %v1239, 126
        %v1242 = vpop.permute.xlu0 %1241
        %v1244 = vadd.f32 %v1100, %v1242
        %s1245 = sld [smem:[#allocation2 + $0xa5]]
        %v1246 = vstv %s1245
        %v1247 = vmul.f32 %v1246, %v280
        %1249 = vrot.lane.b32.xlu0 %v1247, 126
        %v1250 = vpop.permute.xlu0 %1249
        %v1252 = vadd.f32 %v1108, %v1250
        %s1253 = sld [smem:[#allocation2 + $0xa6]]
        %v1254 = vstv %s1253
        %v1255 = vmul.f32 %v1254, %v280
        %1257 = vrot.lane.b32.xlu0 %v1255, 126
        %v1258 = vpop.permute.xlu0 %1257
        %v1260 = vadd.f32 %v1116, %v1258
        %s1261 = sld [smem:[#allocation2 + $0xa7]]
        %v1262 = vstv %s1261
        %v1263 = vmul.f32 %v1262, %v280
        %1265 = vrot.lane.b32.xlu0 %v1263, 126
        %v1266 = vpop.permute.xlu0 %1265
        %v1268 = vadd.f32 %v1124, %v1266
        %s1269 = sld [smem:[#allocation2 + $0xa8]]
        %v1270 = vstv %s1269
        %v1271 = vmul.f32 %v1270, %v280
        %1273 = vrot.lane.b32.xlu0 %v1271, 126
        %v1274 = vpop.permute.xlu0 %1273
        %v1276 = vadd.f32 %v1132, %v1274
        %s1277 = sld [smem:[#allocation2 + $0xa9]]
        %v1278 = vstv %s1277
        %v1279 = vmul.f32 %v1278, %v280
        %1281 = vrot.lane.b32.xlu0 %v1279, 126
        %v1282 = vpop.permute.xlu0 %1281
        %v1284 = vadd.f32 %v1140, %v1282
        %s1285 = sld [smem:[#allocation2 + $0xaa]]
        %v1286 = vstv %s1285
        %v1287 = vmul.f32 %v1286, %v280
        %1289 = vrot.lane.b32.xlu0 %v1287, 126
        %v1290 = vpop.permute.xlu0 %1289
        %v1292 = vadd.f32 %v1148, %v1290
        %s1293 = sld [smem:[#allocation2 + $0xab]]
        %v1294 = vstv %s1293
        %v1295 = vmul.f32 %v1294, %v280
        %1297 = vrot.lane.b32.xlu0 %v1295, 126
        %v1298 = vpop.permute.xlu0 %1297
        %v1300 = vadd.f32 %v1156, %v1298
        %s1301 = sld [smem:[#allocation2 + $0xac]]
        %v1302 = vstv %s1301
        %v1303 = vmul.f32 %v1302, %v280
        %1305 = vrot.lane.b32.xlu0 %v1303, 126
        %v1306 = vpop.permute.xlu0 %1305
        %v1308 = vadd.f32 %v1164, %v1306
        %s1309 = sld [smem:[#allocation2 + $0xad]]
        %v1310 = vstv %s1309
        %v1311 = vmul.f32 %v1310, %v280
        %1313 = vrot.lane.b32.xlu0 %v1311, 126
        %v1314 = vpop.permute.xlu0 %1313
        %v1316 = vadd.f32 %v1172, %v1314
        %s1317 = sld [smem:[#allocation2 + $0xae]]
        %v1318 = vstv %s1317
        %v1319 = vmul.f32 %v1318, %v280
        %1321 = vrot.lane.b32.xlu0 %v1319, 126
        %v1322 = vpop.permute.xlu0 %1321
        %v1324 = vadd.f32 %v1180, %v1322
        %s1325 = sld [smem:[#allocation2 + $0xaf]]
        %v1326 = vstv %s1325
        %v1327 = vmul.f32 %v1326, %v280
        %1329 = vrot.lane.b32.xlu0 %v1327, 126
        %v1330 = vpop.permute.xlu0 %1329
        %v1332 = vadd.f32 %v1188, %v1330
        %s1333 = sld [smem:[#allocation2 + $0xb0]]
        %v1334 = vstv %s1333
        %v1335 = vmul.f32 %v1334, %v280
        %1337 = vrot.lane.b32.xlu0 %v1335, 126
        %v1338 = vpop.permute.xlu0 %1337
        %v1340 = vadd.f32 %v1196, %v1338
        %s1341 = sld [smem:[#allocation2 + $0xb1]]
        %v1342 = vstv %s1341
        %v1343 = vmul.f32 %v1342, %v280
        %1345 = vrot.lane.b32.xlu0 %v1343, 126
        %v1346 = vpop.permute.xlu0 %1345
        %v1348 = vadd.f32 %v1204, %v1346
        %s1349 = sld [smem:[#allocation2 + $0xb2]]
        %v1350 = vstv %s1349
        %v1351 = vmul.f32 %v1350, %v280
        %1353 = vrot.lane.b32.xlu0 %v1351, 126
        %v1354 = vpop.permute.xlu0 %1353
        %v1356 = vadd.f32 %v1212, %v1354
        %s1357 = sld [smem:[#allocation2 + $0xb3]]
        %v1358 = vstv %s1357
        %v1359 = vmul.f32 %v1358, %v280
        %1361 = vrot.lane.b32.xlu0 %v1359, 126
        %v1362 = vpop.permute.xlu0 %1361
        %v1364 = vadd.f32 %v1220, %v1362
        %s1365 = sld [smem:[#allocation2 + $0xb4]]
        %v1366 = vstv %s1365
        %v1367 = vmul.f32 %v1366, %v354
        %1369 = vrot.lane.b32.xlu0 %v1367, 126
        %v1370 = vpop.permute.xlu0 %1369
        %v1372 = vadd.f32 %v1228, %v1370
        %s1373 = sld [smem:[#allocation2 + $0xb5]]
        %v1374 = vstv %s1373
        %v1375 = vmul.f32 %v1374, %v354
        %1377 = vrot.lane.b32.xlu0 %v1375, 126
        %v1378 = vpop.permute.xlu0 %1377
        %v1380 = vadd.f32 %v1236, %v1378
        %s1381 = sld [smem:[#allocation2 + $0xb6]]
        %v1382 = vstv %s1381
        %v1383 = vmul.f32 %v1382, %v354
        %1385 = vrot.lane.b32.xlu0 %v1383, 126
        %v1386 = vpop.permute.xlu0 %1385
        %v1388 = vadd.f32 %v1244, %v1386
        %s1389 = sld [smem:[#allocation2 + $0xb7]]
        %v1390 = vstv %s1389
        %v1391 = vmul.f32 %v1390, %v354
        %1393 = vrot.lane.b32.xlu0 %v1391, 126
        %v1394 = vpop.permute.xlu0 %1393
        %v1396 = vadd.f32 %v1252, %v1394
        %s1397 = sld [smem:[#allocation2 + $0xb8]]
        %v1398 = vstv %s1397
        %v1399 = vmul.f32 %v1398, %v354
        %1401 = vrot.lane.b32.xlu0 %v1399, 126
        %v1402 = vpop.permute.xlu0 %1401
        %v1404 = vadd.f32 %v1260, %v1402
        %s1405 = sld [smem:[#allocation2 + $0xb9]]
        %v1406 = vstv %s1405
        %v1407 = vmul.f32 %v1406, %v354
        %1409 = vrot.lane.b32.xlu0 %v1407, 126
        %v1410 = vpop.permute.xlu0 %1409
        %v1412 = vadd.f32 %v1268, %v1410
        %s1413 = sld [smem:[#allocation2 + $0xba]]
        %v1414 = vstv %s1413
        %v1415 = vmul.f32 %v1414, %v354
        %1417 = vrot.lane.b32.xlu0 %v1415, 126
        %v1418 = vpop.permute.xlu0 %1417
        %v1420 = vadd.f32 %v1276, %v1418
        %s1421 = sld [smem:[#allocation2 + $0xbb]]
        %v1422 = vstv %s1421
        %v1423 = vmul.f32 %v1422, %v354
        %1425 = vrot.lane.b32.xlu0 %v1423, 126
        %v1426 = vpop.permute.xlu0 %1425
        %v1428 = vadd.f32 %v1284, %v1426
        %s1429 = sld [smem:[#allocation2 + $0xbc]]
        %v1430 = vstv %s1429
        %v1431 = vmul.f32 %v1430, %v354
        %1433 = vrot.lane.b32.xlu0 %v1431, 126
        %v1434 = vpop.permute.xlu0 %1433
        %v1436 = vadd.f32 %v1292, %v1434
        %s1437 = sld [smem:[#allocation2 + $0xbd]]
        %v1438 = vstv %s1437
        %v1439 = vmul.f32 %v1438, %v354
        %1441 = vrot.lane.b32.xlu0 %v1439, 126
        %v1442 = vpop.permute.xlu0 %1441
        %v1444 = vadd.f32 %v1300, %v1442
        %s1445 = sld [smem:[#allocation2 + $0xbe]]
        %v1446 = vstv %s1445
        %v1447 = vmul.f32 %v1446, %v354
        %1449 = vrot.lane.b32.xlu0 %v1447, 126
        %v1450 = vpop.permute.xlu0 %1449
        %v1452 = vadd.f32 %v1308, %v1450
        %s1453 = sld [smem:[#allocation2 + $0xbf]]
        %v1454 = vstv %s1453
        %v1455 = vmul.f32 %v1454, %v354
        %1457 = vrot.lane.b32.xlu0 %v1455, 126
        %v1458 = vpop.permute.xlu0 %1457
        %v1460 = vadd.f32 %v1316, %v1458
        %s1461 = sld [smem:[#allocation2 + $0xc0]]
        %v1462 = vstv %s1461
        %v1463 = vmul.f32 %v1462, %v354
        %1465 = vrot.lane.b32.xlu0 %v1463, 126
        %v1466 = vpop.permute.xlu0 %1465
        %v1468 = vadd.f32 %v1324, %v1466
        %s1469 = sld [smem:[#allocation2 + $0xc1]]
        %v1470 = vstv %s1469
        %v1471 = vmul.f32 %v1470, %v354
        %1473 = vrot.lane.b32.xlu0 %v1471, 126
        %v1474 = vpop.permute.xlu0 %1473
        %v1476 = vadd.f32 %v1332, %v1474
        %s1477 = sld [smem:[#allocation2 + $0xc2]]
        %v1478 = vstv %s1477
        %v1479 = vmul.f32 %v1478, %v354
        %1481 = vrot.lane.b32.xlu0 %v1479, 126
        %v1482 = vpop.permute.xlu0 %1481
        %v1484 = vadd.f32 %v1340, %v1482
        %s1485 = sld [smem:[#allocation2 + $0xc3]]
        %v1486 = vstv %s1485
        %v1487 = vmul.f32 %v1486, %v354
        %1489 = vrot.lane.b32.xlu0 %v1487, 126
        %v1490 = vpop.permute.xlu0 %1489
        %v1492 = vadd.f32 %v1348, %v1490
        %s1493 = sld [smem:[#allocation2 + $0xc4]]
        %v1494 = vstv %s1493
        %v1495 = vmul.f32 %v1494, %v354
        %1497 = vrot.lane.b32.xlu0 %v1495, 126
        %v1498 = vpop.permute.xlu0 %1497
        %v1500 = vadd.f32 %v1356, %v1498
        %s1501 = sld [smem:[#allocation2 + $0xc5]]
        %v1502 = vstv %s1501
        %v1503 = vmul.f32 %v1502, %v354
        %1505 = vrot.lane.b32.xlu0 %v1503, 126
        %v1506 = vpop.permute.xlu0 %1505
        %v1508 = vadd.f32 %v1364, %v1506
        %s1509 = sld [smem:[#allocation2 + $0xc6]]
        %v1510 = vstv %s1509
        %v1511 = vmul.f32 %v1510, %v428
        %1513 = vrot.lane.b32.xlu0 %v1511, 126
        %v1514 = vpop.permute.xlu0 %1513
        %v1516 = vadd.f32 %v1372, %v1514
        %s1517 = sld [smem:[#allocation2 + $0xc7]]
        %v1518 = vstv %s1517
        %v1519 = vmul.f32 %v1518, %v428
        %1521 = vrot.lane.b32.xlu0 %v1519, 126
        %v1522 = vpop.permute.xlu0 %1521
        %v1524 = vadd.f32 %v1380, %v1522
        %s1525 = sld [smem:[#allocation2 + $0xc8]]
        %v1526 = vstv %s1525
        %v1527 = vmul.f32 %v1526, %v428
        %1529 = vrot.lane.b32.xlu0 %v1527, 126
        %v1530 = vpop.permute.xlu0 %1529
        %v1532 = vadd.f32 %v1388, %v1530
        %s1533 = sld [smem:[#allocation2 + $0xc9]]
        %v1534 = vstv %s1533
        %v1535 = vmul.f32 %v1534, %v428
        %1537 = vrot.lane.b32.xlu0 %v1535, 126
        %v1538 = vpop.permute.xlu0 %1537
        %v1540 = vadd.f32 %v1396, %v1538
        %s1541 = sld [smem:[#allocation2 + $0xca]]
        %v1542 = vstv %s1541
        %v1543 = vmul.f32 %v1542, %v428
        %1545 = vrot.lane.b32.xlu0 %v1543, 126
        %v1546 = vpop.permute.xlu0 %1545
        %v1548 = vadd.f32 %v1404, %v1546
        %s1549 = sld [smem:[#allocation2 + $0xcb]]
        %v1550 = vstv %s1549
        %v1551 = vmul.f32 %v1550, %v428
        %1553 = vrot.lane.b32.xlu0 %v1551, 126
        %v1554 = vpop.permute.xlu0 %1553
        %v1556 = vadd.f32 %v1412, %v1554
        %s1557 = sld [smem:[#allocation2 + $0xcc]]
        %v1558 = vstv %s1557
        %v1559 = vmul.f32 %v1558, %v428
        %1561 = vrot.lane.b32.xlu0 %v1559, 126
        %v1562 = vpop.permute.xlu0 %1561
        %v1564 = vadd.f32 %v1420, %v1562
        %s1565 = sld [smem:[#allocation2 + $0xcd]]
        %v1566 = vstv %s1565
        %v1567 = vmul.f32 %v1566, %v428
        %1569 = vrot.lane.b32.xlu0 %v1567, 126
        %v1570 = vpop.permute.xlu0 %1569
        %v1572 = vadd.f32 %v1428, %v1570
        %s1573 = sld [smem:[#allocation2 + $0xce]]
        %v1574 = vstv %s1573
        %v1575 = vmul.f32 %v1574, %v428
        %1577 = vrot.lane.b32.xlu0 %v1575, 126
        %v1578 = vpop.permute.xlu0 %1577
        %v1580 = vadd.f32 %v1436, %v1578
        %s1581 = sld [smem:[#allocation2 + $0xcf]]
        %v1582 = vstv %s1581
        %v1583 = vmul.f32 %v1582, %v428
        %1585 = vrot.lane.b32.xlu0 %v1583, 126
        %v1586 = vpop.permute.xlu0 %1585
        %v1588 = vadd.f32 %v1444, %v1586
        %s1589 = sld [smem:[#allocation2 + $0xd0]]
        %v1590 = vstv %s1589
        %v1591 = vmul.f32 %v1590, %v428
        %1593 = vrot.lane.b32.xlu0 %v1591, 126
        %v1594 = vpop.permute.xlu0 %1593
        %v1596 = vadd.f32 %v1452, %v1594
        %s1597 = sld [smem:[#allocation2 + $0xd1]]
        %v1598 = vstv %s1597
        %v1599 = vmul.f32 %v1598, %v428
        %1601 = vrot.lane.b32.xlu0 %v1599, 126
        %v1602 = vpop.permute.xlu0 %1601
        %v1604 = vadd.f32 %v1460, %v1602
        %s1605 = sld [smem:[#allocation2 + $0xd2]]
        %v1606 = vstv %s1605
        %v1607 = vmul.f32 %v1606, %v428
        %1609 = vrot.lane.b32.xlu0 %v1607, 126
        %v1610 = vpop.permute.xlu0 %1609
        %v1612 = vadd.f32 %v1468, %v1610
        %s1613 = sld [smem:[#allocation2 + $0xd3]]
        %v1614 = vstv %s1613
        %v1615 = vmul.f32 %v1614, %v428
        %1617 = vrot.lane.b32.xlu0 %v1615, 126
        %v1618 = vpop.permute.xlu0 %1617
        %v1620 = vadd.f32 %v1476, %v1618
        %s1621 = sld [smem:[#allocation2 + $0xd4]]
        %v1622 = vstv %s1621
        %v1623 = vmul.f32 %v1622, %v428
        %1625 = vrot.lane.b32.xlu0 %v1623, 126
        %v1626 = vpop.permute.xlu0 %1625
        %v1628 = vadd.f32 %v1484, %v1626
        %s1629 = sld [smem:[#allocation2 + $0xd5]]
        %v1630 = vstv %s1629
        %v1631 = vmul.f32 %v1630, %v428
        %1633 = vrot.lane.b32.xlu0 %v1631, 126
        %v1634 = vpop.permute.xlu0 %1633
        %v1636 = vadd.f32 %v1492, %v1634
        %s1637 = sld [smem:[#allocation2 + $0xd6]]
        %v1638 = vstv %s1637
        %v1639 = vmul.f32 %v1638, %v428
        %1641 = vrot.lane.b32.xlu0 %v1639, 126
        %v1642 = vpop.permute.xlu0 %1641
        %v1644 = vadd.f32 %v1500, %v1642
        %s1645 = sld [smem:[#allocation2 + $0xd7]]
        %v1646 = vstv %s1645
        %v1647 = vmul.f32 %v1646, %v428
        %1649 = vrot.lane.b32.xlu0 %v1647, 126
        %v1650 = vpop.permute.xlu0 %1649
        %v1652 = vadd.f32 %v1508, %v1650
        %v1653 = vld [vmem:[%s223 + $0x1] sm:$0xff]
        %s1654 = sld [smem:[#allocation2 + $0xd8]]
        %v1655 = vstv %s1654
        %v1656 = vmul.f32 %v1655, %v1653
        %v1657 = vadd.f32 %v1516, %v1656
        %s1658 = sld [smem:[#allocation2 + $0xd9]]
        %v1659 = vstv %s1658
        %v1660 = vmul.f32 %v1659, %v1653
        %v1661 = vadd.f32 %v1524, %v1660
        %s1662 = sld [smem:[#allocation2 + $0xda]]
        %v1663 = vstv %s1662
        %v1664 = vmul.f32 %v1663, %v1653
        %v1665 = vadd.f32 %v1532, %v1664
        %s1666 = sld [smem:[#allocation2 + $0xdb]]
        %v1667 = vstv %s1666
        %v1668 = vmul.f32 %v1667, %v1653
        %v1669 = vadd.f32 %v1540, %v1668
        %s1670 = sld [smem:[#allocation2 + $0xdc]]
        %v1671 = vstv %s1670
        %v1672 = vmul.f32 %v1671, %v1653
        %v1673 = vadd.f32 %v1548, %v1672
        %s1674 = sld [smem:[#allocation2 + $0xdd]]
        %v1675 = vstv %s1674
        %v1676 = vmul.f32 %v1675, %v1653
        %v1677 = vadd.f32 %v1556, %v1676
        %s1678 = sld [smem:[#allocation2 + $0xde]]
        %v1679 = vstv %s1678
        %v1680 = vmul.f32 %v1679, %v1653
        %v1681 = vadd.f32 %v1564, %v1680
        %s1682 = sld [smem:[#allocation2 + $0xdf]]
        %v1683 = vstv %s1682
        %v1684 = vmul.f32 %v1683, %v1653
        %v1685 = vadd.f32 %v1572, %v1684
        %s1686 = sld [smem:[#allocation2 + $0xe0]]
        %v1687 = vstv %s1686
        %v1688 = vmul.f32 %v1687, %v1653
        %v1689 = vadd.f32 %v1580, %v1688
        %s1690 = sld [smem:[#allocation2 + $0xe1]]
        %v1691 = vstv %s1690
        %v1692 = vmul.f32 %v1691, %v1653
        %v1693 = vadd.f32 %v1588, %v1692
        %s1694 = sld [smem:[#allocation2 + $0xe2]]
        %v1695 = vstv %s1694
        %v1696 = vmul.f32 %v1695, %v1653
        %v1697 = vadd.f32 %v1596, %v1696
        %s1698 = sld [smem:[#allocation2 + $0xe3]]
        %v1699 = vstv %s1698
        %v1700 = vmul.f32 %v1699, %v1653
        %v1701 = vadd.f32 %v1604, %v1700
        %s1702 = sld [smem:[#allocation2 + $0xe4]]
        %v1703 = vstv %s1702
        %v1704 = vmul.f32 %v1703, %v1653
        %v1705 = vadd.f32 %v1612, %v1704
        %s1706 = sld [smem:[#allocation2 + $0xe5]]
        %v1707 = vstv %s1706
        %v1708 = vmul.f32 %v1707, %v1653
        %v1709 = vadd.f32 %v1620, %v1708
        %s1710 = sld [smem:[#allocation2 + $0xe6]]
        %v1711 = vstv %s1710
        %v1712 = vmul.f32 %v1711, %v1653
        %v1713 = vadd.f32 %v1628, %v1712
        %s1714 = sld [smem:[#allocation2 + $0xe7]]
        %v1715 = vstv %s1714
        %v1716 = vmul.f32 %v1715, %v1653
        %v1717 = vadd.f32 %v1636, %v1716
        %s1718 = sld [smem:[#allocation2 + $0xe8]]
        %v1719 = vstv %s1718
        %v1720 = vmul.f32 %v1719, %v1653
        %v1721 = vadd.f32 %v1644, %v1720
        %s1722 = sld [smem:[#allocation2 + $0xe9]]
        %v1723 = vstv %s1722
        %v1724 = vmul.f32 %v1723, %v1653
        %v1725 = vadd.f32 %v1652, %v1724
        %v1726 = vld [vmem:[%s279 + $0x1] sm:$0xff]
        %s1727 = sld [smem:[#allocation2 + $0xea]]
        %v1728 = vstv %s1727
        %v1729 = vmul.f32 %v1728, %v1726
        %v1730 = vadd.f32 %v1657, %v1729
        %s1731 = sld [smem:[#allocation2 + $0xeb]]
        %v1732 = vstv %s1731
        %v1733 = vmul.f32 %v1732, %v1726
        %v1734 = vadd.f32 %v1661, %v1733
        %s1735 = sld [smem:[#allocation2 + $0xec]]
        %v1736 = vstv %s1735
        %v1737 = vmul.f32 %v1736, %v1726
        %v1738 = vadd.f32 %v1665, %v1737
        %s1739 = sld [smem:[#allocation2 + $0xed]]
        %v1740 = vstv %s1739
        %v1741 = vmul.f32 %v1740, %v1726
        %v1742 = vadd.f32 %v1669, %v1741
        %s1743 = sld [smem:[#allocation2 + $0xee]]
        %v1744 = vstv %s1743
        %v1745 = vmul.f32 %v1744, %v1726
        %v1746 = vadd.f32 %v1673, %v1745
        %s1747 = sld [smem:[#allocation2 + $0xef]]
        %v1748 = vstv %s1747
        %v1749 = vmul.f32 %v1748, %v1726
        %v1750 = vadd.f32 %v1677, %v1749
        %s1751 = sld [smem:[#allocation2 + $0xf0]]
        %v1752 = vstv %s1751
        %v1753 = vmul.f32 %v1752, %v1726
        %v1754 = vadd.f32 %v1681, %v1753
        %s1755 = sld [smem:[#allocation2 + $0xf1]]
        %v1756 = vstv %s1755
        %v1757 = vmul.f32 %v1756, %v1726
        %v1758 = vadd.f32 %v1685, %v1757
        %s1759 = sld [smem:[#allocation2 + $0xf2]]
        %v1760 = vstv %s1759
        %v1761 = vmul.f32 %v1760, %v1726
        %v1762 = vadd.f32 %v1689, %v1761
        %s1763 = sld [smem:[#allocation2 + $0xf3]]
        %v1764 = vstv %s1763
        %v1765 = vmul.f32 %v1764, %v1726
        %v1766 = vadd.f32 %v1693, %v1765
        %s1767 = sld [smem:[#allocation2 + $0xf4]]
        %v1768 = vstv %s1767
        %v1769 = vmul.f32 %v1768, %v1726
        %v1770 = vadd.f32 %v1697, %v1769
        %s1771 = sld [smem:[#allocation2 + $0xf5]]
        %v1772 = vstv %s1771
        %v1773 = vmul.f32 %v1772, %v1726
        %v1774 = vadd.f32 %v1701, %v1773
        %s1775 = sld [smem:[#allocation2 + $0xf6]]
        %v1776 = vstv %s1775
        %v1777 = vmul.f32 %v1776, %v1726
        %v1778 = vadd.f32 %v1705, %v1777
        %s1779 = sld [smem:[#allocation2 + $0xf7]]
        %v1780 = vstv %s1779
        %v1781 = vmul.f32 %v1780, %v1726
        %v1782 = vadd.f32 %v1709, %v1781
        %s1783 = sld [smem:[#allocation2 + $0xf8]]
        %v1784 = vstv %s1783
        %v1785 = vmul.f32 %v1784, %v1726
        %v1786 = vadd.f32 %v1713, %v1785
        %s1787 = sld [smem:[#allocation2 + $0xf9]]
        %v1788 = vstv %s1787
        %v1789 = vmul.f32 %v1788, %v1726
        %v1790 = vadd.f32 %v1717, %v1789
        %s1791 = sld [smem:[#allocation2 + $0xfa]]
        %v1792 = vstv %s1791
        %v1793 = vmul.f32 %v1792, %v1726
        %v1794 = vadd.f32 %v1721, %v1793
        %s1795 = sld [smem:[#allocation2 + $0xfb]]
        %v1796 = vstv %s1795
        %v1797 = vmul.f32 %v1796, %v1726
        %v1798 = vadd.f32 %v1725, %v1797
        %v1799 = vld [vmem:[%s353 + $0x1] sm:$0xff]
        %s1800 = sld [smem:[#allocation2 + $0xfc]]
        %v1801 = vstv %s1800
        %v1802 = vmul.f32 %v1801, %v1799
        %v1803 = vadd.f32 %v1730, %v1802
        %s1804 = sld [smem:[#allocation2 + $0xfd]]
        %v1805 = vstv %s1804
        %v1806 = vmul.f32 %v1805, %v1799
        %v1807 = vadd.f32 %v1734, %v1806
        %s1808 = sld [smem:[#allocation2 + $0xfe]]
        %v1809 = vstv %s1808
        %v1810 = vmul.f32 %v1809, %v1799
        %v1811 = vadd.f32 %v1738, %v1810
        %s1812 = sld [smem:[#allocation2 + $0xff]]
        %v1813 = vstv %s1812
        %v1814 = vmul.f32 %v1813, %v1799
        %v1815 = vadd.f32 %v1742, %v1814
        %s1816 = sld [smem:[#allocation2 + $0x100]]
        %v1817 = vstv %s1816
        %v1818 = vmul.f32 %v1817, %v1799
        %v1819 = vadd.f32 %v1746, %v1818
        %s1820 = sld [smem:[#allocation2 + $0x101]]
        %v1821 = vstv %s1820
        %v1822 = vmul.f32 %v1821, %v1799
        %v1823 = vadd.f32 %v1750, %v1822
        %s1824 = sld [smem:[#allocation2 + $0x102]]
        %v1825 = vstv %s1824
        %v1826 = vmul.f32 %v1825, %v1799
        %v1827 = vadd.f32 %v1754, %v1826
        %s1828 = sld [smem:[#allocation2 + $0x103]]
        %v1829 = vstv %s1828
        %v1830 = vmul.f32 %v1829, %v1799
        %v1831 = vadd.f32 %v1758, %v1830
        %s1832 = sld [smem:[#allocation2 + $0x104]]
        %v1833 = vstv %s1832
        %v1834 = vmul.f32 %v1833, %v1799
        %v1835 = vadd.f32 %v1762, %v1834
        %s1836 = sld [smem:[#allocation2 + $0x105]]
        %v1837 = vstv %s1836
        %v1838 = vmul.f32 %v1837, %v1799
        %v1839 = vadd.f32 %v1766, %v1838
        %s1840 = sld [smem:[#allocation2 + $0x106]]
        %v1841 = vstv %s1840
        %v1842 = vmul.f32 %v1841, %v1799
        %v1843 = vadd.f32 %v1770, %v1842
        %s1844 = sld [smem:[#allocation2 + $0x107]]
        %v1845 = vstv %s1844
        %v1846 = vmul.f32 %v1845, %v1799
        %v1847 = vadd.f32 %v1774, %v1846
        %s1848 = sld [smem:[#allocation2 + $0x108]]
        %v1849 = vstv %s1848
        %v1850 = vmul.f32 %v1849, %v1799
        %v1851 = vadd.f32 %v1778, %v1850
        %s1852 = sld [smem:[#allocation2 + $0x109]]
        %v1853 = vstv %s1852
        %v1854 = vmul.f32 %v1853, %v1799
        %v1855 = vadd.f32 %v1782, %v1854
        %s1856 = sld [smem:[#allocation2 + $0x10a]]
        %v1857 = vstv %s1856
        %v1858 = vmul.f32 %v1857, %v1799
        %v1859 = vadd.f32 %v1786, %v1858
        %s1860 = sld [smem:[#allocation2 + $0x10b]]
        %v1861 = vstv %s1860
        %v1862 = vmul.f32 %v1861, %v1799
        %v1863 = vadd.f32 %v1790, %v1862
        %s1864 = sld [smem:[#allocation2 + $0x10c]]
        %v1865 = vstv %s1864
        %v1866 = vmul.f32 %v1865, %v1799
        %v1867 = vadd.f32 %v1794, %v1866
        %s1868 = sld [smem:[#allocation2 + $0x10d]]
        %v1869 = vstv %s1868
        %v1870 = vmul.f32 %v1869, %v1799
        %v1871 = vadd.f32 %v1798, %v1870
        %v1872 = vld [vmem:[%s427 + $0x1] sm:$0xff]
        %s1873 = sld [smem:[#allocation2 + $0x10e]]
        %v1874 = vstv %s1873
        %v1875 = vmul.f32 %v1874, %v1872
        %v1876 = vadd.f32 %v1803, %v1875
        %s1877 = sld [smem:[#allocation2 + $0x10f]]
        %v1878 = vstv %s1877
        %v1879 = vmul.f32 %v1878, %v1872
        %v1880 = vadd.f32 %v1807, %v1879
        %s1881 = sld [smem:[#allocation2 + $0x110]]
        %v1882 = vstv %s1881
        %v1883 = vmul.f32 %v1882, %v1872
        %v1884 = vadd.f32 %v1811, %v1883
        %s1885 = sld [smem:[#allocation2 + $0x111]]
        %v1886 = vstv %s1885
        %v1887 = vmul.f32 %v1886, %v1872
        %v1888 = vadd.f32 %v1815, %v1887
        %s1889 = sld [smem:[#allocation2 + $0x112]]
        %v1890 = vstv %s1889
        %v1891 = vmul.f32 %v1890, %v1872
        %v1892 = vadd.f32 %v1819, %v1891
        %s1893 = sld [smem:[#allocation2 + $0x113]]
        %v1894 = vstv %s1893
        %v1895 = vmul.f32 %v1894, %v1872
        %v1896 = vadd.f32 %v1823, %v1895
        %s1897 = sld [smem:[#allocation2 + $0x114]]
        %v1898 = vstv %s1897
        %v1899 = vmul.f32 %v1898, %v1872
        %v1900 = vadd.f32 %v1827, %v1899
        %s1901 = sld [smem:[#allocation2 + $0x115]]
        %v1902 = vstv %s1901
        %v1903 = vmul.f32 %v1902, %v1872
        %v1904 = vadd.f32 %v1831, %v1903
        %s1905 = sld [smem:[#allocation2 + $0x116]]
        %v1906 = vstv %s1905
        %v1907 = vmul.f32 %v1906, %v1872
        %v1908 = vadd.f32 %v1835, %v1907
        %s1909 = sld [smem:[#allocation2 + $0x117]]
        %v1910 = vstv %s1909
        %v1911 = vmul.f32 %v1910, %v1872
        %v1912 = vadd.f32 %v1839, %v1911
        %s1913 = sld [smem:[#allocation2 + $0x118]]
        %v1914 = vstv %s1913
        %v1915 = vmul.f32 %v1914, %v1872
        %v1916 = vadd.f32 %v1843, %v1915
        %s1917 = sld [smem:[#allocation2 + $0x119]]
        %v1918 = vstv %s1917
        %v1919 = vmul.f32 %v1918, %v1872
        %v1920 = vadd.f32 %v1847, %v1919
        %s1921 = sld [smem:[#allocation2 + $0x11a]]
        %v1922 = vstv %s1921
        %v1923 = vmul.f32 %v1922, %v1872
        %v1924 = vadd.f32 %v1851, %v1923
        %s1925 = sld [smem:[#allocation2 + $0x11b]]
        %v1926 = vstv %s1925
        %v1927 = vmul.f32 %v1926, %v1872
        %v1928 = vadd.f32 %v1855, %v1927
        %s1929 = sld [smem:[#allocation2 + $0x11c]]
        %v1930 = vstv %s1929
        %v1931 = vmul.f32 %v1930, %v1872
        %v1932 = vadd.f32 %v1859, %v1931
        %s1933 = sld [smem:[#allocation2 + $0x11d]]
        %v1934 = vstv %s1933
        %v1935 = vmul.f32 %v1934, %v1872
        %v1936 = vadd.f32 %v1863, %v1935
        %s1937 = sld [smem:[#allocation2 + $0x11e]]
        %v1938 = vstv %s1937
        %v1939 = vmul.f32 %v1938, %v1872
        %v1940 = vadd.f32 %v1867, %v1939
        %s1941 = sld [smem:[#allocation2 + $0x11f]]
        %v1942 = vstv %s1941
        %v1943 = vmul.f32 %v1942, %v1872
        %v1944 = vadd.f32 %v1871, %v1943
        %s1945 = sld [smem:[#allocation2 + $0x120]]
        %v1946 = vstv %s1945
        %v1947 = vmul.f32 %v1946, %v1653
        %1949 = vrot.lane.b32.xlu0 %v1947, 127
        %v1950 = vpop.permute.xlu0 %1949
        %v1952 = vadd.f32 %v1876, %v1950
        %s1953 = sld [smem:[#allocation2 + $0x121]]
        %v1954 = vstv %s1953
        %v1955 = vmul.f32 %v1954, %v1653
        %1957 = vrot.lane.b32.xlu0 %v1955, 127
        %v1958 = vpop.permute.xlu0 %1957
        %v1960 = vadd.f32 %v1880, %v1958
        %s1961 = sld [smem:[#allocation2 + $0x122]]
        %v1962 = vstv %s1961
        %v1963 = vmul.f32 %v1962, %v1653
        %1965 = vrot.lane.b32.xlu0 %v1963, 127
        %v1966 = vpop.permute.xlu0 %1965
        %v1968 = vadd.f32 %v1884, %v1966
        %s1969 = sld [smem:[#allocation2 + $0x123]]
        %v1970 = vstv %s1969
        %v1971 = vmul.f32 %v1970, %v1653
        %1973 = vrot.lane.b32.xlu0 %v1971, 127
        %v1974 = vpop.permute.xlu0 %1973
        %v1976 = vadd.f32 %v1888, %v1974
        %s1977 = sld [smem:[#allocation2 + $0x124]]
        %v1978 = vstv %s1977
        %v1979 = vmul.f32 %v1978, %v1653
        %1981 = vrot.lane.b32.xlu0 %v1979, 127
        %v1982 = vpop.permute.xlu0 %1981
        %v1984 = vadd.f32 %v1892, %v1982
        %s1985 = sld [smem:[#allocation2 + $0x125]]
        %v1986 = vstv %s1985
        %v1987 = vmul.f32 %v1986, %v1653
        %1989 = vrot.lane.b32.xlu0 %v1987, 127
        %v1990 = vpop.permute.xlu0 %1989
        %v1992 = vadd.f32 %v1896, %v1990
        %s1993 = sld [smem:[#allocation2 + $0x126]]
        %v1994 = vstv %s1993
        %v1995 = vmul.f32 %v1994, %v1653
        %1997 = vrot.lane.b32.xlu0 %v1995, 127
        %v1998 = vpop.permute.xlu0 %1997
        %v2000 = vadd.f32 %v1900, %v1998
        %s2001 = sld [smem:[#allocation2 + $0x127]]
        %v2002 = vstv %s2001
        %v2003 = vmul.f32 %v2002, %v1653
        %2005 = vrot.lane.b32.xlu0 %v2003, 127
        %v2006 = vpop.permute.xlu0 %2005
        %v2008 = vadd.f32 %v1904, %v2006
        %s2009 = sld [smem:[#allocation2 + $0x128]]
        %v2010 = vstv %s2009
        %v2011 = vmul.f32 %v2010, %v1653
        %2013 = vrot.lane.b32.xlu0 %v2011, 127
        %v2014 = vpop.permute.xlu0 %2013
        %v2016 = vadd.f32 %v1908, %v2014
        %s2017 = sld [smem:[#allocation2 + $0x129]]
        %v2018 = vstv %s2017
        %v2019 = vmul.f32 %v2018, %v1653
        %2021 = vrot.lane.b32.xlu0 %v2019, 127
        %v2022 = vpop.permute.xlu0 %2021
        %v2024 = vadd.f32 %v1912, %v2022
        %s2025 = sld [smem:[#allocation2 + $0x12a]]
        %v2026 = vstv %s2025
        %v2027 = vmul.f32 %v2026, %v1653
        %2029 = vrot.lane.b32.xlu0 %v2027, 127
        %v2030 = vpop.permute.xlu0 %2029
        %v2032 = vadd.f32 %v1916, %v2030
        %s2033 = sld [smem:[#allocation2 + $0x12b]]
        %v2034 = vstv %s2033
        %v2035 = vmul.f32 %v2034, %v1653
        %2037 = vrot.lane.b32.xlu0 %v2035, 127
        %v2038 = vpop.permute.xlu0 %2037
        %v2040 = vadd.f32 %v1920, %v2038
        %s2041 = sld [smem:[#allocation2 + $0x12c]]
        %v2042 = vstv %s2041
        %v2043 = vmul.f32 %v2042, %v1653
        %2045 = vrot.lane.b32.xlu0 %v2043, 127
        %v2046 = vpop.permute.xlu0 %2045
        %v2048 = vadd.f32 %v1924, %v2046
        %s2049 = sld [smem:[#allocation2 + $0x12d]]
        %v2050 = vstv %s2049
        %v2051 = vmul.f32 %v2050, %v1653
        %2053 = vrot.lane.b32.xlu0 %v2051, 127
        %v2054 = vpop.permute.xlu0 %2053
        %v2056 = vadd.f32 %v1928, %v2054
        %s2057 = sld [smem:[#allocation2 + $0x12e]]
        %v2058 = vstv %s2057
        %v2059 = vmul.f32 %v2058, %v1653
        %2061 = vrot.lane.b32.xlu0 %v2059, 127
        %v2062 = vpop.permute.xlu0 %2061
        %v2064 = vadd.f32 %v1932, %v2062
        %s2065 = sld [smem:[#allocation2 + $0x12f]]
        %v2066 = vstv %s2065
        %v2067 = vmul.f32 %v2066, %v1653
        %2069 = vrot.lane.b32.xlu0 %v2067, 127
        %v2070 = vpop.permute.xlu0 %2069
        %v2072 = vadd.f32 %v1936, %v2070
        %s2073 = sld [smem:[#allocation2 + $0x130]]
        %v2074 = vstv %s2073
        %v2075 = vmul.f32 %v2074, %v1653
        %2077 = vrot.lane.b32.xlu0 %v2075, 127
        %v2078 = vpop.permute.xlu0 %2077
        %v2080 = vadd.f32 %v1940, %v2078
        %s2081 = sld [smem:[#allocation2 + $0x131]]
        %v2082 = vstv %s2081
        %v2083 = vmul.f32 %v2082, %v1653
        %2085 = vrot.lane.b32.xlu0 %v2083, 127
        %v2086 = vpop.permute.xlu0 %2085
        %v2088 = vadd.f32 %v1944, %v2086
        %s2089 = sld [smem:[#allocation2 + $0x132]]
        %v2090 = vstv %s2089
        %v2091 = vmul.f32 %v2090, %v1726
        %2093 = vrot.lane.b32.xlu0 %v2091, 127
        %v2094 = vpop.permute.xlu0 %2093
        %v2096 = vadd.f32 %v1952, %v2094
        %s2097 = sld [smem:[#allocation2 + $0x133]]
        %v2098 = vstv %s2097
        %v2099 = vmul.f32 %v2098, %v1726
        %2101 = vrot.lane.b32.xlu0 %v2099, 127
        %v2102 = vpop.permute.xlu0 %2101
        %v2104 = vadd.f32 %v1960, %v2102
        %s2105 = sld [smem:[#allocation2 + $0x134]]
        %v2106 = vstv %s2105
        %v2107 = vmul.f32 %v2106, %v1726
        %2109 = vrot.lane.b32.xlu0 %v2107, 127
        %v2110 = vpop.permute.xlu0 %2109
        %v2112 = vadd.f32 %v1968, %v2110
        %s2113 = sld [smem:[#allocation2 + $0x135]]
        %v2114 = vstv %s2113
        %v2115 = vmul.f32 %v2114, %v1726
        %2117 = vrot.lane.b32.xlu0 %v2115, 127
        %v2118 = vpop.permute.xlu0 %2117
        %v2120 = vadd.f32 %v1976, %v2118
        %s2121 = sld [smem:[#allocation2 + $0x136]]
        %v2122 = vstv %s2121
        %v2123 = vmul.f32 %v2122, %v1726
        %2125 = vrot.lane.b32.xlu0 %v2123, 127
        %v2126 = vpop.permute.xlu0 %2125
        %v2128 = vadd.f32 %v1984, %v2126
        %s2129 = sld [smem:[#allocation2 + $0x137]]
        %v2130 = vstv %s2129
        %v2131 = vmul.f32 %v2130, %v1726
        %2133 = vrot.lane.b32.xlu0 %v2131, 127
        %v2134 = vpop.permute.xlu0 %2133
        %v2136 = vadd.f32 %v1992, %v2134
        %s2137 = sld [smem:[#allocation2 + $0x138]]
        %v2138 = vstv %s2137
        %v2139 = vmul.f32 %v2138, %v1726
        %2141 = vrot.lane.b32.xlu0 %v2139, 127
        %v2142 = vpop.permute.xlu0 %2141
        %v2144 = vadd.f32 %v2000, %v2142
        %s2145 = sld [smem:[#allocation2 + $0x139]]
        %v2146 = vstv %s2145
        %v2147 = vmul.f32 %v2146, %v1726
        %2149 = vrot.lane.b32.xlu0 %v2147, 127
        %v2150 = vpop.permute.xlu0 %2149
        %v2152 = vadd.f32 %v2008, %v2150
        %s2153 = sld [smem:[#allocation2 + $0x13a]]
        %v2154 = vstv %s2153
        %v2155 = vmul.f32 %v2154, %v1726
        %2157 = vrot.lane.b32.xlu0 %v2155, 127
        %v2158 = vpop.permute.xlu0 %2157
        %v2160 = vadd.f32 %v2016, %v2158
        %s2161 = sld [smem:[#allocation2 + $0x13b]]
        %v2162 = vstv %s2161
        %v2163 = vmul.f32 %v2162, %v1726
        %2165 = vrot.lane.b32.xlu0 %v2163, 127
        %v2166 = vpop.permute.xlu0 %2165
        %v2168 = vadd.f32 %v2024, %v2166
        %s2169 = sld [smem:[#allocation2 + $0x13c]]
        %v2170 = vstv %s2169
        %v2171 = vmul.f32 %v2170, %v1726
        %2173 = vrot.lane.b32.xlu0 %v2171, 127
        %v2174 = vpop.permute.xlu0 %2173
        %v2176 = vadd.f32 %v2032, %v2174
        %s2177 = sld [smem:[#allocation2 + $0x13d]]
        %v2178 = vstv %s2177
        %v2179 = vmul.f32 %v2178, %v1726
        %2181 = vrot.lane.b32.xlu0 %v2179, 127
        %v2182 = vpop.permute.xlu0 %2181
        %v2184 = vadd.f32 %v2040, %v2182
        %s2185 = sld [smem:[#allocation2 + $0x13e]]
        %v2186 = vstv %s2185
        %v2187 = vmul.f32 %v2186, %v1726
        %2189 = vrot.lane.b32.xlu0 %v2187, 127
        %v2190 = vpop.permute.xlu0 %2189
        %v2192 = vadd.f32 %v2048, %v2190
        %s2193 = sld [smem:[#allocation2 + $0x13f]]
        %v2194 = vstv %s2193
        %v2195 = vmul.f32 %v2194, %v1726
        %2197 = vrot.lane.b32.xlu0 %v2195, 127
        %v2198 = vpop.permute.xlu0 %2197
        %v2200 = vadd.f32 %v2056, %v2198
        %s2201 = sld [smem:[#allocation2 + $0x140]]
        %v2202 = vstv %s2201
        %v2203 = vmul.f32 %v2202, %v1726
        %2205 = vrot.lane.b32.xlu0 %v2203, 127
        %v2206 = vpop.permute.xlu0 %2205
        %v2208 = vadd.f32 %v2064, %v2206
        %s2209 = sld [smem:[#allocation2 + $0x141]]
        %v2210 = vstv %s2209
        %v2211 = vmul.f32 %v2210, %v1726
        %2213 = vrot.lane.b32.xlu0 %v2211, 127
        %v2214 = vpop.permute.xlu0 %2213
        %v2216 = vadd.f32 %v2072, %v2214
        %s2217 = sld [smem:[#allocation2 + $0x142]]
        %v2218 = vstv %s2217
        %v2219 = vmul.f32 %v2218, %v1726
        %2221 = vrot.lane.b32.xlu0 %v2219, 127
        %v2222 = vpop.permute.xlu0 %2221
        %v2224 = vadd.f32 %v2080, %v2222
        %s2225 = sld [smem:[#allocation2 + $0x143]]
        %v2226 = vstv %s2225
        %v2227 = vmul.f32 %v2226, %v1726
        %2229 = vrot.lane.b32.xlu0 %v2227, 127
        %v2230 = vpop.permute.xlu0 %2229
        %v2232 = vadd.f32 %v2088, %v2230
        %s2233 = sld [smem:[#allocation2 + $0x144]]
        %v2234 = vstv %s2233
        %v2235 = vmul.f32 %v2234, %v1799
        %2237 = vrot.lane.b32.xlu0 %v2235, 127
        %v2238 = vpop.permute.xlu0 %2237
        %v2240 = vadd.f32 %v2096, %v2238
        %s2241 = sld [smem:[#allocation2 + $0x145]]
        %v2242 = vstv %s2241
        %v2243 = vmul.f32 %v2242, %v1799
        %2245 = vrot.lane.b32.xlu0 %v2243, 127
        %v2246 = vpop.permute.xlu0 %2245
        %v2248 = vadd.f32 %v2104, %v2246
        %s2249 = sld [smem:[#allocation2 + $0x146]]
        %v2250 = vstv %s2249
        %v2251 = vmul.f32 %v2250, %v1799
        %2253 = vrot.lane.b32.xlu0 %v2251, 127
        %v2254 = vpop.permute.xlu0 %2253
        %v2256 = vadd.f32 %v2112, %v2254
        %s2257 = sld [smem:[#allocation2 + $0x147]]
        %v2258 = vstv %s2257
        %v2259 = vmul.f32 %v2258, %v1799
        %2261 = vrot.lane.b32.xlu0 %v2259, 127
        %v2262 = vpop.permute.xlu0 %2261
        %v2264 = vadd.f32 %v2120, %v2262
        %s2265 = sld [smem:[#allocation2 + $0x148]]
        %v2266 = vstv %s2265
        %v2267 = vmul.f32 %v2266, %v1799
        %2269 = vrot.lane.b32.xlu0 %v2267, 127
        %v2270 = vpop.permute.xlu0 %2269
        %v2272 = vadd.f32 %v2128, %v2270
        %s2273 = sld [smem:[#allocation2 + $0x149]]
        %v2274 = vstv %s2273
        %v2275 = vmul.f32 %v2274, %v1799
        %2277 = vrot.lane.b32.xlu0 %v2275, 127
        %v2278 = vpop.permute.xlu0 %2277
        %v2280 = vadd.f32 %v2136, %v2278
        %s2281 = sld [smem:[#allocation2 + $0x14a]]
        %v2282 = vstv %s2281
        %v2283 = vmul.f32 %v2282, %v1799
        %2285 = vrot.lane.b32.xlu0 %v2283, 127
        %v2286 = vpop.permute.xlu0 %2285
        %v2288 = vadd.f32 %v2144, %v2286
        %s2289 = sld [smem:[#allocation2 + $0x14b]]
        %v2290 = vstv %s2289
        %v2291 = vmul.f32 %v2290, %v1799
        %2293 = vrot.lane.b32.xlu0 %v2291, 127
        %v2294 = vpop.permute.xlu0 %2293
        %v2296 = vadd.f32 %v2152, %v2294
        %s2297 = sld [smem:[#allocation2 + $0x14c]]
        %v2298 = vstv %s2297
        %v2299 = vmul.f32 %v2298, %v1799
        %2301 = vrot.lane.b32.xlu0 %v2299, 127
        %v2302 = vpop.permute.xlu0 %2301
        %v2304 = vadd.f32 %v2160, %v2302
        %s2305 = sld [smem:[#allocation2 + $0x14d]]
        %v2306 = vstv %s2305
        %v2307 = vmul.f32 %v2306, %v1799
        %2309 = vrot.lane.b32.xlu0 %v2307, 127
        %v2310 = vpop.permute.xlu0 %2309
        %v2312 = vadd.f32 %v2168, %v2310
        %s2313 = sld [smem:[#allocation2 + $0x14e]]
        %v2314 = vstv %s2313
        %v2315 = vmul.f32 %v2314, %v1799
        %2317 = vrot.lane.b32.xlu0 %v2315, 127
        %v2318 = vpop.permute.xlu0 %2317
        %v2320 = vadd.f32 %v2176, %v2318
        %s2321 = sld [smem:[#allocation2 + $0x14f]]
        %v2322 = vstv %s2321
        %v2323 = vmul.f32 %v2322, %v1799
        %2325 = vrot.lane.b32.xlu0 %v2323, 127
        %v2326 = vpop.permute.xlu0 %2325
        %v2328 = vadd.f32 %v2184, %v2326
        %s2329 = sld [smem:[#allocation2 + $0x150]]
        %v2330 = vstv %s2329
        %v2331 = vmul.f32 %v2330, %v1799
        %2333 = vrot.lane.b32.xlu0 %v2331, 127
        %v2334 = vpop.permute.xlu0 %2333
        %v2336 = vadd.f32 %v2192, %v2334
        %s2337 = sld [smem:[#allocation2 + $0x151]]
        %v2338 = vstv %s2337
        %v2339 = vmul.f32 %v2338, %v1799
        %2341 = vrot.lane.b32.xlu0 %v2339, 127
        %v2342 = vpop.permute.xlu0 %2341
        %v2344 = vadd.f32 %v2200, %v2342
        %s2345 = sld [smem:[#allocation2 + $0x152]]
        %v2346 = vstv %s2345
        %v2347 = vmul.f32 %v2346, %v1799
        %2349 = vrot.lane.b32.xlu0 %v2347, 127
        %v2350 = vpop.permute.xlu0 %2349
        %v2352 = vadd.f32 %v2208, %v2350
        %s2353 = sld [smem:[#allocation2 + $0x153]]
        %v2354 = vstv %s2353
        %v2355 = vmul.f32 %v2354, %v1799
        %2357 = vrot.lane.b32.xlu0 %v2355, 127
        %v2358 = vpop.permute.xlu0 %2357
        %v2360 = vadd.f32 %v2216, %v2358
        %s2361 = sld [smem:[#allocation2 + $0x154]]
        %v2362 = vstv %s2361
        %v2363 = vmul.f32 %v2362, %v1799
        %2365 = vrot.lane.b32.xlu0 %v2363, 127
        %v2366 = vpop.permute.xlu0 %2365
        %v2368 = vadd.f32 %v2224, %v2366
        %s2369 = sld [smem:[#allocation2 + $0x155]]
        %v2370 = vstv %s2369
        %v2371 = vmul.f32 %v2370, %v1799
        %2373 = vrot.lane.b32.xlu0 %v2371, 127
        %v2374 = vpop.permute.xlu0 %2373
        %v2376 = vadd.f32 %v2232, %v2374
        %s2377 = sld [smem:[#allocation2 + $0x156]]
        %v2378 = vstv %s2377
        %v2379 = vmul.f32 %v2378, %v1872
        %2381 = vrot.lane.b32.xlu0 %v2379, 127
        %v2382 = vpop.permute.xlu0 %2381
        %v2384 = vadd.f32 %v2240, %v2382
        %s2385 = sld [smem:[#allocation2 + $0x157]]
        %v2386 = vstv %s2385
        %v2387 = vmul.f32 %v2386, %v1872
        %2389 = vrot.lane.b32.xlu0 %v2387, 127
        %v2390 = vpop.permute.xlu0 %2389
        %v2392 = vadd.f32 %v2248, %v2390
        %s2393 = sld [smem:[#allocation2 + $0x158]]
        %v2394 = vstv %s2393
        %v2395 = vmul.f32 %v2394, %v1872
        %2397 = vrot.lane.b32.xlu0 %v2395, 127
        %v2398 = vpop.permute.xlu0 %2397
        %v2400 = vadd.f32 %v2256, %v2398
        %s2401 = sld [smem:[#allocation2 + $0x159]]
        %v2402 = vstv %s2401
        %v2403 = vmul.f32 %v2402, %v1872
        %2405 = vrot.lane.b32.xlu0 %v2403, 127
        %v2406 = vpop.permute.xlu0 %2405
        %v2408 = vadd.f32 %v2264, %v2406
        %s2409 = sld [smem:[#allocation2 + $0x15a]]
        %v2410 = vstv %s2409
        %v2411 = vmul.f32 %v2410, %v1872
        %2413 = vrot.lane.b32.xlu0 %v2411, 127
        %v2414 = vpop.permute.xlu0 %2413
        %v2416 = vadd.f32 %v2272, %v2414
        %s2417 = sld [smem:[#allocation2 + $0x15b]]
        %v2418 = vstv %s2417
        %v2419 = vmul.f32 %v2418, %v1872
        %2421 = vrot.lane.b32.xlu0 %v2419, 127
        %v2422 = vpop.permute.xlu0 %2421
        %v2424 = vadd.f32 %v2280, %v2422
        %s2425 = sld [smem:[#allocation2 + $0x15c]]
        %v2426 = vstv %s2425
        %v2427 = vmul.f32 %v2426, %v1872
        %2429 = vrot.lane.b32.xlu0 %v2427, 127
        %v2430 = vpop.permute.xlu0 %2429
        %v2432 = vadd.f32 %v2288, %v2430
        %s2433 = sld [smem:[#allocation2 + $0x15d]]
        %v2434 = vstv %s2433
        %v2435 = vmul.f32 %v2434, %v1872
        %2437 = vrot.lane.b32.xlu0 %v2435, 127
        %v2438 = vpop.permute.xlu0 %2437
        %v2440 = vadd.f32 %v2296, %v2438
        %s2441 = sld [smem:[#allocation2 + $0x15e]]
        %v2442 = vstv %s2441
        %v2443 = vmul.f32 %v2442, %v1872
        %2445 = vrot.lane.b32.xlu0 %v2443, 127
        %v2446 = vpop.permute.xlu0 %2445
        %v2448 = vadd.f32 %v2304, %v2446
        %s2449 = sld [smem:[#allocation2 + $0x15f]]
        %v2450 = vstv %s2449
        %v2451 = vmul.f32 %v2450, %v1872
        %2453 = vrot.lane.b32.xlu0 %v2451, 127
        %v2454 = vpop.permute.xlu0 %2453
        %v2456 = vadd.f32 %v2312, %v2454
        %s2457 = sld [smem:[#allocation2 + $0x160]]
        %v2458 = vstv %s2457
        %v2459 = vmul.f32 %v2458, %v1872
        %2461 = vrot.lane.b32.xlu0 %v2459, 127
        %v2462 = vpop.permute.xlu0 %2461
        %v2464 = vadd.f32 %v2320, %v2462
        %s2465 = sld [smem:[#allocation2 + $0x161]]
        %v2466 = vstv %s2465
        %v2467 = vmul.f32 %v2466, %v1872
        %2469 = vrot.lane.b32.xlu0 %v2467, 127
        %v2470 = vpop.permute.xlu0 %2469
        %v2472 = vadd.f32 %v2328, %v2470
        %s2473 = sld [smem:[#allocation2 + $0x162]]
        %v2474 = vstv %s2473
        %v2475 = vmul.f32 %v2474, %v1872
        %2477 = vrot.lane.b32.xlu0 %v2475, 127
        %v2478 = vpop.permute.xlu0 %2477
        %v2480 = vadd.f32 %v2336, %v2478
        %s2481 = sld [smem:[#allocation2 + $0x163]]
        %v2482 = vstv %s2481
        %v2483 = vmul.f32 %v2482, %v1872
        %2485 = vrot.lane.b32.xlu0 %v2483, 127
        %v2486 = vpop.permute.xlu0 %2485
        %v2488 = vadd.f32 %v2344, %v2486
        %s2489 = sld [smem:[#allocation2 + $0x164]]
        %v2490 = vstv %s2489
        %v2491 = vmul.f32 %v2490, %v1872
        %2493 = vrot.lane.b32.xlu0 %v2491, 127
        %v2494 = vpop.permute.xlu0 %2493
        %v2496 = vadd.f32 %v2352, %v2494
        %s2497 = sld [smem:[#allocation2 + $0x165]]
        %v2498 = vstv %s2497
        %v2499 = vmul.f32 %v2498, %v1872
        %2501 = vrot.lane.b32.xlu0 %v2499, 127
        %v2502 = vpop.permute.xlu0 %2501
        %v2504 = vadd.f32 %v2360, %v2502
        %s2505 = sld [smem:[#allocation2 + $0x166]]
        %v2506 = vstv %s2505
        %v2507 = vmul.f32 %v2506, %v1872
        %2509 = vrot.lane.b32.xlu0 %v2507, 127
        %v2510 = vpop.permute.xlu0 %2509
        %v2512 = vadd.f32 %v2368, %v2510
        %s2513 = sld [smem:[#allocation2 + $0x167]]
        %v2514 = vstv %s2513
        %v2515 = vmul.f32 %v2514, %v1872
        %2517 = vrot.lane.b32.xlu0 %v2515, 127
        %v2518 = vpop.permute.xlu0 %2517
        %v2520 = vadd.f32 %v2376, %v2518
        %s2521 = sld [smem:[#allocation2 + $0x168]]
        %v2522 = vstv %s2521
        %v2523 = vmul.f32 %v2522, %v1653
        %2525 = vrot.lane.b32.xlu0 %v2523, 126
        %v2526 = vpop.permute.xlu0 %2525
        %v2528 = vadd.f32 %v2384, %v2526
        %s2529 = sld [smem:[#allocation2 + $0x169]]
        %v2530 = vstv %s2529
        %v2531 = vmul.f32 %v2530, %v1653
        %2533 = vrot.lane.b32.xlu0 %v2531, 126
        %v2534 = vpop.permute.xlu0 %2533
        %v2536 = vadd.f32 %v2392, %v2534
        %s2537 = sld [smem:[#allocation2 + $0x16a]]
        %v2538 = vstv %s2537
        %v2539 = vmul.f32 %v2538, %v1653
        %2541 = vrot.lane.b32.xlu0 %v2539, 126
        %v2542 = vpop.permute.xlu0 %2541
        %v2544 = vadd.f32 %v2400, %v2542
        %s2545 = sld [smem:[#allocation2 + $0x16b]]
        %v2546 = vstv %s2545
        %v2547 = vmul.f32 %v2546, %v1653
        %2549 = vrot.lane.b32.xlu0 %v2547, 126
        %v2550 = vpop.permute.xlu0 %2549
        %v2552 = vadd.f32 %v2408, %v2550
        %s2553 = sld [smem:[#allocation2 + $0x16c]]
        %v2554 = vstv %s2553
        %v2555 = vmul.f32 %v2554, %v1653
        %2557 = vrot.lane.b32.xlu0 %v2555, 126
        %v2558 = vpop.permute.xlu0 %2557
        %v2560 = vadd.f32 %v2416, %v2558
        %s2561 = sld [smem:[#allocation2 + $0x16d]]
        %v2562 = vstv %s2561
        %v2563 = vmul.f32 %v2562, %v1653
        %2565 = vrot.lane.b32.xlu0 %v2563, 126
        %v2566 = vpop.permute.xlu0 %2565
        %v2568 = vadd.f32 %v2424, %v2566
        %s2569 = sld [smem:[#allocation2 + $0x16e]]
        %v2570 = vstv %s2569
        %v2571 = vmul.f32 %v2570, %v1653
        %2573 = vrot.lane.b32.xlu0 %v2571, 126
        %v2574 = vpop.permute.xlu0 %2573
        %v2576 = vadd.f32 %v2432, %v2574
        %s2577 = sld [smem:[#allocation2 + $0x16f]]
        %v2578 = vstv %s2577
        %v2579 = vmul.f32 %v2578, %v1653
        %2581 = vrot.lane.b32.xlu0 %v2579, 126
        %v2582 = vpop.permute.xlu0 %2581
        %v2584 = vadd.f32 %v2440, %v2582
        %s2585 = sld [smem:[#allocation2 + $0x170]]
        %v2586 = vstv %s2585
        %v2587 = vmul.f32 %v2586, %v1653
        %2589 = vrot.lane.b32.xlu0 %v2587, 126
        %v2590 = vpop.permute.xlu0 %2589
        %v2592 = vadd.f32 %v2448, %v2590
        %s2593 = sld [smem:[#allocation2 + $0x171]]
        %v2594 = vstv %s2593
        %v2595 = vmul.f32 %v2594, %v1653
        %2597 = vrot.lane.b32.xlu0 %v2595, 126
        %v2598 = vpop.permute.xlu0 %2597
        %v2600 = vadd.f32 %v2456, %v2598
        %s2601 = sld [smem:[#allocation2 + $0x172]]
        %v2602 = vstv %s2601
        %v2603 = vmul.f32 %v2602, %v1653
        %2605 = vrot.lane.b32.xlu0 %v2603, 126
        %v2606 = vpop.permute.xlu0 %2605
        %v2608 = vadd.f32 %v2464, %v2606
        %s2609 = sld [smem:[#allocation2 + $0x173]]
        %v2610 = vstv %s2609
        %v2611 = vmul.f32 %v2610, %v1653
        %2613 = vrot.lane.b32.xlu0 %v2611, 126
        %v2614 = vpop.permute.xlu0 %2613
        %v2616 = vadd.f32 %v2472, %v2614
        %s2617 = sld [smem:[#allocation2 + $0x174]]
        %v2618 = vstv %s2617
        %v2619 = vmul.f32 %v2618, %v1653
        %2621 = vrot.lane.b32.xlu0 %v2619, 126
        %v2622 = vpop.permute.xlu0 %2621
        %v2624 = vadd.f32 %v2480, %v2622
        %s2625 = sld [smem:[#allocation2 + $0x175]]
        %v2626 = vstv %s2625
        %v2627 = vmul.f32 %v2626, %v1653
        %2629 = vrot.lane.b32.xlu0 %v2627, 126
        %v2630 = vpop.permute.xlu0 %2629
        %v2632 = vadd.f32 %v2488, %v2630
        %s2633 = sld [smem:[#allocation2 + $0x176]]
        %v2634 = vstv %s2633
        %v2635 = vmul.f32 %v2634, %v1653
        %2637 = vrot.lane.b32.xlu0 %v2635, 126
        %v2638 = vpop.permute.xlu0 %2637
        %v2640 = vadd.f32 %v2496, %v2638
        %s2641 = sld [smem:[#allocation2 + $0x177]]
        %v2642 = vstv %s2641
        %v2643 = vmul.f32 %v2642, %v1653
        %2645 = vrot.lane.b32.xlu0 %v2643, 126
        %v2646 = vpop.permute.xlu0 %2645
        %v2648 = vadd.f32 %v2504, %v2646
        %s2649 = sld [smem:[#allocation2 + $0x178]]
        %v2650 = vstv %s2649
        %v2651 = vmul.f32 %v2650, %v1653
        %2653 = vrot.lane.b32.xlu0 %v2651, 126
        %v2654 = vpop.permute.xlu0 %2653
        %v2656 = vadd.f32 %v2512, %v2654
        %s2657 = sld [smem:[#allocation2 + $0x179]]
        %v2658 = vstv %s2657
        %v2659 = vmul.f32 %v2658, %v1653
        %2661 = vrot.lane.b32.xlu0 %v2659, 126
        %v2662 = vpop.permute.xlu0 %2661
        %v2664 = vadd.f32 %v2520, %v2662
        %s2665 = sld [smem:[#allocation2 + $0x17a]]
        %v2666 = vstv %s2665
        %v2667 = vmul.f32 %v2666, %v1726
        %2669 = vrot.lane.b32.xlu0 %v2667, 126
        %v2670 = vpop.permute.xlu0 %2669
        %v2672 = vadd.f32 %v2528, %v2670
        %s2673 = sld [smem:[#allocation2 + $0x17b]]
        %v2674 = vstv %s2673
        %v2675 = vmul.f32 %v2674, %v1726
        %2677 = vrot.lane.b32.xlu0 %v2675, 126
        %v2678 = vpop.permute.xlu0 %2677
        %v2680 = vadd.f32 %v2536, %v2678
        %s2681 = sld [smem:[#allocation2 + $0x17c]]
        %v2682 = vstv %s2681
        %v2683 = vmul.f32 %v2682, %v1726
        %2685 = vrot.lane.b32.xlu0 %v2683, 126
        %v2686 = vpop.permute.xlu0 %2685
        %v2688 = vadd.f32 %v2544, %v2686
        %s2689 = sld [smem:[#allocation2 + $0x17d]]
        %v2690 = vstv %s2689
        %v2691 = vmul.f32 %v2690, %v1726
        %2693 = vrot.lane.b32.xlu0 %v2691, 126
        %v2694 = vpop.permute.xlu0 %2693
        %v2696 = vadd.f32 %v2552, %v2694
        %s2697 = sld [smem:[#allocation2 + $0x17e]]
        %v2698 = vstv %s2697
        %v2699 = vmul.f32 %v2698, %v1726
        %2701 = vrot.lane.b32.xlu0 %v2699, 126
        %v2702 = vpop.permute.xlu0 %2701
        %v2704 = vadd.f32 %v2560, %v2702
        %s2705 = sld [smem:[#allocation2 + $0x17f]]
        %v2706 = vstv %s2705
        %v2707 = vmul.f32 %v2706, %v1726
        %2709 = vrot.lane.b32.xlu0 %v2707, 126
        %v2710 = vpop.permute.xlu0 %2709
        %v2712 = vadd.f32 %v2568, %v2710
        %s2713 = sld [smem:[#allocation2 + $0x180]]
        %v2714 = vstv %s2713
        %v2715 = vmul.f32 %v2714, %v1726
        %2717 = vrot.lane.b32.xlu0 %v2715, 126
        %v2718 = vpop.permute.xlu0 %2717
        %v2720 = vadd.f32 %v2576, %v2718
        %s2721 = sld [smem:[#allocation2 + $0x181]]
        %v2722 = vstv %s2721
        %v2723 = vmul.f32 %v2722, %v1726
        %2725 = vrot.lane.b32.xlu0 %v2723, 126
        %v2726 = vpop.permute.xlu0 %2725
        %v2728 = vadd.f32 %v2584, %v2726
        %s2729 = sld [smem:[#allocation2 + $0x182]]
        %v2730 = vstv %s2729
        %v2731 = vmul.f32 %v2730, %v1726
        %2733 = vrot.lane.b32.xlu0 %v2731, 126
        %v2734 = vpop.permute.xlu0 %2733
        %v2736 = vadd.f32 %v2592, %v2734
        %s2737 = sld [smem:[#allocation2 + $0x183]]
        %v2738 = vstv %s2737
        %v2739 = vmul.f32 %v2738, %v1726
        %2741 = vrot.lane.b32.xlu0 %v2739, 126
        %v2742 = vpop.permute.xlu0 %2741
        %v2744 = vadd.f32 %v2600, %v2742
        %s2745 = sld [smem:[#allocation2 + $0x184]]
        %v2746 = vstv %s2745
        %v2747 = vmul.f32 %v2746, %v1726
        %2749 = vrot.lane.b32.xlu0 %v2747, 126
        %v2750 = vpop.permute.xlu0 %2749
        %v2752 = vadd.f32 %v2608, %v2750
        %s2753 = sld [smem:[#allocation2 + $0x185]]
        %v2754 = vstv %s2753
        %v2755 = vmul.f32 %v2754, %v1726
        %2757 = vrot.lane.b32.xlu0 %v2755, 126
        %v2758 = vpop.permute.xlu0 %2757
        %v2760 = vadd.f32 %v2616, %v2758
        %s2761 = sld [smem:[#allocation2 + $0x186]]
        %v2762 = vstv %s2761
        %v2763 = vmul.f32 %v2762, %v1726
        %2765 = vrot.lane.b32.xlu0 %v2763, 126
        %v2766 = vpop.permute.xlu0 %2765
        %v2768 = vadd.f32 %v2624, %v2766
        %s2769 = sld [smem:[#allocation2 + $0x187]]
        %v2770 = vstv %s2769
        %v2771 = vmul.f32 %v2770, %v1726
        %2773 = vrot.lane.b32.xlu0 %v2771, 126
        %v2774 = vpop.permute.xlu0 %2773
        %v2776 = vadd.f32 %v2632, %v2774
        %s2777 = sld [smem:[#allocation2 + $0x188]]
        %v2778 = vstv %s2777
        %v2779 = vmul.f32 %v2778, %v1726
        %2781 = vrot.lane.b32.xlu0 %v2779, 126
        %v2782 = vpop.permute.xlu0 %2781
        %v2784 = vadd.f32 %v2640, %v2782
        %s2785 = sld [smem:[#allocation2 + $0x189]]
        %v2786 = vstv %s2785
        %v2787 = vmul.f32 %v2786, %v1726
        %2789 = vrot.lane.b32.xlu0 %v2787, 126
        %v2790 = vpop.permute.xlu0 %2789
        %v2792 = vadd.f32 %v2648, %v2790
        %s2793 = sld [smem:[#allocation2 + $0x18a]]
        %v2794 = vstv %s2793
        %v2795 = vmul.f32 %v2794, %v1726
        %2797 = vrot.lane.b32.xlu0 %v2795, 126
        %v2798 = vpop.permute.xlu0 %2797
        %v2800 = vadd.f32 %v2656, %v2798
        %s2801 = sld [smem:[#allocation2 + $0x18b]]
        %v2802 = vstv %s2801
        %v2803 = vmul.f32 %v2802, %v1726
        %2805 = vrot.lane.b32.xlu0 %v2803, 126
        %v2806 = vpop.permute.xlu0 %2805
        %v2808 = vadd.f32 %v2664, %v2806
        %s2809 = sld [smem:[#allocation2 + $0x18c]]
        %v2810 = vstv %s2809
        %v2811 = vmul.f32 %v2810, %v1799
        %2813 = vrot.lane.b32.xlu0 %v2811, 126
        %v2814 = vpop.permute.xlu0 %2813
        %v2816 = vadd.f32 %v2672, %v2814
        %s2817 = sld [smem:[#allocation2 + $0x18d]]
        %v2818 = vstv %s2817
        %v2819 = vmul.f32 %v2818, %v1799
        %2821 = vrot.lane.b32.xlu0 %v2819, 126
        %v2822 = vpop.permute.xlu0 %2821
        %v2824 = vadd.f32 %v2680, %v2822
        %s2825 = sld [smem:[#allocation2 + $0x18e]]
        %v2826 = vstv %s2825
        %v2827 = vmul.f32 %v2826, %v1799
        %2829 = vrot.lane.b32.xlu0 %v2827, 126
        %v2830 = vpop.permute.xlu0 %2829
        %v2832 = vadd.f32 %v2688, %v2830
        %s2833 = sld [smem:[#allocation2 + $0x18f]]
        %v2834 = vstv %s2833
        %v2835 = vmul.f32 %v2834, %v1799
        %2837 = vrot.lane.b32.xlu0 %v2835, 126
        %v2838 = vpop.permute.xlu0 %2837
        %v2840 = vadd.f32 %v2696, %v2838
        %s2841 = sld [smem:[#allocation2 + $0x190]]
        %v2842 = vstv %s2841
        %v2843 = vmul.f32 %v2842, %v1799
        %2845 = vrot.lane.b32.xlu0 %v2843, 126
        %v2846 = vpop.permute.xlu0 %2845
        %v2848 = vadd.f32 %v2704, %v2846
        %s2849 = sld [smem:[#allocation2 + $0x191]]
        %v2850 = vstv %s2849
        %v2851 = vmul.f32 %v2850, %v1799
        %2853 = vrot.lane.b32.xlu0 %v2851, 126
        %v2854 = vpop.permute.xlu0 %2853
        %v2856 = vadd.f32 %v2712, %v2854
        %s2857 = sld [smem:[#allocation2 + $0x192]]
        %v2858 = vstv %s2857
        %v2859 = vmul.f32 %v2858, %v1799
        %2861 = vrot.lane.b32.xlu0 %v2859, 126
        %v2862 = vpop.permute.xlu0 %2861
        %v2864 = vadd.f32 %v2720, %v2862
        %s2865 = sld [smem:[#allocation2 + $0x193]]
        %v2866 = vstv %s2865
        %v2867 = vmul.f32 %v2866, %v1799
        %2869 = vrot.lane.b32.xlu0 %v2867, 126
        %v2870 = vpop.permute.xlu0 %2869
        %v2872 = vadd.f32 %v2728, %v2870
        %s2873 = sld [smem:[#allocation2 + $0x194]]
        %v2874 = vstv %s2873
        %v2875 = vmul.f32 %v2874, %v1799
        %2877 = vrot.lane.b32.xlu0 %v2875, 126
        %v2878 = vpop.permute.xlu0 %2877
        %v2880 = vadd.f32 %v2736, %v2878
        %s2881 = sld [smem:[#allocation2 + $0x195]]
        %v2882 = vstv %s2881
        %v2883 = vmul.f32 %v2882, %v1799
        %2885 = vrot.lane.b32.xlu0 %v2883, 126
        %v2886 = vpop.permute.xlu0 %2885
        %v2888 = vadd.f32 %v2744, %v2886
        %s2889 = sld [smem:[#allocation2 + $0x196]]
        %v2890 = vstv %s2889
        %v2891 = vmul.f32 %v2890, %v1799
        %2893 = vrot.lane.b32.xlu0 %v2891, 126
        %v2894 = vpop.permute.xlu0 %2893
        %v2896 = vadd.f32 %v2752, %v2894
        %s2897 = sld [smem:[#allocation2 + $0x197]]
        %v2898 = vstv %s2897
        %v2899 = vmul.f32 %v2898, %v1799
        %2901 = vrot.lane.b32.xlu0 %v2899, 126
        %v2902 = vpop.permute.xlu0 %2901
        %v2904 = vadd.f32 %v2760, %v2902
        %s2905 = sld [smem:[#allocation2 + $0x198]]
        %v2906 = vstv %s2905
        %v2907 = vmul.f32 %v2906, %v1799
        %2909 = vrot.lane.b32.xlu0 %v2907, 126
        %v2910 = vpop.permute.xlu0 %2909
        %v2912 = vadd.f32 %v2768, %v2910
        %s2913 = sld [smem:[#allocation2 + $0x199]]
        %v2914 = vstv %s2913
        %v2915 = vmul.f32 %v2914, %v1799
        %2917 = vrot.lane.b32.xlu0 %v2915, 126
        %v2918 = vpop.permute.xlu0 %2917
        %v2920 = vadd.f32 %v2776, %v2918
        %s2921 = sld [smem:[#allocation2 + $0x19a]]
        %v2922 = vstv %s2921
        %v2923 = vmul.f32 %v2922, %v1799
        %2925 = vrot.lane.b32.xlu0 %v2923, 126
        %v2926 = vpop.permute.xlu0 %2925
        %v2928 = vadd.f32 %v2784, %v2926
        %s2929 = sld [smem:[#allocation2 + $0x19b]]
        %v2930 = vstv %s2929
        %v2931 = vmul.f32 %v2930, %v1799
        %2933 = vrot.lane.b32.xlu0 %v2931, 126
        %v2934 = vpop.permute.xlu0 %2933
        %v2936 = vadd.f32 %v2792, %v2934
        %s2937 = sld [smem:[#allocation2 + $0x19c]]
        %v2938 = vstv %s2937
        %v2939 = vmul.f32 %v2938, %v1799
        %2941 = vrot.lane.b32.xlu0 %v2939, 126
        %v2942 = vpop.permute.xlu0 %2941
        %v2944 = vadd.f32 %v2800, %v2942
        %s2945 = sld [smem:[#allocation2 + $0x19d]]
        %v2946 = vstv %s2945
        %v2947 = vmul.f32 %v2946, %v1799
        %2949 = vrot.lane.b32.xlu0 %v2947, 126
        %v2950 = vpop.permute.xlu0 %2949
        %v2952 = vadd.f32 %v2808, %v2950
        %s2953 = sld [smem:[#allocation2 + $0x19e]]
        %v2954 = vstv %s2953
        %v2955 = vmul.f32 %v2954, %v1872
        %2957 = vrot.lane.b32.xlu0 %v2955, 126
        %v2958 = vpop.permute.xlu0 %2957
        %v2960 = vadd.f32 %v2816, %v2958
        %s2961 = sld [smem:[#allocation2 + $0x19f]]
        %v2962 = vstv %s2961
        %v2963 = vmul.f32 %v2962, %v1872
        %2965 = vrot.lane.b32.xlu0 %v2963, 126
        %v2966 = vpop.permute.xlu0 %2965
        %v2968 = vadd.f32 %v2824, %v2966
        %s2969 = sld [smem:[#allocation2 + $0x1a0]]
        %v2970 = vstv %s2969
        %v2971 = vmul.f32 %v2970, %v1872
        %2973 = vrot.lane.b32.xlu0 %v2971, 126
        %v2974 = vpop.permute.xlu0 %2973
        %v2976 = vadd.f32 %v2832, %v2974
        %s2977 = sld [smem:[#allocation2 + $0x1a1]]
        %v2978 = vstv %s2977
        %v2979 = vmul.f32 %v2978, %v1872
        %2981 = vrot.lane.b32.xlu0 %v2979, 126
        %v2982 = vpop.permute.xlu0 %2981
        %v2984 = vadd.f32 %v2840, %v2982
        %s2985 = sld [smem:[#allocation2 + $0x1a2]]
        %v2986 = vstv %s2985
        %v2987 = vmul.f32 %v2986, %v1872
        %2989 = vrot.lane.b32.xlu0 %v2987, 126
        %v2990 = vpop.permute.xlu0 %2989
        %v2992 = vadd.f32 %v2848, %v2990
        %s2993 = sld [smem:[#allocation2 + $0x1a3]]
        %v2994 = vstv %s2993
        %v2995 = vmul.f32 %v2994, %v1872
        %2997 = vrot.lane.b32.xlu0 %v2995, 126
        %v2998 = vpop.permute.xlu0 %2997
        %v3000 = vadd.f32 %v2856, %v2998
        %s3001 = sld [smem:[#allocation2 + $0x1a4]]
        %v3002 = vstv %s3001
        %v3003 = vmul.f32 %v3002, %v1872
        %3005 = vrot.lane.b32.xlu0 %v3003, 126
        %v3006 = vpop.permute.xlu0 %3005
        %v3008 = vadd.f32 %v2864, %v3006
        %s3009 = sld [smem:[#allocation2 + $0x1a5]]
        %v3010 = vstv %s3009
        %v3011 = vmul.f32 %v3010, %v1872
        %3013 = vrot.lane.b32.xlu0 %v3011, 126
        %v3014 = vpop.permute.xlu0 %3013
        %v3016 = vadd.f32 %v2872, %v3014
        %s3017 = sld [smem:[#allocation2 + $0x1a6]]
        %v3018 = vstv %s3017
        %v3019 = vmul.f32 %v3018, %v1872
        %3021 = vrot.lane.b32.xlu0 %v3019, 126
        %v3022 = vpop.permute.xlu0 %3021
        %v3024 = vadd.f32 %v2880, %v3022
        %s3025 = sld [smem:[#allocation2 + $0x1a7]]
        %v3026 = vstv %s3025
        %v3027 = vmul.f32 %v3026, %v1872
        %3029 = vrot.lane.b32.xlu0 %v3027, 126
        %v3030 = vpop.permute.xlu0 %3029
        %v3032 = vadd.f32 %v2888, %v3030
        %s3033 = sld [smem:[#allocation2 + $0x1a8]]
        %v3034 = vstv %s3033
        %v3035 = vmul.f32 %v3034, %v1872
        %3037 = vrot.lane.b32.xlu0 %v3035, 126
        %v3038 = vpop.permute.xlu0 %3037
        %v3040 = vadd.f32 %v2896, %v3038
        %s3041 = sld [smem:[#allocation2 + $0x1a9]]
        %v3042 = vstv %s3041
        %v3043 = vmul.f32 %v3042, %v1872
        %3045 = vrot.lane.b32.xlu0 %v3043, 126
        %v3046 = vpop.permute.xlu0 %3045
        %v3048 = vadd.f32 %v2904, %v3046
        %s3049 = sld [smem:[#allocation2 + $0x1aa]]
        %v3050 = vstv %s3049
        %v3051 = vmul.f32 %v3050, %v1872
        %3053 = vrot.lane.b32.xlu0 %v3051, 126
        %v3054 = vpop.permute.xlu0 %3053
        %v3056 = vadd.f32 %v2912, %v3054
        %s3057 = sld [smem:[#allocation2 + $0x1ab]]
        %v3058 = vstv %s3057
        %v3059 = vmul.f32 %v3058, %v1872
        %3061 = vrot.lane.b32.xlu0 %v3059, 126
        %v3062 = vpop.permute.xlu0 %3061
        %v3064 = vadd.f32 %v2920, %v3062
        %s3065 = sld [smem:[#allocation2 + $0x1ac]]
        %v3066 = vstv %s3065
        %v3067 = vmul.f32 %v3066, %v1872
        %3069 = vrot.lane.b32.xlu0 %v3067, 126
        %v3070 = vpop.permute.xlu0 %3069
        %v3072 = vadd.f32 %v2928, %v3070
        %s3073 = sld [smem:[#allocation2 + $0x1ad]]
        %v3074 = vstv %s3073
        %v3075 = vmul.f32 %v3074, %v1872
        %3077 = vrot.lane.b32.xlu0 %v3075, 126
        %v3078 = vpop.permute.xlu0 %3077
        %v3080 = vadd.f32 %v2936, %v3078
        %s3081 = sld [smem:[#allocation2 + $0x1ae]]
        %v3082 = vstv %s3081
        %v3083 = vmul.f32 %v3082, %v1872
        %3085 = vrot.lane.b32.xlu0 %v3083, 126
        %v3086 = vpop.permute.xlu0 %3085
        %v3088 = vadd.f32 %v2944, %v3086
        %s3089 = sld [smem:[#allocation2 + $0x1af]]
        %v3090 = vstv %s3089
        %v3091 = vmul.f32 %v3090, %v1872
        %3093 = vrot.lane.b32.xlu0 %v3091, 126
        %v3094 = vpop.permute.xlu0 %3093
        %v3096 = vadd.f32 %v2952, %v3094
        %v3097 = vld [vmem:[%s223 + $0x2] sm:$0xff]
        %s3098 = sld [smem:[#allocation2 + $0x1b0]]
        %v3099 = vstv %s3098
        %v3100 = vmul.f32 %v3099, %v3097
        %v3101 = vadd.f32 %v2960, %v3100
        %s3102 = sld [smem:[#allocation2 + $0x1b1]]
        %v3103 = vstv %s3102
        %v3104 = vmul.f32 %v3103, %v3097
        %v3105 = vadd.f32 %v2968, %v3104
        %s3106 = sld [smem:[#allocation2 + $0x1b2]]
        %v3107 = vstv %s3106
        %v3108 = vmul.f32 %v3107, %v3097
        %v3109 = vadd.f32 %v2976, %v3108
        %s3110 = sld [smem:[#allocation2 + $0x1b3]]
        %v3111 = vstv %s3110
        %v3112 = vmul.f32 %v3111, %v3097
        %v3113 = vadd.f32 %v2984, %v3112
        %s3114 = sld [smem:[#allocation2 + $0x1b4]]
        %v3115 = vstv %s3114
        %v3116 = vmul.f32 %v3115, %v3097
        %v3117 = vadd.f32 %v2992, %v3116
        %s3118 = sld [smem:[#allocation2 + $0x1b5]]
        %v3119 = vstv %s3118
        %v3120 = vmul.f32 %v3119, %v3097
        %v3121 = vadd.f32 %v3000, %v3120
        %s3122 = sld [smem:[#allocation2 + $0x1b6]]
        %v3123 = vstv %s3122
        %v3124 = vmul.f32 %v3123, %v3097
        %v3125 = vadd.f32 %v3008, %v3124
        %s3126 = sld [smem:[#allocation2 + $0x1b7]]
        %v3127 = vstv %s3126
        %v3128 = vmul.f32 %v3127, %v3097
        %v3129 = vadd.f32 %v3016, %v3128
        %s3130 = sld [smem:[#allocation2 + $0x1b8]]
        %v3131 = vstv %s3130
        %v3132 = vmul.f32 %v3131, %v3097
        %v3133 = vadd.f32 %v3024, %v3132
        %s3134 = sld [smem:[#allocation2 + $0x1b9]]
        %v3135 = vstv %s3134
        %v3136 = vmul.f32 %v3135, %v3097
        %v3137 = vadd.f32 %v3032, %v3136
        %s3138 = sld [smem:[#allocation2 + $0x1ba]]
        %v3139 = vstv %s3138
        %v3140 = vmul.f32 %v3139, %v3097
        %v3141 = vadd.f32 %v3040, %v3140
        %s3142 = sld [smem:[#allocation2 + $0x1bb]]
        %v3143 = vstv %s3142
        %v3144 = vmul.f32 %v3143, %v3097
        %v3145 = vadd.f32 %v3048, %v3144
        %s3146 = sld [smem:[#allocation2 + $0x1bc]]
        %v3147 = vstv %s3146
        %v3148 = vmul.f32 %v3147, %v3097
        %v3149 = vadd.f32 %v3056, %v3148
        %s3150 = sld [smem:[#allocation2 + $0x1bd]]
        %v3151 = vstv %s3150
        %v3152 = vmul.f32 %v3151, %v3097
        %v3153 = vadd.f32 %v3064, %v3152
        %s3154 = sld [smem:[#allocation2 + $0x1be]]
        %v3155 = vstv %s3154
        %v3156 = vmul.f32 %v3155, %v3097
        %v3157 = vadd.f32 %v3072, %v3156
        %s3158 = sld [smem:[#allocation2 + $0x1bf]]
        %v3159 = vstv %s3158
        %v3160 = vmul.f32 %v3159, %v3097
        %v3161 = vadd.f32 %v3080, %v3160
        %s3162 = sld [smem:[#allocation2 + $0x1c0]]
        %v3163 = vstv %s3162
        %v3164 = vmul.f32 %v3163, %v3097
        %v3165 = vadd.f32 %v3088, %v3164
        %s3166 = sld [smem:[#allocation2 + $0x1c1]]
        %v3167 = vstv %s3166
        %v3168 = vmul.f32 %v3167, %v3097
        %v3169 = vadd.f32 %v3096, %v3168
        %v3170 = vld [vmem:[%s279 + $0x2] sm:$0xff]
        %s3171 = sld [smem:[#allocation2 + $0x1c2]]
        %v3172 = vstv %s3171
        %v3173 = vmul.f32 %v3172, %v3170
        %v3174 = vadd.f32 %v3101, %v3173
        %s3175 = sld [smem:[#allocation2 + $0x1c3]]
        %v3176 = vstv %s3175
        %v3177 = vmul.f32 %v3176, %v3170
        %v3178 = vadd.f32 %v3105, %v3177
        %s3179 = sld [smem:[#allocation2 + $0x1c4]]
        %v3180 = vstv %s3179
        %v3181 = vmul.f32 %v3180, %v3170
        %v3182 = vadd.f32 %v3109, %v3181
        %s3183 = sld [smem:[#allocation2 + $0x1c5]]
        %v3184 = vstv %s3183
        %v3185 = vmul.f32 %v3184, %v3170
        %v3186 = vadd.f32 %v3113, %v3185
        %s3187 = sld [smem:[#allocation2 + $0x1c6]]
        %v3188 = vstv %s3187
        %v3189 = vmul.f32 %v3188, %v3170
        %v3190 = vadd.f32 %v3117, %v3189
        %s3191 = sld [smem:[#allocation2 + $0x1c7]]
        %v3192 = vstv %s3191
        %v3193 = vmul.f32 %v3192, %v3170
        %v3194 = vadd.f32 %v3121, %v3193
        %s3195 = sld [smem:[#allocation2 + $0x1c8]]
        %v3196 = vstv %s3195
        %v3197 = vmul.f32 %v3196, %v3170
        %v3198 = vadd.f32 %v3125, %v3197
        %s3199 = sld [smem:[#allocation2 + $0x1c9]]
        %v3200 = vstv %s3199
        %v3201 = vmul.f32 %v3200, %v3170
        %v3202 = vadd.f32 %v3129, %v3201
        %s3203 = sld [smem:[#allocation2 + $0x1ca]]
        %v3204 = vstv %s3203
        %v3205 = vmul.f32 %v3204, %v3170
        %v3206 = vadd.f32 %v3133, %v3205
        %s3207 = sld [smem:[#allocation2 + $0x1cb]]
        %v3208 = vstv %s3207
        %v3209 = vmul.f32 %v3208, %v3170
        %v3210 = vadd.f32 %v3137, %v3209
        %s3211 = sld [smem:[#allocation2 + $0x1cc]]
        %v3212 = vstv %s3211
        %v3213 = vmul.f32 %v3212, %v3170
        %v3214 = vadd.f32 %v3141, %v3213
        %s3215 = sld [smem:[#allocation2 + $0x1cd]]
        %v3216 = vstv %s3215
        %v3217 = vmul.f32 %v3216, %v3170
        %v3218 = vadd.f32 %v3145, %v3217
        %s3219 = sld [smem:[#allocation2 + $0x1ce]]
        %v3220 = vstv %s3219
        %v3221 = vmul.f32 %v3220, %v3170
        %v3222 = vadd.f32 %v3149, %v3221
        %s3223 = sld [smem:[#allocation2 + $0x1cf]]
        %v3224 = vstv %s3223
        %v3225 = vmul.f32 %v3224, %v3170
        %v3226 = vadd.f32 %v3153, %v3225
        %s3227 = sld [smem:[#allocation2 + $0x1d0]]
        %v3228 = vstv %s3227
        %v3229 = vmul.f32 %v3228, %v3170
        %v3230 = vadd.f32 %v3157, %v3229
        %s3231 = sld [smem:[#allocation2 + $0x1d1]]
        %v3232 = vstv %s3231
        %v3233 = vmul.f32 %v3232, %v3170
        %v3234 = vadd.f32 %v3161, %v3233
        %s3235 = sld [smem:[#allocation2 + $0x1d2]]
        %v3236 = vstv %s3235
        %v3237 = vmul.f32 %v3236, %v3170
        %v3238 = vadd.f32 %v3165, %v3237
        %s3239 = sld [smem:[#allocation2 + $0x1d3]]
        %v3240 = vstv %s3239
        %v3241 = vmul.f32 %v3240, %v3170
        %v3242 = vadd.f32 %v3169, %v3241
        %v3243 = vld [vmem:[%s353 + $0x2] sm:$0xff]
        %s3244 = sld [smem:[#allocation2 + $0x1d4]]
        %v3245 = vstv %s3244
        %v3246 = vmul.f32 %v3245, %v3243
        %v3247 = vadd.f32 %v3174, %v3246
        %s3248 = sld [smem:[#allocation2 + $0x1d5]]
        %v3249 = vstv %s3248
        %v3250 = vmul.f32 %v3249, %v3243
        %v3251 = vadd.f32 %v3178, %v3250
        %s3252 = sld [smem:[#allocation2 + $0x1d6]]
        %v3253 = vstv %s3252
        %v3254 = vmul.f32 %v3253, %v3243
        %v3255 = vadd.f32 %v3182, %v3254
        %s3256 = sld [smem:[#allocation2 + $0x1d7]]
        %v3257 = vstv %s3256
        %v3258 = vmul.f32 %v3257, %v3243
        %v3259 = vadd.f32 %v3186, %v3258
        %s3260 = sld [smem:[#allocation2 + $0x1d8]]
        %v3261 = vstv %s3260
        %v3262 = vmul.f32 %v3261, %v3243
        %v3263 = vadd.f32 %v3190, %v3262
        %s3264 = sld [smem:[#allocation2 + $0x1d9]]
        %v3265 = vstv %s3264
        %v3266 = vmul.f32 %v3265, %v3243
        %v3267 = vadd.f32 %v3194, %v3266
        %s3268 = sld [smem:[#allocation2 + $0x1da]]
        %v3269 = vstv %s3268
        %v3270 = vmul.f32 %v3269, %v3243
        %v3271 = vadd.f32 %v3198, %v3270
        %s3272 = sld [smem:[#allocation2 + $0x1db]]
        %v3273 = vstv %s3272
        %v3274 = vmul.f32 %v3273, %v3243
        %v3275 = vadd.f32 %v3202, %v3274
        %s3276 = sld [smem:[#allocation2 + $0x1dc]]
        %v3277 = vstv %s3276
        %v3278 = vmul.f32 %v3277, %v3243
        %v3279 = vadd.f32 %v3206, %v3278
        %s3280 = sld [smem:[#allocation2 + $0x1dd]]
        %v3281 = vstv %s3280
        %v3282 = vmul.f32 %v3281, %v3243
        %v3283 = vadd.f32 %v3210, %v3282
        %s3284 = sld [smem:[#allocation2 + $0x1de]]
        %v3285 = vstv %s3284
        %v3286 = vmul.f32 %v3285, %v3243
        %v3287 = vadd.f32 %v3214, %v3286
        %s3288 = sld [smem:[#allocation2 + $0x1df]]
        %v3289 = vstv %s3288
        %v3290 = vmul.f32 %v3289, %v3243
        %v3291 = vadd.f32 %v3218, %v3290
        %s3292 = sld [smem:[#allocation2 + $0x1e0]]
        %v3293 = vstv %s3292
        %v3294 = vmul.f32 %v3293, %v3243
        %v3295 = vadd.f32 %v3222, %v3294
        %s3296 = sld [smem:[#allocation2 + $0x1e1]]
        %v3297 = vstv %s3296
        %v3298 = vmul.f32 %v3297, %v3243
        %v3299 = vadd.f32 %v3226, %v3298
        %s3300 = sld [smem:[#allocation2 + $0x1e2]]
        %v3301 = vstv %s3300
        %v3302 = vmul.f32 %v3301, %v3243
        %v3303 = vadd.f32 %v3230, %v3302
        %s3304 = sld [smem:[#allocation2 + $0x1e3]]
        %v3305 = vstv %s3304
        %v3306 = vmul.f32 %v3305, %v3243
        %v3307 = vadd.f32 %v3234, %v3306
        %s3308 = sld [smem:[#allocation2 + $0x1e4]]
        %v3309 = vstv %s3308
        %v3310 = vmul.f32 %v3309, %v3243
        %v3311 = vadd.f32 %v3238, %v3310
        %s3312 = sld [smem:[#allocation2 + $0x1e5]]
        %v3313 = vstv %s3312
        %v3314 = vmul.f32 %v3313, %v3243
        %v3315 = vadd.f32 %v3242, %v3314
        %v3316 = vld [vmem:[%s427 + $0x2] sm:$0xff]
        %s3317 = sld [smem:[#allocation2 + $0x1e6]]
        %v3318 = vstv %s3317
        %v3319 = vmul.f32 %v3318, %v3316
        %v3320 = vadd.f32 %v3247, %v3319
        %s3321 = sld [smem:[#allocation2 + $0x1e7]]
        %v3322 = vstv %s3321
        %v3323 = vmul.f32 %v3322, %v3316
        %v3324 = vadd.f32 %v3251, %v3323
        %s3325 = sld [smem:[#allocation2 + $0x1e8]]
        %v3326 = vstv %s3325
        %v3327 = vmul.f32 %v3326, %v3316
        %v3328 = vadd.f32 %v3255, %v3327
        %s3329 = sld [smem:[#allocation2 + $0x1e9]]
        %v3330 = vstv %s3329
        %v3331 = vmul.f32 %v3330, %v3316
        %v3332 = vadd.f32 %v3259, %v3331
        %s3333 = sld [smem:[#allocation2 + $0x1ea]]
        %v3334 = vstv %s3333
        %v3335 = vmul.f32 %v3334, %v3316
        %v3336 = vadd.f32 %v3263, %v3335
        %s3337 = sld [smem:[#allocation2 + $0x1eb]]
        %v3338 = vstv %s3337
        %v3339 = vmul.f32 %v3338, %v3316
        %v3340 = vadd.f32 %v3267, %v3339
        %s3341 = sld [smem:[#allocation2 + $0x1ec]]
        %v3342 = vstv %s3341
        %v3343 = vmul.f32 %v3342, %v3316
        %v3344 = vadd.f32 %v3271, %v3343
        %s3345 = sld [smem:[#allocation2 + $0x1ed]]
        %v3346 = vstv %s3345
        %v3347 = vmul.f32 %v3346, %v3316
        %v3348 = vadd.f32 %v3275, %v3347
        %s3349 = sld [smem:[#allocation2 + $0x1ee]]
        %v3350 = vstv %s3349
        %v3351 = vmul.f32 %v3350, %v3316
        %v3352 = vadd.f32 %v3279, %v3351
        %s3353 = sld [smem:[#allocation2 + $0x1ef]]
        %v3354 = vstv %s3353
        %v3355 = vmul.f32 %v3354, %v3316
        %v3356 = vadd.f32 %v3283, %v3355
        %s3357 = sld [smem:[#allocation2 + $0x1f0]]
        %v3358 = vstv %s3357
        %v3359 = vmul.f32 %v3358, %v3316
        %v3360 = vadd.f32 %v3287, %v3359
        %s3361 = sld [smem:[#allocation2 + $0x1f1]]
        %v3362 = vstv %s3361
        %v3363 = vmul.f32 %v3362, %v3316
        %v3364 = vadd.f32 %v3291, %v3363
        %s3365 = sld [smem:[#allocation2 + $0x1f2]]
        %v3366 = vstv %s3365
        %v3367 = vmul.f32 %v3366, %v3316
        %v3368 = vadd.f32 %v3295, %v3367
        %s3369 = sld [smem:[#allocation2 + $0x1f3]]
        %v3370 = vstv %s3369
        %v3371 = vmul.f32 %v3370, %v3316
        %v3372 = vadd.f32 %v3299, %v3371
        %s3373 = sld [smem:[#allocation2 + $0x1f4]]
        %v3374 = vstv %s3373
        %v3375 = vmul.f32 %v3374, %v3316
        %v3376 = vadd.f32 %v3303, %v3375
        %s3377 = sld [smem:[#allocation2 + $0x1f5]]
        %v3378 = vstv %s3377
        %v3379 = vmul.f32 %v3378, %v3316
        %v3380 = vadd.f32 %v3307, %v3379
        %s3381 = sld [smem:[#allocation2 + $0x1f6]]
        %v3382 = vstv %s3381
        %v3383 = vmul.f32 %v3382, %v3316
        %v3384 = vadd.f32 %v3311, %v3383
        %s3385 = sld [smem:[#allocation2 + $0x1f7]]
        %v3386 = vstv %s3385
        %v3387 = vmul.f32 %v3386, %v3316
        %v3388 = vadd.f32 %v3315, %v3387
        %s3389 = sld [smem:[#allocation2 + $0x1f8]]
        %v3390 = vstv %s3389
        %v3391 = vmul.f32 %v3390, %v3097
        %3393 = vrot.lane.b32.xlu0 %v3391, 127
        %v3394 = vpop.permute.xlu0 %3393
        %v3396 = vadd.f32 %v3320, %v3394
        %s3397 = sld [smem:[#allocation2 + $0x1f9]]
        %v3398 = vstv %s3397
        %v3399 = vmul.f32 %v3398, %v3097
        %3401 = vrot.lane.b32.xlu0 %v3399, 127
        %v3402 = vpop.permute.xlu0 %3401
        %v3404 = vadd.f32 %v3324, %v3402
        %s3405 = sld [smem:[#allocation2 + $0x1fa]]
        %v3406 = vstv %s3405
        %v3407 = vmul.f32 %v3406, %v3097
        %3409 = vrot.lane.b32.xlu0 %v3407, 127
        %v3410 = vpop.permute.xlu0 %3409
        %v3412 = vadd.f32 %v3328, %v3410
        %s3413 = sld [smem:[#allocation2 + $0x1fb]]
        %v3414 = vstv %s3413
        %v3415 = vmul.f32 %v3414, %v3097
        %3417 = vrot.lane.b32.xlu0 %v3415, 127
        %v3418 = vpop.permute.xlu0 %3417
        %v3420 = vadd.f32 %v3332, %v3418
        %s3421 = sld [smem:[#allocation2 + $0x1fc]]
        %v3422 = vstv %s3421
        %v3423 = vmul.f32 %v3422, %v3097
        %3425 = vrot.lane.b32.xlu0 %v3423, 127
        %v3426 = vpop.permute.xlu0 %3425
        %v3428 = vadd.f32 %v3336, %v3426
        %s3429 = sld [smem:[#allocation2 + $0x1fd]]
        %v3430 = vstv %s3429
        %v3431 = vmul.f32 %v3430, %v3097
        %3433 = vrot.lane.b32.xlu0 %v3431, 127
        %v3434 = vpop.permute.xlu0 %3433
        %v3436 = vadd.f32 %v3340, %v3434
        %s3437 = sld [smem:[#allocation2 + $0x1fe]]
        %v3438 = vstv %s3437
        %v3439 = vmul.f32 %v3438, %v3097
        %3441 = vrot.lane.b32.xlu0 %v3439, 127
        %v3442 = vpop.permute.xlu0 %3441
        %v3444 = vadd.f32 %v3344, %v3442
        %s3445 = sld [smem:[#allocation2 + $0x1ff]]
        %v3446 = vstv %s3445
        %v3447 = vmul.f32 %v3446, %v3097
        %3449 = vrot.lane.b32.xlu0 %v3447, 127
        %v3450 = vpop.permute.xlu0 %3449
        %v3452 = vadd.f32 %v3348, %v3450
        %s3453 = sld [smem:[#allocation2 + $0x200]]
        %v3454 = vstv %s3453
        %v3455 = vmul.f32 %v3454, %v3097
        %3457 = vrot.lane.b32.xlu0 %v3455, 127
        %v3458 = vpop.permute.xlu0 %3457
        %v3460 = vadd.f32 %v3352, %v3458
        %s3461 = sld [smem:[#allocation2 + $0x201]]
        %v3462 = vstv %s3461
        %v3463 = vmul.f32 %v3462, %v3097
        %3465 = vrot.lane.b32.xlu0 %v3463, 127
        %v3466 = vpop.permute.xlu0 %3465
        %v3468 = vadd.f32 %v3356, %v3466
        %s3469 = sld [smem:[#allocation2 + $0x202]]
        %v3470 = vstv %s3469
        %v3471 = vmul.f32 %v3470, %v3097
        %3473 = vrot.lane.b32.xlu0 %v3471, 127
        %v3474 = vpop.permute.xlu0 %3473
        %v3476 = vadd.f32 %v3360, %v3474
        %s3477 = sld [smem:[#allocation2 + $0x203]]
        %v3478 = vstv %s3477
        %v3479 = vmul.f32 %v3478, %v3097
        %3481 = vrot.lane.b32.xlu0 %v3479, 127
        %v3482 = vpop.permute.xlu0 %3481
        %v3484 = vadd.f32 %v3364, %v3482
        %s3485 = sld [smem:[#allocation2 + $0x204]]
        %v3486 = vstv %s3485
        %v3487 = vmul.f32 %v3486, %v3097
        %3489 = vrot.lane.b32.xlu0 %v3487, 127
        %v3490 = vpop.permute.xlu0 %3489
        %v3492 = vadd.f32 %v3368, %v3490
        %s3493 = sld [smem:[#allocation2 + $0x205]]
        %v3494 = vstv %s3493
        %v3495 = vmul.f32 %v3494, %v3097
        %3497 = vrot.lane.b32.xlu0 %v3495, 127
        %v3498 = vpop.permute.xlu0 %3497
        %v3500 = vadd.f32 %v3372, %v3498
        %s3501 = sld [smem:[#allocation2 + $0x206]]
        %v3502 = vstv %s3501
        %v3503 = vmul.f32 %v3502, %v3097
        %3505 = vrot.lane.b32.xlu0 %v3503, 127
        %v3506 = vpop.permute.xlu0 %3505
        %v3508 = vadd.f32 %v3376, %v3506
        %s3509 = sld [smem:[#allocation2 + $0x207]]
        %v3510 = vstv %s3509
        %v3511 = vmul.f32 %v3510, %v3097
        %3513 = vrot.lane.b32.xlu0 %v3511, 127
        %v3514 = vpop.permute.xlu0 %3513
        %v3516 = vadd.f32 %v3380, %v3514
        %s3517 = sld [smem:[#allocation2 + $0x208]]
        %v3518 = vstv %s3517
        %v3519 = vmul.f32 %v3518, %v3097
        %3521 = vrot.lane.b32.xlu0 %v3519, 127
        %v3522 = vpop.permute.xlu0 %3521
        %v3524 = vadd.f32 %v3384, %v3522
        %s3525 = sld [smem:[#allocation2 + $0x209]]
        %v3526 = vstv %s3525
        %v3527 = vmul.f32 %v3526, %v3097
        %3529 = vrot.lane.b32.xlu0 %v3527, 127
        %v3530 = vpop.permute.xlu0 %3529
        %v3532 = vadd.f32 %v3388, %v3530
        %s3533 = sld [smem:[#allocation2 + $0x20a]]
        %v3534 = vstv %s3533
        %v3535 = vmul.f32 %v3534, %v3170
        %3537 = vrot.lane.b32.xlu0 %v3535, 127
        %v3538 = vpop.permute.xlu0 %3537
        %v3540 = vadd.f32 %v3396, %v3538
        %s3541 = sld [smem:[#allocation2 + $0x20b]]
        %v3542 = vstv %s3541
        %v3543 = vmul.f32 %v3542, %v3170
        %3545 = vrot.lane.b32.xlu0 %v3543, 127
        %v3546 = vpop.permute.xlu0 %3545
        %v3548 = vadd.f32 %v3404, %v3546
        %s3549 = sld [smem:[#allocation2 + $0x20c]]
        %v3550 = vstv %s3549
        %v3551 = vmul.f32 %v3550, %v3170
        %3553 = vrot.lane.b32.xlu0 %v3551, 127
        %v3554 = vpop.permute.xlu0 %3553
        %v3556 = vadd.f32 %v3412, %v3554
        %s3557 = sld [smem:[#allocation2 + $0x20d]]
        %v3558 = vstv %s3557
        %v3559 = vmul.f32 %v3558, %v3170
        %3561 = vrot.lane.b32.xlu0 %v3559, 127
        %v3562 = vpop.permute.xlu0 %3561
        %v3564 = vadd.f32 %v3420, %v3562
        %s3565 = sld [smem:[#allocation2 + $0x20e]]
        %v3566 = vstv %s3565
        %v3567 = vmul.f32 %v3566, %v3170
        %3569 = vrot.lane.b32.xlu0 %v3567, 127
        %v3570 = vpop.permute.xlu0 %3569
        %v3572 = vadd.f32 %v3428, %v3570
        %s3573 = sld [smem:[#allocation2 + $0x20f]]
        %v3574 = vstv %s3573
        %v3575 = vmul.f32 %v3574, %v3170
        %3577 = vrot.lane.b32.xlu0 %v3575, 127
        %v3578 = vpop.permute.xlu0 %3577
        %v3580 = vadd.f32 %v3436, %v3578
        %s3581 = sld [smem:[#allocation2 + $0x210]]
        %v3582 = vstv %s3581
        %v3583 = vmul.f32 %v3582, %v3170
        %3585 = vrot.lane.b32.xlu0 %v3583, 127
        %v3586 = vpop.permute.xlu0 %3585
        %v3588 = vadd.f32 %v3444, %v3586
        %s3589 = sld [smem:[#allocation2 + $0x211]]
        %v3590 = vstv %s3589
        %v3591 = vmul.f32 %v3590, %v3170
        %3593 = vrot.lane.b32.xlu0 %v3591, 127
        %v3594 = vpop.permute.xlu0 %3593
        %v3596 = vadd.f32 %v3452, %v3594
        %s3597 = sld [smem:[#allocation2 + $0x212]]
        %v3598 = vstv %s3597
        %v3599 = vmul.f32 %v3598, %v3170
        %3601 = vrot.lane.b32.xlu0 %v3599, 127
        %v3602 = vpop.permute.xlu0 %3601
        %v3604 = vadd.f32 %v3460, %v3602
        %s3605 = sld [smem:[#allocation2 + $0x213]]
        %v3606 = vstv %s3605
        %v3607 = vmul.f32 %v3606, %v3170
        %3609 = vrot.lane.b32.xlu0 %v3607, 127
        %v3610 = vpop.permute.xlu0 %3609
        %v3612 = vadd.f32 %v3468, %v3610
        %s3613 = sld [smem:[#allocation2 + $0x214]]
        %v3614 = vstv %s3613
        %v3615 = vmul.f32 %v3614, %v3170
        %3617 = vrot.lane.b32.xlu0 %v3615, 127
        %v3618 = vpop.permute.xlu0 %3617
        %v3620 = vadd.f32 %v3476, %v3618
        %s3621 = sld [smem:[#allocation2 + $0x215]]
        %v3622 = vstv %s3621
        %v3623 = vmul.f32 %v3622, %v3170
        %3625 = vrot.lane.b32.xlu0 %v3623, 127
        %v3626 = vpop.permute.xlu0 %3625
        %v3628 = vadd.f32 %v3484, %v3626
        %s3629 = sld [smem:[#allocation2 + $0x216]]
        %v3630 = vstv %s3629
        %v3631 = vmul.f32 %v3630, %v3170
        %3633 = vrot.lane.b32.xlu0 %v3631, 127
        %v3634 = vpop.permute.xlu0 %3633
        %v3636 = vadd.f32 %v3492, %v3634
        %s3637 = sld [smem:[#allocation2 + $0x217]]
        %v3638 = vstv %s3637
        %v3639 = vmul.f32 %v3638, %v3170
        %3641 = vrot.lane.b32.xlu0 %v3639, 127
        %v3642 = vpop.permute.xlu0 %3641
        %v3644 = vadd.f32 %v3500, %v3642
        %s3645 = sld [smem:[#allocation2 + $0x218]]
        %v3646 = vstv %s3645
        %v3647 = vmul.f32 %v3646, %v3170
        %3649 = vrot.lane.b32.xlu0 %v3647, 127
        %v3650 = vpop.permute.xlu0 %3649
        %v3652 = vadd.f32 %v3508, %v3650
        %s3653 = sld [smem:[#allocation2 + $0x219]]
        %v3654 = vstv %s3653
        %v3655 = vmul.f32 %v3654, %v3170
        %3657 = vrot.lane.b32.xlu0 %v3655, 127
        %v3658 = vpop.permute.xlu0 %3657
        %v3660 = vadd.f32 %v3516, %v3658
        %s3661 = sld [smem:[#allocation2 + $0x21a]]
        %v3662 = vstv %s3661
        %v3663 = vmul.f32 %v3662, %v3170
        %3665 = vrot.lane.b32.xlu0 %v3663, 127
        %v3666 = vpop.permute.xlu0 %3665
        %v3668 = vadd.f32 %v3524, %v3666
        %s3669 = sld [smem:[#allocation2 + $0x21b]]
        %v3670 = vstv %s3669
        %v3671 = vmul.f32 %v3670, %v3170
        %3673 = vrot.lane.b32.xlu0 %v3671, 127
        %v3674 = vpop.permute.xlu0 %3673
        %v3676 = vadd.f32 %v3532, %v3674
        %s3677 = sld [smem:[#allocation2 + $0x21c]]
        %v3678 = vstv %s3677
        %v3679 = vmul.f32 %v3678, %v3243
        %3681 = vrot.lane.b32.xlu0 %v3679, 127
        %v3682 = vpop.permute.xlu0 %3681
        %v3684 = vadd.f32 %v3540, %v3682
        %s3685 = sld [smem:[#allocation2 + $0x21d]]
        %v3686 = vstv %s3685
        %v3687 = vmul.f32 %v3686, %v3243
        %3689 = vrot.lane.b32.xlu0 %v3687, 127
        %v3690 = vpop.permute.xlu0 %3689
        %v3692 = vadd.f32 %v3548, %v3690
        %s3693 = sld [smem:[#allocation2 + $0x21e]]
        %v3694 = vstv %s3693
        %v3695 = vmul.f32 %v3694, %v3243
        %3697 = vrot.lane.b32.xlu0 %v3695, 127
        %v3698 = vpop.permute.xlu0 %3697
        %v3700 = vadd.f32 %v3556, %v3698
        %s3701 = sld [smem:[#allocation2 + $0x21f]]
        %v3702 = vstv %s3701
        %v3703 = vmul.f32 %v3702, %v3243
        %3705 = vrot.lane.b32.xlu0 %v3703, 127
        %v3706 = vpop.permute.xlu0 %3705
        %v3708 = vadd.f32 %v3564, %v3706
        %s3709 = sld [smem:[#allocation2 + $0x220]]
        %v3710 = vstv %s3709
        %v3711 = vmul.f32 %v3710, %v3243
        %3713 = vrot.lane.b32.xlu0 %v3711, 127
        %v3714 = vpop.permute.xlu0 %3713
        %v3716 = vadd.f32 %v3572, %v3714
        %s3717 = sld [smem:[#allocation2 + $0x221]]
        %v3718 = vstv %s3717
        %v3719 = vmul.f32 %v3718, %v3243
        %3721 = vrot.lane.b32.xlu0 %v3719, 127
        %v3722 = vpop.permute.xlu0 %3721
        %v3724 = vadd.f32 %v3580, %v3722
        %s3725 = sld [smem:[#allocation2 + $0x222]]
        %v3726 = vstv %s3725
        %v3727 = vmul.f32 %v3726, %v3243
        %3729 = vrot.lane.b32.xlu0 %v3727, 127
        %v3730 = vpop.permute.xlu0 %3729
        %v3732 = vadd.f32 %v3588, %v3730
        %s3733 = sld [smem:[#allocation2 + $0x223]]
        %v3734 = vstv %s3733
        %v3735 = vmul.f32 %v3734, %v3243
        %3737 = vrot.lane.b32.xlu0 %v3735, 127
        %v3738 = vpop.permute.xlu0 %3737
        %v3740 = vadd.f32 %v3596, %v3738
        %s3741 = sld [smem:[#allocation2 + $0x224]]
        %v3742 = vstv %s3741
        %v3743 = vmul.f32 %v3742, %v3243
        %3745 = vrot.lane.b32.xlu0 %v3743, 127
        %v3746 = vpop.permute.xlu0 %3745
        %v3748 = vadd.f32 %v3604, %v3746
        %s3749 = sld [smem:[#allocation2 + $0x225]]
        %v3750 = vstv %s3749
        %v3751 = vmul.f32 %v3750, %v3243
        %3753 = vrot.lane.b32.xlu0 %v3751, 127
        %v3754 = vpop.permute.xlu0 %3753
        %v3756 = vadd.f32 %v3612, %v3754
        %s3757 = sld [smem:[#allocation2 + $0x226]]
        %v3758 = vstv %s3757
        %v3759 = vmul.f32 %v3758, %v3243
        %3761 = vrot.lane.b32.xlu0 %v3759, 127
        %v3762 = vpop.permute.xlu0 %3761
        %v3764 = vadd.f32 %v3620, %v3762
        %s3765 = sld [smem:[#allocation2 + $0x227]]
        %v3766 = vstv %s3765
        %v3767 = vmul.f32 %v3766, %v3243
        %3769 = vrot.lane.b32.xlu0 %v3767, 127
        %v3770 = vpop.permute.xlu0 %3769
        %v3772 = vadd.f32 %v3628, %v3770
        %s3773 = sld [smem:[#allocation2 + $0x228]]
        %v3774 = vstv %s3773
        %v3775 = vmul.f32 %v3774, %v3243
        %3777 = vrot.lane.b32.xlu0 %v3775, 127
        %v3778 = vpop.permute.xlu0 %3777
        %v3780 = vadd.f32 %v3636, %v3778
        %s3781 = sld [smem:[#allocation2 + $0x229]]
        %v3782 = vstv %s3781
        %v3783 = vmul.f32 %v3782, %v3243
        %3785 = vrot.lane.b32.xlu0 %v3783, 127
        %v3786 = vpop.permute.xlu0 %3785
        %v3788 = vadd.f32 %v3644, %v3786
        %s3789 = sld [smem:[#allocation2 + $0x22a]]
        %v3790 = vstv %s3789
        %v3791 = vmul.f32 %v3790, %v3243
        %3793 = vrot.lane.b32.xlu0 %v3791, 127
        %v3794 = vpop.permute.xlu0 %3793
        %v3796 = vadd.f32 %v3652, %v3794
        %s3797 = sld [smem:[#allocation2 + $0x22b]]
        %v3798 = vstv %s3797
        %v3799 = vmul.f32 %v3798, %v3243
        %3801 = vrot.lane.b32.xlu0 %v3799, 127
        %v3802 = vpop.permute.xlu0 %3801
        %v3804 = vadd.f32 %v3660, %v3802
        %s3805 = sld [smem:[#allocation2 + $0x22c]]
        %v3806 = vstv %s3805
        %v3807 = vmul.f32 %v3806, %v3243
        %3809 = vrot.lane.b32.xlu0 %v3807, 127
        %v3810 = vpop.permute.xlu0 %3809
        %v3812 = vadd.f32 %v3668, %v3810
        %s3813 = sld [smem:[#allocation2 + $0x22d]]
        %v3814 = vstv %s3813
        %v3815 = vmul.f32 %v3814, %v3243
        %3817 = vrot.lane.b32.xlu0 %v3815, 127
        %v3818 = vpop.permute.xlu0 %3817
        %v3820 = vadd.f32 %v3676, %v3818
        %s3821 = sld [smem:[#allocation2 + $0x22e]]
        %v3822 = vstv %s3821
        %v3823 = vmul.f32 %v3822, %v3316
        %3825 = vrot.lane.b32.xlu0 %v3823, 127
        %v3826 = vpop.permute.xlu0 %3825
        %v3828 = vadd.f32 %v3684, %v3826
        %s3829 = sld [smem:[#allocation2 + $0x22f]]
        %v3830 = vstv %s3829
        %v3831 = vmul.f32 %v3830, %v3316
        %3833 = vrot.lane.b32.xlu0 %v3831, 127
        %v3834 = vpop.permute.xlu0 %3833
        %v3836 = vadd.f32 %v3692, %v3834
        %s3837 = sld [smem:[#allocation2 + $0x230]]
        %v3838 = vstv %s3837
        %v3839 = vmul.f32 %v3838, %v3316
        %3841 = vrot.lane.b32.xlu0 %v3839, 127
        %v3842 = vpop.permute.xlu0 %3841
        %v3844 = vadd.f32 %v3700, %v3842
        %s3845 = sld [smem:[#allocation2 + $0x231]]
        %v3846 = vstv %s3845
        %v3847 = vmul.f32 %v3846, %v3316
        %3849 = vrot.lane.b32.xlu0 %v3847, 127
        %v3850 = vpop.permute.xlu0 %3849
        %v3852 = vadd.f32 %v3708, %v3850
        %s3853 = sld [smem:[#allocation2 + $0x232]]
        %v3854 = vstv %s3853
        %v3855 = vmul.f32 %v3854, %v3316
        %3857 = vrot.lane.b32.xlu0 %v3855, 127
        %v3858 = vpop.permute.xlu0 %3857
        %v3860 = vadd.f32 %v3716, %v3858
        %s3861 = sld [smem:[#allocation2 + $0x233]]
        %v3862 = vstv %s3861
        %v3863 = vmul.f32 %v3862, %v3316
        %3865 = vrot.lane.b32.xlu0 %v3863, 127
        %v3866 = vpop.permute.xlu0 %3865
        %v3868 = vadd.f32 %v3724, %v3866
        %s3869 = sld [smem:[#allocation2 + $0x234]]
        %v3870 = vstv %s3869
        %v3871 = vmul.f32 %v3870, %v3316
        %3873 = vrot.lane.b32.xlu0 %v3871, 127
        %v3874 = vpop.permute.xlu0 %3873
        %v3876 = vadd.f32 %v3732, %v3874
        %s3877 = sld [smem:[#allocation2 + $0x235]]
        %v3878 = vstv %s3877
        %v3879 = vmul.f32 %v3878, %v3316
        %3881 = vrot.lane.b32.xlu0 %v3879, 127
        %v3882 = vpop.permute.xlu0 %3881
        %v3884 = vadd.f32 %v3740, %v3882
        %s3885 = sld [smem:[#allocation2 + $0x236]]
        %v3886 = vstv %s3885
        %v3887 = vmul.f32 %v3886, %v3316
        %3889 = vrot.lane.b32.xlu0 %v3887, 127
        %v3890 = vpop.permute.xlu0 %3889
        %v3892 = vadd.f32 %v3748, %v3890
        %s3893 = sld [smem:[#allocation2 + $0x237]]
        %v3894 = vstv %s3893
        %v3895 = vmul.f32 %v3894, %v3316
        %3897 = vrot.lane.b32.xlu0 %v3895, 127
        %v3898 = vpop.permute.xlu0 %3897
        %v3900 = vadd.f32 %v3756, %v3898
        %s3901 = sld [smem:[#allocation2 + $0x238]]
        %v3902 = vstv %s3901
        %v3903 = vmul.f32 %v3902, %v3316
        %3905 = vrot.lane.b32.xlu0 %v3903, 127
        %v3906 = vpop.permute.xlu0 %3905
        %v3908 = vadd.f32 %v3764, %v3906
        %s3909 = sld [smem:[#allocation2 + $0x239]]
        %v3910 = vstv %s3909
        %v3911 = vmul.f32 %v3910, %v3316
        %3913 = vrot.lane.b32.xlu0 %v3911, 127
        %v3914 = vpop.permute.xlu0 %3913
        %v3916 = vadd.f32 %v3772, %v3914
        %s3917 = sld [smem:[#allocation2 + $0x23a]]
        %v3918 = vstv %s3917
        %v3919 = vmul.f32 %v3918, %v3316
        %3921 = vrot.lane.b32.xlu0 %v3919, 127
        %v3922 = vpop.permute.xlu0 %3921
        %v3924 = vadd.f32 %v3780, %v3922
        %s3925 = sld [smem:[#allocation2 + $0x23b]]
        %v3926 = vstv %s3925
        %v3927 = vmul.f32 %v3926, %v3316
        %3929 = vrot.lane.b32.xlu0 %v3927, 127
        %v3930 = vpop.permute.xlu0 %3929
        %v3932 = vadd.f32 %v3788, %v3930
        %s3933 = sld [smem:[#allocation2 + $0x23c]]
        %v3934 = vstv %s3933
        %v3935 = vmul.f32 %v3934, %v3316
        %3937 = vrot.lane.b32.xlu0 %v3935, 127
        %v3938 = vpop.permute.xlu0 %3937
        %v3940 = vadd.f32 %v3796, %v3938
        %s3941 = sld [smem:[#allocation2 + $0x23d]]
        %v3942 = vstv %s3941
        %v3943 = vmul.f32 %v3942, %v3316
        %3945 = vrot.lane.b32.xlu0 %v3943, 127
        %v3946 = vpop.permute.xlu0 %3945
        %v3948 = vadd.f32 %v3804, %v3946
        %s3949 = sld [smem:[#allocation2 + $0x23e]]
        %v3950 = vstv %s3949
        %v3951 = vmul.f32 %v3950, %v3316
        %3953 = vrot.lane.b32.xlu0 %v3951, 127
        %v3954 = vpop.permute.xlu0 %3953
        %v3956 = vadd.f32 %v3812, %v3954
        %s3957 = sld [smem:[#allocation2 + $0x23f]]
        %v3958 = vstv %s3957
        %v3959 = vmul.f32 %v3958, %v3316
        %3961 = vrot.lane.b32.xlu0 %v3959, 127
        %v3962 = vpop.permute.xlu0 %3961
        %v3964 = vadd.f32 %v3820, %v3962
        %s3965 = sld [smem:[#allocation2 + $0x240]]
        %v3966 = vstv %s3965
        %v3967 = vmul.f32 %v3966, %v3097
        %3969 = vrot.lane.b32.xlu0 %v3967, 126
        %v3970 = vpop.permute.xlu0 %3969
        %v3972 = vadd.f32 %v3828, %v3970
        %s3973 = sld [smem:[#allocation2 + $0x241]]
        %v3974 = vstv %s3973
        %v3975 = vmul.f32 %v3974, %v3097
        %3977 = vrot.lane.b32.xlu0 %v3975, 126
        %v3978 = vpop.permute.xlu0 %3977
        %v3980 = vadd.f32 %v3836, %v3978
        %s3981 = sld [smem:[#allocation2 + $0x242]]
        %v3982 = vstv %s3981
        %v3983 = vmul.f32 %v3982, %v3097
        %3985 = vrot.lane.b32.xlu0 %v3983, 126
        %v3986 = vpop.permute.xlu0 %3985
        %v3988 = vadd.f32 %v3844, %v3986
        %s3989 = sld [smem:[#allocation2 + $0x243]]
        %v3990 = vstv %s3989
        %v3991 = vmul.f32 %v3990, %v3097
        %3993 = vrot.lane.b32.xlu0 %v3991, 126
        %v3994 = vpop.permute.xlu0 %3993
        %v3996 = vadd.f32 %v3852, %v3994
        %s3997 = sld [smem:[#allocation2 + $0x244]]
        %v3998 = vstv %s3997
        %v3999 = vmul.f32 %v3998, %v3097
        %4001 = vrot.lane.b32.xlu0 %v3999, 126
        %v4002 = vpop.permute.xlu0 %4001
        %v4004 = vadd.f32 %v3860, %v4002
        %s4005 = sld [smem:[#allocation2 + $0x245]]
        %v4006 = vstv %s4005
        %v4007 = vmul.f32 %v4006, %v3097
        %4009 = vrot.lane.b32.xlu0 %v4007, 126
        %v4010 = vpop.permute.xlu0 %4009
        %v4012 = vadd.f32 %v3868, %v4010
        %s4013 = sld [smem:[#allocation2 + $0x246]]
        %v4014 = vstv %s4013
        %v4015 = vmul.f32 %v4014, %v3097
        %4017 = vrot.lane.b32.xlu0 %v4015, 126
        %v4018 = vpop.permute.xlu0 %4017
        %v4020 = vadd.f32 %v3876, %v4018
        %s4021 = sld [smem:[#allocation2 + $0x247]]
        %v4022 = vstv %s4021
        %v4023 = vmul.f32 %v4022, %v3097
        %4025 = vrot.lane.b32.xlu0 %v4023, 126
        %v4026 = vpop.permute.xlu0 %4025
        %v4028 = vadd.f32 %v3884, %v4026
        %s4029 = sld [smem:[#allocation2 + $0x248]]
        %v4030 = vstv %s4029
        %v4031 = vmul.f32 %v4030, %v3097
        %4033 = vrot.lane.b32.xlu0 %v4031, 126
        %v4034 = vpop.permute.xlu0 %4033
        %v4036 = vadd.f32 %v3892, %v4034
        %s4037 = sld [smem:[#allocation2 + $0x249]]
        %v4038 = vstv %s4037
        %v4039 = vmul.f32 %v4038, %v3097
        %4041 = vrot.lane.b32.xlu0 %v4039, 126
        %v4042 = vpop.permute.xlu0 %4041
        %v4044 = vadd.f32 %v3900, %v4042
        %s4045 = sld [smem:[#allocation2 + $0x24a]]
        %v4046 = vstv %s4045
        %v4047 = vmul.f32 %v4046, %v3097
        %4049 = vrot.lane.b32.xlu0 %v4047, 126
        %v4050 = vpop.permute.xlu0 %4049
        %v4052 = vadd.f32 %v3908, %v4050
        %s4053 = sld [smem:[#allocation2 + $0x24b]]
        %v4054 = vstv %s4053
        %v4055 = vmul.f32 %v4054, %v3097
        %4057 = vrot.lane.b32.xlu0 %v4055, 126
        %v4058 = vpop.permute.xlu0 %4057
        %v4060 = vadd.f32 %v3916, %v4058
        %s4061 = sld [smem:[#allocation2 + $0x24c]]
        %v4062 = vstv %s4061
        %v4063 = vmul.f32 %v4062, %v3097
        %4065 = vrot.lane.b32.xlu0 %v4063, 126
        %v4066 = vpop.permute.xlu0 %4065
        %v4068 = vadd.f32 %v3924, %v4066
        %s4069 = sld [smem:[#allocation2 + $0x24d]]
        %v4070 = vstv %s4069
        %v4071 = vmul.f32 %v4070, %v3097
        %4073 = vrot.lane.b32.xlu0 %v4071, 126
        %v4074 = vpop.permute.xlu0 %4073
        %v4076 = vadd.f32 %v3932, %v4074
        %s4077 = sld [smem:[#allocation2 + $0x24e]]
        %v4078 = vstv %s4077
        %v4079 = vmul.f32 %v4078, %v3097
        %4081 = vrot.lane.b32.xlu0 %v4079, 126
        %v4082 = vpop.permute.xlu0 %4081
        %v4084 = vadd.f32 %v3940, %v4082
        %s4085 = sld [smem:[#allocation2 + $0x24f]]
        %v4086 = vstv %s4085
        %v4087 = vmul.f32 %v4086, %v3097
        %4089 = vrot.lane.b32.xlu0 %v4087, 126
        %v4090 = vpop.permute.xlu0 %4089
        %v4092 = vadd.f32 %v3948, %v4090
        %s4093 = sld [smem:[#allocation2 + $0x250]]
        %v4094 = vstv %s4093
        %v4095 = vmul.f32 %v4094, %v3097
        %4097 = vrot.lane.b32.xlu0 %v4095, 126
        %v4098 = vpop.permute.xlu0 %4097
        %v4100 = vadd.f32 %v3956, %v4098
        %s4101 = sld [smem:[#allocation2 + $0x251]]
        %v4102 = vstv %s4101
        %v4103 = vmul.f32 %v4102, %v3097
        %4105 = vrot.lane.b32.xlu0 %v4103, 126
        %v4106 = vpop.permute.xlu0 %4105
        %v4108 = vadd.f32 %v3964, %v4106
        %s4109 = sld [smem:[#allocation2 + $0x252]]
        %v4110 = vstv %s4109
        %v4111 = vmul.f32 %v4110, %v3170
        %4113 = vrot.lane.b32.xlu0 %v4111, 126
        %v4114 = vpop.permute.xlu0 %4113
        %v4116 = vadd.f32 %v3972, %v4114
        %s4117 = sld [smem:[#allocation2 + $0x253]]
        %v4118 = vstv %s4117
        %v4119 = vmul.f32 %v4118, %v3170
        %4121 = vrot.lane.b32.xlu0 %v4119, 126
        %v4122 = vpop.permute.xlu0 %4121
        %v4124 = vadd.f32 %v3980, %v4122
        %s4125 = sld [smem:[#allocation2 + $0x254]]
        %v4126 = vstv %s4125
        %v4127 = vmul.f32 %v4126, %v3170
        %4129 = vrot.lane.b32.xlu0 %v4127, 126
        %v4130 = vpop.permute.xlu0 %4129
        %v4132 = vadd.f32 %v3988, %v4130
        %s4133 = sld [smem:[#allocation2 + $0x255]]
        %v4134 = vstv %s4133
        %v4135 = vmul.f32 %v4134, %v3170
        %4137 = vrot.lane.b32.xlu0 %v4135, 126
        %v4138 = vpop.permute.xlu0 %4137
        %v4140 = vadd.f32 %v3996, %v4138
        %s4141 = sld [smem:[#allocation2 + $0x256]]
        %v4142 = vstv %s4141
        %v4143 = vmul.f32 %v4142, %v3170
        %4145 = vrot.lane.b32.xlu0 %v4143, 126
        %v4146 = vpop.permute.xlu0 %4145
        %v4148 = vadd.f32 %v4004, %v4146
        %s4149 = sld [smem:[#allocation2 + $0x257]]
        %v4150 = vstv %s4149
        %v4151 = vmul.f32 %v4150, %v3170
        %4153 = vrot.lane.b32.xlu0 %v4151, 126
        %v4154 = vpop.permute.xlu0 %4153
        %v4156 = vadd.f32 %v4012, %v4154
        %s4157 = sld [smem:[#allocation2 + $0x258]]
        %v4158 = vstv %s4157
        %v4159 = vmul.f32 %v4158, %v3170
        %4161 = vrot.lane.b32.xlu0 %v4159, 126
        %v4162 = vpop.permute.xlu0 %4161
        %v4164 = vadd.f32 %v4020, %v4162
        %s4165 = sld [smem:[#allocation2 + $0x259]]
        %v4166 = vstv %s4165
        %v4167 = vmul.f32 %v4166, %v3170
        %4169 = vrot.lane.b32.xlu0 %v4167, 126
        %v4170 = vpop.permute.xlu0 %4169
        %v4172 = vadd.f32 %v4028, %v4170
        %s4173 = sld [smem:[#allocation2 + $0x25a]]
        %v4174 = vstv %s4173
        %v4175 = vmul.f32 %v4174, %v3170
        %4177 = vrot.lane.b32.xlu0 %v4175, 126
        %v4178 = vpop.permute.xlu0 %4177
        %v4180 = vadd.f32 %v4036, %v4178
        %s4181 = sld [smem:[#allocation2 + $0x25b]]
        %v4182 = vstv %s4181
        %v4183 = vmul.f32 %v4182, %v3170
        %4185 = vrot.lane.b32.xlu0 %v4183, 126
        %v4186 = vpop.permute.xlu0 %4185
        %v4188 = vadd.f32 %v4044, %v4186
        %s4189 = sld [smem:[#allocation2 + $0x25c]]
        %v4190 = vstv %s4189
        %v4191 = vmul.f32 %v4190, %v3170
        %4193 = vrot.lane.b32.xlu0 %v4191, 126
        %v4194 = vpop.permute.xlu0 %4193
        %v4196 = vadd.f32 %v4052, %v4194
        %s4197 = sld [smem:[#allocation2 + $0x25d]]
        %v4198 = vstv %s4197
        %v4199 = vmul.f32 %v4198, %v3170
        %4201 = vrot.lane.b32.xlu0 %v4199, 126
        %v4202 = vpop.permute.xlu0 %4201
        %v4204 = vadd.f32 %v4060, %v4202
        %s4205 = sld [smem:[#allocation2 + $0x25e]]
        %v4206 = vstv %s4205
        %v4207 = vmul.f32 %v4206, %v3170
        %4209 = vrot.lane.b32.xlu0 %v4207, 126
        %v4210 = vpop.permute.xlu0 %4209
        %v4212 = vadd.f32 %v4068, %v4210
        %s4213 = sld [smem:[#allocation2 + $0x25f]]
        %v4214 = vstv %s4213
        %v4215 = vmul.f32 %v4214, %v3170
        %4217 = vrot.lane.b32.xlu0 %v4215, 126
        %v4218 = vpop.permute.xlu0 %4217
        %v4220 = vadd.f32 %v4076, %v4218
        %s4221 = sld [smem:[#allocation2 + $0x260]]
        %v4222 = vstv %s4221
        %v4223 = vmul.f32 %v4222, %v3170
        %4225 = vrot.lane.b32.xlu0 %v4223, 126
        %v4226 = vpop.permute.xlu0 %4225
        %v4228 = vadd.f32 %v4084, %v4226
        %s4229 = sld [smem:[#allocation2 + $0x261]]
        %v4230 = vstv %s4229
        %v4231 = vmul.f32 %v4230, %v3170
        %4233 = vrot.lane.b32.xlu0 %v4231, 126
        %v4234 = vpop.permute.xlu0 %4233
        %v4236 = vadd.f32 %v4092, %v4234
        %s4237 = sld [smem:[#allocation2 + $0x262]]
        %v4238 = vstv %s4237
        %v4239 = vmul.f32 %v4238, %v3170
        %4241 = vrot.lane.b32.xlu0 %v4239, 126
        %v4242 = vpop.permute.xlu0 %4241
        %v4244 = vadd.f32 %v4100, %v4242
        %s4245 = sld [smem:[#allocation2 + $0x263]]
        %v4246 = vstv %s4245
        %v4247 = vmul.f32 %v4246, %v3170
        %4249 = vrot.lane.b32.xlu0 %v4247, 126
        %v4250 = vpop.permute.xlu0 %4249
        %v4252 = vadd.f32 %v4108, %v4250
        %s4253 = sld [smem:[#allocation2 + $0x264]]
        %v4254 = vstv %s4253
        %v4255 = vmul.f32 %v4254, %v3243
        %4257 = vrot.lane.b32.xlu0 %v4255, 126
        %v4258 = vpop.permute.xlu0 %4257
        %v4260 = vadd.f32 %v4116, %v4258
        %s4261 = sld [smem:[#allocation2 + $0x265]]
        %v4262 = vstv %s4261
        %v4263 = vmul.f32 %v4262, %v3243
        %4265 = vrot.lane.b32.xlu0 %v4263, 126
        %v4266 = vpop.permute.xlu0 %4265
        %v4268 = vadd.f32 %v4124, %v4266
        %s4269 = sld [smem:[#allocation2 + $0x266]]
        %v4270 = vstv %s4269
        %v4271 = vmul.f32 %v4270, %v3243
        %4273 = vrot.lane.b32.xlu0 %v4271, 126
        %v4274 = vpop.permute.xlu0 %4273
        %v4276 = vadd.f32 %v4132, %v4274
        %s4277 = sld [smem:[#allocation2 + $0x267]]
        %v4278 = vstv %s4277
        %v4279 = vmul.f32 %v4278, %v3243
        %4281 = vrot.lane.b32.xlu0 %v4279, 126
        %v4282 = vpop.permute.xlu0 %4281
        %v4284 = vadd.f32 %v4140, %v4282
        %s4285 = sld [smem:[#allocation2 + $0x268]]
        %v4286 = vstv %s4285
        %v4287 = vmul.f32 %v4286, %v3243
        %4289 = vrot.lane.b32.xlu0 %v4287, 126
        %v4290 = vpop.permute.xlu0 %4289
        %v4292 = vadd.f32 %v4148, %v4290
        %s4293 = sld [smem:[#allocation2 + $0x269]]
        %v4294 = vstv %s4293
        %v4295 = vmul.f32 %v4294, %v3243
        %4297 = vrot.lane.b32.xlu0 %v4295, 126
        %v4298 = vpop.permute.xlu0 %4297
        %v4300 = vadd.f32 %v4156, %v4298
        %s4301 = sld [smem:[#allocation2 + $0x26a]]
        %v4302 = vstv %s4301
        %v4303 = vmul.f32 %v4302, %v3243
        %4305 = vrot.lane.b32.xlu0 %v4303, 126
        %v4306 = vpop.permute.xlu0 %4305
        %v4308 = vadd.f32 %v4164, %v4306
        %s4309 = sld [smem:[#allocation2 + $0x26b]]
        %v4310 = vstv %s4309
        %v4311 = vmul.f32 %v4310, %v3243
        %4313 = vrot.lane.b32.xlu0 %v4311, 126
        %v4314 = vpop.permute.xlu0 %4313
        %v4316 = vadd.f32 %v4172, %v4314
        %s4317 = sld [smem:[#allocation2 + $0x26c]]
        %v4318 = vstv %s4317
        %v4319 = vmul.f32 %v4318, %v3243
        %4321 = vrot.lane.b32.xlu0 %v4319, 126
        %v4322 = vpop.permute.xlu0 %4321
        %v4324 = vadd.f32 %v4180, %v4322
        %s4325 = sld [smem:[#allocation2 + $0x26d]]
        %v4326 = vstv %s4325
        %v4327 = vmul.f32 %v4326, %v3243
        %4329 = vrot.lane.b32.xlu0 %v4327, 126
        %v4330 = vpop.permute.xlu0 %4329
        %v4332 = vadd.f32 %v4188, %v4330
        %s4333 = sld [smem:[#allocation2 + $0x26e]]
        %v4334 = vstv %s4333
        %v4335 = vmul.f32 %v4334, %v3243
        %4337 = vrot.lane.b32.xlu0 %v4335, 126
        %v4338 = vpop.permute.xlu0 %4337
        %v4340 = vadd.f32 %v4196, %v4338
        %s4341 = sld [smem:[#allocation2 + $0x26f]]
        %v4342 = vstv %s4341
        %v4343 = vmul.f32 %v4342, %v3243
        %4345 = vrot.lane.b32.xlu0 %v4343, 126
        %v4346 = vpop.permute.xlu0 %4345
        %v4348 = vadd.f32 %v4204, %v4346
        %s4349 = sld [smem:[#allocation2 + $0x270]]
        %v4350 = vstv %s4349
        %v4351 = vmul.f32 %v4350, %v3243
        %4353 = vrot.lane.b32.xlu0 %v4351, 126
        %v4354 = vpop.permute.xlu0 %4353
        %v4356 = vadd.f32 %v4212, %v4354
        %s4357 = sld [smem:[#allocation2 + $0x271]]
        %v4358 = vstv %s4357
        %v4359 = vmul.f32 %v4358, %v3243
        %4361 = vrot.lane.b32.xlu0 %v4359, 126
        %v4362 = vpop.permute.xlu0 %4361
        %v4364 = vadd.f32 %v4220, %v4362
        %s4365 = sld [smem:[#allocation2 + $0x272]]
        %v4366 = vstv %s4365
        %v4367 = vmul.f32 %v4366, %v3243
        %4369 = vrot.lane.b32.xlu0 %v4367, 126
        %v4370 = vpop.permute.xlu0 %4369
        %v4372 = vadd.f32 %v4228, %v4370
        %s4373 = sld [smem:[#allocation2 + $0x273]]
        %v4374 = vstv %s4373
        %v4375 = vmul.f32 %v4374, %v3243
        %4377 = vrot.lane.b32.xlu0 %v4375, 126
        %v4378 = vpop.permute.xlu0 %4377
        %v4380 = vadd.f32 %v4236, %v4378
        %s4381 = sld [smem:[#allocation2 + $0x274]]
        %v4382 = vstv %s4381
        %v4383 = vmul.f32 %v4382, %v3243
        %4385 = vrot.lane.b32.xlu0 %v4383, 126
        %v4386 = vpop.permute.xlu0 %4385
        %v4388 = vadd.f32 %v4244, %v4386
        %s4389 = sld [smem:[#allocation2 + $0x275]]
        %v4390 = vstv %s4389
        %v4391 = vmul.f32 %v4390, %v3243
        %4393 = vrot.lane.b32.xlu0 %v4391, 126
        %v4394 = vpop.permute.xlu0 %4393
        %v4396 = vadd.f32 %v4252, %v4394
        %s4397 = sld [smem:[#allocation2 + $0x276]]
        %v4398 = vstv %s4397
        %v4399 = vmul.f32 %v4398, %v3316
        %4401 = vrot.lane.b32.xlu0 %v4399, 126
        %v4402 = vpop.permute.xlu0 %4401
        %v4404 = vadd.f32 %v4260, %v4402
        %s4405 = sld [smem:[#allocation2 + $0x277]]
        %v4406 = vstv %s4405
        %v4407 = vmul.f32 %v4406, %v3316
        %4409 = vrot.lane.b32.xlu0 %v4407, 126
        %v4410 = vpop.permute.xlu0 %4409
        %v4412 = vadd.f32 %v4268, %v4410
        %s4413 = sld [smem:[#allocation2 + $0x278]]
        %v4414 = vstv %s4413
        %v4415 = vmul.f32 %v4414, %v3316
        %4417 = vrot.lane.b32.xlu0 %v4415, 126
        %v4418 = vpop.permute.xlu0 %4417
        %v4420 = vadd.f32 %v4276, %v4418
        %s4421 = sld [smem:[#allocation2 + $0x279]]
        %v4422 = vstv %s4421
        %v4423 = vmul.f32 %v4422, %v3316
        %4425 = vrot.lane.b32.xlu0 %v4423, 126
        %v4426 = vpop.permute.xlu0 %4425
        %v4428 = vadd.f32 %v4284, %v4426
        %s4429 = sld [smem:[#allocation2 + $0x27a]]
        %v4430 = vstv %s4429
        %v4431 = vmul.f32 %v4430, %v3316
        %4433 = vrot.lane.b32.xlu0 %v4431, 126
        %v4434 = vpop.permute.xlu0 %4433
        %v4436 = vadd.f32 %v4292, %v4434
        %s4437 = sld [smem:[#allocation2 + $0x27b]]
        %v4438 = vstv %s4437
        %v4439 = vmul.f32 %v4438, %v3316
        %4441 = vrot.lane.b32.xlu0 %v4439, 126
        %v4442 = vpop.permute.xlu0 %4441
        %v4444 = vadd.f32 %v4300, %v4442
        %s4445 = sld [smem:[#allocation2 + $0x27c]]
        %v4446 = vstv %s4445
        %v4447 = vmul.f32 %v4446, %v3316
        %4449 = vrot.lane.b32.xlu0 %v4447, 126
        %v4450 = vpop.permute.xlu0 %4449
        %v4452 = vadd.f32 %v4308, %v4450
        %s4453 = sld [smem:[#allocation2 + $0x27d]]
        %v4454 = vstv %s4453
        %v4455 = vmul.f32 %v4454, %v3316
        %4457 = vrot.lane.b32.xlu0 %v4455, 126
        %v4458 = vpop.permute.xlu0 %4457
        %v4460 = vadd.f32 %v4316, %v4458
        %s4461 = sld [smem:[#allocation2 + $0x27e]]
        %v4462 = vstv %s4461
        %v4463 = vmul.f32 %v4462, %v3316
        %4465 = vrot.lane.b32.xlu0 %v4463, 126
        %v4466 = vpop.permute.xlu0 %4465
        %v4468 = vadd.f32 %v4324, %v4466
        %s4469 = sld [smem:[#allocation2 + $0x27f]]
        %v4470 = vstv %s4469
        %v4471 = vmul.f32 %v4470, %v3316
        %4473 = vrot.lane.b32.xlu0 %v4471, 126
        %v4474 = vpop.permute.xlu0 %4473
        %v4476 = vadd.f32 %v4332, %v4474
        %s4477 = sld [smem:[#allocation2 + $0x280]]
        %v4478 = vstv %s4477
        %v4479 = vmul.f32 %v4478, %v3316
        %4481 = vrot.lane.b32.xlu0 %v4479, 126
        %v4482 = vpop.permute.xlu0 %4481
        %v4484 = vadd.f32 %v4340, %v4482
        %s4485 = sld [smem:[#allocation2 + $0x281]]
        %v4486 = vstv %s4485
        %v4487 = vmul.f32 %v4486, %v3316
        %4489 = vrot.lane.b32.xlu0 %v4487, 126
        %v4490 = vpop.permute.xlu0 %4489
        %v4492 = vadd.f32 %v4348, %v4490
        %s4493 = sld [smem:[#allocation2 + $0x282]]
        %v4494 = vstv %s4493
        %v4495 = vmul.f32 %v4494, %v3316
        %4497 = vrot.lane.b32.xlu0 %v4495, 126
        %v4498 = vpop.permute.xlu0 %4497
        %v4500 = vadd.f32 %v4356, %v4498
        %s4501 = sld [smem:[#allocation2 + $0x283]]
        %v4502 = vstv %s4501
        %v4503 = vmul.f32 %v4502, %v3316
        %4505 = vrot.lane.b32.xlu0 %v4503, 126
        %v4506 = vpop.permute.xlu0 %4505
        %v4508 = vadd.f32 %v4364, %v4506
        %s4509 = sld [smem:[#allocation2 + $0x284]]
        %v4510 = vstv %s4509
        %v4511 = vmul.f32 %v4510, %v3316
        %4513 = vrot.lane.b32.xlu0 %v4511, 126
        %v4514 = vpop.permute.xlu0 %4513
        %v4516 = vadd.f32 %v4372, %v4514
        %s4517 = sld [smem:[#allocation2 + $0x285]]
        %v4518 = vstv %s4517
        %v4519 = vmul.f32 %v4518, %v3316
        %4521 = vrot.lane.b32.xlu0 %v4519, 126
        %v4522 = vpop.permute.xlu0 %4521
        %v4524 = vadd.f32 %v4380, %v4522
        %s4525 = sld [smem:[#allocation2 + $0x286]]
        %v4526 = vstv %s4525
        %v4527 = vmul.f32 %v4526, %v3316
        %4529 = vrot.lane.b32.xlu0 %v4527, 126
        %v4530 = vpop.permute.xlu0 %4529
        %v4532 = vadd.f32 %v4388, %v4530
        %s4533 = sld [smem:[#allocation2 + $0x287]]
        %v4534 = vstv %s4533
        %v4535 = vmul.f32 %v4534, %v3316
        %4537 = vrot.lane.b32.xlu0 %v4535, 126
        %v4538 = vpop.permute.xlu0 %4537
        %v4540 = vadd.f32 %v4396, %v4538
        %s4541 = sld [smem:[#allocation5]]
        %v4542 = vstv %s4541
        %v4543 = vadd.f32 %v4404, %v4542
        %s4544 = sld [smem:[#allocation5 + $0x1]]
        %v4545 = vstv %s4544
        %v4546 = vadd.f32 %v4412, %v4545
        %s4547 = sld [smem:[#allocation5 + $0x2]]
        %v4548 = vstv %s4547
        %v4549 = vadd.f32 %v4420, %v4548
        %s4550 = sld [smem:[#allocation5 + $0x3]]
        %v4551 = vstv %s4550
        %v4552 = vadd.f32 %v4428, %v4551
        %s4553 = sld [smem:[#allocation5 + $0x4]]
        %v4554 = vstv %s4553
        %v4555 = vadd.f32 %v4436, %v4554
        %s4556 = sld [smem:[#allocation5 + $0x5]]
        %v4557 = vstv %s4556
        %v4558 = vadd.f32 %v4444, %v4557
        %s4559 = sld [smem:[#allocation5 + $0x6]]
        %v4560 = vstv %s4559
        %v4561 = vadd.f32 %v4452, %v4560
        %s4562 = sld [smem:[#allocation5 + $0x7]]
        %v4563 = vstv %s4562
        %v4564 = vadd.f32 %v4460, %v4563
        %s4565 = sld [smem:[#allocation5 + $0x8]]
        %v4566 = vstv %s4565
        %v4567 = vadd.f32 %v4468, %v4566
        %s4568 = sld [smem:[#allocation5 + $0x9]]
        %v4569 = vstv %s4568
        %v4570 = vadd.f32 %v4476, %v4569
        %s4571 = sld [smem:[#allocation5 + $0xa]]
        %v4572 = vstv %s4571
        %v4573 = vadd.f32 %v4484, %v4572
        %s4574 = sld [smem:[#allocation5 + $0xb]]
        %v4575 = vstv %s4574
        %v4576 = vadd.f32 %v4492, %v4575
        %s4577 = sld [smem:[#allocation5 + $0xc]]
        %v4578 = vstv %s4577
        %v4579 = vadd.f32 %v4500, %v4578
        %s4580 = sld [smem:[#allocation5 + $0xd]]
        %v4581 = vstv %s4580
        %v4582 = vadd.f32 %v4508, %v4581
        %s4583 = sld [smem:[#allocation5 + $0xe]]
        %v4584 = vstv %s4583
        %v4585 = vadd.f32 %v4516, %v4584
        %s4586 = sld [smem:[#allocation5 + $0xf]]
        %v4587 = vstv %s4586
        %v4588 = vadd.f32 %v4524, %v4587
        %s4589 = sld [smem:[#allocation5 + $0x10]]
        %v4590 = vstv %s4589
        %v4591 = vadd.f32 %v4532, %v4590
        %s4592 = sld [smem:[#allocation5 + $0x11]]
        %v4593 = vstv %s4592
        %v4594 = vadd.f32 %v4540, %v4593
        %v4595 = vmax.f32 %v4543, %v4546
        %v4596 = vmax.f32 %v4595, %v4549
        %v4597 = vmax.f32 %v4596, %v4552
        %v4598 = vmax.f32 %v4597, %v4555
        %v4599 = vmax.f32 %v4598, %v4558
        %v4600 = vmax.f32 %v4599, %v4561
        %v4601 = vmax.f32 %v4600, %v4564
        %v4602 = vmax.f32 %v4601, %v4567
        %v4603 = vmax.f32 %v4602, %v4570
        %v4604 = vmax.f32 %v4603, %v4573
        %v4605 = vmax.f32 %v4604, %v4576
        %v4606 = vmax.f32 %v4605, %v4579
        %v4607 = vmax.f32 %v4606, %v4582
        %v4608 = vmax.f32 %v4607, %v4585
        %v4609 = vmax.f32 %v4608, %v4588
        %v4610 = vmax.f32 %v4609, %v4591
        %v4611 = vmax.f32 %v4610, %v4594
        %v4612 = vsub.f32 %v4543, %v4611
        %v4613 = vmul.f32 %v4612, 1.442695
        %v4614 = vpow.pop %v4613
        %v4615 = vsub.f32 %v4546, %v4611
        %v4616 = vmul.f32 %v4615, 1.442695
        %v4617 = vpow.pop %v4616
        %v4618 = vsub.f32 %v4549, %v4611
        %v4619 = vmul.f32 %v4618, 1.442695
        %v4620 = vpow.pop %v4619
        %v4621 = vsub.f32 %v4552, %v4611
        %v4622 = vmul.f32 %v4621, 1.442695
        %v4623 = vpow.pop %v4622
        %v4624 = vsub.f32 %v4555, %v4611
        %v4625 = vmul.f32 %v4624, 1.442695
        %v4626 = vpow.pop %v4625
        %v4627 = vsub.f32 %v4558, %v4611
        %v4628 = vmul.f32 %v4627, 1.442695
        %v4629 = vpow.pop %v4628
        %v4630 = vsub.f32 %v4561, %v4611
        %v4631 = vmul.f32 %v4630, 1.442695
        %v4632 = vpow.pop %v4631
        %v4633 = vsub.f32 %v4564, %v4611
        %v4634 = vmul.f32 %v4633, 1.442695
        %v4635 = vpow.pop %v4634
        %v4636 = vsub.f32 %v4567, %v4611
        %v4637 = vmul.f32 %v4636, 1.442695
        %v4638 = vpow.pop %v4637
        %v4639 = vsub.f32 %v4570, %v4611
        %v4640 = vmul.f32 %v4639, 1.442695
        %v4641 = vpow.pop %v4640
        %v4642 = vsub.f32 %v4573, %v4611
        %v4643 = vmul.f32 %v4642, 1.442695
        %v4644 = vpow.pop %v4643
        %v4645 = vsub.f32 %v4576, %v4611
        %v4646 = vmul.f32 %v4645, 1.442695
        %v4647 = vpow.pop %v4646
        %v4648 = vsub.f32 %v4579, %v4611
        %v4649 = vmul.f32 %v4648, 1.442695
        %v4650 = vpow.pop %v4649
        %v4651 = vsub.f32 %v4582, %v4611
        %v4652 = vmul.f32 %v4651, 1.442695
        %v4653 = vpow.pop %v4652
        %v4654 = vsub.f32 %v4585, %v4611
        %v4655 = vmul.f32 %v4654, 1.442695
        %v4656 = vpow.pop %v4655
        %v4657 = vsub.f32 %v4588, %v4611
        %v4658 = vmul.f32 %v4657, 1.442695
        %v4659 = vpow.pop %v4658
        %v4660 = vsub.f32 %v4591, %v4611
        %v4661 = vmul.f32 %v4660, 1.442695
        %v4662 = vpow.pop %v4661
        %v4663 = vsub.f32 %v4594, %v4611
        %v4664 = vmul.f32 %v4663, 1.442695
        %v4665 = vpow.pop %v4664
        %v4666 = vadd.f32 %v4614, %v4617
        %v4667 = vadd.f32 %v4666, %v4620
        %v4668 = vadd.f32 %v4667, %v4623
        %v4669 = vadd.f32 %v4668, %v4626
        %v4670 = vadd.f32 %v4669, %v4629
        %v4671 = vadd.f32 %v4670, %v4632
        %v4672 = vadd.f32 %v4671, %v4635
        %v4673 = vadd.f32 %v4672, %v4638
        %v4674 = vadd.f32 %v4673, %v4641
        %v4675 = vadd.f32 %v4674, %v4644
        %v4676 = vadd.f32 %v4675, %v4647
        %v4677 = vadd.f32 %v4676, %v4650
        %v4678 = vadd.f32 %v4677, %v4653
        %v4679 = vadd.f32 %v4678, %v4656
        %v4680 = vadd.f32 %v4679, %v4659
        %v4681 = vadd.f32 %v4680, %v4662
        %v4682 = vadd.f32 %v4681, %v4665
        %v4683 = vrcp.pop %v4682
        %v4684 = vmul.f32 1.0, %v4683
        %v4685 = vmul.f32 %v4614, %v224
        %4687 = vrot.lane.b32.xlu0 %v224, 127
        %v4688 = vpop.permute.xlu0 %4687
        %v4690 = vmul.f32 %v4617, %v4688
        %v4691 = vadd.f32 %v4685, %v4690
        %4692 = vrot.lane.b32.xlu0 %v224, 126
        %v4693 = vpop.permute.xlu0 %4692
        %v4695 = vmul.f32 %v4620, %v4693
        %v4696 = vadd.f32 %v4691, %v4695
        %v4697 = vmul.f32 %v4623, %v1653
        %v4698 = vadd.f32 %v4696, %v4697
        %4700 = vrot.lane.b32.xlu0 %v1653, 127
        %v4701 = vpop.permute.xlu0 %4700
        %v4703 = vmul.f32 %v4626, %v4701
        %v4704 = vadd.f32 %v4698, %v4703
        %4705 = vrot.lane.b32.xlu0 %v1653, 126
        %v4706 = vpop.permute.xlu0 %4705
        %v4708 = vmul.f32 %v4629, %v4706
        %v4709 = vadd.f32 %v4704, %v4708
        %v4710 = vmul.f32 %v4632, %v3097
        %v4711 = vadd.f32 %v4709, %v4710
        %4713 = vrot.lane.b32.xlu0 %v3097, 127
        %v4714 = vpop.permute.xlu0 %4713
        %v4716 = vmul.f32 %v4635, %v4714
        %v4717 = vadd.f32 %v4711, %v4716
        %4718 = vrot.lane.b32.xlu0 %v3097, 126
        %v4719 = vpop.permute.xlu0 %4718
        %v4721 = vmul.f32 %v4638, %v4719
        %v4722 = vadd.f32 %v4717, %v4721
        %v4723 = vmul.f32 %v4722, %v4684
        %vm4724 = vcmask 130048
        %4725 = vst.msk [vmem:[%s214] sm:$0xff] %vm4724, %v4723
        %v4726 = vld [vmem:[%s279] sm:$0xff]
        %v4727 = vmul.f32 %v4614, %v4726
        %4729 = vrot.lane.b32.xlu0 %v4726, 127
        %v4730 = vpop.permute.xlu0 %4729
        %v4732 = vmul.f32 %v4617, %v4730
        %v4733 = vadd.f32 %v4727, %v4732
        %4734 = vrot.lane.b32.xlu0 %v4726, 126
        %v4735 = vpop.permute.xlu0 %4734
        %v4737 = vmul.f32 %v4620, %v4735
        %v4738 = vadd.f32 %v4733, %v4737
        %v4739 = vld [vmem:[%s279 + $0x1] sm:$0xff]
        %v4740 = vmul.f32 %v4623, %v4739
        %v4741 = vadd.f32 %v4738, %v4740
        %4743 = vrot.lane.b32.xlu0 %v4739, 127
        %v4744 = vpop.permute.xlu0 %4743
        %v4746 = vmul.f32 %v4626, %v4744
        %v4747 = vadd.f32 %v4741, %v4746
        %4748 = vrot.lane.b32.xlu0 %v4739, 126
        %v4749 = vpop.permute.xlu0 %4748
        %v4751 = vmul.f32 %v4629, %v4749
        %v4752 = vadd.f32 %v4747, %v4751
        %v4753 = vld [vmem:[%s279 + $0x2] sm:$0xff]
        %v4754 = vmul.f32 %v4632, %v4753
        %v4755 = vadd.f32 %v4752, %v4754
        %4757 = vrot.lane.b32.xlu0 %v4753, 127
        %v4758 = vpop.permute.xlu0 %4757
        %v4760 = vmul.f32 %v4635, %v4758
        %v4761 = vadd.f32 %v4755, %v4760
        %4762 = vrot.lane.b32.xlu0 %v4753, 126
        %v4763 = vpop.permute.xlu0 %4762
        %v4765 = vmul.f32 %v4638, %v4763
        %v4766 = vadd.f32 %v4761, %v4765
        %v4767 = vmul.f32 %v4766, %v4684
        %s4768 = scalar_lea.vmem %s214, 8 [#allocation7]
        %4769 = vst.msk [vmem:[%s4768] sm:$0xff] %vm4724, %v4767
        %v4770 = vld [vmem:[%s353] sm:$0xff]
        %v4771 = vmul.f32 %v4641, %v4770
        %4773 = vrot.lane.b32.xlu0 %v4770, 127
        %v4774 = vpop.permute.xlu0 %4773
        %v4776 = vmul.f32 %v4644, %v4774
        %v4777 = vadd.f32 %v4771, %v4776
        %4778 = vrot.lane.b32.xlu0 %v4770, 126
        %v4779 = vpop.permute.xlu0 %4778
        %v4781 = vmul.f32 %v4647, %v4779
        %v4782 = vadd.f32 %v4777, %v4781
        %v4783 = vld [vmem:[%s353 + $0x1] sm:$0xff]
        %v4784 = vmul.f32 %v4650, %v4783
        %v4785 = vadd.f32 %v4782, %v4784
        %4787 = vrot.lane.b32.xlu0 %v4783, 127
        %v4788 = vpop.permute.xlu0 %4787
        %v4790 = vmul.f32 %v4653, %v4788
        %v4791 = vadd.f32 %v4785, %v4790
        %4792 = vrot.lane.b32.xlu0 %v4783, 126
        %v4793 = vpop.permute.xlu0 %4792
        %v4795 = vmul.f32 %v4656, %v4793
        %v4796 = vadd.f32 %v4791, %v4795
        %v4797 = vld [vmem:[%s353 + $0x2] sm:$0xff]
        %v4798 = vmul.f32 %v4659, %v4797
        %v4799 = vadd.f32 %v4796, %v4798
        %4801 = vrot.lane.b32.xlu0 %v4797, 127
        %v4802 = vpop.permute.xlu0 %4801
        %v4804 = vmul.f32 %v4662, %v4802
        %v4805 = vadd.f32 %v4799, %v4804
        %4806 = vrot.lane.b32.xlu0 %v4797, 126
        %v4807 = vpop.permute.xlu0 %4806
        %v4809 = vmul.f32 %v4665, %v4807
        %v4810 = vadd.f32 %v4805, %v4809
        %v4811 = vmul.f32 %v4810, %v4684
        %s4812 = scalar_lea.vmem %s214, 16 [#allocation7]
        %4813 = vst.msk [vmem:[%s4812] sm:$0xff] %vm4724, %v4811
        %v4814 = vld [vmem:[%s427] sm:$0xff]
        %v4815 = vmul.f32 %v4641, %v4814
        %4817 = vrot.lane.b32.xlu0 %v4814, 127
        %v4818 = vpop.permute.xlu0 %4817
        %v4820 = vmul.f32 %v4644, %v4818
        %v4821 = vadd.f32 %v4815, %v4820
        %4822 = vrot.lane.b32.xlu0 %v4814, 126
        %v4823 = vpop.permute.xlu0 %4822
        %v4825 = vmul.f32 %v4647, %v4823
        %v4826 = vadd.f32 %v4821, %v4825
        %v4827 = vld [vmem:[%s427 + $0x1] sm:$0xff]
        %v4828 = vmul.f32 %v4650, %v4827
        %v4829 = vadd.f32 %v4826, %v4828
        %4831 = vrot.lane.b32.xlu0 %v4827, 127
        %v4832 = vpop.permute.xlu0 %4831
        %v4834 = vmul.f32 %v4653, %v4832
        %v4835 = vadd.f32 %v4829, %v4834
        %4836 = vrot.lane.b32.xlu0 %v4827, 126
        %v4837 = vpop.permute.xlu0 %4836
        %v4839 = vmul.f32 %v4656, %v4837
        %v4840 = vadd.f32 %v4835, %v4839
        %v4841 = vld [vmem:[%s427 + $0x2] sm:$0xff]
        %v4842 = vmul.f32 %v4659, %v4841
        %v4843 = vadd.f32 %v4840, %v4842
        %4845 = vrot.lane.b32.xlu0 %v4841, 127
        %v4846 = vpop.permute.xlu0 %4845
        %v4848 = vmul.f32 %v4662, %v4846
        %v4849 = vadd.f32 %v4843, %v4848
        %4850 = vrot.lane.b32.xlu0 %v4841, 126
        %v4851 = vpop.permute.xlu0 %4850
        %v4853 = vmul.f32 %v4665, %v4851
        %v4854 = vadd.f32 %v4849, %v4853
        %v4855 = vmul.f32 %v4854, %v4684
        %s4856 = scalar_lea.vmem %s214, 24 [#allocation7]
        %4857 = vst.msk [vmem:[%s4856] sm:$0xff] %vm4724, %v4855
        %s4858 = sand.u32 %s111, 1
        %s4859 = scalar_lea.sflag [#allocation3], %s4858
        %s4860 = sand.u32 %s111, 1
        %s4861 = smul.addr %s4860, 32
        %s4862 = scalar_lea.vmem [#allocation7], %s4861
        // Predicated region
        $region41: #{tpu_custom_call.1} parent=31 // pred_check
          %p4863 = pneg %p121
        $region42: #{tpu_custom_call.1} parent=31 // pred_check_branch
          %4865 = sbr.rel (%p4863) target = $region44
        $region43: #{tpu_custom_call.1} parent=31 // pred_region
          %s4867 = ssub.s32 512, 512
          %4868 = vsyncadd %s4859, %s4867
          %s4869 = smul.addr %s23, 8
          %s4870 = sadd.s32 %s24, %s4869
          %s4871 = smul.addr %s4870, 128
          %s4872 = scalar_lea.hbm %s3, %s4871
          %s4873 = sshll.u32 %s4862, 4
          %s4874 = int_to_ptr.vmem [resolvable:$true] %s4873
          %4879 = dma.vmem_to_hbm [thread:$0]  %s4874, 512, %s4872, %s4859, 128, 256, 8
        $region44: #{tpu_custom_call.1} parent=31 // pred_fallthru
          _
      $region32: #{tpu_custom_call.1} parent=5 // pred_fallthru
        _
      %p4880 = scmp.le.s32.totalorder 2, %s14
      // Predicated region
      $region45: #{tpu_custom_call.1} parent=5 // pred_check
        %p4881 = pneg %p4880
      $region46: #{tpu_custom_call.1} parent=5 // pred_check_branch
        %4883 = sbr.rel (%p4881) target = $region48
      $region47: #{tpu_custom_call.1} parent=5 // pred_region
        %s4884 = ssub.s32 %s14, 2
        // Predicated region
        $region49: #{tpu_custom_call.1} parent=47 // pred_check
          %p4885 = pneg %p127
        $region50: #{tpu_custom_call.1} parent=47 // pred_check_branch
          %4887 = sbr.rel (%p4885) target = $region52
        $region51: #{tpu_custom_call.1} parent=47 // pred_region
          %s4888 = sand.u32 %s112, 1
          %s4889 = scalar_lea.sflag [#allocation3], %s4888
          %s4890 = sand.u32 %s112, 1
          %s4891 = smul.addr %s4890, 32
          %s4892 = scalar_lea.vmem [#allocation7], %s4891
          %4893 = dma.done %s4889, 512
        $region52: #{tpu_custom_call.1} parent=47 // pred_fallthru
          _
      $region48: #{tpu_custom_call.1} parent=5 // pred_fallthru
        _
    $region6: #{tpu_custom_call.1} parent=1 // loop_footer
      %s18 = sadd.s32 1, %s14
    $region7: #{tpu_custom_call.1} parent=1 // loop_footer_branch
      %13 = sbr.rel target = $region3
    $region8: #{tpu_custom_call.1} parent=1 // loop_exit
      _
    %4894 = vsyncpa [#allocation3], 1
    %s4895 = scalar_lea.sflag [#allocation3], 1
    %4896 = vsyncpa %s4895, 1
    %4897 = vsyncpa [#allocation4], 1
    %s4898 = scalar_lea.sflag [#allocation4], 1
    %4899 = vsyncpa %s4898, 1
    %4900 = vsyncpa [#allocation6], 1

</llo_original>
